<compile_context>
chip_gen: v7x
topology: tpu7x:2x2x1
jax: 0.10.0
libtpu: 0.0.40
codegen_flags: <defaults>
</compile_context>

<pallas_src>
import math
import numpy as np

import jax
import jax.numpy as jnp
from jax.experimental import pallas as pl
from jax.experimental.pallas import tpu as pltpu

# --------------------------------------------------------------------------
# configuration (small, consistent with the module's constructor)
# --------------------------------------------------------------------------
WIDTH = 32          # token embedding dim ("width")
LAYERS = 4          # number of Swin blocks ("layers")
CHANNELS_FT = 16    # "channels_finetune" (channel code dimension)
ADAPTER_DIM = 8     # adapter bottleneck dim
NUM_HEADS = 4
WINDOW = 4
MLP_RATIO = 4
RMS_EPS = 1.1920929e-07   # torch.nn.RMSNorm(eps=None) -> finfo(float32).eps
NEG = -1e9                # "not allowed to attend" additive value


# --------------------------------------------------------------------------
# host-side constant construction (runs once, outside jit)
# --------------------------------------------------------------------------
def relative_position_index(wsz):
    coords = np.stack(np.meshgrid(np.arange(wsz), np.arange(wsz), indexing="ij"))
    flat = coords.reshape(2, -1)
    rel = (flat[:, :, None] - flat[:, None, :]).transpose(1, 2, 0).astype(np.int64)
    rel[:, :, 0] += wsz - 1
    rel[:, :, 1] += wsz - 1
    rel[:, :, 0] *= 2 * wsz - 1
    return rel.sum(-1)                                        # (L, L)


def make_swin_attn_mask(H, W, wsz, shift):
    """Standard Swin SW-MSA region mask, (num_windows, L, L) with 0 / -100."""
    nw = (H // wsz) * (W // wsz)
    L = wsz * wsz
    if shift == 0:
        return np.zeros((nw, L, L), np.float32)
    img = np.zeros((1, H, W, 1), np.float32)
    cnt = 0
    for hs in (slice(0, -wsz), slice(-wsz, -shift), slice(-shift, None)):
        for wsl in (slice(0, -wsz), slice(-wsz, -shift), slice(-shift, None)):
            img[:, hs, wsl, :] = cnt
            cnt += 1
    mw = img.reshape(1, H // wsz, wsz, W // wsz, wsz, 1)
    mw = mw.transpose(0, 1, 3, 2, 4, 5).reshape(-1, L)
    am = mw[:, None, :] - mw[:, :, None]
    return np.where(am != 0, -100.0, 0.0).astype(np.float32)


def build_attn_bias(rel_bias, H, W, wsz, shift):
    """Fold cyclic shift + window partition + rel-pos bias + SW-MSA mask +
    cross-window exclusion into one per-head (nh, N, N) constant, shared by
    every batch element.

    Tokens i, j attend iff they fall into the same window of the *shifted*
    image; allowed pairs get rel_bias + region_mask (0 or -100), disallowed
    pairs get NEG (-1e9), which underflows to exactly 0 after softmax
    -> identical math to the per-window formulation."""
    nh, L, _ = rel_bias.shape
    N = H * W
    nw_w = W // wsz

    widx = np.zeros((N,), np.int32)   # window index in the shifted frame
    lidx = np.zeros((N,), np.int32)   # within-window flat index in the shifted frame
    for h in range(H):
        for w in range(W):
            hs = (h - shift) % H
            wc = (w - shift) % W
            p = h * W + w
            widx[p] = (hs // wsz) * nw_w + (wc // wsz)
            lidx[p] = (hs % wsz) * wsz + (wc % wsz)

    mask_nw = make_swin_attn_mask(H, W, wsz, shift)           # (nw, L, L)
    same = widx[:, None] == widx[None, :]                     # (N, N)
    reg = mask_nw[widx[:, None], lidx[:, None], lidx[None, :]]

    M = np.empty((nh, N, N), np.float32)
    for hh in range(nh):
        bias = rel_bias[hh][lidx[:, None], lidx[None, :]]
        M[hh] = np.where(same, bias + reg, NEG)
    return M


def init_params(key, H, W):
    def nrm(k, shape, s=0.02):
        return s * jax.random.normal(k, shape, jnp.float32)

    C, A, CF = WIDTH, ADAPTER_DIM, CHANNELS_FT
    hidden = MLP_RATIO * C
    hd_scale = (C // NUM_HEADS) ** -0.5
    keys = jax.random.split(key, 2 + LAYERS)
    rel_idx = relative_position_index(WINDOW)

    wqkv, wproj, w1, w2, wd, wu, gate_w, bm = [], [], [], [], [], [], [], []
    for i in range(LAYERS):
        bk = jax.random.split(keys[2 + i], 8)
        shift = 0 if i % 2 == 0 else WINDOW // 2
        table = np.asarray(nrm(bk[0], ((2 * WINDOW - 1) ** 2, NUM_HEADS)))
        rel_bias = np.transpose(table[rel_idx], (2, 0, 1))    # (nh, L, L)
        bm.append(build_attn_bias(rel_bias, H, W, WINDOW, shift))
        # fold 1/sqrt(head_dim) into the Q columns (bqkv is zero, so no fold
        # needed there; if it were nonzero its Q slice would be scaled too).
        wq = nrm(bk[1], (C, 3 * C))
        wqkv.append(wq.at[:, :C].multiply(hd_scale))
        wproj.append(nrm(bk[2], (C, C)))
        w1.append(nrm(bk[3], (C, hidden)))
        w2.append(nrm(bk[4], (hidden, C)))
        wd.append(nrm(bk[5], (C, A)))
        wu.append(nrm(bk[6], (A, C)))
        gate_w.append(nrm(bk[7], ()))

    Ls = LAYERS
    bf16 = jnp.bfloat16
    return dict(
        ln_pre=jnp.ones((1, C), jnp.float32),
        ln_post=jnp.ones((1, C), jnp.float32),
        enc_w=nrm(keys[0], (C, CF)).astype(bf16),
        enc_b=jnp.zeros((1, CF), jnp.float32),
        dec_w=nrm(keys[1], (CF, C)).astype(bf16),
        dec_b=jnp.zeros((1, C), jnp.float32),
        n1=jnp.ones((Ls, 1, C), jnp.float32),
        n2=jnp.ones((Ls, 1, C), jnp.float32),
        wqkv=jnp.stack(wqkv).astype(bf16),
        bqkv=jnp.zeros((Ls, 1, 3 * C), jnp.float32),
        wproj=jnp.stack(wproj).astype(bf16),
        bproj=jnp.zeros((Ls, 1, C), jnp.float32),
        bm=jnp.asarray(np.stack(bm)).astype(bf16),            # (Ls, nh, N, N) bf16
        w1=jnp.stack(w1).astype(bf16),
        b1=jnp.zeros((Ls, 1, hidden), jnp.float32),
        w2=jnp.stack(w2).astype(bf16),
        b2=jnp.zeros((Ls, 1, C), jnp.float32),
        wd=jnp.stack(wd).astype(bf16),
        bd=jnp.zeros((Ls, 1, A), jnp.float32),
        wu=jnp.stack(wu).astype(bf16),
        bu=jnp.zeros((Ls, 1, C), jnp.float32),
        gate_w=jnp.stack(gate_w), gate_b=jnp.zeros((Ls,), jnp.float32),
    )


# --------------------------------------------------------------------------
# the fused Pallas kernel: one grid step == one Swin layer
# --------------------------------------------------------------------------
def wipo_kernel(scalars_ref, x_ref, noise_ref,
                ln_pre_ref, ln_post_ref,
                enc_w_ref, enc_b_ref, dec_w_ref, dec_b_ref,
                n1_ref, n2_ref, wqkv_ref, bqkv_ref, wproj_ref, bproj_ref, bm_ref,
                w1_ref, b1_ref, w2_ref, b2_ref, wd_ref, bd_ref, wu_ref, bu_ref,
                out_ref, true_ref, recon_ref,
                x_vmem, attn_vmem):
    i = pl.program_id(0)
    BN, C = x_ref.shape
    nh, N, _ = bm_ref.shape
    B = BN // N
    hd = C // nh
    f32 = jnp.float32
    bf16 = jnp.bfloat16

    def rms(v, w):
        ms = jnp.mean(v * v, axis=-1, keepdims=True)
        return v * jax.lax.rsqrt(ms + RMS_EPS) * w

    def bdot(a, b):   # bf16 MXU operands, f32 accumulation
        return jnp.dot(a.astype(bf16), b, preferred_element_type=f32)

    # ---------------- ln_pre on the first grid step -------------------------
    @pl.when(i == 0)
    def _():
        x_vmem[...] = rms(x_ref[...].astype(f32), ln_pre_ref[...])

    # ------ encoder -> AWGN channel -> decoder, just before layer L/2 -------
    @pl.when(i == LAYERS // 2)
    def _():
        xc = x_vmem[...]
        true_ref[...] = xc.astype(true_ref.dtype)
        # TODO(synk): Channel(chan_type=1) source not provided; WITT-style AWGN
        # with global average-power scaling assumed.
        z = bdot(xc, enc_w_ref[...]) + enc_b_ref[...]
        pwr = jnp.mean(z * z)
        z = z + noise_ref[...].astype(f32) * (jnp.sqrt(2.0 * pwr) * scalars_ref[0])
        xr = bdot(z, dec_w_ref[...]) + dec_b_ref[...]
        recon_ref[...] = xr.astype(recon_ref.dtype)
        x_vmem[...] = xr

    # ---------------- Swin block for layer i --------------------------------
    # TODO(synk): SwinTransformerBlockSnrAdapter source not provided; standard
    # Swin (S)W-MSA block + sigmoid(snr)-gated bottleneck adapter assumed.
    x = x_vmem[...]

    # --- (shifted-)window MHSA: shift / window partition / region mask /
    #     rel-pos bias are all folded into the per-batch-shared bm constant ---
    shortcut = x
    h = rms(x, n1_ref[...])
    # 1/sqrt(head_dim) is folded into the Q columns of wqkv host-side.
    qkv = bdot(h, wqkv_ref[...]) + bqkv_ref[...]              # (BN, 3C) f32
    for hh in range(NUM_HEADS):                               # static unroll
        q = qkv[:, hh * hd:(hh + 1) * hd].reshape(B, N, hd)
        k = qkv[:, C + hh * hd:C + (hh + 1) * hd].reshape(B, N, hd)
        v = qkv[:, 2 * C + hh * hd:2 * C + (hh + 1) * hd].reshape(B, N, hd)
        s = jnp.einsum('bnd,bmd->bnm', q.astype(bf16), k.astype(bf16),
                       preferred_element_type=f32)            # (B, N, N)
        s = s + bm_ref[hh].astype(f32)[None]                  # bf16 bias, upcast
        # hand-rolled softmax: divide goes to the EUP via approx reciprocal
        m = jnp.max(s, axis=-1, keepdims=True)
        e = jnp.exp(s - m)
        p = e * pl.reciprocal(jnp.sum(e, axis=-1, keepdims=True), approx=True)
        oh = jnp.einsum('bnm,bmd->bnd', p.astype(bf16), v.astype(bf16),
                        preferred_element_type=f32)           # (B, N, hd)
        attn_vmem[:, hh * hd:(hh + 1) * hd] = oh.reshape(BN, hd)
    # single fused output projection over all heads
    attn = bdot(attn_vmem[...], wproj_ref[...]) + bproj_ref[...]
    x = shortcut + attn

    # --- MLP + SNR-gated bottleneck adapter ---
    shortcut = x
    hn = rms(x, n2_ref[...])
    hid = bdot(hn, w1_ref[...]) + b1_ref[...]
    # TODO(synk): tanh-approx GELU; torch exact-erf GELU differs by ~1e-3.
    hid = jax.nn.gelu(hid, approximate=True)
    mlp_out = bdot(hid, w2_ref[...]) + b2_ref[...]
    a = bdot(hn, wd_ref[...]) + bd_ref[...]
    a = jax.nn.gelu(a, approximate=True)
    a = bdot(a, wu_ref[...]) + bu_ref[...]
    gate = scalars_ref[1 + i]                   # sigmoid(snr)-gate from SMEM
    x = shortcut + mlp_out + gate * a
    x_vmem[...] = x

    # ---------------- ln_post + output on the last grid step ----------------
    @pl.when(i == LAYERS - 1)
    def _():
        out_ref[...] = rms(x, ln_post_ref[...]).astype(out_ref.dtype)


# --------------------------------------------------------------------------
# wrapper
# --------------------------------------------------------------------------
def wipo_forward(params, x, snr, noise):
    # `modality` is unused in the reference forward and omitted here.
    B, N, C = x.shape
    BN = B * N

    # tiny scalar prologue (computed by XLA, passed to the kernel via SMEM)
    # TODO(synk): exact SNR conditioning of the adapter gate is unknown.
    gates = jax.nn.sigmoid(params["gate_w"] * snr + params["gate_b"])     # (LAYERS,)
    sigma = jnp.sqrt(1.0 / (2.0 * jnp.power(10.0, snr / 10.0)))
    scalars = jnp.concatenate([jnp.reshape(sigma, (1,)), gates]).astype(jnp.float32)

    def rep(shape):                       # same (whole) block every grid step
        nd = len(shape)
        return pl.BlockSpec(tuple(shape), lambda i, nd=nd: (0,) * nd)

    def per_layer(shape):                 # leading layer axis indexed by grid step
        nd = len(shape)
        return pl.BlockSpec((None,) + tuple(shape),
                            lambda i, nd=nd: (i,) + (0,) * nd)

    args = (scalars, x.reshape(BN, C), noise,
            params["ln_pre"], params["ln_post"],
            params["enc_w"], params["enc_b"], params["dec_w"], params["dec_b"],
            params["n1"], params["n2"], params["wqkv"], params["bqkv"],
            params["wproj"], params["bproj"], params["bm"],
            params["w1"], params["b1"], params["w2"], params["b2"],
            params["wd"], params["bd"], params["wu"], params["bu"])

    in_specs = ([pl.BlockSpec(memory_space=pltpu.MemorySpace.SMEM),
                 rep((BN, C)), rep(noise.shape),
                 rep(params["ln_pre"].shape), rep(params["ln_post"].shape),
                 rep(params["enc_w"].shape), rep(params["enc_b"].shape),
                 rep(params["dec_w"].shape), rep(params["dec_b"].shape)]
                + [per_layer(params[k].shape[1:]) for k in
                   ("n1", "n2", "wqkv", "bqkv", "wproj", "bproj", "bm",
                    "w1", "b1", "w2", "b2", "wd", "bd", "wu", "bu")])

    out2d, true2d, recon2d = pl.pallas_call(
        wipo_kernel,
        out_shape=(jax.ShapeDtypeStruct((BN, C), x.dtype),
                   jax.ShapeDtypeStruct((BN, C), x.dtype),
                   jax.ShapeDtypeStruct((BN, C), x.dtype)),
        grid=(LAYERS,),
        in_specs=in_specs,
        out_specs=(rep((BN, C)), rep((BN, C)), rep((BN, C))),
        scratch_shapes=[pltpu.VMEM((BN, C), jnp.float32),     # carried activation
                        pltpu.VMEM((BN, C), jnp.float32)],    # head-output staging
        compiler_params=pltpu.CompilerParams(
            dimension_semantics=("arbitrary",),
            vmem_limit_bytes=8 * 1024 * 1024),
    )(*args)

    return (out2d.reshape(B, N, C),
            true2d.reshape(B, N, C),
            recon2d.reshape(B, N, C))


# --------------------------------------------------------------------------
if __name__ == "__main__":
    B, N = 2, 64                      # N = H*W with H = W = 8 (window 4)
    H = W = int(math.isqrt(N))

    key = jax.random.PRNGKey(0)
    kp, kx, kn = jax.random.split(key, 3)
    params = init_params(kp, H, W)
    x = jax.random.normal(kx, (B, N, WIDTH), jnp.float32)
    snr = jnp.float32(10.0)           # SNR in dB
    noise = jax.random.normal(kn, (B * N, CHANNELS_FT), jnp.float32)

    out, true_tok, recon_tok = jax.jit(wipo_forward)(params, x, snr, noise)
    jax.block_until_ready((out, true_tok, recon_tok))
    assert out.shape == (B, N, WIDTH)
    assert true_tok.shape == (B, N, WIDTH) and recon_tok.shape == (B, N, WIDTH)
    assert bool(jnp.isfinite(out).all())
    print("KERNEL_OK")
</pallas_src>

<mosaic_0001>
module attributes {stable_mosaic.version = 11 : i64} {
  func.func @wipo_kernel(%arg0: i32, %arg1: memref<5xf32, #tpu.memory_space<smem>>, %arg2: memref<128x32xf32, #tpu.memory_space<vmem>>, %arg3: memref<128x16xf32, #tpu.memory_space<vmem>>, %arg4: memref<1x32xf32, #tpu.memory_space<vmem>>, %arg5: memref<1x32xf32, #tpu.memory_space<vmem>>, %arg6: memref<32x16xbf16, #tpu.memory_space<vmem>>, %arg7: memref<1x16xf32, #tpu.memory_space<vmem>>, %arg8: memref<16x32xbf16, #tpu.memory_space<vmem>>, %arg9: memref<1x32xf32, #tpu.memory_space<vmem>>, %arg10: memref<1x1x32xf32, #tpu.memory_space<vmem>>, %arg11: memref<1x1x32xf32, #tpu.memory_space<vmem>>, %arg12: memref<1x32x96xbf16, #tpu.memory_space<vmem>>, %arg13: memref<1x1x96xf32, #tpu.memory_space<vmem>>, %arg14: memref<1x32x32xbf16, #tpu.memory_space<vmem>>, %arg15: memref<1x1x32xf32, #tpu.memory_space<vmem>>, %arg16: memref<1x4x64x64xbf16, #tpu.memory_space<vmem>>, %arg17: memref<1x32x128xbf16, #tpu.memory_space<vmem>>, %arg18: memref<1x1x128xf32, #tpu.memory_space<vmem>>, %arg19: memref<1x128x32xbf16, #tpu.memory_space<vmem>>, %arg20: memref<1x1x32xf32, #tpu.memory_space<vmem>>, %arg21: memref<1x32x8xbf16, #tpu.memory_space<vmem>>, %arg22: memref<1x1x8xf32, #tpu.memory_space<vmem>>, %arg23: memref<1x8x32xbf16, #tpu.memory_space<vmem>>, %arg24: memref<1x1x32xf32, #tpu.memory_space<vmem>>, %arg25: memref<128x32xf32, #tpu.memory_space<vmem>>, %arg26: memref<128x32xf32, #tpu.memory_space<vmem>>, %arg27: memref<128x32xf32, #tpu.memory_space<vmem>>, %arg28: memref<128x32xf32, #tpu.memory_space<vmem>>, %arg29: memref<128x32xf32, #tpu.memory_space<vmem>>) attributes {dimension_semantics = [#tpu.dimension_semantics<arbitrary>], iteration_bounds = array<i64: 4>, scalar_prefetch = 0 : i64, scratch_operands = 2 : i64, tpu.core_type = #tpu.core_type<tc>, window_params = [{transform_indices = @transform_0, window_bounds = array<i64: 5>}, {pipeline_mode = #tpu.pipeline_mode<synchronous>, transform_indices = @transform_1, window_bounds = array<i64: 128, 32>}, {pipeline_mode = #tpu.pipeline_mode<synchronous>, transform_indices = @transform_2, window_bounds = array<i64: 128, 16>}, {pipeline_mode = #tpu.pipeline_mode<synchronous>, transform_indices = @transform_3, window_bounds = array<i64: 1, 32>}, {pipeline_mode = #tpu.pipeline_mode<synchronous>, transform_indices = @transform_4, window_bounds = array<i64: 1, 32>}, {pipeline_mode = #tpu.pipeline_mode<synchronous>, transform_indices = @transform_5, window_bounds = array<i64: 32, 16>}, {pipeline_mode = #tpu.pipeline_mode<synchronous>, transform_indices = @transform_6, window_bounds = array<i64: 1, 16>}, {pipeline_mode = #tpu.pipeline_mode<synchronous>, transform_indices = @transform_7, window_bounds = array<i64: 16, 32>}, {pipeline_mode = #tpu.pipeline_mode<synchronous>, transform_indices = @transform_8, window_bounds = array<i64: 1, 32>}, {transform_indices = @transform_9, window_bounds = array<i64: 1, 1, 32>}, {transform_indices = @transform_10, window_bounds = array<i64: 1, 1, 32>}, {transform_indices = @transform_11, window_bounds = array<i64: 1, 32, 96>}, {transform_indices = @transform_12, window_bounds = array<i64: 1, 1, 96>}, {transform_indices = @transform_13, window_bounds = array<i64: 1, 32, 32>}, {transform_indices = @transform_14, window_bounds = array<i64: 1, 1, 32>}, {transform_indices = @transform_15, window_bounds = array<i64: 1, 4, 64, 64>}, {transform_indices = @transform_16, window_bounds = array<i64: 1, 32, 128>}, {transform_indices = @transform_17, window_bounds = array<i64: 1, 1, 128>}, {transform_indices = @transform_18, window_bounds = array<i64: 1, 128, 32>}, {transform_indices = @transform_19, window_bounds = array<i64: 1, 1, 32>}, {transform_indices = @transform_20, window_bounds = array<i64: 1, 32, 8>}, {transform_indices = @transform_21, window_bounds = array<i64: 1, 1, 8>}, {transform_indices = @transform_22, window_bounds = array<i64: 1, 8, 32>}, {transform_indices = @transform_23, window_bounds = array<i64: 1, 1, 32>}, {pipeline_mode = #tpu.pipeline_mode<synchronous>, transform_indices = @transform_24, window_bounds = array<i64: 128, 32>}, {pipeline_mode = #tpu.pipeline_mode<synchronous>, transform_indices = @transform_25, window_bounds = array<i64: 128, 32>}, {pipeline_mode = #tpu.pipeline_mode<synchronous>, transform_indices = @transform_26, window_bounds = array<i64: 128, 32>}]} {
    %c0_i32 = arith.constant 0 : i32
    %0 = arith.cmpi eq, %arg0, %c0_i32 : i32
    %1 = arith.extui %0 : i1 to i32
    %c0_i32_0 = arith.constant 0 : i32
    %2 = arith.cmpi ne, %1, %c0_i32_0 : i32
    scf.if %2 {
      %c0_103 = arith.constant 0 : index
      %c0_104 = arith.constant 0 : index
      %242 = vector.load %arg2[%c0_103, %c0_104] : memref<128x32xf32, #tpu.memory_space<vmem>>, vector<128x32xf32>
      %c0_105 = arith.constant 0 : index
      %c0_106 = arith.constant 0 : index
      %243 = vector.load %arg4[%c0_105, %c0_106] : memref<1x32xf32, #tpu.memory_space<vmem>>, vector<1x32xf32>
      %244 = arith.mulf %242, %242 : vector<128x32xf32>
      %cst_107 = arith.constant dense<0.000000e+00> : vector<128xf32>
      %245 = vector.multi_reduction <add>, %244, %cst_107 [1] : vector<128x32xf32> to vector<128xf32>
      %246 = vector.shape_cast %245 : vector<128xf32> to vector<128x1xf32>
      %cst_108 = arith.constant 3.200000e+01 : f32
      %247 = vector.broadcast %cst_108 : f32 to vector<128x1xf32>
      %248 = arith.divf %246, %247 : vector<128x1xf32>
      %cst_109 = arith.constant 1.1920929E-7 : f32
      %249 = vector.broadcast %cst_109 : f32 to vector<128x1xf32>
      %250 = arith.addf %248, %249 : vector<128x1xf32>
      %251 = math.rsqrt %250 : vector<128x1xf32>
      %252 = vector.broadcast %251 : vector<128x1xf32> to vector<128x32xf32>
      %253 = arith.mulf %242, %252 : vector<128x32xf32>
      %254 = vector.broadcast %243 : vector<1x32xf32> to vector<128x32xf32>
      %255 = arith.mulf %253, %254 : vector<128x32xf32>
      %c0_110 = arith.constant 0 : index
      %c0_111 = arith.constant 0 : index
      %256 = vector.load %arg28[%c0_110, %c0_111] : memref<128x32xf32, #tpu.memory_space<vmem>>, vector<128x32xf32>
      tpu.vector_store %arg28[%c0_110, %c0_111], %255 {strides = array<i32>} : memref<128x32xf32, #tpu.memory_space<vmem>>, vector<128x32xf32>,
    } else {
    }
    %c2_i32 = arith.constant 2 : i32
    %3 = arith.cmpi eq, %arg0, %c2_i32 : i32
    %4 = arith.extui %3 : i1 to i32
    %c0_i32_1 = arith.constant 0 : i32
    %5 = arith.cmpi ne, %4, %c0_i32_1 : i32
    scf.if %5 {
      %c0_103 = arith.constant 0 : index
      %c0_104 = arith.constant 0 : index
      %242 = vector.load %arg28[%c0_103, %c0_104] : memref<128x32xf32, #tpu.memory_space<vmem>>, vector<128x32xf32>
      %c0_105 = arith.constant 0 : index
      %c0_106 = arith.constant 0 : index
      %243 = vector.load %arg26[%c0_105, %c0_106] : memref<128x32xf32, #tpu.memory_space<vmem>>, vector<128x32xf32>
      tpu.vector_store %arg26[%c0_105, %c0_106], %242 {strides = array<i32>} : memref<128x32xf32, #tpu.memory_space<vmem>>, vector<128x32xf32>,
      %c0_107 = arith.constant 0 : index
      %c0_108 = arith.constant 0 : index
      %244 = vector.load %arg6[%c0_107, %c0_108] : memref<32x16xbf16, #tpu.memory_space<vmem>>, vector<32x16xbf16>
      %245 = arith.truncf %242 : vector<128x32xf32> to vector<128x32xbf16>
      %cst_109 = arith.constant dense<0.000000e+00> : vector<128x16xf32>
      %246 = tpu.matmul %245, %244, %cst_109 {dimension_numbers = #tpu.dot_dimension_numbers<[1], [0], [0], [1], [0, 0, 1, 1], [], []>} : vector<128x32xbf16>, vector<32x16xbf16>, vector<128x16xf32> -> vector<128x16xf32>
      %c0_110 = arith.constant 0 : index
      %c0_111 = arith.constant 0 : index
      %247 = vector.load %arg7[%c0_110, %c0_111] : memref<1x16xf32, #tpu.memory_space<vmem>>, vector<1x16xf32>
      %248 = vector.broadcast %247 : vector<1x16xf32> to vector<128x16xf32>
      %249 = arith.addf %246, %248 : vector<128x16xf32>
      %250 = arith.mulf %249, %249 : vector<128x16xf32>
      %251 = vector.shape_cast %250 : vector<128x16xf32> to vector<1x128x16xf32>
      %cst_112 = arith.constant dense<0.000000e+00> : vector<1xf32>
      %252 = vector.multi_reduction <add>, %251, %cst_112 [1, 2] : vector<1x128x16xf32> to vector<1xf32>
      %253 = vector.shape_cast %252 : vector<1xf32> to vector<1x1x1xf32>
      %254 = vector.extract %253[0, 0, 0] : f32 from vector<1x1x1xf32>
      %cst_113 = arith.constant 2.048000e+03 : f32
      %255 = arith.divf %254, %cst_113 : f32
      %c0_114 = arith.constant 0 : index
      %c0_115 = arith.constant 0 : index
      %256 = vector.load %arg3[%c0_114, %c0_115] : memref<128x16xf32, #tpu.memory_space<vmem>>, vector<128x16xf32>
      %cst_116 = arith.constant 2.000000e+00 : f32
      %257 = arith.mulf %cst_116, %255 : f32
      %258 = math.sqrt %257 : f32
      %c0_117 = arith.constant 0 : index
      %259 = memref.load %arg1[%c0_117] : memref<5xf32, #tpu.memory_space<smem>>
      %260 = arith.mulf %258, %259 : f32
      %261 = vector.broadcast %260 : f32 to vector<128x16xf32>
      %262 = arith.mulf %256, %261 : vector<128x16xf32>
      %263 = arith.addf %249, %262 : vector<128x16xf32>
      %c0_118 = arith.constant 0 : index
      %c0_119 = arith.constant 0 : index
      %264 = vector.load %arg8[%c0_118, %c0_119] : memref<16x32xbf16, #tpu.memory_space<vmem>>, vector<16x32xbf16>
      %265 = arith.truncf %263 : vector<128x16xf32> to vector<128x16xbf16>
      %cst_120 = arith.constant dense<0.000000e+00> : vector<128x32xf32>
      %266 = tpu.matmul %265, %264, %cst_120 {dimension_numbers = #tpu.dot_dimension_numbers<[1], [0], [0], [1], [0, 0, 1, 1], [], []>} : vector<128x16xbf16>, vector<16x32xbf16>, vector<128x32xf32> -> vector<128x32xf32>
      %c0_121 = arith.constant 0 : index
      %c0_122 = arith.constant 0 : index
      %267 = vector.load %arg9[%c0_121, %c0_122] : memref<1x32xf32, #tpu.memory_space<vmem>>, vector<1x32xf32>
      %268 = vector.broadcast %267 : vector<1x32xf32> to vector<128x32xf32>
      %269 = arith.addf %266, %268 : vector<128x32xf32>
      %c0_123 = arith.constant 0 : index
      %c0_124 = arith.constant 0 : index
      %270 = vector.load %arg27[%c0_123, %c0_124] : memref<128x32xf32, #tpu.memory_space<vmem>>, vector<128x32xf32>
      tpu.vector_store %arg27[%c0_123, %c0_124], %269 {strides = array<i32>} : memref<128x32xf32, #tpu.memory_space<vmem>>, vector<128x32xf32>,
      %c0_125 = arith.constant 0 : index
      %c0_126 = arith.constant 0 : index
      %271 = vector.load %arg28[%c0_125, %c0_126] : memref<128x32xf32, #tpu.memory_space<vmem>>, vector<128x32xf32>
      tpu.vector_store %arg28[%c0_125, %c0_126], %269 {strides = array<i32>} : memref<128x32xf32, #tpu.memory_space<vmem>>, vector<128x32xf32>,
    } else {
    }
    %c0 = arith.constant 0 : index
    %c0_2 = arith.constant 0 : index
    %6 = vector.load %arg28[%c0, %c0_2] : memref<128x32xf32, #tpu.memory_space<vmem>>, vector<128x32xf32>
    %c0_3 = arith.constant 0 : index
    %c0_4 = arith.constant 0 : index
    %c0_5 = arith.constant 0 : index
    %7 = vector.load %arg10[%c0_3, %c0_4, %c0_5] : memref<1x1x32xf32, #tpu.memory_space<vmem>>, vector<1x1x32xf32>
    %8 = vector.shape_cast %7 : vector<1x1x32xf32> to vector<1x32xf32>
    %9 = arith.mulf %6, %6 : vector<128x32xf32>
    %cst = arith.constant dense<0.000000e+00> : vector<128xf32>
    %10 = vector.multi_reduction <add>, %9, %cst [1] : vector<128x32xf32> to vector<128xf32>
    %11 = vector.shape_cast %10 : vector<128xf32> to vector<128x1xf32>
    %cst_6 = arith.constant 3.200000e+01 : f32
    %12 = vector.broadcast %cst_6 : f32 to vector<128x1xf32>
    %13 = arith.divf %11, %12 : vector<128x1xf32>
    %cst_7 = arith.constant 1.1920929E-7 : f32
    %14 = vector.broadcast %cst_7 : f32 to vector<128x1xf32>
    %15 = arith.addf %13, %14 : vector<128x1xf32>
    %16 = math.rsqrt %15 : vector<128x1xf32>
    %17 = vector.broadcast %16 : vector<128x1xf32> to vector<128x32xf32>
    %18 = arith.mulf %6, %17 : vector<128x32xf32>
    %19 = vector.broadcast %8 : vector<1x32xf32> to vector<128x32xf32>
    %20 = arith.mulf %18, %19 : vector<128x32xf32>
    %c0_8 = arith.constant 0 : index
    %c0_9 = arith.constant 0 : index
    %c0_10 = arith.constant 0 : index
    %21 = vector.load %arg12[%c0_8, %c0_9, %c0_10] : memref<1x32x96xbf16, #tpu.memory_space<vmem>>, vector<1x32x96xbf16>
    %22 = vector.shape_cast %21 : vector<1x32x96xbf16> to vector<32x96xbf16>
    %23 = arith.truncf %20 : vector<128x32xf32> to vector<128x32xbf16>
    %cst_11 = arith.constant dense<0.000000e+00> : vector<128x96xf32>
    %24 = tpu.matmul %23, %22, %cst_11 {dimension_numbers = #tpu.dot_dimension_numbers<[1], [0], [0], [1], [0, 0, 1, 1], [], []>} : vector<128x32xbf16>, vector<32x96xbf16>, vector<128x96xf32> -> vector<128x96xf32>
    %c0_12 = arith.constant 0 : index
    %c0_13 = arith.constant 0 : index
    %c0_14 = arith.constant 0 : index
    %25 = vector.load %arg13[%c0_12, %c0_13, %c0_14] : memref<1x1x96xf32, #tpu.memory_space<vmem>>, vector<1x1x96xf32>
    %26 = vector.shape_cast %25 : vector<1x1x96xf32> to vector<1x96xf32>
    %27 = vector.broadcast %26 : vector<1x96xf32> to vector<128x96xf32>
    %28 = arith.addf %24, %27 : vector<128x96xf32>
    %29 = vector.extract_strided_slice %28 {offsets = [0, 0], sizes = [128, 8], strides = [1, 1]} : vector<128x96xf32> to vector<128x8xf32>
    %30 = vector.shape_cast %29 : vector<128x8xf32> to vector<2x64x8xf32>
    %31 = vector.extract_strided_slice %28 {offsets = [0, 32], sizes = [128, 8], strides = [1, 1]} : vector<128x96xf32> to vector<128x8xf32>
    %32 = vector.shape_cast %31 : vector<128x8xf32> to vector<2x64x8xf32>
    %33 = vector.extract_strided_slice %28 {offsets = [0, 64], sizes = [128, 8], strides = [1, 1]} : vector<128x96xf32> to vector<128x8xf32>
    %34 = vector.shape_cast %33 : vector<128x8xf32> to vector<2x64x8xf32>
    %35 = arith.truncf %30 : vector<2x64x8xf32> to vector<2x64x8xbf16>
    %36 = arith.truncf %32 : vector<2x64x8xf32> to vector<2x64x8xbf16>
    "tpu.trace_start"() <{level = 10 : i32, message = "bnd,bmd->bnm"}> : () -> ()
    %cst_15 = arith.constant dense<0.000000e+00> : vector<2x64x64xf32>
    %37 = tpu.matmul %35, %36, %cst_15 {dimension_numbers = #tpu.dot_dimension_numbers<[2], [2], [1], [1], [0, 0, 0, 1, 1, 1], [0], [0]>} : vector<2x64x8xbf16>, vector<2x64x8xbf16>, vector<2x64x64xf32> -> vector<2x64x64xf32>
    "tpu.trace_stop"() : () -> ()
    %c0_16 = arith.constant 0 : index
    %c0_17 = arith.constant 0 : index
    %c0_18 = arith.constant 0 : index
    %c0_19 = arith.constant 0 : index
    %38 = vector.load %arg16[%c0_16, %c0_17, %c0_18, %c0_19] : memref<1x4x64x64xbf16, #tpu.memory_space<vmem>>, vector<1x1x64x64xbf16>
    %39 = vector.shape_cast %38 : vector<1x1x64x64xbf16> to vector<64x64xbf16>
    %40 = arith.extf %39 : vector<64x64xbf16> to vector<64x64xf32>
    %41 = vector.shape_cast %40 : vector<64x64xf32> to vector<1x64x64xf32>
    %42 = vector.broadcast %41 : vector<1x64x64xf32> to vector<2x64x64xf32>
    %43 = arith.addf %37, %42 : vector<2x64x64xf32>
    %cst_20 = arith.constant dense<0xFF800000> : vector<2x64xf32>
    %44 = vector.multi_reduction <maximumf>, %43, %cst_20 [2] : vector<2x64x64xf32> to vector<2x64xf32>
    %45 = vector.shape_cast %44 : vector<2x64xf32> to vector<2x64x1xf32>
    %46 = vector.broadcast %45 : vector<2x64x1xf32> to vector<2x64x64xf32>
    %47 = arith.subf %43, %46 : vector<2x64x64xf32>
    %48 = math.exp %47 : vector<2x64x64xf32>
    %cst_21 = arith.constant dense<0.000000e+00> : vector<2x64xf32>
    %49 = vector.multi_reduction <add>, %48, %cst_21 [2] : vector<2x64x64xf32> to vector<2x64xf32>
    %50 = vector.shape_cast %49 : vector<2x64xf32> to vector<2x64x1xf32>
    %51 = tpu.reciprocal %50 {approx = true} : vector<2x64x1xf32> -> vector<2x64x1xf32>
    %52 = vector.broadcast %51 : vector<2x64x1xf32> to vector<2x64x64xf32>
    %53 = arith.mulf %48, %52 : vector<2x64x64xf32>
    %54 = arith.truncf %53 : vector<2x64x64xf32> to vector<2x64x64xbf16>
    %55 = arith.truncf %34 : vector<2x64x8xf32> to vector<2x64x8xbf16>
    "tpu.trace_start"() <{level = 10 : i32, message = "bnm,bmd->bnd"}> : () -> ()
    %cst_22 = arith.constant dense<0.000000e+00> : vector<2x64x8xf32>
    %56 = tpu.matmul %54, %55, %cst_22 {dimension_numbers = #tpu.dot_dimension_numbers<[2], [1], [1], [2], [0, 0, 0, 1, 1, 2], [0], [0]>} : vector<2x64x64xbf16>, vector<2x64x8xbf16>, vector<2x64x8xf32> -> vector<2x64x8xf32>
    "tpu.trace_stop"() : () -> ()
    %57 = vector.shape_cast %56 : vector<2x64x8xf32> to vector<128x8xf32>
    %c0_23 = arith.constant 0 : index
    %c0_24 = arith.constant 0 : index
    %58 = vector.load %arg29[%c0_23, %c0_24] : memref<128x32xf32, #tpu.memory_space<vmem>>, vector<128x8xf32>
    tpu.vector_store %arg29[%c0_23, %c0_24], %57 {strides = array<i32>} : memref<128x32xf32, #tpu.memory_space<vmem>>, vector<128x8xf32>,
    %59 = vector.extract_strided_slice %28 {offsets = [0, 8], sizes = [128, 8], strides = [1, 1]} : vector<128x96xf32> to vector<128x8xf32>
    %60 = vector.shape_cast %59 : vector<128x8xf32> to vector<2x64x8xf32>
    %61 = vector.extract_strided_slice %28 {offsets = [0, 40], sizes = [128, 8], strides = [1, 1]} : vector<128x96xf32> to vector<128x8xf32>
    %62 = vector.shape_cast %61 : vector<128x8xf32> to vector<2x64x8xf32>
    %63 = vector.extract_strided_slice %28 {offsets = [0, 72], sizes = [128, 8], strides = [1, 1]} : vector<128x96xf32> to vector<128x8xf32>
    %64 = vector.shape_cast %63 : vector<128x8xf32> to vector<2x64x8xf32>
    %65 = arith.truncf %60 : vector<2x64x8xf32> to vector<2x64x8xbf16>
    %66 = arith.truncf %62 : vector<2x64x8xf32> to vector<2x64x8xbf16>
    "tpu.trace_start"() <{level = 10 : i32, message = "bnd,bmd->bnm"}> : () -> ()
    %cst_25 = arith.constant dense<0.000000e+00> : vector<2x64x64xf32>
    %67 = tpu.matmul %65, %66, %cst_25 {dimension_numbers = #tpu.dot_dimension_numbers<[2], [2], [1], [1], [0, 0, 0, 1, 1, 1], [0], [0]>} : vector<2x64x8xbf16>, vector<2x64x8xbf16>, vector<2x64x64xf32> -> vector<2x64x64xf32>
    "tpu.trace_stop"() : () -> ()
    %c0_26 = arith.constant 0 : index
    %c1 = arith.constant 1 : index
    %c0_27 = arith.constant 0 : index
    %c0_28 = arith.constant 0 : index
    %68 = vector.load %arg16[%c0_26, %c1, %c0_27, %c0_28] : memref<1x4x64x64xbf16, #tpu.memory_space<vmem>>, vector<1x1x64x64xbf16>
    %69 = vector.shape_cast %68 : vector<1x1x64x64xbf16> to vector<64x64xbf16>
    %70 = arith.extf %69 : vector<64x64xbf16> to vector<64x64xf32>
    %71 = vector.shape_cast %70 : vector<64x64xf32> to vector<1x64x64xf32>
    %72 = vector.broadcast %71 : vector<1x64x64xf32> to vector<2x64x64xf32>
    %73 = arith.addf %67, %72 : vector<2x64x64xf32>
    %cst_29 = arith.constant dense<0xFF800000> : vector<2x64xf32>
    %74 = vector.multi_reduction <maximumf>, %73, %cst_29 [2] : vector<2x64x64xf32> to vector<2x64xf32>
    %75 = vector.shape_cast %74 : vector<2x64xf32> to vector<2x64x1xf32>
    %76 = vector.broadcast %75 : vector<2x64x1xf32> to vector<2x64x64xf32>
    %77 = arith.subf %73, %76 : vector<2x64x64xf32>
    %78 = math.exp %77 : vector<2x64x64xf32>
    %cst_30 = arith.constant dense<0.000000e+00> : vector<2x64xf32>
    %79 = vector.multi_reduction <add>, %78, %cst_30 [2] : vector<2x64x64xf32> to vector<2x64xf32>
    %80 = vector.shape_cast %79 : vector<2x64xf32> to vector<2x64x1xf32>
    %81 = tpu.reciprocal %80 {approx = true} : vector<2x64x1xf32> -> vector<2x64x1xf32>
    %82 = vector.broadcast %81 : vector<2x64x1xf32> to vector<2x64x64xf32>
    %83 = arith.mulf %78, %82 : vector<2x64x64xf32>
    %84 = arith.truncf %83 : vector<2x64x64xf32> to vector<2x64x64xbf16>
    %85 = arith.truncf %64 : vector<2x64x8xf32> to vector<2x64x8xbf16>
    "tpu.trace_start"() <{level = 10 : i32, message = "bnm,bmd->bnd"}> : () -> ()
    %cst_31 = arith.constant dense<0.000000e+00> : vector<2x64x8xf32>
    %86 = tpu.matmul %84, %85, %cst_31 {dimension_numbers = #tpu.dot_dimension_numbers<[2], [1], [1], [2], [0, 0, 0, 1, 1, 2], [0], [0]>} : vector<2x64x64xbf16>, vector<2x64x8xbf16>, vector<2x64x8xf32> -> vector<2x64x8xf32>
    "tpu.trace_stop"() : () -> ()
    %87 = vector.shape_cast %86 : vector<2x64x8xf32> to vector<128x8xf32>
    %c0_32 = arith.constant 0 : index
    %c8 = arith.constant 8 : index
    %88 = vector.load %arg29[%c0_32, %c8] : memref<128x32xf32, #tpu.memory_space<vmem>>, vector<128x8xf32>
    tpu.vector_store %arg29[%c0_32, %c8], %87 {strides = array<i32>} : memref<128x32xf32, #tpu.memory_space<vmem>>, vector<128x8xf32>,
    %89 = vector.extract_strided_slice %28 {offsets = [0, 16], sizes = [128, 8], strides = [1, 1]} : vector<128x96xf32> to vector<128x8xf32>
    %90 = vector.shape_cast %89 : vector<128x8xf32> to vector<2x64x8xf32>
    %91 = vector.extract_strided_slice %28 {offsets = [0, 48], sizes = [128, 8], strides = [1, 1]} : vector<128x96xf32> to vector<128x8xf32>
    %92 = vector.shape_cast %91 : vector<128x8xf32> to vector<2x64x8xf32>
    %93 = vector.extract_strided_slice %28 {offsets = [0, 80], sizes = [128, 8], strides = [1, 1]} : vector<128x96xf32> to vector<128x8xf32>
    %94 = vector.shape_cast %93 : vector<128x8xf32> to vector<2x64x8xf32>
    %95 = arith.truncf %90 : vector<2x64x8xf32> to vector<2x64x8xbf16>
    %96 = arith.truncf %92 : vector<2x64x8xf32> to vector<2x64x8xbf16>
    "tpu.trace_start"() <{level = 10 : i32, message = "bnd,bmd->bnm"}> : () -> ()
    %cst_33 = arith.constant dense<0.000000e+00> : vector<2x64x64xf32>
    %97 = tpu.matmul %95, %96, %cst_33 {dimension_numbers = #tpu.dot_dimension_numbers<[2], [2], [1], [1], [0, 0, 0, 1, 1, 1], [0], [0]>} : vector<2x64x8xbf16>, vector<2x64x8xbf16>, vector<2x64x64xf32> -> vector<2x64x64xf32>
    "tpu.trace_stop"() : () -> ()
    %c0_34 = arith.constant 0 : index
    %c2 = arith.constant 2 : index
    %c0_35 = arith.constant 0 : index
    %c0_36 = arith.constant 0 : index
    %98 = vector.load %arg16[%c0_34, %c2, %c0_35, %c0_36] : memref<1x4x64x64xbf16, #tpu.memory_space<vmem>>, vector<1x1x64x64xbf16>
    %99 = vector.shape_cast %98 : vector<1x1x64x64xbf16> to vector<64x64xbf16>
    %100 = arith.extf %99 : vector<64x64xbf16> to vector<64x64xf32>
    %101 = vector.shape_cast %100 : vector<64x64xf32> to vector<1x64x64xf32>
    %102 = vector.broadcast %101 : vector<1x64x64xf32> to vector<2x64x64xf32>
    %103 = arith.addf %97, %102 : vector<2x64x64xf32>
    %cst_37 = arith.constant dense<0xFF800000> : vector<2x64xf32>
    %104 = vector.multi_reduction <maximumf>, %103, %cst_37 [2] : vector<2x64x64xf32> to vector<2x64xf32>
    %105 = vector.shape_cast %104 : vector<2x64xf32> to vector<2x64x1xf32>
    %106 = vector.broadcast %105 : vector<2x64x1xf32> to vector<2x64x64xf32>
    %107 = arith.subf %103, %106 : vector<2x64x64xf32>
    %108 = math.exp %107 : vector<2x64x64xf32>
    %cst_38 = arith.constant dense<0.000000e+00> : vector<2x64xf32>
    %109 = vector.multi_reduction <add>, %108, %cst_38 [2] : vector<2x64x64xf32> to vector<2x64xf32>
    %110 = vector.shape_cast %109 : vector<2x64xf32> to vector<2x64x1xf32>
    %111 = tpu.reciprocal %110 {approx = true} : vector<2x64x1xf32> -> vector<2x64x1xf32>
    %112 = vector.broadcast %111 : vector<2x64x1xf32> to vector<2x64x64xf32>
    %113 = arith.mulf %108, %112 : vector<2x64x64xf32>
    %114 = arith.truncf %113 : vector<2x64x64xf32> to vector<2x64x64xbf16>
    %115 = arith.truncf %94 : vector<2x64x8xf32> to vector<2x64x8xbf16>
    "tpu.trace_start"() <{level = 10 : i32, message = "bnm,bmd->bnd"}> : () -> ()
    %cst_39 = arith.constant dense<0.000000e+00> : vector<2x64x8xf32>
    %116 = tpu.matmul %114, %115, %cst_39 {dimension_numbers = #tpu.dot_dimension_numbers<[2], [1], [1], [2], [0, 0, 0, 1, 1, 2], [0], [0]>} : vector<2x64x64xbf16>, vector<2x64x8xbf16>, vector<2x64x8xf32> -> vector<2x64x8xf32>
    "tpu.trace_stop"() : () -> ()
    %117 = vector.shape_cast %116 : vector<2x64x8xf32> to vector<128x8xf32>
    %c0_40 = arith.constant 0 : index
    %c16 = arith.constant 16 : index
    %118 = vector.load %arg29[%c0_40, %c16] : memref<128x32xf32, #tpu.memory_space<vmem>>, vector<128x8xf32>
    tpu.vector_store %arg29[%c0_40, %c16], %117 {strides = array<i32>} : memref<128x32xf32, #tpu.memory_space<vmem>>, vector<128x8xf32>,
    %119 = vector.extract_strided_slice %28 {offsets = [0, 24], sizes = [128, 8], strides = [1, 1]} : vector<128x96xf32> to vector<128x8xf32>
    %120 = vector.shape_cast %119 : vector<128x8xf32> to vector<2x64x8xf32>
    %121 = vector.extract_strided_slice %28 {offsets = [0, 56], sizes = [128, 8], strides = [1, 1]} : vector<128x96xf32> to vector<128x8xf32>
    %122 = vector.shape_cast %121 : vector<128x8xf32> to vector<2x64x8xf32>
    %123 = vector.extract_strided_slice %28 {offsets = [0, 88], sizes = [128, 8], strides = [1, 1]} : vector<128x96xf32> to vector<128x8xf32>
    %124 = vector.shape_cast %123 : vector<128x8xf32> to vector<2x64x8xf32>
    %125 = arith.truncf %120 : vector<2x64x8xf32> to vector<2x64x8xbf16>
    %126 = arith.truncf %122 : vector<2x64x8xf32> to vector<2x64x8xbf16>
    "tpu.trace_start"() <{level = 10 : i32, message = "bnd,bmd->bnm"}> : () -> ()
    %cst_41 = arith.constant dense<0.000000e+00> : vector<2x64x64xf32>
    %127 = tpu.matmul %125, %126, %cst_41 {dimension_numbers = #tpu.dot_dimension_numbers<[2], [2], [1], [1], [0, 0, 0, 1, 1, 1], [0], [0]>} : vector<2x64x8xbf16>, vector<2x64x8xbf16>, vector<2x64x64xf32> -> vector<2x64x64xf32>
    "tpu.trace_stop"() : () -> ()
    %c0_42 = arith.constant 0 : index
    %c3 = arith.constant 3 : index
    %c0_43 = arith.constant 0 : index
    %c0_44 = arith.constant 0 : index
    %128 = vector.load %arg16[%c0_42, %c3, %c0_43, %c0_44] : memref<1x4x64x64xbf16, #tpu.memory_space<vmem>>, vector<1x1x64x64xbf16>
    %129 = vector.shape_cast %128 : vector<1x1x64x64xbf16> to vector<64x64xbf16>
    %130 = arith.extf %129 : vector<64x64xbf16> to vector<64x64xf32>
    %131 = vector.shape_cast %130 : vector<64x64xf32> to vector<1x64x64xf32>
    %132 = vector.broadcast %131 : vector<1x64x64xf32> to vector<2x64x64xf32>
    %133 = arith.addf %127, %132 : vector<2x64x64xf32>
    %cst_45 = arith.constant dense<0xFF800000> : vector<2x64xf32>
    %134 = vector.multi_reduction <maximumf>, %133, %cst_45 [2] : vector<2x64x64xf32> to vector<2x64xf32>
    %135 = vector.shape_cast %134 : vector<2x64xf32> to vector<2x64x1xf32>
    %136 = vector.broadcast %135 : vector<2x64x1xf32> to vector<2x64x64xf32>
    %137 = arith.subf %133, %136 : vector<2x64x64xf32>
    %138 = math.exp %137 : vector<2x64x64xf32>
    %cst_46 = arith.constant dense<0.000000e+00> : vector<2x64xf32>
    %139 = vector.multi_reduction <add>, %138, %cst_46 [2] : vector<2x64x64xf32> to vector<2x64xf32>
    %140 = vector.shape_cast %139 : vector<2x64xf32> to vector<2x64x1xf32>
    %141 = tpu.reciprocal %140 {approx = true} : vector<2x64x1xf32> -> vector<2x64x1xf32>
    %142 = vector.broadcast %141 : vector<2x64x1xf32> to vector<2x64x64xf32>
    %143 = arith.mulf %138, %142 : vector<2x64x64xf32>
    %144 = arith.truncf %143 : vector<2x64x64xf32> to vector<2x64x64xbf16>
    %145 = arith.truncf %124 : vector<2x64x8xf32> to vector<2x64x8xbf16>
    "tpu.trace_start"() <{level = 10 : i32, message = "bnm,bmd->bnd"}> : () -> ()
    %cst_47 = arith.constant dense<0.000000e+00> : vector<2x64x8xf32>
    %146 = tpu.matmul %144, %145, %cst_47 {dimension_numbers = #tpu.dot_dimension_numbers<[2], [1], [1], [2], [0, 0, 0, 1, 1, 2], [0], [0]>} : vector<2x64x64xbf16>, vector<2x64x8xbf16>, vector<2x64x8xf32> -> vector<2x64x8xf32>
    "tpu.trace_stop"() : () -> ()
    %147 = vector.shape_cast %146 : vector<2x64x8xf32> to vector<128x8xf32>
    %c0_48 = arith.constant 0 : index
    %c24 = arith.constant 24 : index
    %148 = vector.load %arg29[%c0_48, %c24] : memref<128x32xf32, #tpu.memory_space<vmem>>, vector<128x8xf32>
    tpu.vector_store %arg29[%c0_48, %c24], %147 {strides = array<i32>} : memref<128x32xf32, #tpu.memory_space<vmem>>, vector<128x8xf32>,
    %c0_49 = arith.constant 0 : index
    %c0_50 = arith.constant 0 : index
    %149 = vector.load %arg29[%c0_49, %c0_50] : memref<128x32xf32, #tpu.memory_space<vmem>>, vector<128x32xf32>
    %c0_51 = arith.constant 0 : index
    %c0_52 = arith.constant 0 : index
    %c0_53 = arith.constant 0 : index
    %150 = vector.load %arg14[%c0_51, %c0_52, %c0_53] : memref<1x32x32xbf16, #tpu.memory_space<vmem>>, vector<1x32x32xbf16>
    %151 = vector.shape_cast %150 : vector<1x32x32xbf16> to vector<32x32xbf16>
    %152 = arith.truncf %149 : vector<128x32xf32> to vector<128x32xbf16>
    %cst_54 = arith.constant dense<0.000000e+00> : vector<128x32xf32>
    %153 = tpu.matmul %152, %151, %cst_54 {dimension_numbers = #tpu.dot_dimension_numbers<[1], [0], [0], [1], [0, 0, 1, 1], [], []>} : vector<128x32xbf16>, vector<32x32xbf16>, vector<128x32xf32> -> vector<128x32xf32>
    %c0_55 = arith.constant 0 : index
    %c0_56 = arith.constant 0 : index
    %c0_57 = arith.constant 0 : index
    %154 = vector.load %arg15[%c0_55, %c0_56, %c0_57] : memref<1x1x32xf32, #tpu.memory_space<vmem>>, vector<1x1x32xf32>
    %155 = vector.shape_cast %154 : vector<1x1x32xf32> to vector<1x32xf32>
    %156 = vector.broadcast %155 : vector<1x32xf32> to vector<128x32xf32>
    %157 = arith.addf %153, %156 : vector<128x32xf32>
    %158 = arith.addf %6, %157 : vector<128x32xf32>
    %c0_58 = arith.constant 0 : index
    %c0_59 = arith.constant 0 : index
    %c0_60 = arith.constant 0 : index
    %159 = vector.load %arg11[%c0_58, %c0_59, %c0_60] : memref<1x1x32xf32, #tpu.memory_space<vmem>>, vector<1x1x32xf32>
    %160 = vector.shape_cast %159 : vector<1x1x32xf32> to vector<1x32xf32>
    %161 = arith.mulf %158, %158 : vector<128x32xf32>
    %cst_61 = arith.constant dense<0.000000e+00> : vector<128xf32>
    %162 = vector.multi_reduction <add>, %161, %cst_61 [1] : vector<128x32xf32> to vector<128xf32>
    %163 = vector.shape_cast %162 : vector<128xf32> to vector<128x1xf32>
    %cst_62 = arith.constant 3.200000e+01 : f32
    %164 = vector.broadcast %cst_62 : f32 to vector<128x1xf32>
    %165 = arith.divf %163, %164 : vector<128x1xf32>
    %cst_63 = arith.constant 1.1920929E-7 : f32
    %166 = vector.broadcast %cst_63 : f32 to vector<128x1xf32>
    %167 = arith.addf %165, %166 : vector<128x1xf32>
    %168 = math.rsqrt %167 : vector<128x1xf32>
    %169 = vector.broadcast %168 : vector<128x1xf32> to vector<128x32xf32>
    %170 = arith.mulf %158, %169 : vector<128x32xf32>
    %171 = vector.broadcast %160 : vector<1x32xf32> to vector<128x32xf32>
    %172 = arith.mulf %170, %171 : vector<128x32xf32>
    %c0_64 = arith.constant 0 : index
    %c0_65 = arith.constant 0 : index
    %c0_66 = arith.constant 0 : index
    %173 = vector.load %arg17[%c0_64, %c0_65, %c0_66] : memref<1x32x128xbf16, #tpu.memory_space<vmem>>, vector<1x32x128xbf16>
    %174 = vector.shape_cast %173 : vector<1x32x128xbf16> to vector<32x128xbf16>
    %175 = arith.truncf %172 : vector<128x32xf32> to vector<128x32xbf16>
    %cst_67 = arith.constant dense<0.000000e+00> : vector<128x128xf32>
    %176 = tpu.matmul %175, %174, %cst_67 {dimension_numbers = #tpu.dot_dimension_numbers<[1], [0], [0], [1], [0, 0, 1, 1], [], []>} : vector<128x32xbf16>, vector<32x128xbf16>, vector<128x128xf32> -> vector<128x128xf32>
    %c0_68 = arith.constant 0 : index
    %c0_69 = arith.constant 0 : index
    %c0_70 = arith.constant 0 : index
    %177 = vector.load %arg18[%c0_68, %c0_69, %c0_70] : memref<1x1x128xf32, #tpu.memory_space<vmem>>, vector<1x1x128xf32>
    %178 = vector.shape_cast %177 : vector<1x1x128xf32> to vector<1x128xf32>
    %179 = vector.broadcast %178 : vector<1x128xf32> to vector<128x128xf32>
    %180 = arith.addf %176, %179 : vector<128x128xf32>
    %181 = arith.mulf %180, %180 : vector<128x128xf32>
    %182 = arith.mulf %180, %181 : vector<128x128xf32>
    %cst_71 = arith.constant 4.471500e-02 : f32
    %183 = vector.broadcast %cst_71 : f32 to vector<128x128xf32>
    %184 = arith.mulf %183, %182 : vector<128x128xf32>
    %185 = arith.addf %180, %184 : vector<128x128xf32>
    %cst_72 = arith.constant 0.797884583 : f32
    %186 = vector.broadcast %cst_72 : f32 to vector<128x128xf32>
    %187 = arith.mulf %186, %185 : vector<128x128xf32>
    %188 = math.tanh %187 : vector<128x128xf32>
    %cst_73 = arith.constant 1.000000e+00 : f32
    %189 = vector.broadcast %cst_73 : f32 to vector<128x128xf32>
    %190 = arith.addf %189, %188 : vector<128x128xf32>
    %cst_74 = arith.constant 5.000000e-01 : f32
    %191 = vector.broadcast %cst_74 : f32 to vector<128x128xf32>
    %192 = arith.mulf %191, %190 : vector<128x128xf32>
    %193 = arith.mulf %180, %192 : vector<128x128xf32>
    %c0_75 = arith.constant 0 : index
    %c0_76 = arith.constant 0 : index
    %c0_77 = arith.constant 0 : index
    %194 = vector.load %arg19[%c0_75, %c0_76, %c0_77] : memref<1x128x32xbf16, #tpu.memory_space<vmem>>, vector<1x128x32xbf16>
    %195 = vector.shape_cast %194 : vector<1x128x32xbf16> to vector<128x32xbf16>
    %196 = arith.truncf %193 : vector<128x128xf32> to vector<128x128xbf16>
    %cst_78 = arith.constant dense<0.000000e+00> : vector<128x32xf32>
    %197 = tpu.matmul %196, %195, %cst_78 {dimension_numbers = #tpu.dot_dimension_numbers<[1], [0], [0], [1], [0, 0, 1, 1], [], []>} : vector<128x128xbf16>, vector<128x32xbf16>, vector<128x32xf32> -> vector<128x32xf32>
    %c0_79 = arith.constant 0 : index
    %c0_80 = arith.constant 0 : index
    %c0_81 = arith.constant 0 : index
    %198 = vector.load %arg20[%c0_79, %c0_80, %c0_81] : memref<1x1x32xf32, #tpu.memory_space<vmem>>, vector<1x1x32xf32>
    %199 = vector.shape_cast %198 : vector<1x1x32xf32> to vector<1x32xf32>
    %200 = vector.broadcast %199 : vector<1x32xf32> to vector<128x32xf32>
    %201 = arith.addf %197, %200 : vector<128x32xf32>
    %c0_82 = arith.constant 0 : index
    %c0_83 = arith.constant 0 : index
    %c0_84 = arith.constant 0 : index
    %202 = vector.load %arg21[%c0_82, %c0_83, %c0_84] : memref<1x32x8xbf16, #tpu.memory_space<vmem>>, vector<1x32x8xbf16>
    %203 = vector.shape_cast %202 : vector<1x32x8xbf16> to vector<32x8xbf16>
    %204 = arith.truncf %172 : vector<128x32xf32> to vector<128x32xbf16>
    %cst_85 = arith.constant dense<0.000000e+00> : vector<128x8xf32>
    %205 = tpu.matmul %204, %203, %cst_85 {dimension_numbers = #tpu.dot_dimension_numbers<[1], [0], [0], [1], [0, 0, 1, 1], [], []>} : vector<128x32xbf16>, vector<32x8xbf16>, vector<128x8xf32> -> vector<128x8xf32>
    %c0_86 = arith.constant 0 : index
    %c0_87 = arith.constant 0 : index
    %c0_88 = arith.constant 0 : index
    %206 = vector.load %arg22[%c0_86, %c0_87, %c0_88] : memref<1x1x8xf32, #tpu.memory_space<vmem>>, vector<1x1x8xf32>
    %207 = vector.shape_cast %206 : vector<1x1x8xf32> to vector<1x8xf32>
    %208 = vector.broadcast %207 : vector<1x8xf32> to vector<128x8xf32>
    %209 = arith.addf %205, %208 : vector<128x8xf32>
    %210 = arith.mulf %209, %209 : vector<128x8xf32>
    %211 = arith.mulf %209, %210 : vector<128x8xf32>
    %cst_89 = arith.constant 4.471500e-02 : f32
    %212 = vector.broadcast %cst_89 : f32 to vector<128x8xf32>
    %213 = arith.mulf %212, %211 : vector<128x8xf32>
    %214 = arith.addf %209, %213 : vector<128x8xf32>
    %cst_90 = arith.constant 0.797884583 : f32
    %215 = vector.broadcast %cst_90 : f32 to vector<128x8xf32>
    %216 = arith.mulf %215, %214 : vector<128x8xf32>
    %217 = math.tanh %216 : vector<128x8xf32>
    %cst_91 = arith.constant 1.000000e+00 : f32
    %218 = vector.broadcast %cst_91 : f32 to vector<128x8xf32>
    %219 = arith.addf %218, %217 : vector<128x8xf32>
    %cst_92 = arith.constant 5.000000e-01 : f32
    %220 = vector.broadcast %cst_92 : f32 to vector<128x8xf32>
    %221 = arith.mulf %220, %219 : vector<128x8xf32>
    %222 = arith.mulf %209, %221 : vector<128x8xf32>
    %c0_93 = arith.constant 0 : index
    %c0_94 = arith.constant 0 : index
    %c0_95 = arith.constant 0 : index
    %223 = vector.load %arg23[%c0_93, %c0_94, %c0_95] : memref<1x8x32xbf16, #tpu.memory_space<vmem>>, vector<1x8x32xbf16>
    %224 = vector.shape_cast %223 : vector<1x8x32xbf16> to vector<8x32xbf16>
    %225 = arith.truncf %222 : vector<128x8xf32> to vector<128x8xbf16>
    %cst_96 = arith.constant dense<0.000000e+00> : vector<128x32xf32>
    %226 = tpu.matmul %225, %224, %cst_96 {dimension_numbers = #tpu.dot_dimension_numbers<[1], [0], [0], [1], [0, 0, 1, 1], [], []>} : vector<128x8xbf16>, vector<8x32xbf16>, vector<128x32xf32> -> vector<128x32xf32>
    %c0_97 = arith.constant 0 : index
    %c0_98 = arith.constant 0 : index
    %c0_99 = arith.constant 0 : index
    %227 = vector.load %arg24[%c0_97, %c0_98, %c0_99] : memref<1x1x32xf32, #tpu.memory_space<vmem>>, vector<1x1x32xf32>
    %228 = vector.shape_cast %227 : vector<1x1x32xf32> to vector<1x32xf32>
    %229 = vector.broadcast %228 : vector<1x32xf32> to vector<128x32xf32>
    %230 = arith.addf %226, %229 : vector<128x32xf32>
    %c1_i32 = arith.constant 1 : i32
    %231 = arith.addi %c1_i32, %arg0 : i32
    %232 = arith.index_cast %231 : i32 to index
    %233 = memref.load %arg1[%232] : memref<5xf32, #tpu.memory_space<smem>>
    %234 = arith.addf %158, %201 : vector<128x32xf32>
    %235 = vector.broadcast %233 : f32 to vector<128x32xf32>
    %236 = arith.mulf %235, %230 : vector<128x32xf32>
    %237 = arith.addf %234, %236 : vector<128x32xf32>
    %c0_100 = arith.constant 0 : index
    %c0_101 = arith.constant 0 : index
    %238 = vector.load %arg28[%c0_100, %c0_101] : memref<128x32xf32, #tpu.memory_space<vmem>>, vector<128x32xf32>
    tpu.vector_store %arg28[%c0_100, %c0_101], %237 {strides = array<i32>} : memref<128x32xf32, #tpu.memory_space<vmem>>, vector<128x32xf32>,
    %c3_i32 = arith.constant 3 : i32
    %239 = arith.cmpi eq, %arg0, %c3_i32 : i32
    %240 = arith.extui %239 : i1 to i32
    %c0_i32_102 = arith.constant 0 : i32
    %241 = arith.cmpi ne, %240, %c0_i32_102 : i32
    scf.if %241 {
      %c0_103 = arith.constant 0 : index
      %c0_104 = arith.constant 0 : index
      %242 = vector.load %arg5[%c0_103, %c0_104] : memref<1x32xf32, #tpu.memory_space<vmem>>, vector<1x32xf32>
      %243 = arith.mulf %237, %237 : vector<128x32xf32>
      %cst_105 = arith.constant dense<0.000000e+00> : vector<128xf32>
      %244 = vector.multi_reduction <add>, %243, %cst_105 [1] : vector<128x32xf32> to vector<128xf32>
      %245 = vector.shape_cast %244 : vector<128xf32> to vector<128x1xf32>
      %cst_106 = arith.constant 3.200000e+01 : f32
      %246 = vector.broadcast %cst_106 : f32 to vector<128x1xf32>
      %247 = arith.divf %245, %246 : vector<128x1xf32>
      %cst_107 = arith.constant 1.1920929E-7 : f32
      %248 = vector.broadcast %cst_107 : f32 to vector<128x1xf32>
      %249 = arith.addf %247, %248 : vector<128x1xf32>
      %250 = math.rsqrt %249 : vector<128x1xf32>
      %251 = vector.broadcast %250 : vector<128x1xf32> to vector<128x32xf32>
      %252 = arith.mulf %237, %251 : vector<128x32xf32>
      %253 = vector.broadcast %242 : vector<1x32xf32> to vector<128x32xf32>
      %254 = arith.mulf %252, %253 : vector<128x32xf32>
      %c0_108 = arith.constant 0 : index
      %c0_109 = arith.constant 0 : index
      %255 = vector.load %arg25[%c0_108, %c0_109] : memref<128x32xf32, #tpu.memory_space<vmem>>, vector<128x32xf32>
      tpu.vector_store %arg25[%c0_108, %c0_109], %254 {strides = array<i32>} : memref<128x32xf32, #tpu.memory_space<vmem>>, vector<128x32xf32>,
    } else {
    }
    return
  }
  func.func @transform_0(%arg0: i32) -> i32 {
    %c0_i32 = arith.constant 0 : i32
    %c0_i32_0 = arith.constant 0 : i32
    return %c0_i32 : i32
  }
  func.func @transform_1(%arg0: i32) -> (i32, i32) {
    %c0_i32 = arith.constant 0 : i32
    %c0_i32_0 = arith.constant 0 : i32
    %c0_i32_1 = arith.constant 0 : i32
    return %c0_i32, %c0_i32_0 : i32, i32
  }
  func.func @transform_2(%arg0: i32) -> (i32, i32) {
    %c0_i32 = arith.constant 0 : i32
    %c0_i32_0 = arith.constant 0 : i32
    %c0_i32_1 = arith.constant 0 : i32
    return %c0_i32, %c0_i32_0 : i32, i32
  }
  func.func @transform_3(%arg0: i32) -> (i32, i32) {
    %c0_i32 = arith.constant 0 : i32
    %c0_i32_0 = arith.constant 0 : i32
    %c0_i32_1 = arith.constant 0 : i32
    return %c0_i32, %c0_i32_0 : i32, i32
  }
  func.func @transform_4(%arg0: i32) -> (i32, i32) {
    %c0_i32 = arith.constant 0 : i32
    %c0_i32_0 = arith.constant 0 : i32
    %c0_i32_1 = arith.constant 0 : i32
    return %c0_i32, %c0_i32_0 : i32, i32
  }
  func.func @transform_5(%arg0: i32) -> (i32, i32) {
    %c0_i32 = arith.constant 0 : i32
    %c0_i32_0 = arith.constant 0 : i32
    %c0_i32_1 = arith.constant 0 : i32
    return %c0_i32, %c0_i32_0 : i32, i32
  }
  func.func @transform_6(%arg0: i32) -> (i32, i32) {
    %c0_i32 = arith.constant 0 : i32
    %c0_i32_0 = arith.constant 0 : i32
    %c0_i32_1 = arith.constant 0 : i32
    return %c0_i32, %c0_i32_0 : i32, i32
  }
  func.func @transform_7(%arg0: i32) -> (i32, i32) {
    %c0_i32 = arith.constant 0 : i32
    %c0_i32_0 = arith.constant 0 : i32
    %c0_i32_1 = arith.constant 0 : i32
    return %c0_i32, %c0_i32_0 : i32, i32
  }
  func.func @transform_8(%arg0: i32) -> (i32, i32) {
    %c0_i32 = arith.constant 0 : i32
    %c0_i32_0 = arith.constant 0 : i32
    %c0_i32_1 = arith.constant 0 : i32
    return %c0_i32, %c0_i32_0 : i32, i32
  }
  func.func @transform_9(%arg0: i32) -> (i32, i32, i32) {
    %c0_i32 = arith.constant 0 : i32
    %c0_i32_0 = arith.constant 0 : i32
    %c0_i32_1 = arith.constant 0 : i32
    return %arg0, %c0_i32, %c0_i32_0 : i32, i32, i32
  }
  func.func @transform_10(%arg0: i32) -> (i32, i32, i32) {
    %c0_i32 = arith.constant 0 : i32
    %c0_i32_0 = arith.constant 0 : i32
    %c0_i32_1 = arith.constant 0 : i32
    return %arg0, %c0_i32, %c0_i32_0 : i32, i32, i32
  }
  func.func @transform_11(%arg0: i32) -> (i32, i32, i32) {
    %c0_i32 = arith.constant 0 : i32
    %c0_i32_0 = arith.constant 0 : i32
    %c0_i32_1 = arith.constant 0 : i32
    return %arg0, %c0_i32, %c0_i32_0 : i32, i32, i32
  }
  func.func @transform_12(%arg0: i32) -> (i32, i32, i32) {
    %c0_i32 = arith.constant 0 : i32
    %c0_i32_0 = arith.constant 0 : i32
    %c0_i32_1 = arith.constant 0 : i32
    return %arg0, %c0_i32, %c0_i32_0 : i32, i32, i32
  }
  func.func @transform_13(%arg0: i32) -> (i32, i32, i32) {
    %c0_i32 = arith.constant 0 : i32
    %c0_i32_0 = arith.constant 0 : i32
    %c0_i32_1 = arith.constant 0 : i32
    return %arg0, %c0_i32, %c0_i32_0 : i32, i32, i32
  }
  func.func @transform_14(%arg0: i32) -> (i32, i32, i32) {
    %c0_i32 = arith.constant 0 : i32
    %c0_i32_0 = arith.constant 0 : i32
    %c0_i32_1 = arith.constant 0 : i32
    return %arg0, %c0_i32, %c0_i32_0 : i32, i32, i32
  }
  func.func @transform_15(%arg0: i32) -> (i32, i32, i32, i32) {
    %c0_i32 = arith.constant 0 : i32
    %c0_i32_0 = arith.constant 0 : i32
    %c0_i32_1 = arith.constant 0 : i32
    %c0_i32_2 = arith.constant 0 : i32
    return %arg0, %c0_i32, %c0_i32_0, %c0_i32_1 : i32, i32, i32, i32
  }
  func.func @transform_16(%arg0: i32) -> (i32, i32, i32) {
    %c0_i32 = arith.constant 0 : i32
    %c0_i32_0 = arith.constant 0 : i32
    %c0_i32_1 = arith.constant 0 : i32
    return %arg0, %c0_i32, %c0_i32_0 : i32, i32, i32
  }
  func.func @transform_17(%arg0: i32) -> (i32, i32, i32) {
    %c0_i32 = arith.constant 0 : i32
    %c0_i32_0 = arith.constant 0 : i32
    %c0_i32_1 = arith.constant 0 : i32
    return %arg0, %c0_i32, %c0_i32_0 : i32, i32, i32
  }
  func.func @transform_18(%arg0: i32) -> (i32, i32, i32) {
    %c0_i32 = arith.constant 0 : i32
    %c0_i32_0 = arith.constant 0 : i32
    %c0_i32_1 = arith.constant 0 : i32
    return %arg0, %c0_i32, %c0_i32_0 : i32, i32, i32
  }
  func.func @transform_19(%arg0: i32) -> (i32, i32, i32) {
    %c0_i32 = arith.constant 0 : i32
    %c0_i32_0 = arith.constant 0 : i32
    %c0_i32_1 = arith.constant 0 : i32
    return %arg0, %c0_i32, %c0_i32_0 : i32, i32, i32
  }
  func.func @transform_20(%arg0: i32) -> (i32, i32, i32) {
    %c0_i32 = arith.constant 0 : i32
    %c0_i32_0 = arith.constant 0 : i32
    %c0_i32_1 = arith.constant 0 : i32
    return %arg0, %c0_i32, %c0_i32_0 : i32, i32, i32
  }
  func.func @transform_21(%arg0: i32) -> (i32, i32, i32) {
    %c0_i32 = arith.constant 0 : i32
    %c0_i32_0 = arith.constant 0 : i32
    %c0_i32_1 = arith.constant 0 : i32
    return %arg0, %c0_i32, %c0_i32_0 : i32, i32, i32
  }
  func.func @transform_22(%arg0: i32) -> (i32, i32, i32) {
    %c0_i32 = arith.constant 0 : i32
    %c0_i32_0 = arith.constant 0 : i32
    %c0_i32_1 = arith.constant 0 : i32
    return %arg0, %c0_i32, %c0_i32_0 : i32, i32, i32
  }
  func.func @transform_23(%arg0: i32) -> (i32, i32, i32) {
    %c0_i32 = arith.constant 0 : i32
    %c0_i32_0 = arith.constant 0 : i32
    %c0_i32_1 = arith.constant 0 : i32
    return %arg0, %c0_i32, %c0_i32_0 : i32, i32, i32
  }
  func.func @transform_24(%arg0: i32) -> (i32, i32) {
    %c0_i32 = arith.constant 0 : i32
    %c0_i32_0 = arith.constant 0 : i32
    %c0_i32_1 = arith.constant 0 : i32
    return %c0_i32, %c0_i32_0 : i32, i32
  }
  func.func @transform_25(%arg0: i32) -> (i32, i32) {
    %c0_i32 = arith.constant 0 : i32
    %c0_i32_0 = arith.constant 0 : i32
    %c0_i32_1 = arith.constant 0 : i32
    return %c0_i32, %c0_i32_0 : i32, i32
  }
  func.func @transform_26(%arg0: i32) -> (i32, i32) {
    %c0_i32 = arith.constant 0 : i32
    %c0_i32_0 = arith.constant 0 : i32
    %c0_i32_1 = arith.constant 0 : i32
    return %c0_i32, %c0_i32_0 : i32, i32
  }
}

</mosaic_0001>

<llo_original>
// kernel: wipo_forward.1
$region0: #{wipo_forward.1}
  #allocation0 [shape = 'u32[]', space=smem, size = 0x4, offset = 0x4, fixed_abs, tag = 'smem constant byte address 0x4 - core index']
  #allocation1 [shape = 'u32[144,128]{1,0:T(1,128)}', space=vmem, size = 0x12000, scoped, tag = 'internal scratch']
  #allocation2 [shape = 'f32[128,32]{1,0:T(8,128)}', space=vmem, size = 0x10000, scoped, tag = 'scratch operand']
  #allocation3 [shape = 'f32[128,32]{1,0:T(8,128)}', space=vmem, size = 0x10000, scoped, tag = 'scratch operand']
  %s0 = inlined_call_operand.vmem [shape: f32[5], index: 0, kind: input, shape index: {}]
  %s1 = inlined_call_operand.vmem [shape: f32[128,32], index: 1, kind: input, shape index: {}]
  %s2 = inlined_call_operand.vmem [shape: f32[128,16], index: 2, kind: input, shape index: {}]
  %s3 = inlined_call_operand.vmem [shape: f32[1,32], index: 3, kind: input, shape index: {}]
  %s4 = inlined_call_operand.hbm [shape: f32[1,32], index: 4, kind: input, shape index: {}]
  %s5 = inlined_call_operand.vmem [shape: bf16[32,16], index: 5, kind: input, shape index: {}]
  %s6 = inlined_call_operand.hbm [shape: f32[1,16], index: 6, kind: input, shape index: {}]
  %s7 = inlined_call_operand.hbm [shape: bf16[16,32], index: 7, kind: input, shape index: {}]
  %s8 = inlined_call_operand.hbm [shape: f32[1,32], index: 8, kind: input, shape index: {}]
  %s9 = inlined_call_operand.vmem [shape: f32[4,1,32], index: 9, kind: input, shape index: {}]
  %s10 = inlined_call_operand.hbm [shape: f32[4,1,32], index: 10, kind: input, shape index: {}]
  %s11 = inlined_call_operand.vmem [shape: bf16[4,32,96], index: 11, kind: input, shape index: {}]
  %s12 = inlined_call_operand.hbm [shape: f32[4,1,96], index: 12, kind: input, shape index: {}]
  %s13 = inlined_call_operand.vmem [shape: bf16[4,32,32], index: 13, kind: input, shape index: {}]
  %s14 = inlined_call_operand.hbm [shape: f32[4,1,32], index: 14, kind: input, shape index: {}]
  %s15 = inlined_call_operand.vmem [shape: bf16[4,4,64,64], index: 15, kind: input, shape index: {}]
  %s16 = inlined_call_operand.vmem [shape: bf16[4,32,128], index: 16, kind: input, shape index: {}]
  %s17 = inlined_call_operand.hbm [shape: f32[4,1,128], index: 17, kind: input, shape index: {}]
  %s18 = inlined_call_operand.vmem [shape: bf16[4,128,32], index: 18, kind: input, shape index: {}]
  %s19 = inlined_call_operand.hbm [shape: f32[4,1,32], index: 19, kind: input, shape index: {}]
  %s20 = inlined_call_operand.vmem [shape: bf16[4,32,8], index: 20, kind: input, shape index: {}]
  %s21 = inlined_call_operand.hbm [shape: f32[4,1,8], index: 21, kind: input, shape index: {}]
  %s22 = inlined_call_operand.vmem [shape: bf16[4,8,32], index: 22, kind: input, shape index: {}]
  %s23 = inlined_call_operand.hbm [shape: f32[4,1,32], index: 23, kind: input, shape index: {}]
  %s24 = inlined_call_operand.vmem [shape: f32[128,32], index: 24, kind: output, shape index: {0}]
  %s25 = inlined_call_operand.vmem [shape: f32[128,32], index: 25, kind: output, shape index: {1}]
  %s26 = inlined_call_operand.vmem [shape: f32[128,32], index: 26, kind: output, shape index: {2}]
  %27 = xla_tuple %s24, %s25, %s26
  %s28 = sld [smem:[#allocation0]]
  $region205: #{wipo_forward.1} parent=0
    _
  %s30 = ssub.s32 1, %s28
  %s31 = scalar_select 0, %s30, %s28
  $region1: #{wipo_forward.1} parent=0
    #allocation4 [shape = 'u8[512]{0}', space=smem, size = 0x200, scoped, tag = 'input window, operand 0, single buffered']
    #allocation5 [shape = 's32[2]{0}', space=sflag, size = 0x8, scoped, tag = 'scoped memory for wipo_forward.1']
    #allocation6 [shape = 's32[2]{0}', space=sflag, size = 0x8, scoped, tag = 'scoped memory for wipo_forward.1']
    #allocation7 [shape = 'u8[512]{0}', space=vmem, size = 0x400, scoped, tag = 'input window, operand 4, single buffered']
    #allocation8 [shape = 'u8[512]{0}', space=vmem, size = 0x400, scoped, tag = 'input window, operand 6, single buffered']
    #allocation9 [shape = 's32[1]{0}', space=sflag, size = 0x4, scoped, tag = 'scoped memory for wipo_forward.1']
    #allocation10 [shape = 'u8[4096]{0}', space=vmem, size = 0x1000, scoped, tag = 'input window, operand 7, single buffered']
    #allocation11 [shape = 'u8[512]{0}', space=vmem, size = 0x400, scoped, tag = 'input window, operand 8, single buffered']
    #allocation12 [shape = 's32[1]{0}', space=sflag, size = 0x4, scoped, tag = 'scoped memory for wipo_forward.1']
    #allocation13 [shape = 'u8[1024]{0}', space=vmem, size = 0x400, scoped, tag = 'input window, operand 10']
    #allocation14 [shape = 'u8[1024]{0}', space=vmem, size = 0x400, scoped, tag = 'input window, operand 12']
    #allocation15 [shape = 'u8[1024]{0}', space=vmem, size = 0x400, scoped, tag = 'input window, operand 14']
    #allocation16 [shape = 'u8[1024]{0}', space=vmem, size = 0x400, scoped, tag = 'input window, operand 17']
    #allocation17 [shape = 'u8[1024]{0}', space=vmem, size = 0x400, scoped, tag = 'input window, operand 19']
    #allocation18 [shape = 'u8[1024]{0}', space=vmem, size = 0x400, scoped, tag = 'input window, operand 21']
    #allocation19 [shape = 'u8[1024]{0}', space=vmem, size = 0x400, scoped, tag = 'input window, operand 23']
    %32 = vsyncpa [#allocation6], 0
    %33 = vsyncpa [#allocation5], 0
    %34 = vsyncpa [#allocation9], 0
    %35 = vsyncpa [#allocation12], 0
    loop: start=0, step=1, limit=6
    $region2: #{wipo_forward.1} parent=1 // loop_pre_header
      _
    $region3: #{wipo_forward.1} parent=1 // loop_header
      %s37 = sphi 0, %s41
      %p38 = scmp.ge.s32.totalorder %s37, 6
      %s45 = sphi 0, %s45
      %s47 = sphi 0, %s45
      %s48 = sphi 0, %s47
      %s62 = sphi 0, %s48
      %s66 = sphi 0, %s66
      %s68 = sphi 0, %s66
      %s69 = sphi 0, %s68
      %s83 = sphi 0, %s69
      %s87 = sphi 0, %s87
      %s89 = sphi 0, %s87
      %s90 = sphi 0, %s89
      %s104 = sphi 0, %s90
      %s108 = sphi 0, %s108
      %s110 = sphi 0, %s108
      %s111 = sphi 0, %s110
      %s125 = sphi 0, %s111
      %s129 = sphi 0, %s129
      %s131 = sphi 0, %s129
      %s132 = sphi 0, %s131
      %s146 = sphi 0, %s132
      %s150 = sphi 0, %s150
      %s152 = sphi 0, %s150
      %s153 = sphi 0, %s152
      %s167 = sphi 0, %s153
      %s171 = sphi 0, %s171
      %s173 = sphi 0, %s171
      %s174 = sphi 0, %s173
      %s188 = sphi 0, %s174
      %s192 = sphi 0, %s192
      %s194 = sphi 0, %s192
      %s195 = sphi 0, %s194
      %s209 = sphi 0, %s195
      %s213 = sphi 0, %s213
      %s215 = sphi 0, %s213
      %s216 = sphi 0, %s215
      %s230 = sphi 0, %s216
      %s236 = sphi 0, %s238
      %s239 = sphi 0, %s236
      %s240 = sphi 0, %s239
      %s256 = sphi 0, %s240
      %s262 = sphi 0, %s264
      %s265 = sphi 0, %s262
      %s266 = sphi 0, %s265
      %s282 = sphi 0, %s266
      %s288 = sphi 0, %s290
      %s291 = sphi 0, %s288
      %s292 = sphi 0, %s291
      %s308 = sphi 0, %s292
      %s314 = sphi 0, %s316
      %s317 = sphi 0, %s314
      %s318 = sphi 0, %s317
      %s334 = sphi 0, %s318
      %s340 = sphi 0, %s342
      %s343 = sphi 0, %s340
      %s344 = sphi 0, %s343
      %s360 = sphi 0, %s344
      %s366 = sphi 0, %s368
      %s369 = sphi 0, %s366
      %s370 = sphi 0, %s369
      %s386 = sphi 0, %s370
      %s392 = sphi 0, %s394
      %s395 = sphi 0, %s392
      %s396 = sphi 0, %s395
      %s412 = sphi 0, %s396
      %s418 = sphi 0, %s420
      %s421 = sphi 0, %s418
      %s422 = sphi 0, %s421
      %s438 = sphi 0, %s422
      %s444 = sphi 0, %s446
      %s447 = sphi 0, %s444
      %s448 = sphi 0, %s447
      %s464 = sphi 0, %s448
      %s470 = sphi 0, %s472
      %s473 = sphi 0, %s470
      %s474 = sphi 0, %s473
      %s490 = sphi 0, %s474
      %s496 = sphi 0, %s498
      %s499 = sphi 0, %s496
      %s500 = sphi 0, %s499
      %s516 = sphi 0, %s500
      %s522 = sphi 0, %s524
      %s525 = sphi 0, %s522
      %s526 = sphi 0, %s525
      %s542 = sphi 0, %s526
      %s548 = sphi 0, %s550
      %s551 = sphi 0, %s548
      %s552 = sphi 0, %s551
      %s568 = sphi 0, %s552
      %s574 = sphi 0, %s576
      %s577 = sphi 0, %s574
      %s578 = sphi 0, %s577
      %s594 = sphi 0, %s578
      %s600 = sphi 0, %s602
      %s603 = sphi 0, %s600
      %s604 = sphi 0, %s603
      %s620 = sphi 0, %s604
      %s624 = sphi 0, %s624
      %s626 = sphi 0, %s624
      %s627 = sphi 0, %s626
      %s641 = sphi 0, %s627
      %s645 = sphi 0, %s645
      %s647 = sphi 0, %s645
      %s648 = sphi 0, %s647
      %s662 = sphi 0, %s648
      %s666 = sphi 0, %s666
      %s668 = sphi 0, %s666
      %s669 = sphi 0, %s668
      %s683 = sphi 0, %s669
    $region4: #{wipo_forward.1} parent=1 // loop_header_branch
      %40 = sbr.rel (%p38) target = $region8
    $region5: #{wipo_forward.1} parent=1 // loop_body
      %s42 = ssub.s32 %s37, 1
      %s43 = ssub.s32 %s37, 2
      %s44 = sadd.s32 %s37, 1
      %s46 = sadd.s32 %s45, 1
      %p49 = scmp.eq.s32.totalorder %s37, 3
      %p50 = scmp.ne.s32.totalorder %s45, %s47
      %p51 = scmp.eq.s32.totalorder %s37, 0
      %p52 = por %p50, %p51
      %p53 = scmp.ne.s32.totalorder %s45, %s47
      %p54 = scmp.eq.s32.totalorder %s42, 3
      %p55 = por %p53, %p54
      %p56 = scmp.ne.s32.totalorder %s47, %s48
      %p57 = scmp.eq.s32.totalorder %s42, 0
      %p58 = por %p56, %p57
      %p59 = scmp.ne.s32.totalorder %s47, %s48
      %p60 = scmp.eq.s32.totalorder %s43, 3
      %p61 = por %p59, %p60
      %p63 = scmp.ne.s32.totalorder %s48, %s62
      %p64 = scmp.eq.s32.totalorder %s43, 0
      %p65 = por %p63, %p64
      %s67 = sadd.s32 %s66, 1
      %p70 = scmp.eq.s32.totalorder %s37, 3
      %p71 = scmp.ne.s32.totalorder %s66, %s68
      %p72 = scmp.eq.s32.totalorder %s37, 0
      %p73 = por %p71, %p72
      %p74 = scmp.ne.s32.totalorder %s66, %s68
      %p75 = scmp.eq.s32.totalorder %s42, 3
      %p76 = por %p74, %p75
      %p77 = scmp.ne.s32.totalorder %s68, %s69
      %p78 = scmp.eq.s32.totalorder %s42, 0
      %p79 = por %p77, %p78
      %p80 = scmp.ne.s32.totalorder %s68, %s69
      %p81 = scmp.eq.s32.totalorder %s43, 3
      %p82 = por %p80, %p81
      %p84 = scmp.ne.s32.totalorder %s69, %s83
      %p85 = scmp.eq.s32.totalorder %s43, 0
      %p86 = por %p84, %p85
      %s88 = sadd.s32 %s87, 1
      %p91 = scmp.eq.s32.totalorder %s37, 3
      %p92 = scmp.ne.s32.totalorder %s87, %s89
      %p93 = scmp.eq.s32.totalorder %s37, 0
      %p94 = por %p92, %p93
      %p95 = scmp.ne.s32.totalorder %s87, %s89
      %p96 = scmp.eq.s32.totalorder %s42, 3
      %p97 = por %p95, %p96
      %p98 = scmp.ne.s32.totalorder %s89, %s90
      %p99 = scmp.eq.s32.totalorder %s42, 0
      %p100 = por %p98, %p99
      %p101 = scmp.ne.s32.totalorder %s89, %s90
      %p102 = scmp.eq.s32.totalorder %s43, 3
      %p103 = por %p101, %p102
      %p105 = scmp.ne.s32.totalorder %s90, %s104
      %p106 = scmp.eq.s32.totalorder %s43, 0
      %p107 = por %p105, %p106
      %s109 = sadd.s32 %s108, 1
      %p112 = scmp.eq.s32.totalorder %s37, 3
      %p113 = scmp.ne.s32.totalorder %s108, %s110
      %p114 = scmp.eq.s32.totalorder %s37, 0
      %p115 = por %p113, %p114
      %p116 = scmp.ne.s32.totalorder %s108, %s110
      %p117 = scmp.eq.s32.totalorder %s42, 3
      %p118 = por %p116, %p117
      %p119 = scmp.ne.s32.totalorder %s110, %s111
      %p120 = scmp.eq.s32.totalorder %s42, 0
      %p121 = por %p119, %p120
      %p122 = scmp.ne.s32.totalorder %s110, %s111
      %p123 = scmp.eq.s32.totalorder %s43, 3
      %p124 = por %p122, %p123
      %p126 = scmp.ne.s32.totalorder %s111, %s125
      %p127 = scmp.eq.s32.totalorder %s43, 0
      %p128 = por %p126, %p127
      %s130 = sadd.s32 %s129, 1
      %p133 = scmp.eq.s32.totalorder %s37, 3
      %p134 = scmp.ne.s32.totalorder %s129, %s131
      %p135 = scmp.eq.s32.totalorder %s37, 0
      %p136 = por %p134, %p135
      %p137 = scmp.ne.s32.totalorder %s129, %s131
      %p138 = scmp.eq.s32.totalorder %s42, 3
      %p139 = por %p137, %p138
      %p140 = scmp.ne.s32.totalorder %s131, %s132
      %p141 = scmp.eq.s32.totalorder %s42, 0
      %p142 = por %p140, %p141
      %p143 = scmp.ne.s32.totalorder %s131, %s132
      %p144 = scmp.eq.s32.totalorder %s43, 3
      %p145 = por %p143, %p144
      %p147 = scmp.ne.s32.totalorder %s132, %s146
      %p148 = scmp.eq.s32.totalorder %s43, 0
      %p149 = por %p147, %p148
      %s151 = sadd.s32 %s150, 1
      %p154 = scmp.eq.s32.totalorder %s37, 3
      %p155 = scmp.ne.s32.totalorder %s150, %s152
      %p156 = scmp.eq.s32.totalorder %s37, 0
      %p157 = por %p155, %p156
      %p158 = scmp.ne.s32.totalorder %s150, %s152
      %p159 = scmp.eq.s32.totalorder %s42, 3
      %p160 = por %p158, %p159
      %p161 = scmp.ne.s32.totalorder %s152, %s153
      %p162 = scmp.eq.s32.totalorder %s42, 0
      %p163 = por %p161, %p162
      %p164 = scmp.ne.s32.totalorder %s152, %s153
      %p165 = scmp.eq.s32.totalorder %s43, 3
      %p166 = por %p164, %p165
      %p168 = scmp.ne.s32.totalorder %s153, %s167
      %p169 = scmp.eq.s32.totalorder %s43, 0
      %p170 = por %p168, %p169
      %s172 = sadd.s32 %s171, 1
      %p175 = scmp.eq.s32.totalorder %s37, 3
      %p176 = scmp.ne.s32.totalorder %s171, %s173
      %p177 = scmp.eq.s32.totalorder %s37, 0
      %p178 = por %p176, %p177
      %p179 = scmp.ne.s32.totalorder %s171, %s173
      %p180 = scmp.eq.s32.totalorder %s42, 3
      %p181 = por %p179, %p180
      %p182 = scmp.ne.s32.totalorder %s173, %s174
      %p183 = scmp.eq.s32.totalorder %s42, 0
      %p184 = por %p182, %p183
      %p185 = scmp.ne.s32.totalorder %s173, %s174
      %p186 = scmp.eq.s32.totalorder %s43, 3
      %p187 = por %p185, %p186
      %p189 = scmp.ne.s32.totalorder %s174, %s188
      %p190 = scmp.eq.s32.totalorder %s43, 0
      %p191 = por %p189, %p190
      %s193 = sadd.s32 %s192, 1
      %p196 = scmp.eq.s32.totalorder %s37, 3
      %p197 = scmp.ne.s32.totalorder %s192, %s194
      %p198 = scmp.eq.s32.totalorder %s37, 0
      %p199 = por %p197, %p198
      %p200 = scmp.ne.s32.totalorder %s192, %s194
      %p201 = scmp.eq.s32.totalorder %s42, 3
      %p202 = por %p200, %p201
      %p203 = scmp.ne.s32.totalorder %s194, %s195
      %p204 = scmp.eq.s32.totalorder %s42, 0
      %p205 = por %p203, %p204
      %p206 = scmp.ne.s32.totalorder %s194, %s195
      %p207 = scmp.eq.s32.totalorder %s43, 3
      %p208 = por %p206, %p207
      %p210 = scmp.ne.s32.totalorder %s195, %s209
      %p211 = scmp.eq.s32.totalorder %s43, 0
      %p212 = por %p210, %p211
      %s214 = sadd.s32 %s213, 1
      %p217 = scmp.eq.s32.totalorder %s37, 3
      %p218 = scmp.ne.s32.totalorder %s213, %s215
      %p219 = scmp.eq.s32.totalorder %s37, 0
      %p220 = por %p218, %p219
      %p221 = scmp.ne.s32.totalorder %s213, %s215
      %p222 = scmp.eq.s32.totalorder %s42, 3
      %p223 = por %p221, %p222
      %p224 = scmp.ne.s32.totalorder %s215, %s216
      %p225 = scmp.eq.s32.totalorder %s42, 0
      %p226 = por %p224, %p225
      %p227 = scmp.ne.s32.totalorder %s215, %s216
      %p228 = scmp.eq.s32.totalorder %s43, 3
      %p229 = por %p227, %p228
      %p231 = scmp.ne.s32.totalorder %s216, %s230
      %p232 = scmp.eq.s32.totalorder %s43, 0
      %p233 = por %p231, %p232
      %s234 = ssub.s32 %s37, %s44
      %p235 = scmp.eq.s32.totalorder %s234, 0
      %s237 = sadd.s32 %s236, 1
      %s238 = scalar_select %p235, %s236, %s237
      %p241 = pneg %p235
      %p242 = scmp.eq.s32.totalorder %s37, 3
      %p243 = por %p241, %p242
      %p244 = scmp.ne.s32.totalorder %s236, %s239
      %p245 = scmp.eq.s32.totalorder %s37, 0
      %p246 = por %p244, %p245
      %p247 = scmp.ne.s32.totalorder %s236, %s239
      %p248 = scmp.eq.s32.totalorder %s42, 3
      %p249 = por %p247, %p248
      %p250 = scmp.ne.s32.totalorder %s239, %s240
      %p251 = scmp.eq.s32.totalorder %s42, 0
      %p252 = por %p250, %p251
      %p253 = scmp.ne.s32.totalorder %s239, %s240
      %p254 = scmp.eq.s32.totalorder %s43, 3
      %p255 = por %p253, %p254
      %p257 = scmp.ne.s32.totalorder %s240, %s256
      %p258 = scmp.eq.s32.totalorder %s43, 0
      %p259 = por %p257, %p258
      %s260 = ssub.s32 %s37, %s44
      %p261 = scmp.eq.s32.totalorder %s260, 0
      %s263 = sadd.s32 %s262, 1
      %s264 = scalar_select %p261, %s262, %s263
      %p267 = pneg %p261
      %p268 = scmp.eq.s32.totalorder %s37, 3
      %p269 = por %p267, %p268
      %p270 = scmp.ne.s32.totalorder %s262, %s265
      %p271 = scmp.eq.s32.totalorder %s37, 0
      %p272 = por %p270, %p271
      %p273 = scmp.ne.s32.totalorder %s262, %s265
      %p274 = scmp.eq.s32.totalorder %s42, 3
      %p275 = por %p273, %p274
      %p276 = scmp.ne.s32.totalorder %s265, %s266
      %p277 = scmp.eq.s32.totalorder %s42, 0
      %p278 = por %p276, %p277
      %p279 = scmp.ne.s32.totalorder %s265, %s266
      %p280 = scmp.eq.s32.totalorder %s43, 3
      %p281 = por %p279, %p280
      %p283 = scmp.ne.s32.totalorder %s266, %s282
      %p284 = scmp.eq.s32.totalorder %s43, 0
      %p285 = por %p283, %p284
      %s286 = ssub.s32 %s37, %s44
      %p287 = scmp.eq.s32.totalorder %s286, 0
      %s289 = sadd.s32 %s288, 1
      %s290 = scalar_select %p287, %s288, %s289
      %p293 = pneg %p287
      %p294 = scmp.eq.s32.totalorder %s37, 3
      %p295 = por %p293, %p294
      %p296 = scmp.ne.s32.totalorder %s288, %s291
      %p297 = scmp.eq.s32.totalorder %s37, 0
      %p298 = por %p296, %p297
      %p299 = scmp.ne.s32.totalorder %s288, %s291
      %p300 = scmp.eq.s32.totalorder %s42, 3
      %p301 = por %p299, %p300
      %p302 = scmp.ne.s32.totalorder %s291, %s292
      %p303 = scmp.eq.s32.totalorder %s42, 0
      %p304 = por %p302, %p303
      %p305 = scmp.ne.s32.totalorder %s291, %s292
      %p306 = scmp.eq.s32.totalorder %s43, 3
      %p307 = por %p305, %p306
      %p309 = scmp.ne.s32.totalorder %s292, %s308
      %p310 = scmp.eq.s32.totalorder %s43, 0
      %p311 = por %p309, %p310
      %s312 = ssub.s32 %s37, %s44
      %p313 = scmp.eq.s32.totalorder %s312, 0
      %s315 = sadd.s32 %s314, 1
      %s316 = scalar_select %p313, %s314, %s315
      %p319 = pneg %p313
      %p320 = scmp.eq.s32.totalorder %s37, 3
      %p321 = por %p319, %p320
      %p322 = scmp.ne.s32.totalorder %s314, %s317
      %p323 = scmp.eq.s32.totalorder %s37, 0
      %p324 = por %p322, %p323
      %p325 = scmp.ne.s32.totalorder %s314, %s317
      %p326 = scmp.eq.s32.totalorder %s42, 3
      %p327 = por %p325, %p326
      %p328 = scmp.ne.s32.totalorder %s317, %s318
      %p329 = scmp.eq.s32.totalorder %s42, 0
      %p330 = por %p328, %p329
      %p331 = scmp.ne.s32.totalorder %s317, %s318
      %p332 = scmp.eq.s32.totalorder %s43, 3
      %p333 = por %p331, %p332
      %p335 = scmp.ne.s32.totalorder %s318, %s334
      %p336 = scmp.eq.s32.totalorder %s43, 0
      %p337 = por %p335, %p336
      %s338 = ssub.s32 %s37, %s44
      %p339 = scmp.eq.s32.totalorder %s338, 0
      %s341 = sadd.s32 %s340, 1
      %s342 = scalar_select %p339, %s340, %s341
      %p345 = pneg %p339
      %p346 = scmp.eq.s32.totalorder %s37, 3
      %p347 = por %p345, %p346
      %p348 = scmp.ne.s32.totalorder %s340, %s343
      %p349 = scmp.eq.s32.totalorder %s37, 0
      %p350 = por %p348, %p349
      %p351 = scmp.ne.s32.totalorder %s340, %s343
      %p352 = scmp.eq.s32.totalorder %s42, 3
      %p353 = por %p351, %p352
      %p354 = scmp.ne.s32.totalorder %s343, %s344
      %p355 = scmp.eq.s32.totalorder %s42, 0
      %p356 = por %p354, %p355
      %p357 = scmp.ne.s32.totalorder %s343, %s344
      %p358 = scmp.eq.s32.totalorder %s43, 3
      %p359 = por %p357, %p358
      %p361 = scmp.ne.s32.totalorder %s344, %s360
      %p362 = scmp.eq.s32.totalorder %s43, 0
      %p363 = por %p361, %p362
      %s364 = ssub.s32 %s37, %s44
      %p365 = scmp.eq.s32.totalorder %s364, 0
      %s367 = sadd.s32 %s366, 1
      %s368 = scalar_select %p365, %s366, %s367
      %p371 = pneg %p365
      %p372 = scmp.eq.s32.totalorder %s37, 3
      %p373 = por %p371, %p372
      %p374 = scmp.ne.s32.totalorder %s366, %s369
      %p375 = scmp.eq.s32.totalorder %s37, 0
      %p376 = por %p374, %p375
      %p377 = scmp.ne.s32.totalorder %s366, %s369
      %p378 = scmp.eq.s32.totalorder %s42, 3
      %p379 = por %p377, %p378
      %p380 = scmp.ne.s32.totalorder %s369, %s370
      %p381 = scmp.eq.s32.totalorder %s42, 0
      %p382 = por %p380, %p381
      %p383 = scmp.ne.s32.totalorder %s369, %s370
      %p384 = scmp.eq.s32.totalorder %s43, 3
      %p385 = por %p383, %p384
      %p387 = scmp.ne.s32.totalorder %s370, %s386
      %p388 = scmp.eq.s32.totalorder %s43, 0
      %p389 = por %p387, %p388
      %s390 = ssub.s32 %s37, %s44
      %p391 = scmp.eq.s32.totalorder %s390, 0
      %s393 = sadd.s32 %s392, 1
      %s394 = scalar_select %p391, %s392, %s393
      %p397 = pneg %p391
      %p398 = scmp.eq.s32.totalorder %s37, 3
      %p399 = por %p397, %p398
      %p400 = scmp.ne.s32.totalorder %s392, %s395
      %p401 = scmp.eq.s32.totalorder %s37, 0
      %p402 = por %p400, %p401
      %p403 = scmp.ne.s32.totalorder %s392, %s395
      %p404 = scmp.eq.s32.totalorder %s42, 3
      %p405 = por %p403, %p404
      %p406 = scmp.ne.s32.totalorder %s395, %s396
      %p407 = scmp.eq.s32.totalorder %s42, 0
      %p408 = por %p406, %p407
      %p409 = scmp.ne.s32.totalorder %s395, %s396
      %p410 = scmp.eq.s32.totalorder %s43, 3
      %p411 = por %p409, %p410
      %p413 = scmp.ne.s32.totalorder %s396, %s412
      %p414 = scmp.eq.s32.totalorder %s43, 0
      %p415 = por %p413, %p414
      %s416 = ssub.s32 %s37, %s44
      %p417 = scmp.eq.s32.totalorder %s416, 0
      %s419 = sadd.s32 %s418, 1
      %s420 = scalar_select %p417, %s418, %s419
      %p423 = pneg %p417
      %p424 = scmp.eq.s32.totalorder %s37, 3
      %p425 = por %p423, %p424
      %p426 = scmp.ne.s32.totalorder %s418, %s421
      %p427 = scmp.eq.s32.totalorder %s37, 0
      %p428 = por %p426, %p427
      %p429 = scmp.ne.s32.totalorder %s418, %s421
      %p430 = scmp.eq.s32.totalorder %s42, 3
      %p431 = por %p429, %p430
      %p432 = scmp.ne.s32.totalorder %s421, %s422
      %p433 = scmp.eq.s32.totalorder %s42, 0
      %p434 = por %p432, %p433
      %p435 = scmp.ne.s32.totalorder %s421, %s422
      %p436 = scmp.eq.s32.totalorder %s43, 3
      %p437 = por %p435, %p436
      %p439 = scmp.ne.s32.totalorder %s422, %s438
      %p440 = scmp.eq.s32.totalorder %s43, 0
      %p441 = por %p439, %p440
      %s442 = ssub.s32 %s37, %s44
      %p443 = scmp.eq.s32.totalorder %s442, 0
      %s445 = sadd.s32 %s444, 1
      %s446 = scalar_select %p443, %s444, %s445
      %p449 = pneg %p443
      %p450 = scmp.eq.s32.totalorder %s37, 3
      %p451 = por %p449, %p450
      %p452 = scmp.ne.s32.totalorder %s444, %s447
      %p453 = scmp.eq.s32.totalorder %s37, 0
      %p454 = por %p452, %p453
      %p455 = scmp.ne.s32.totalorder %s444, %s447
      %p456 = scmp.eq.s32.totalorder %s42, 3
      %p457 = por %p455, %p456
      %p458 = scmp.ne.s32.totalorder %s447, %s448
      %p459 = scmp.eq.s32.totalorder %s42, 0
      %p460 = por %p458, %p459
      %p461 = scmp.ne.s32.totalorder %s447, %s448
      %p462 = scmp.eq.s32.totalorder %s43, 3
      %p463 = por %p461, %p462
      %p465 = scmp.ne.s32.totalorder %s448, %s464
      %p466 = scmp.eq.s32.totalorder %s43, 0
      %p467 = por %p465, %p466
      %s468 = ssub.s32 %s37, %s44
      %p469 = scmp.eq.s32.totalorder %s468, 0
      %s471 = sadd.s32 %s470, 1
      %s472 = scalar_select %p469, %s470, %s471
      %p475 = pneg %p469
      %p476 = scmp.eq.s32.totalorder %s37, 3
      %p477 = por %p475, %p476
      %p478 = scmp.ne.s32.totalorder %s470, %s473
      %p479 = scmp.eq.s32.totalorder %s37, 0
      %p480 = por %p478, %p479
      %p481 = scmp.ne.s32.totalorder %s470, %s473
      %p482 = scmp.eq.s32.totalorder %s42, 3
      %p483 = por %p481, %p482
      %p484 = scmp.ne.s32.totalorder %s473, %s474
      %p485 = scmp.eq.s32.totalorder %s42, 0
      %p486 = por %p484, %p485
      %p487 = scmp.ne.s32.totalorder %s473, %s474
      %p488 = scmp.eq.s32.totalorder %s43, 3
      %p489 = por %p487, %p488
      %p491 = scmp.ne.s32.totalorder %s474, %s490
      %p492 = scmp.eq.s32.totalorder %s43, 0
      %p493 = por %p491, %p492
      %s494 = ssub.s32 %s37, %s44
      %p495 = scmp.eq.s32.totalorder %s494, 0
      %s497 = sadd.s32 %s496, 1
      %s498 = scalar_select %p495, %s496, %s497
      %p501 = pneg %p495
      %p502 = scmp.eq.s32.totalorder %s37, 3
      %p503 = por %p501, %p502
      %p504 = scmp.ne.s32.totalorder %s496, %s499
      %p505 = scmp.eq.s32.totalorder %s37, 0
      %p506 = por %p504, %p505
      %p507 = scmp.ne.s32.totalorder %s496, %s499
      %p508 = scmp.eq.s32.totalorder %s42, 3
      %p509 = por %p507, %p508
      %p510 = scmp.ne.s32.totalorder %s499, %s500
      %p511 = scmp.eq.s32.totalorder %s42, 0
      %p512 = por %p510, %p511
      %p513 = scmp.ne.s32.totalorder %s499, %s500
      %p514 = scmp.eq.s32.totalorder %s43, 3
      %p515 = por %p513, %p514
      %p517 = scmp.ne.s32.totalorder %s500, %s516
      %p518 = scmp.eq.s32.totalorder %s43, 0
      %p519 = por %p517, %p518
      %s520 = ssub.s32 %s37, %s44
      %p521 = scmp.eq.s32.totalorder %s520, 0
      %s523 = sadd.s32 %s522, 1
      %s524 = scalar_select %p521, %s522, %s523
      %p527 = pneg %p521
      %p528 = scmp.eq.s32.totalorder %s37, 3
      %p529 = por %p527, %p528
      %p530 = scmp.ne.s32.totalorder %s522, %s525
      %p531 = scmp.eq.s32.totalorder %s37, 0
      %p532 = por %p530, %p531
      %p533 = scmp.ne.s32.totalorder %s522, %s525
      %p534 = scmp.eq.s32.totalorder %s42, 3
      %p535 = por %p533, %p534
      %p536 = scmp.ne.s32.totalorder %s525, %s526
      %p537 = scmp.eq.s32.totalorder %s42, 0
      %p538 = por %p536, %p537
      %p539 = scmp.ne.s32.totalorder %s525, %s526
      %p540 = scmp.eq.s32.totalorder %s43, 3
      %p541 = por %p539, %p540
      %p543 = scmp.ne.s32.totalorder %s526, %s542
      %p544 = scmp.eq.s32.totalorder %s43, 0
      %p545 = por %p543, %p544
      %s546 = ssub.s32 %s37, %s44
      %p547 = scmp.eq.s32.totalorder %s546, 0
      %s549 = sadd.s32 %s548, 1
      %s550 = scalar_select %p547, %s548, %s549
      %p553 = pneg %p547
      %p554 = scmp.eq.s32.totalorder %s37, 3
      %p555 = por %p553, %p554
      %p556 = scmp.ne.s32.totalorder %s548, %s551
      %p557 = scmp.eq.s32.totalorder %s37, 0
      %p558 = por %p556, %p557
      %p559 = scmp.ne.s32.totalorder %s548, %s551
      %p560 = scmp.eq.s32.totalorder %s42, 3
      %p561 = por %p559, %p560
      %p562 = scmp.ne.s32.totalorder %s551, %s552
      %p563 = scmp.eq.s32.totalorder %s42, 0
      %p564 = por %p562, %p563
      %p565 = scmp.ne.s32.totalorder %s551, %s552
      %p566 = scmp.eq.s32.totalorder %s43, 3
      %p567 = por %p565, %p566
      %p569 = scmp.ne.s32.totalorder %s552, %s568
      %p570 = scmp.eq.s32.totalorder %s43, 0
      %p571 = por %p569, %p570
      %s572 = ssub.s32 %s37, %s44
      %p573 = scmp.eq.s32.totalorder %s572, 0
      %s575 = sadd.s32 %s574, 1
      %s576 = scalar_select %p573, %s574, %s575
      %p579 = pneg %p573
      %p580 = scmp.eq.s32.totalorder %s37, 3
      %p581 = por %p579, %p580
      %p582 = scmp.ne.s32.totalorder %s574, %s577
      %p583 = scmp.eq.s32.totalorder %s37, 0
      %p584 = por %p582, %p583
      %p585 = scmp.ne.s32.totalorder %s574, %s577
      %p586 = scmp.eq.s32.totalorder %s42, 3
      %p587 = por %p585, %p586
      %p588 = scmp.ne.s32.totalorder %s577, %s578
      %p589 = scmp.eq.s32.totalorder %s42, 0
      %p590 = por %p588, %p589
      %p591 = scmp.ne.s32.totalorder %s577, %s578
      %p592 = scmp.eq.s32.totalorder %s43, 3
      %p593 = por %p591, %p592
      %p595 = scmp.ne.s32.totalorder %s578, %s594
      %p596 = scmp.eq.s32.totalorder %s43, 0
      %p597 = por %p595, %p596
      %s598 = ssub.s32 %s37, %s44
      %p599 = scmp.eq.s32.totalorder %s598, 0
      %s601 = sadd.s32 %s600, 1
      %s602 = scalar_select %p599, %s600, %s601
      %p605 = pneg %p599
      %p606 = scmp.eq.s32.totalorder %s37, 3
      %p607 = por %p605, %p606
      %p608 = scmp.ne.s32.totalorder %s600, %s603
      %p609 = scmp.eq.s32.totalorder %s37, 0
      %p610 = por %p608, %p609
      %p611 = scmp.ne.s32.totalorder %s600, %s603
      %p612 = scmp.eq.s32.totalorder %s42, 3
      %p613 = por %p611, %p612
      %p614 = scmp.ne.s32.totalorder %s603, %s604
      %p615 = scmp.eq.s32.totalorder %s42, 0
      %p616 = por %p614, %p615
      %p617 = scmp.ne.s32.totalorder %s603, %s604
      %p618 = scmp.eq.s32.totalorder %s43, 3
      %p619 = por %p617, %p618
      %p621 = scmp.ne.s32.totalorder %s604, %s620
      %p622 = scmp.eq.s32.totalorder %s43, 0
      %p623 = por %p621, %p622
      %s625 = sadd.s32 %s624, 1
      %p628 = scmp.eq.s32.totalorder %s37, 3
      %p629 = scmp.ne.s32.totalorder %s624, %s626
      %p630 = scmp.eq.s32.totalorder %s37, 0
      %p631 = por %p629, %p630
      %p632 = scmp.ne.s32.totalorder %s624, %s626
      %p633 = scmp.eq.s32.totalorder %s42, 3
      %p634 = por %p632, %p633
      %p635 = scmp.ne.s32.totalorder %s626, %s627
      %p636 = scmp.eq.s32.totalorder %s42, 0
      %p637 = por %p635, %p636
      %p638 = scmp.ne.s32.totalorder %s626, %s627
      %p639 = scmp.eq.s32.totalorder %s43, 3
      %p640 = por %p638, %p639
      %p642 = scmp.ne.s32.totalorder %s627, %s641
      %p643 = scmp.eq.s32.totalorder %s43, 0
      %p644 = por %p642, %p643
      %s646 = sadd.s32 %s645, 1
      %p649 = scmp.eq.s32.totalorder %s37, 3
      %p650 = scmp.ne.s32.totalorder %s645, %s647
      %p651 = scmp.eq.s32.totalorder %s37, 0
      %p652 = por %p650, %p651
      %p653 = scmp.ne.s32.totalorder %s645, %s647
      %p654 = scmp.eq.s32.totalorder %s42, 3
      %p655 = por %p653, %p654
      %p656 = scmp.ne.s32.totalorder %s647, %s648
      %p657 = scmp.eq.s32.totalorder %s42, 0
      %p658 = por %p656, %p657
      %p659 = scmp.ne.s32.totalorder %s647, %s648
      %p660 = scmp.eq.s32.totalorder %s43, 3
      %p661 = por %p659, %p660
      %p663 = scmp.ne.s32.totalorder %s648, %s662
      %p664 = scmp.eq.s32.totalorder %s43, 0
      %p665 = por %p663, %p664
      %s667 = sadd.s32 %s666, 1
      %p670 = scmp.eq.s32.totalorder %s37, 3
      %p671 = scmp.ne.s32.totalorder %s666, %s668
      %p672 = scmp.eq.s32.totalorder %s37, 0
      %p673 = por %p671, %p672
      %p674 = scmp.ne.s32.totalorder %s666, %s668
      %p675 = scmp.eq.s32.totalorder %s42, 3
      %p676 = por %p674, %p675
      %p677 = scmp.ne.s32.totalorder %s668, %s669
      %p678 = scmp.eq.s32.totalorder %s42, 0
      %p679 = por %p677, %p678
      %p680 = scmp.ne.s32.totalorder %s668, %s669
      %p681 = scmp.eq.s32.totalorder %s43, 3
      %p682 = por %p680, %p681
      %p684 = scmp.ne.s32.totalorder %s669, %s683
      %p685 = scmp.eq.s32.totalorder %s43, 0
      %p686 = por %p684, %p685
      %p687 = scmp.le.s32.totalorder 1, %s37
      %p688 = scmp.lt.s32.totalorder %s37, 5
      %p689 = pnand %p687, %p688
      %p690 = pneg %p689
      // Predicated region
      $region9: #{wipo_forward.1} parent=5 // pred_check
        _
      $region10: #{wipo_forward.1} parent=5 // pred_check_branch
        %692 = sbr.rel (%p689) target = $region12
      $region11: #{wipo_forward.1} parent=5 // pred_region
        %s693 = ssub.s32 %s37, 1
        // Predicated region
        $region13: #{wipo_forward.1} parent=11 // pred_check
          %p694 = pneg %p58
        $region14: #{wipo_forward.1} parent=11 // pred_check_branch
          %696 = sbr.rel (%p694) target = $region16
        $region15: #{wipo_forward.1} parent=11 // pred_region
          %s698 = ssub.s32 16, 16
          %699 = vsyncadd [#allocation6], %s698
          %s701 = sshll.u32 %s0, 4
          %s702 = int_to_ptr.vmem [resolvable:$true] %s701
          %704 = dma.vmem_to_smem %s702, 16, [#allocation4], [#allocation6]
        $region16: #{wipo_forward.1} parent=11 // pred_fallthru
          _
        // Predicated region
        $region17: #{wipo_forward.1} parent=11 // pred_check
          %p705 = pneg %p79
        $region18: #{wipo_forward.1} parent=11 // pred_check_branch
          %707 = sbr.rel (%p705) target = $region20
        $region19: #{wipo_forward.1} parent=11 // pred_region
          _
        $region20: #{wipo_forward.1} parent=11 // pred_fallthru
          _
        // Predicated region
        $region21: #{wipo_forward.1} parent=11 // pred_check
          %p708 = pneg %p100
        $region22: #{wipo_forward.1} parent=11 // pred_check_branch
          %710 = sbr.rel (%p708) target = $region24
        $region23: #{wipo_forward.1} parent=11 // pred_region
          _
        $region24: #{wipo_forward.1} parent=11 // pred_fallthru
          _
        // Predicated region
        $region25: #{wipo_forward.1} parent=11 // pred_check
          %p711 = pneg %p121
        $region26: #{wipo_forward.1} parent=11 // pred_check_branch
          %713 = sbr.rel (%p711) target = $region28
        $region27: #{wipo_forward.1} parent=11 // pred_region
          _
        $region28: #{wipo_forward.1} parent=11 // pred_fallthru
          _
        // Predicated region
        $region29: #{wipo_forward.1} parent=11 // pred_check
          %p714 = pneg %p142
        $region30: #{wipo_forward.1} parent=11 // pred_check_branch
          %716 = sbr.rel (%p714) target = $region32
        $region31: #{wipo_forward.1} parent=11 // pred_region
          %s718 = ssub.s32 16, 16
          %719 = vsyncadd [#allocation5], %s718
          %s721 = sshll.u32 [#allocation7], 4
          %s722 = int_to_ptr.vmem [resolvable:$true] %s721
          %724 = dma.hbm_to_vmem [thread:$0]  %s4, 16, %s722, [#allocation5]
        $region32: #{wipo_forward.1} parent=11 // pred_fallthru
          _
        // Predicated region
        $region33: #{wipo_forward.1} parent=11 // pred_check
          %p725 = pneg %p163
        $region34: #{wipo_forward.1} parent=11 // pred_check_branch
          %727 = sbr.rel (%p725) target = $region36
        $region35: #{wipo_forward.1} parent=11 // pred_region
          _
        $region36: #{wipo_forward.1} parent=11 // pred_fallthru
          _
        // Predicated region
        $region37: #{wipo_forward.1} parent=11 // pred_check
          %p728 = pneg %p184
        $region38: #{wipo_forward.1} parent=11 // pred_check_branch
          %730 = sbr.rel (%p728) target = $region40
        $region39: #{wipo_forward.1} parent=11 // pred_region
          %s732 = ssub.s32 16, 16
          %733 = vsyncadd [#allocation9], %s732
          %s735 = sshll.u32 [#allocation8], 4
          %s736 = int_to_ptr.vmem [resolvable:$true] %s735
          %738 = dma.hbm_to_vmem [thread:$0]  %s6, 16, %s736, [#allocation9]
        $region40: #{wipo_forward.1} parent=11 // pred_fallthru
          _
        // Predicated region
        $region41: #{wipo_forward.1} parent=11 // pred_check
          %p739 = pneg %p205
        $region42: #{wipo_forward.1} parent=11 // pred_check_branch
          %741 = sbr.rel (%p739) target = $region44
        $region43: #{wipo_forward.1} parent=11 // pred_region
          %s743 = ssub.s32 128, 128
          %744 = vsyncadd [#allocation9], %s743
          %s745 = sshll.u32 [#allocation10], 4
          %s746 = int_to_ptr.vmem [resolvable:$true] %s745
          %751 = dma.hbm_to_vmem [thread:$0]  %s7, 128, %s746, [#allocation9], 64, 64, 4
        $region44: #{wipo_forward.1} parent=11 // pred_fallthru
          _
        // Predicated region
        $region45: #{wipo_forward.1} parent=11 // pred_check
          %p752 = pneg %p226
        $region46: #{wipo_forward.1} parent=11 // pred_check_branch
          %754 = sbr.rel (%p752) target = $region48
        $region47: #{wipo_forward.1} parent=11 // pred_region
          %s756 = ssub.s32 16, 16
          %757 = vsyncadd [#allocation12], %s756
          %s759 = sshll.u32 [#allocation11], 4
          %s760 = int_to_ptr.vmem [resolvable:$true] %s759
          %762 = dma.hbm_to_vmem [thread:$0]  %s8, 16, %s760, [#allocation12]
        $region48: #{wipo_forward.1} parent=11 // pred_fallthru
          _
      $region12: #{wipo_forward.1} parent=5 // pred_fallthru
        _
      %p763 = scmp.lt.s32.totalorder %s37, 4
      // Predicated region
      $region49: #{wipo_forward.1} parent=5 // pred_check
        %p764 = pneg %p763
      $region50: #{wipo_forward.1} parent=5 // pred_check_branch
        %766 = sbr.rel (%p764) target = $region52
      $region51: #{wipo_forward.1} parent=5 // pred_region
        // Predicated region
        $region53: #{wipo_forward.1} parent=51 // pred_check
          %p767 = pneg %p246
        $region54: #{wipo_forward.1} parent=51 // pred_check_branch
          %769 = sbr.rel (%p767) target = $region56
        $region55: #{wipo_forward.1} parent=51 // pred_region
          %p770 = scmp.lt.s32.totalorder %s37, 3
          %s771 = scalar_select %p770, %s37, 3
          %s772 = scalar_lea.vmem %s9, %s771
        $region56: #{wipo_forward.1} parent=51 // pred_fallthru
          _
        // Predicated region
        $region57: #{wipo_forward.1} parent=51 // pred_check
          %p773 = pneg %p272
        $region58: #{wipo_forward.1} parent=51 // pred_check_branch
          %775 = sbr.rel (%p773) target = $region60
        $region59: #{wipo_forward.1} parent=51 // pred_region
          %s776 = sand.u32 %s37, 1
          %s777 = scalar_lea.sflag [#allocation5], %s776
          %s778 = sand.u32 %s262, 1
          %s779 = scalar_lea.vmem [#allocation13], %s778
          %s781 = ssub.s32 16, 16
          %782 = vsyncadd %s777, %s781
          %s783 = smul.addr %s37, 16
          %s784 = scalar_lea.hbm %s10, %s783
          %s786 = sshll.u32 %s779, 4
          %s787 = int_to_ptr.vmem [resolvable:$true] %s786
          %789 = dma.hbm_to_vmem [thread:$0]  %s784, 16, %s787, %s777
        $region60: #{wipo_forward.1} parent=51 // pred_fallthru
          _
        // Predicated region
        $region61: #{wipo_forward.1} parent=51 // pred_check
          %p790 = pneg %p298
        $region62: #{wipo_forward.1} parent=51 // pred_check_branch
          %792 = sbr.rel (%p790) target = $region64
        $region63: #{wipo_forward.1} parent=51 // pred_region
          %p793 = scmp.lt.s32.totalorder %s37, 3
          %s794 = scalar_select %p793, %s37, 3
          %s795 = smul.addr %s794, 4
          %s796 = smul.addr %s795, 4
          %s797 = scalar_lea.vmem %s11, %s796
        $region64: #{wipo_forward.1} parent=51 // pred_fallthru
          _
        // Predicated region
        $region65: #{wipo_forward.1} parent=51 // pred_check
          %p798 = pneg %p324
        $region66: #{wipo_forward.1} parent=51 // pred_check_branch
          %800 = sbr.rel (%p798) target = $region68
        $region67: #{wipo_forward.1} parent=51 // pred_region
          %s801 = sand.u32 %s37, 1
          %s802 = scalar_lea.sflag [#allocation5], %s801
          %s803 = sand.u32 %s314, 1
          %s804 = scalar_lea.vmem [#allocation14], %s803
          %s806 = ssub.s32 16, 16
          %807 = vsyncadd %s802, %s806
          %s808 = smul.addr %s37, 16
          %s809 = scalar_lea.hbm %s12, %s808
          %s811 = sshll.u32 %s804, 4
          %s812 = int_to_ptr.vmem [resolvable:$true] %s811
          %814 = dma.hbm_to_vmem [thread:$0]  %s809, 16, %s812, %s802
        $region68: #{wipo_forward.1} parent=51 // pred_fallthru
          _
        // Predicated region
        $region69: #{wipo_forward.1} parent=51 // pred_check
          %p815 = pneg %p350
        $region70: #{wipo_forward.1} parent=51 // pred_check_branch
          %817 = sbr.rel (%p815) target = $region72
        $region71: #{wipo_forward.1} parent=51 // pred_region
          %p818 = scmp.lt.s32.totalorder %s37, 3
          %s819 = scalar_select %p818, %s37, 3
          %s820 = smul.addr %s819, 4
          %s821 = smul.addr %s820, 4
          %s822 = scalar_lea.vmem %s13, %s821
        $region72: #{wipo_forward.1} parent=51 // pred_fallthru
          _
        // Predicated region
        $region73: #{wipo_forward.1} parent=51 // pred_check
          %p823 = pneg %p376
        $region74: #{wipo_forward.1} parent=51 // pred_check_branch
          %825 = sbr.rel (%p823) target = $region76
        $region75: #{wipo_forward.1} parent=51 // pred_region
          %s826 = sand.u32 %s37, 1
          %s827 = scalar_lea.sflag [#allocation5], %s826
          %s828 = sand.u32 %s366, 1
          %s829 = scalar_lea.vmem [#allocation15], %s828
          %s831 = ssub.s32 16, 16
          %832 = vsyncadd %s827, %s831
          %s833 = smul.addr %s37, 16
          %s834 = scalar_lea.hbm %s14, %s833
          %s836 = sshll.u32 %s829, 4
          %s837 = int_to_ptr.vmem [resolvable:$true] %s836
          %839 = dma.hbm_to_vmem [thread:$0]  %s834, 16, %s837, %s827
        $region76: #{wipo_forward.1} parent=51 // pred_fallthru
          _
        // Predicated region
        $region77: #{wipo_forward.1} parent=51 // pred_check
          %p840 = pneg %p402
        $region78: #{wipo_forward.1} parent=51 // pred_check_branch
          %842 = sbr.rel (%p840) target = $region80
        $region79: #{wipo_forward.1} parent=51 // pred_region
          %p843 = scmp.lt.s32.totalorder %s37, 3
          %s844 = scalar_select %p843, %s37, 3
          %s845 = smul.addr %s844, 32
          %s846 = smul.addr %s845, 4
          %s847 = scalar_lea.vmem %s15, %s846
        $region80: #{wipo_forward.1} parent=51 // pred_fallthru
          _
        // Predicated region
        $region81: #{wipo_forward.1} parent=51 // pred_check
          %p848 = pneg %p428
        $region82: #{wipo_forward.1} parent=51 // pred_check_branch
          %850 = sbr.rel (%p848) target = $region84
        $region83: #{wipo_forward.1} parent=51 // pred_region
          %p851 = scmp.lt.s32.totalorder %s37, 3
          %s852 = scalar_select %p851, %s37, 3
          %s853 = smul.addr %s852, 4
          %s854 = smul.addr %s853, 4
          %s855 = scalar_lea.vmem %s16, %s854
        $region84: #{wipo_forward.1} parent=51 // pred_fallthru
          _
        // Predicated region
        $region85: #{wipo_forward.1} parent=51 // pred_check
          %p856 = pneg %p454
        $region86: #{wipo_forward.1} parent=51 // pred_check_branch
          %858 = sbr.rel (%p856) target = $region88
        $region87: #{wipo_forward.1} parent=51 // pred_region
          %s859 = sand.u32 %s37, 1
          %s860 = scalar_lea.sflag [#allocation5], %s859
          %s861 = sand.u32 %s444, 1
          %s862 = scalar_lea.vmem [#allocation16], %s861
          %s864 = ssub.s32 16, 16
          %865 = vsyncadd %s860, %s864
          %s866 = smul.addr %s37, 16
          %s867 = scalar_lea.hbm %s17, %s866
          %s869 = sshll.u32 %s862, 4
          %s870 = int_to_ptr.vmem [resolvable:$true] %s869
          %872 = dma.hbm_to_vmem [thread:$0]  %s867, 16, %s870, %s860
        $region88: #{wipo_forward.1} parent=51 // pred_fallthru
          _
        // Predicated region
        $region89: #{wipo_forward.1} parent=51 // pred_check
          %p873 = pneg %p480
        $region90: #{wipo_forward.1} parent=51 // pred_check_branch
          %875 = sbr.rel (%p873) target = $region92
        $region91: #{wipo_forward.1} parent=51 // pred_region
          %p876 = scmp.lt.s32.totalorder %s37, 3
          %s877 = scalar_select %p876, %s37, 3
          %s878 = smul.addr %s877, 16
          %s879 = smul.addr %s878, 4
          %s880 = scalar_lea.vmem %s18, %s879
        $region92: #{wipo_forward.1} parent=51 // pred_fallthru
          _
        // Predicated region
        $region93: #{wipo_forward.1} parent=51 // pred_check
          %p881 = pneg %p506
        $region94: #{wipo_forward.1} parent=51 // pred_check_branch
          %883 = sbr.rel (%p881) target = $region96
        $region95: #{wipo_forward.1} parent=51 // pred_region
          %s884 = sand.u32 %s37, 1
          %s885 = scalar_lea.sflag [#allocation5], %s884
          %s886 = sand.u32 %s496, 1
          %s887 = scalar_lea.vmem [#allocation17], %s886
          %s889 = ssub.s32 16, 16
          %890 = vsyncadd %s885, %s889
          %s891 = smul.addr %s37, 16
          %s892 = scalar_lea.hbm %s19, %s891
          %s894 = sshll.u32 %s887, 4
          %s895 = int_to_ptr.vmem [resolvable:$true] %s894
          %897 = dma.hbm_to_vmem [thread:$0]  %s892, 16, %s895, %s885
        $region96: #{wipo_forward.1} parent=51 // pred_fallthru
          _
        // Predicated region
        $region97: #{wipo_forward.1} parent=51 // pred_check
          %p898 = pneg %p532
        $region98: #{wipo_forward.1} parent=51 // pred_check_branch
          %900 = sbr.rel (%p898) target = $region100
        $region99: #{wipo_forward.1} parent=51 // pred_region
          %p901 = scmp.lt.s32.totalorder %s37, 3
          %s902 = scalar_select %p901, %s37, 3
          %s903 = smul.addr %s902, 4
          %s904 = smul.addr %s903, 4
          %s905 = scalar_lea.vmem %s20, %s904
        $region100: #{wipo_forward.1} parent=51 // pred_fallthru
          _
        // Predicated region
        $region101: #{wipo_forward.1} parent=51 // pred_check
          %p906 = pneg %p558
        $region102: #{wipo_forward.1} parent=51 // pred_check_branch
          %908 = sbr.rel (%p906) target = $region104
        $region103: #{wipo_forward.1} parent=51 // pred_region
          %s909 = sand.u32 %s37, 1
          %s910 = scalar_lea.sflag [#allocation5], %s909
          %s911 = sand.u32 %s548, 1
          %s912 = scalar_lea.vmem [#allocation18], %s911
          %s914 = ssub.s32 16, 16
          %915 = vsyncadd %s910, %s914
          %s916 = smul.addr %s37, 16
          %s917 = scalar_lea.hbm %s21, %s916
          %s919 = sshll.u32 %s912, 4
          %s920 = int_to_ptr.vmem [resolvable:$true] %s919
          %922 = dma.hbm_to_vmem [thread:$0]  %s917, 16, %s920, %s910
        $region104: #{wipo_forward.1} parent=51 // pred_fallthru
          _
        // Predicated region
        $region105: #{wipo_forward.1} parent=51 // pred_check
          %p923 = pneg %p584
        $region106: #{wipo_forward.1} parent=51 // pred_check_branch
          %925 = sbr.rel (%p923) target = $region108
        $region107: #{wipo_forward.1} parent=51 // pred_region
          %p926 = scmp.lt.s32.totalorder %s37, 3
          %s927 = scalar_select %p926, %s37, 3
          %s928 = smul.addr %s927, 4
          %s929 = scalar_lea.vmem %s22, %s928
        $region108: #{wipo_forward.1} parent=51 // pred_fallthru
          _
        // Predicated region
        $region109: #{wipo_forward.1} parent=51 // pred_check
          %p930 = pneg %p610
        $region110: #{wipo_forward.1} parent=51 // pred_check_branch
          %932 = sbr.rel (%p930) target = $region112
        $region111: #{wipo_forward.1} parent=51 // pred_region
          %s933 = sand.u32 %s37, 1
          %s934 = scalar_lea.sflag [#allocation5], %s933
          %s935 = sand.u32 %s600, 1
          %s936 = scalar_lea.vmem [#allocation19], %s935
          %s938 = ssub.s32 16, 16
          %939 = vsyncadd %s934, %s938
          %s940 = smul.addr %s37, 16
          %s941 = scalar_lea.hbm %s23, %s940
          %s943 = sshll.u32 %s936, 4
          %s944 = int_to_ptr.vmem [resolvable:$true] %s943
          %946 = dma.hbm_to_vmem [thread:$0]  %s941, 16, %s944, %s934
        $region112: #{wipo_forward.1} parent=51 // pred_fallthru
          _
      $region52: #{wipo_forward.1} parent=5 // pred_fallthru
        _
      %p947 = scmp.le.s32.totalorder 1, %s37
      %p948 = scmp.lt.s32.totalorder %s37, 5
      %p949 = pnand %p947, %p948
      %p950 = pneg %p949
      // Predicated region
      $region113: #{wipo_forward.1} parent=5 // pred_check
        _
      $region114: #{wipo_forward.1} parent=5 // pred_check_branch
        %952 = sbr.rel (%p949) target = $region116
      $region115: #{wipo_forward.1} parent=5 // pred_region
        %s953 = ssub.s32 %s37, 1
        // Predicated region
        $region117: #{wipo_forward.1} parent=115 // pred_check
          %p954 = pneg %p58
        $region118: #{wipo_forward.1} parent=115 // pred_check_branch
          %956 = sbr.rel (%p954) target = $region120
        $region119: #{wipo_forward.1} parent=115 // pred_region
          %957 = dma.done [#allocation6], 16
        $region120: #{wipo_forward.1} parent=115 // pred_fallthru
          _
        // Predicated region
        $region121: #{wipo_forward.1} parent=115 // pred_check
          %p958 = pneg %p142
        $region122: #{wipo_forward.1} parent=115 // pred_check_branch
          %960 = sbr.rel (%p958) target = $region124
        $region123: #{wipo_forward.1} parent=115 // pred_region
          %961 = dma.done [#allocation5], 16
        $region124: #{wipo_forward.1} parent=115 // pred_fallthru
          _
        // Predicated region
        $region125: #{wipo_forward.1} parent=115 // pred_check
          %p962 = pneg %p184
        $region126: #{wipo_forward.1} parent=115 // pred_check_branch
          %964 = sbr.rel (%p962) target = $region128
        $region127: #{wipo_forward.1} parent=115 // pred_region
          %965 = dma.done [#allocation9], 16
        $region128: #{wipo_forward.1} parent=115 // pred_fallthru
          _
        // Predicated region
        $region129: #{wipo_forward.1} parent=115 // pred_check
          %p966 = pneg %p205
        $region130: #{wipo_forward.1} parent=115 // pred_check_branch
          %968 = sbr.rel (%p966) target = $region132
        $region131: #{wipo_forward.1} parent=115 // pred_region
          %969 = dma.done [#allocation9], 128
        $region132: #{wipo_forward.1} parent=115 // pred_fallthru
          _
        // Predicated region
        $region133: #{wipo_forward.1} parent=115 // pred_check
          %p970 = pneg %p226
        $region134: #{wipo_forward.1} parent=115 // pred_check_branch
          %972 = sbr.rel (%p970) target = $region136
        $region135: #{wipo_forward.1} parent=115 // pred_region
          %973 = dma.done [#allocation12], 16
        $region136: #{wipo_forward.1} parent=115 // pred_fallthru
          _
        %s974 = sand.u32 %s42, 1
        %s975 = scalar_lea.sflag [#allocation5], %s974
        %s976 = sand.u32 %s265, 1
        %s977 = scalar_lea.vmem [#allocation13], %s976
        // Predicated region
        $region137: #{wipo_forward.1} parent=115 // pred_check
          %p978 = pneg %p278
        $region138: #{wipo_forward.1} parent=115 // pred_check_branch
          %980 = sbr.rel (%p978) target = $region140
        $region139: #{wipo_forward.1} parent=115 // pred_region
          %981 = dma.done %s975, 16
        $region140: #{wipo_forward.1} parent=115 // pred_fallthru
          _
        %s982 = sand.u32 %s42, 1
        %s983 = scalar_lea.sflag [#allocation5], %s982
        %s984 = sand.u32 %s317, 1
        %s985 = scalar_lea.vmem [#allocation14], %s984
        // Predicated region
        $region141: #{wipo_forward.1} parent=115 // pred_check
          %p986 = pneg %p330
        $region142: #{wipo_forward.1} parent=115 // pred_check_branch
          %988 = sbr.rel (%p986) target = $region144
        $region143: #{wipo_forward.1} parent=115 // pred_region
          %989 = dma.done %s983, 16
        $region144: #{wipo_forward.1} parent=115 // pred_fallthru
          _
        %s990 = sand.u32 %s42, 1
        %s991 = scalar_lea.sflag [#allocation5], %s990
        %s992 = sand.u32 %s369, 1
        %s993 = scalar_lea.vmem [#allocation15], %s992
        // Predicated region
        $region145: #{wipo_forward.1} parent=115 // pred_check
          %p994 = pneg %p382
        $region146: #{wipo_forward.1} parent=115 // pred_check_branch
          %996 = sbr.rel (%p994) target = $region148
        $region147: #{wipo_forward.1} parent=115 // pred_region
          %997 = dma.done %s991, 16
        $region148: #{wipo_forward.1} parent=115 // pred_fallthru
          _
        %s998 = sand.u32 %s42, 1
        %s999 = scalar_lea.sflag [#allocation5], %s998
        %s1000 = sand.u32 %s447, 1
        %s1001 = scalar_lea.vmem [#allocation16], %s1000
        // Predicated region
        $region149: #{wipo_forward.1} parent=115 // pred_check
          %p1002 = pneg %p460
        $region150: #{wipo_forward.1} parent=115 // pred_check_branch
          %1004 = sbr.rel (%p1002) target = $region152
        $region151: #{wipo_forward.1} parent=115 // pred_region
          %1005 = dma.done %s999, 16
        $region152: #{wipo_forward.1} parent=115 // pred_fallthru
          _
        %s1006 = sand.u32 %s42, 1
        %s1007 = scalar_lea.sflag [#allocation5], %s1006
        %s1008 = sand.u32 %s499, 1
        %s1009 = scalar_lea.vmem [#allocation17], %s1008
        // Predicated region
        $region153: #{wipo_forward.1} parent=115 // pred_check
          %p1010 = pneg %p512
        $region154: #{wipo_forward.1} parent=115 // pred_check_branch
          %1012 = sbr.rel (%p1010) target = $region156
        $region155: #{wipo_forward.1} parent=115 // pred_region
          %1013 = dma.done %s1007, 16
        $region156: #{wipo_forward.1} parent=115 // pred_fallthru
          _
        %s1014 = sand.u32 %s42, 1
        %s1015 = scalar_lea.sflag [#allocation5], %s1014
        %s1016 = sand.u32 %s551, 1
        %s1017 = scalar_lea.vmem [#allocation18], %s1016
        // Predicated region
        $region157: #{wipo_forward.1} parent=115 // pred_check
          %p1018 = pneg %p564
        $region158: #{wipo_forward.1} parent=115 // pred_check_branch
          %1020 = sbr.rel (%p1018) target = $region160
        $region159: #{wipo_forward.1} parent=115 // pred_region
          %1021 = dma.done %s1015, 16
        $region160: #{wipo_forward.1} parent=115 // pred_fallthru
          _
        %s1022 = sand.u32 %s42, 1
        %s1023 = scalar_lea.sflag [#allocation5], %s1022
        %s1024 = sand.u32 %s603, 1
        %s1025 = scalar_lea.vmem [#allocation19], %s1024
        // Predicated region
        $region161: #{wipo_forward.1} parent=115 // pred_check
          %p1026 = pneg %p616
        $region162: #{wipo_forward.1} parent=115 // pred_check_branch
          %1028 = sbr.rel (%p1026) target = $region164
        $region163: #{wipo_forward.1} parent=115 // pred_region
          %1029 = dma.done %s1023, 16
        $region164: #{wipo_forward.1} parent=115 // pred_fallthru
          _
        %1030 = sfence
        %p1031 = pneg %p58
        %p1032 = pneg %p55
        %p1033 = pneg %p79
        %p1034 = pneg %p76
        %p1035 = pneg %p100
        %p1036 = pneg %p97
        %p1037 = pneg %p121
        %p1038 = pneg %p118
        %p1039 = pneg %p142
        %p1040 = pneg %p139
        %p1041 = pneg %p163
        %p1042 = pneg %p160
        %p1043 = pneg %p184
        %p1044 = pneg %p181
        %p1045 = pneg %p205
        %p1046 = pneg %p202
        %p1047 = pneg %p226
        %p1048 = pneg %p223
        %p1049 = scmp.lt.s32.totalorder %s42, 3
        %s1050 = scalar_select %p1049, %s42, 3
        %s1051 = scalar_lea.vmem %s9, %s1050
        %p1052 = pneg %p252
        %p1053 = pneg %p249
        %s1054 = sand.u32 %s42, 1
        %s1055 = scalar_lea.sflag [#allocation5], %s1054
        %s1056 = sand.u32 %s265, 1
        %s1057 = scalar_lea.vmem [#allocation13], %s1056
        %p1058 = pneg %p278
        %p1059 = pneg %p275
        %p1060 = scmp.lt.s32.totalorder %s42, 3
        %s1061 = scalar_select %p1060, %s42, 3
        %s1062 = smul.addr %s1061, 4
        %s1063 = smul.addr %s1062, 4
        %s1064 = scalar_lea.vmem %s11, %s1063
        %p1065 = pneg %p304
        %p1066 = pneg %p301
        %s1067 = sand.u32 %s42, 1
        %s1068 = scalar_lea.sflag [#allocation5], %s1067
        %s1069 = sand.u32 %s317, 1
        %s1070 = scalar_lea.vmem [#allocation14], %s1069
        %p1071 = pneg %p330
        %p1072 = pneg %p327
        %p1073 = scmp.lt.s32.totalorder %s42, 3
        %s1074 = scalar_select %p1073, %s42, 3
        %s1075 = smul.addr %s1074, 4
        %s1076 = smul.addr %s1075, 4
        %s1077 = scalar_lea.vmem %s13, %s1076
        %p1078 = pneg %p356
        %p1079 = pneg %p353
        %s1080 = sand.u32 %s42, 1
        %s1081 = scalar_lea.sflag [#allocation5], %s1080
        %s1082 = sand.u32 %s369, 1
        %s1083 = scalar_lea.vmem [#allocation15], %s1082
        %p1084 = pneg %p382
        %p1085 = pneg %p379
        %p1086 = scmp.lt.s32.totalorder %s42, 3
        %s1087 = scalar_select %p1086, %s42, 3
        %s1088 = smul.addr %s1087, 32
        %s1089 = smul.addr %s1088, 4
        %s1090 = scalar_lea.vmem %s15, %s1089
        %p1091 = pneg %p408
        %p1092 = pneg %p405
        %p1093 = scmp.lt.s32.totalorder %s42, 3
        %s1094 = scalar_select %p1093, %s42, 3
        %s1095 = smul.addr %s1094, 4
        %s1096 = smul.addr %s1095, 4
        %s1097 = scalar_lea.vmem %s16, %s1096
        %p1098 = pneg %p434
        %p1099 = pneg %p431
        %s1100 = sand.u32 %s42, 1
        %s1101 = scalar_lea.sflag [#allocation5], %s1100
        %s1102 = sand.u32 %s447, 1
        %s1103 = scalar_lea.vmem [#allocation16], %s1102
        %p1104 = pneg %p460
        %p1105 = pneg %p457
        %p1106 = scmp.lt.s32.totalorder %s42, 3
        %s1107 = scalar_select %p1106, %s42, 3
        %s1108 = smul.addr %s1107, 16
        %s1109 = smul.addr %s1108, 4
        %s1110 = scalar_lea.vmem %s18, %s1109
        %p1111 = pneg %p486
        %p1112 = pneg %p483
        %s1113 = sand.u32 %s42, 1
        %s1114 = scalar_lea.sflag [#allocation5], %s1113
        %s1115 = sand.u32 %s499, 1
        %s1116 = scalar_lea.vmem [#allocation17], %s1115
        %p1117 = pneg %p512
        %p1118 = pneg %p509
        %p1119 = scmp.lt.s32.totalorder %s42, 3
        %s1120 = scalar_select %p1119, %s42, 3
        %s1121 = smul.addr %s1120, 4
        %s1122 = smul.addr %s1121, 4
        %s1123 = scalar_lea.vmem %s20, %s1122
        %p1124 = pneg %p538
        %p1125 = pneg %p535
        %s1126 = sand.u32 %s42, 1
        %s1127 = scalar_lea.sflag [#allocation5], %s1126
        %s1128 = sand.u32 %s551, 1
        %s1129 = scalar_lea.vmem [#allocation18], %s1128
        %p1130 = pneg %p564
        %p1131 = pneg %p561
        %p1132 = scmp.lt.s32.totalorder %s42, 3
        %s1133 = scalar_select %p1132, %s42, 3
        %s1134 = smul.addr %s1133, 4
        %s1135 = scalar_lea.vmem %s22, %s1134
        %p1136 = pneg %p590
        %p1137 = pneg %p587
        %s1138 = sand.u32 %s42, 1
        %s1139 = scalar_lea.sflag [#allocation5], %s1138
        %s1140 = sand.u32 %s603, 1
        %s1141 = scalar_lea.vmem [#allocation19], %s1140
        %p1142 = pneg %p616
        %p1143 = pneg %p613
        %p1144 = pneg %p637
        %p1145 = pneg %p634
        %p1146 = pneg %p658
        %p1147 = pneg %p655
        %p1148 = pneg %p679
        %p1149 = pneg %p676
        %p1150 = scmp.lt.s32.totalorder %s42, 3
        %s1151 = scalar_select %p1150, %s42, 3
        %s1152 = scalar_lea.vmem %s9, %s1151
        %p1153 = scmp.lt.s32.totalorder %s42, 3
        %s1154 = scalar_select %p1153, %s42, 3
        %s1155 = smul.addr %s1154, 4
        %s1156 = smul.addr %s1155, 4
        %s1157 = scalar_lea.vmem %s11, %s1156
        %p1158 = scmp.lt.s32.totalorder %s42, 3
        %s1159 = scalar_select %p1158, %s42, 3
        %s1160 = smul.addr %s1159, 4
        %s1161 = smul.addr %s1160, 4
        %s1162 = scalar_lea.vmem %s13, %s1161
        %p1163 = scmp.lt.s32.totalorder %s42, 3
        %s1164 = scalar_select %p1163, %s42, 3
        %s1165 = smul.addr %s1164, 32
        %s1166 = smul.addr %s1165, 4
        %s1167 = scalar_lea.vmem %s15, %s1166
        %p1168 = scmp.lt.s32.totalorder %s42, 3
        %s1169 = scalar_select %p1168, %s42, 3
        %s1170 = smul.addr %s1169, 4
        %s1171 = smul.addr %s1170, 4
        %s1172 = scalar_lea.vmem %s16, %s1171
        %p1173 = scmp.lt.s32.totalorder %s42, 3
        %s1174 = scalar_select %p1173, %s42, 3
        %s1175 = smul.addr %s1174, 16
        %s1176 = smul.addr %s1175, 4
        %s1177 = scalar_lea.vmem %s18, %s1176
        %p1178 = scmp.lt.s32.totalorder %s42, 3
        %s1179 = scalar_select %p1178, %s42, 3
        %s1180 = smul.addr %s1179, 4
        %s1181 = smul.addr %s1180, 4
        %s1182 = scalar_lea.vmem %s20, %s1181
        %p1183 = scmp.lt.s32.totalorder %s42, 3
        %s1184 = scalar_select %p1183, %s42, 3
        %s1185 = smul.addr %s1184, 4
        %s1186 = scalar_lea.vmem %s22, %s1185
        %p1188 = scmp.eq.s32.totalorder %s42, 0
        // Predicated region
        $region165: #{wipo_forward.1} parent=115 // pred_check
          %p1189 = pneg %p1188
        $region166: #{wipo_forward.1} parent=115 // pred_check_branch
          %1191 = sbr.rel (%p1189) target = $region168
        $region167: #{wipo_forward.1} parent=115 // pred_region
          %v1192 = vld [vmem:[%s1] sm:$0xff]
          %v1193 = vld [vmem:[%s1 + $0x8] sm:$0xff]
          %v1194 = vld [vmem:[%s1 + $0x10] sm:$0xff]
          %v1195 = vld [vmem:[%s1 + $0x18] sm:$0xff]
          %v1196 = vld [vmem:[%s1 + $0x20] sm:$0xff]
          %v1197 = vld [vmem:[%s1 + $0x28] sm:$0xff]
          %v1198 = vld [vmem:[%s1 + $0x30] sm:$0xff]
          %v1199 = vld [vmem:[%s1 + $0x38] sm:$0xff]
          %v1200 = vld [vmem:[%s1 + $0x40] sm:$0xff]
          %v1201 = vld [vmem:[%s1 + $0x48] sm:$0xff]
          %v1202 = vld [vmem:[%s1 + $0x50] sm:$0xff]
          %v1203 = vld [vmem:[%s1 + $0x58] sm:$0xff]
          %v1204 = vld [vmem:[%s1 + $0x60] sm:$0xff]
          %v1205 = vld [vmem:[%s1 + $0x68] sm:$0xff]
          %v1206 = vld [vmem:[%s1 + $0x70] sm:$0xff]
          %v1207 = vld [vmem:[%s1 + $0x78] sm:$0xff]
          %v1208 = vld [vmem:[%s3] sm:$0x1]
          %v1209 = vmul.f32 %v1192, %v1192
          %v1210 = vmul.f32 %v1193, %v1193
          %v1211 = vmul.f32 %v1194, %v1194
          %v1212 = vmul.f32 %v1195, %v1195
          %v1213 = vmul.f32 %v1196, %v1196
          %v1214 = vmul.f32 %v1197, %v1197
          %v1215 = vmul.f32 %v1198, %v1198
          %v1216 = vmul.f32 %v1199, %v1199
          %v1217 = vmul.f32 %v1200, %v1200
          %v1218 = vmul.f32 %v1201, %v1201
          %v1219 = vmul.f32 %v1202, %v1202
          %v1220 = vmul.f32 %v1203, %v1203
          %v1221 = vmul.f32 %v1204, %v1204
          %v1222 = vmul.f32 %v1205, %v1205
          %v1223 = vmul.f32 %v1206, %v1206
          %v1224 = vmul.f32 %v1207, %v1207
          %vm1225 = vcmask 261120
          %v1226 = vsel %vm1225, %v1209, 0.0
          %1227 = vadd.xlane.f32.xlu0 %v1226
          %v1228 = vpop.xlane.xlu0 %1227
          %v1229 = vsel %vm1225, %v1210, 0.0
          %1230 = vadd.xlane.f32.xlu0 %v1229
          %v1231 = vpop.xlane.xlu0 %1230
          %v1232 = vsel %vm1225, %v1211, 0.0
          %1233 = vadd.xlane.f32.xlu0 %v1232
          %v1234 = vpop.xlane.xlu0 %1233
          %v1235 = vsel %vm1225, %v1212, 0.0
          %1236 = vadd.xlane.f32.xlu0 %v1235
          %v1237 = vpop.xlane.xlu0 %1236
          %v1238 = vsel %vm1225, %v1213, 0.0
          %1239 = vadd.xlane.f32.xlu0 %v1238
          %v1240 = vpop.xlane.xlu0 %1239
          %v1241 = vsel %vm1225, %v1214, 0.0
          %1242 = vadd.xlane.f32.xlu0 %v1241
          %v1243 = vpop.xlane.xlu0 %1242
          %v1244 = vsel %vm1225, %v1215, 0.0
          %1245 = vadd.xlane.f32.xlu0 %v1244
          %v1246 = vpop.xlane.xlu0 %1245
          %v1247 = vsel %vm1225, %v1216, 0.0
          %1248 = vadd.xlane.f32.xlu0 %v1247
          %v1249 = vpop.xlane.xlu0 %1248
          %v1250 = vsel %vm1225, %v1217, 0.0
          %1251 = vadd.xlane.f32.xlu0 %v1250
          %v1252 = vpop.xlane.xlu0 %1251
          %v1253 = vsel %vm1225, %v1218, 0.0
          %1254 = vadd.xlane.f32.xlu0 %v1253
          %v1255 = vpop.xlane.xlu0 %1254
          %v1256 = vsel %vm1225, %v1219, 0.0
          %1257 = vadd.xlane.f32.xlu0 %v1256
          %v1258 = vpop.xlane.xlu0 %1257
          %v1259 = vsel %vm1225, %v1220, 0.0
          %1260 = vadd.xlane.f32.xlu0 %v1259
          %v1261 = vpop.xlane.xlu0 %1260
          %v1262 = vsel %vm1225, %v1221, 0.0
          %1263 = vadd.xlane.f32.xlu0 %v1262
          %v1264 = vpop.xlane.xlu0 %1263
          %v1265 = vsel %vm1225, %v1222, 0.0
          %1266 = vadd.xlane.f32.xlu0 %v1265
          %v1267 = vpop.xlane.xlu0 %1266
          %v1268 = vsel %vm1225, %v1223, 0.0
          %1269 = vadd.xlane.f32.xlu0 %v1268
          %v1270 = vpop.xlane.xlu0 %1269
          %v1271 = vsel %vm1225, %v1224, 0.0
          %1272 = vadd.xlane.f32.xlu0 %v1271
          %v1273 = vpop.xlane.xlu0 %1272
          %v1274 = vrcp.pop 32.0
          %v1275 = vmul.f32 %v1228, %v1274
          %v1276 = vmul.f32 %v1231, %v1274
          %v1277 = vmul.f32 %v1234, %v1274
          %v1278 = vmul.f32 %v1237, %v1274
          %v1279 = vmul.f32 %v1240, %v1274
          %v1280 = vmul.f32 %v1243, %v1274
          %v1281 = vmul.f32 %v1246, %v1274
          %v1282 = vmul.f32 %v1249, %v1274
          %v1283 = vmul.f32 %v1252, %v1274
          %v1284 = vmul.f32 %v1255, %v1274
          %v1285 = vmul.f32 %v1258, %v1274
          %v1286 = vmul.f32 %v1261, %v1274
          %v1287 = vmul.f32 %v1264, %v1274
          %v1288 = vmul.f32 %v1267, %v1274
          %v1289 = vmul.f32 %v1270, %v1274
          %v1290 = vmul.f32 %v1273, %v1274
          %v1291 = vadd.f32 %v1275, 1.1920929e-07
          %v1292 = vadd.f32 %v1276, 1.1920929e-07
          %v1293 = vadd.f32 %v1277, 1.1920929e-07
          %v1294 = vadd.f32 %v1278, 1.1920929e-07
          %v1295 = vadd.f32 %v1279, 1.1920929e-07
          %v1296 = vadd.f32 %v1280, 1.1920929e-07
          %v1297 = vadd.f32 %v1281, 1.1920929e-07
          %v1298 = vadd.f32 %v1282, 1.1920929e-07
          %v1299 = vadd.f32 %v1283, 1.1920929e-07
          %v1300 = vadd.f32 %v1284, 1.1920929e-07
          %v1301 = vadd.f32 %v1285, 1.1920929e-07
          %v1302 = vadd.f32 %v1286, 1.1920929e-07
          %v1303 = vadd.f32 %v1287, 1.1920929e-07
          %v1304 = vadd.f32 %v1288, 1.1920929e-07
          %v1305 = vadd.f32 %v1289, 1.1920929e-07
          %v1306 = vadd.f32 %v1290, 1.1920929e-07
          %v1307 = vrsqrt.pop %v1291
          %v1308 = vrsqrt.pop %v1292
          %v1309 = vrsqrt.pop %v1293
          %v1310 = vrsqrt.pop %v1294
          %v1311 = vrsqrt.pop %v1295
          %v1312 = vrsqrt.pop %v1296
          %v1313 = vrsqrt.pop %v1297
          %v1314 = vrsqrt.pop %v1298
          %v1315 = vrsqrt.pop %v1299
          %v1316 = vrsqrt.pop %v1300
          %v1317 = vrsqrt.pop %v1301
          %v1318 = vrsqrt.pop %v1302
          %v1319 = vrsqrt.pop %v1303
          %v1320 = vrsqrt.pop %v1304
          %v1321 = vrsqrt.pop %v1305
          %v1322 = vrsqrt.pop %v1306
          %v1323 = vmul.f32 %v1192, %v1307
          %v1324 = vmul.f32 %v1193, %v1308
          %v1325 = vmul.f32 %v1194, %v1309
          %v1326 = vmul.f32 %v1195, %v1310
          %v1327 = vmul.f32 %v1196, %v1311
          %v1328 = vmul.f32 %v1197, %v1312
          %v1329 = vmul.f32 %v1198, %v1313
          %v1330 = vmul.f32 %v1199, %v1314
          %v1331 = vmul.f32 %v1200, %v1315
          %v1332 = vmul.f32 %v1201, %v1316
          %v1333 = vmul.f32 %v1202, %v1317
          %v1334 = vmul.f32 %v1203, %v1318
          %v1335 = vmul.f32 %v1204, %v1319
          %v1336 = vmul.f32 %v1205, %v1320
          %v1337 = vmul.f32 %v1206, %v1321
          %v1338 = vmul.f32 %v1207, %v1322
          %v1340 = vlaneseq
          %v1341 = vshrl.u32 %v1340, 7
          %v1342 = vsub.s32 0, %v1341
          %v1343 = vrot.slane %v1208, %v1342
          %v1345 = vmul.f32 %v1323, %v1343
          %v1346 = vmul.f32 %v1324, %v1343
          %v1347 = vmul.f32 %v1325, %v1343
          %v1348 = vmul.f32 %v1326, %v1343
          %v1349 = vmul.f32 %v1327, %v1343
          %v1350 = vmul.f32 %v1328, %v1343
          %v1351 = vmul.f32 %v1329, %v1343
          %v1352 = vmul.f32 %v1330, %v1343
          %v1353 = vmul.f32 %v1331, %v1343
          %v1354 = vmul.f32 %v1332, %v1343
          %v1355 = vmul.f32 %v1333, %v1343
          %v1356 = vmul.f32 %v1334, %v1343
          %v1357 = vmul.f32 %v1335, %v1343
          %v1358 = vmul.f32 %v1336, %v1343
          %v1359 = vmul.f32 %v1337, %v1343
          %v1360 = vmul.f32 %v1338, %v1343
          %1361 = vst.msk [vmem:[#allocation2] sm:$0xff] %vm1225, %v1345
          %1362 = vst.msk [vmem:[#allocation2 + $0x8] sm:$0xff] %vm1225, %v1346
          %1363 = vst.msk [vmem:[#allocation2 + $0x10] sm:$0xff] %vm1225, %v1347
          %1364 = vst.msk [vmem:[#allocation2 + $0x18] sm:$0xff] %vm1225, %v1348
          %1365 = vst.msk [vmem:[#allocation2 + $0x20] sm:$0xff] %vm1225, %v1349
          %1366 = vst.msk [vmem:[#allocation2 + $0x28] sm:$0xff] %vm1225, %v1350
          %1367 = vst.msk [vmem:[#allocation2 + $0x30] sm:$0xff] %vm1225, %v1351
          %1368 = vst.msk [vmem:[#allocation2 + $0x38] sm:$0xff] %vm1225, %v1352
          %1369 = vst.msk [vmem:[#allocation2 + $0x40] sm:$0xff] %vm1225, %v1353
          %1370 = vst.msk [vmem:[#allocation2 + $0x48] sm:$0xff] %vm1225, %v1354
          %1371 = vst.msk [vmem:[#allocation2 + $0x50] sm:$0xff] %vm1225, %v1355
          %1372 = vst.msk [vmem:[#allocation2 + $0x58] sm:$0xff] %vm1225, %v1356
          %1373 = vst.msk [vmem:[#allocation2 + $0x60] sm:$0xff] %vm1225, %v1357
          %1374 = vst.msk [vmem:[#allocation2 + $0x68] sm:$0xff] %vm1225, %v1358
          %1375 = vst.msk [vmem:[#allocation2 + $0x70] sm:$0xff] %vm1225, %v1359
          %1376 = vst.msk [vmem:[#allocation2 + $0x78] sm:$0xff] %vm1225, %v1360
        $region168: #{wipo_forward.1} parent=115 // pred_fallthru
          _
        %p1377 = scmp.eq.s32.totalorder %s42, 2
        // Predicated region
        $region169: #{wipo_forward.1} parent=115 // pred_check
          %p1378 = pneg %p1377
        $region170: #{wipo_forward.1} parent=115 // pred_check_branch
          %1380 = sbr.rel (%p1378) target = $region172
        $region171: #{wipo_forward.1} parent=115 // pred_region
          %v1381 = vld [vmem:[#allocation2] sm:$0xff]
          %v1382 = vld [vmem:[#allocation2 + $0x8] sm:$0xff]
          %v1383 = vld [vmem:[#allocation2 + $0x10] sm:$0xff]
          %v1384 = vld [vmem:[#allocation2 + $0x18] sm:$0xff]
          %v1385 = vld [vmem:[#allocation2 + $0x20] sm:$0xff]
          %v1386 = vld [vmem:[#allocation2 + $0x28] sm:$0xff]
          %v1387 = vld [vmem:[#allocation2 + $0x30] sm:$0xff]
          %v1388 = vld [vmem:[#allocation2 + $0x38] sm:$0xff]
          %v1389 = vld [vmem:[#allocation2 + $0x40] sm:$0xff]
          %v1390 = vld [vmem:[#allocation2 + $0x48] sm:$0xff]
          %v1391 = vld [vmem:[#allocation2 + $0x50] sm:$0xff]
          %v1392 = vld [vmem:[#allocation2 + $0x58] sm:$0xff]
          %v1393 = vld [vmem:[#allocation2 + $0x60] sm:$0xff]
          %v1394 = vld [vmem:[#allocation2 + $0x68] sm:$0xff]
          %v1395 = vld [vmem:[#allocation2 + $0x70] sm:$0xff]
          %v1396 = vld [vmem:[#allocation2 + $0x78] sm:$0xff]
          %vm1397 = vcmask 261120
          %1398 = vst.msk [vmem:[%s25] sm:$0xff] %vm1397, %v1381
          %1399 = vst.msk [vmem:[%s25 + $0x8] sm:$0xff] %vm1397, %v1382
          %1400 = vst.msk [vmem:[%s25 + $0x10] sm:$0xff] %vm1397, %v1383
          %1401 = vst.msk [vmem:[%s25 + $0x18] sm:$0xff] %vm1397, %v1384
          %1402 = vst.msk [vmem:[%s25 + $0x20] sm:$0xff] %vm1397, %v1385
          %1403 = vst.msk [vmem:[%s25 + $0x28] sm:$0xff] %vm1397, %v1386
          %1404 = vst.msk [vmem:[%s25 + $0x30] sm:$0xff] %vm1397, %v1387
          %1405 = vst.msk [vmem:[%s25 + $0x38] sm:$0xff] %vm1397, %v1388
          %1406 = vst.msk [vmem:[%s25 + $0x40] sm:$0xff] %vm1397, %v1389
          %1407 = vst.msk [vmem:[%s25 + $0x48] sm:$0xff] %vm1397, %v1390
          %1408 = vst.msk [vmem:[%s25 + $0x50] sm:$0xff] %vm1397, %v1391
          %1409 = vst.msk [vmem:[%s25 + $0x58] sm:$0xff] %vm1397, %v1392
          %1410 = vst.msk [vmem:[%s25 + $0x60] sm:$0xff] %vm1397, %v1393
          %1411 = vst.msk [vmem:[%s25 + $0x68] sm:$0xff] %vm1397, %v1394
          %1412 = vst.msk [vmem:[%s25 + $0x70] sm:$0xff] %vm1397, %v1395
          %1413 = vst.msk [vmem:[%s25 + $0x78] sm:$0xff] %vm1397, %v1396
          %v1414 = vld [vmem:[%s5] sm:$0xf]
          %v1415 = vld [vmem:[%s5 + $0x4] sm:$0xf]
          %v1416 = vld [vmem:[%s5 + $0x8] sm:$0xf]
          %v1417 = vld [vmem:[%s5 + $0xc] sm:$0xf]
          %v1418 = vpack.c.bf16 %v1382, %v1381
          %v1419 = vpack.c.bf16 %v1384, %v1383
          %v1420 = vpack.c.bf16 %v1386, %v1385
          %v1421 = vpack.c.bf16 %v1388, %v1387
          %v1422 = vpack.c.bf16 %v1390, %v1389
          %v1423 = vpack.c.bf16 %v1392, %v1391
          %v1424 = vpack.c.bf16 %v1394, %v1393
          %v1425 = vpack.c.bf16 %v1396, %v1395
          %v1426 = vld [vmem:[#allocation8] sm:$0x1]
          %v1428 = vlaneseq
          %v1429 = vshrl.u32 %v1428, 7
          %v1430 = vsub.s32 0, %v1429
          %v1431 = vrot.slane %v1426, %v1430
          %v1437 = vunpack.c.l.b16 %v1414
          %v1438 = vunpack.c.l.b16 %v1415
          %v1439 = vunpack.c.l.b16 %v1416
          %v1440 = vunpack.c.l.b16 %v1417
          %v1441 = vpack.c.b16 %v1438, %v1437
          %v1442 = vpack.c.b16 %v1440, %v1439
          %v1446 = vsel %vm1397, %v1418, 0
          %v1449 = vsel %vm1397, %v1419, 0
          %v1452 = vsel %vm1397, %v1420, 0
          %v1455 = vsel %vm1397, %v1421, 0
          %v1458 = vsel %vm1397, %v1422, 0
          %v1461 = vsel %vm1397, %v1423, 0
          %v1464 = vsel %vm1397, %v1424, 0
          %v1467 = vsel %vm1397, %v1425, 0
          %1469 = vmatprep.subr.bf16.mxu0 0
          %1470 = vmatpush1.bf16.msra.mxu0 %v1441
          %1471 = vmatprep.subr.bf16.mxu0 0
          %1472 = vmatpush1.bf16.msra.mxu0 %v1442
          %1473 = vmatprep.subr.bf16.mxu0 0
          %1474 = vmatpush1.bf16.msra.mxu0 0
          %1475 = vmatprep.subr.bf16.mxu0 0
          %1476 = vmatpush1.bf16.msra.mxu0 0
          %1477 = vmatprep.subr.bf16.mxu0 0
          %1478 = vmatpush1.bf16.msra.mxu0 0
          %1479 = vmatprep.subr.bf16.mxu0 0
          %1480 = vmatpush1.bf16.msra.mxu0 0
          %1481 = vmatprep.subr.bf16.mxu0 0
          %1482 = vmatpush1.bf16.msra.mxu0 0
          %1483 = vmatprep.subr.bf16.mxu0 0
          %1484 = vmatpush1.bf16.msra.mxu0 0
          %1485 = vmatprep.subr.bf16.mxu0 0
          %1486 = vmatpush1.bf16.msra.mxu0 0
          %1487 = vmatprep.subr.bf16.mxu0 0
          %1488 = vmatpush1.bf16.msra.mxu0 0
          %1489 = vmatprep.subr.bf16.mxu0 0
          %1490 = vmatpush1.bf16.msra.mxu0 0
          %1491 = vmatprep.subr.bf16.mxu0 0
          %1492 = vmatpush1.bf16.msra.mxu0 0
          %1493 = vmatprep.subr.bf16.mxu0 0
          %1494 = vmatpush1.bf16.msra.mxu0 0
          %1495 = vmatprep.subr.bf16.mxu0 0
          %1496 = vmatpush1.bf16.msra.mxu0 0
          %1497 = vmatprep.subr.bf16.mxu0 0
          %1498 = vmatpush1.bf16.msra.mxu0 0
          %1499 = vmatprep.subr.bf16.mxu0 0
          %1500 = vmatpush1.bf16.msra.mxu0 0
          %1501 = vmatprep.mubr.bf16.mxu0 0
          %1502 = vmatmul.mubr.bf16.gmra.mrb[0].mxu0 %v1446
          %v1503 = vpop.f32.mrb[0].mxu0
          %v1504 = vadd.f32 %v1431, %v1503
          %v1505 = vpop.f32.mrb[0].mxu0
          %v1506 = vpop.f32.mrb[0].mxu0
          %v1507 = vadd.f32 %v1431, %v1506
          %v1508 = vpop.f32.mrb[0].mxu0
          %1509 = vmatprep.mubr.bf16.mxu0 0
          %1510 = vmatmul.mubr.bf16.gmra.mrb[0].mxu0 %v1449
          %v1511 = vpop.f32.mrb[0].mxu0
          %v1512 = vadd.f32 %v1431, %v1511
          %v1513 = vpop.f32.mrb[0].mxu0
          %v1514 = vpop.f32.mrb[0].mxu0
          %v1515 = vadd.f32 %v1431, %v1514
          %v1516 = vpop.f32.mrb[0].mxu0
          %1517 = vmatprep.mubr.bf16.mxu0 0
          %1518 = vmatmul.mubr.bf16.gmra.mrb[0].mxu0 %v1452
          %v1519 = vpop.f32.mrb[0].mxu0
          %v1520 = vadd.f32 %v1431, %v1519
          %v1521 = vpop.f32.mrb[0].mxu0
          %v1522 = vpop.f32.mrb[0].mxu0
          %v1523 = vadd.f32 %v1431, %v1522
          %v1524 = vpop.f32.mrb[0].mxu0
          %1525 = vmatprep.mubr.bf16.mxu0 0
          %1526 = vmatmul.mubr.bf16.gmra.mrb[0].mxu0 %v1455
          %v1527 = vpop.f32.mrb[0].mxu0
          %v1528 = vadd.f32 %v1431, %v1527
          %v1529 = vpop.f32.mrb[0].mxu0
          %v1530 = vpop.f32.mrb[0].mxu0
          %v1531 = vadd.f32 %v1431, %v1530
          %v1532 = vpop.f32.mrb[0].mxu0
          %1533 = vmatprep.mubr.bf16.mxu0 0
          %1534 = vmatmul.mubr.bf16.gmra.mrb[0].mxu0 %v1458
          %v1535 = vpop.f32.mrb[0].mxu0
          %v1536 = vadd.f32 %v1431, %v1535
          %v1537 = vpop.f32.mrb[0].mxu0
          %v1538 = vpop.f32.mrb[0].mxu0
          %v1539 = vadd.f32 %v1431, %v1538
          %v1540 = vpop.f32.mrb[0].mxu0
          %1541 = vmatprep.mubr.bf16.mxu0 0
          %1542 = vmatmul.mubr.bf16.gmra.mrb[0].mxu0 %v1461
          %v1543 = vpop.f32.mrb[0].mxu0
          %v1544 = vadd.f32 %v1431, %v1543
          %v1545 = vpop.f32.mrb[0].mxu0
          %v1546 = vpop.f32.mrb[0].mxu0
          %v1547 = vadd.f32 %v1431, %v1546
          %v1548 = vpop.f32.mrb[0].mxu0
          %1549 = vmatprep.mubr.bf16.mxu0 0
          %1550 = vmatmul.mubr.bf16.gmra.mrb[0].mxu0 %v1464
          %v1551 = vpop.f32.mrb[0].mxu0
          %v1552 = vadd.f32 %v1431, %v1551
          %v1553 = vpop.f32.mrb[0].mxu0
          %v1554 = vpop.f32.mrb[0].mxu0
          %v1555 = vadd.f32 %v1431, %v1554
          %v1556 = vpop.f32.mrb[0].mxu0
          %1557 = vmatprep.mubr.bf16.mxu0 0
          %1558 = vmatmul.mubr.bf16.gmra.mrb[0].mxu0 %v1467
          %v1559 = vpop.f32.mrb[0].mxu0
          %v1560 = vadd.f32 %v1431, %v1559
          %v1561 = vpop.f32.mrb[0].mxu0
          %v1562 = vpop.f32.mrb[0].mxu0
          %v1563 = vadd.f32 %v1431, %v1562
          %v1564 = vpop.f32.mrb[0].mxu0
          %1565 = vdwg.mxu0
          %v1566 = vmul.f32 %v1504, %v1504
          %v1567 = vmul.f32 %v1507, %v1507
          %v1568 = vmul.f32 %v1512, %v1512
          %v1569 = vmul.f32 %v1515, %v1515
          %v1570 = vmul.f32 %v1520, %v1520
          %v1571 = vmul.f32 %v1523, %v1523
          %v1572 = vmul.f32 %v1528, %v1528
          %v1573 = vmul.f32 %v1531, %v1531
          %v1574 = vmul.f32 %v1536, %v1536
          %v1575 = vmul.f32 %v1539, %v1539
          %v1576 = vmul.f32 %v1544, %v1544
          %v1577 = vmul.f32 %v1547, %v1547
          %v1578 = vmul.f32 %v1552, %v1552
          %v1579 = vmul.f32 %v1555, %v1555
          %v1580 = vmul.f32 %v1560, %v1560
          %v1581 = vmul.f32 %v1563, %v1563
          %vm1582 = vcmask 130048
          %v1583 = vsel %vm1582, %v1566, 0.0
          %v1584 = vsel %vm1582, %v1567, 0.0
          %v1585 = vadd.f32 %v1583, %v1584
          %v1586 = vsel %vm1582, %v1568, 0.0
          %v1587 = vadd.f32 %v1585, %v1586
          %v1588 = vsel %vm1582, %v1569, 0.0
          %v1589 = vadd.f32 %v1587, %v1588
          %v1590 = vsel %vm1582, %v1570, 0.0
          %v1591 = vadd.f32 %v1589, %v1590
          %v1592 = vsel %vm1582, %v1571, 0.0
          %v1593 = vadd.f32 %v1591, %v1592
          %v1594 = vsel %vm1582, %v1572, 0.0
          %v1595 = vadd.f32 %v1593, %v1594
          %v1596 = vsel %vm1582, %v1573, 0.0
          %v1597 = vadd.f32 %v1595, %v1596
          %v1598 = vsel %vm1582, %v1574, 0.0
          %v1599 = vadd.f32 %v1597, %v1598
          %v1600 = vsel %vm1582, %v1575, 0.0
          %v1601 = vadd.f32 %v1599, %v1600
          %v1602 = vsel %vm1582, %v1576, 0.0
          %v1603 = vadd.f32 %v1601, %v1602
          %v1604 = vsel %vm1582, %v1577, 0.0
          %v1605 = vadd.f32 %v1603, %v1604
          %v1606 = vsel %vm1582, %v1578, 0.0
          %v1607 = vadd.f32 %v1605, %v1606
          %v1608 = vsel %vm1582, %v1579, 0.0
          %v1609 = vadd.f32 %v1607, %v1608
          %v1610 = vsel %vm1582, %v1580, 0.0
          %v1611 = vadd.f32 %v1609, %v1610
          %v1612 = vsel %vm1582, %v1581, 0.0
          %v1613 = vadd.f32 %v1611, %v1612
          %1614 = vadd.xlane.f32.xlu0 %v1613
          %v1615 = vpop.xlane.xlu0 %1614
          %v1616 = vrot.slane %v1615, 4
          %v1617 = vadd.f32 %v1615, %v1616
          %v1618 = vrot.slane %v1617, 2
          %v1619 = vadd.f32 %v1617, %v1618
          %v1620 = vrot.slane %v1619, 1
          %v1621 = vadd.f32 %v1619, %v1620
          %s1622 = vtos %v1621
          %v1623 = vrcp.pop 2048.0
          %s1624 = vtos %v1623
          %s1625 = smul.f32 %s1622, %s1624
          %v1626 = vld [vmem:[%s2] sm:$0xff]
          %v1627 = vld [vmem:[%s2 + $0x8] sm:$0xff]
          %v1628 = vld [vmem:[%s2 + $0x10] sm:$0xff]
          %v1629 = vld [vmem:[%s2 + $0x18] sm:$0xff]
          %v1630 = vld [vmem:[%s2 + $0x20] sm:$0xff]
          %v1631 = vld [vmem:[%s2 + $0x28] sm:$0xff]
          %v1632 = vld [vmem:[%s2 + $0x30] sm:$0xff]
          %v1633 = vld [vmem:[%s2 + $0x38] sm:$0xff]
          %v1634 = vld [vmem:[%s2 + $0x40] sm:$0xff]
          %v1635 = vld [vmem:[%s2 + $0x48] sm:$0xff]
          %v1636 = vld [vmem:[%s2 + $0x50] sm:$0xff]
          %v1637 = vld [vmem:[%s2 + $0x58] sm:$0xff]
          %v1638 = vld [vmem:[%s2 + $0x60] sm:$0xff]
          %v1639 = vld [vmem:[%s2 + $0x68] sm:$0xff]
          %v1640 = vld [vmem:[%s2 + $0x70] sm:$0xff]
          %v1641 = vld [vmem:[%s2 + $0x78] sm:$0xff]
          %s1642 = smul.f32 %s1625, 2.0
          %v1643 = vstv %s1642
          %v1644 = vrsqrt.pop %v1643
          %v1645 = vmul.f32 %v1643, %v1644
          %vm1646 = vcmp.eq.f32.partialorder %v1643, inf
          %v1647 = vsel %vm1646, %v1643, %v1645
          %vm1648 = vcmp.eq.f32.partialorder %v1643, 0.0
          %v1649 = vand.u32 %v1643, 2147483648
          %v1650 = vsel %vm1648, %v1649, %v1647
          %s1651 = vtos %v1650
          %s1652 = sld [smem:[#allocation4]]
          %s1653 = smul.f32 %s1651, %s1652
          %v1654 = vstv %s1653
          %v1655 = vmul.f32 %v1626, %v1654
          %v1656 = vmul.f32 %v1627, %v1654
          %v1657 = vmul.f32 %v1628, %v1654
          %v1658 = vmul.f32 %v1629, %v1654
          %v1659 = vmul.f32 %v1630, %v1654
          %v1660 = vmul.f32 %v1631, %v1654
          %v1661 = vmul.f32 %v1632, %v1654
          %v1662 = vmul.f32 %v1633, %v1654
          %v1663 = vmul.f32 %v1634, %v1654
          %v1664 = vmul.f32 %v1635, %v1654
          %v1665 = vmul.f32 %v1636, %v1654
          %v1666 = vmul.f32 %v1637, %v1654
          %v1667 = vmul.f32 %v1638, %v1654
          %v1668 = vmul.f32 %v1639, %v1654
          %v1669 = vmul.f32 %v1640, %v1654
          %v1670 = vmul.f32 %v1641, %v1654
          %v1671 = vadd.f32 %v1504, %v1655
          %v1672 = vadd.f32 %v1507, %v1656
          %v1673 = vadd.f32 %v1512, %v1657
          %v1674 = vadd.f32 %v1515, %v1658
          %v1675 = vadd.f32 %v1520, %v1659
          %v1676 = vadd.f32 %v1523, %v1660
          %v1677 = vadd.f32 %v1528, %v1661
          %v1678 = vadd.f32 %v1531, %v1662
          %v1679 = vadd.f32 %v1536, %v1663
          %v1680 = vadd.f32 %v1539, %v1664
          %v1681 = vadd.f32 %v1544, %v1665
          %v1682 = vadd.f32 %v1547, %v1666
          %v1683 = vadd.f32 %v1552, %v1667
          %v1684 = vadd.f32 %v1555, %v1668
          %v1685 = vadd.f32 %v1560, %v1669
          %v1686 = vadd.f32 %v1563, %v1670
          %v1687 = vld [vmem:[#allocation10] sm:$0xf]
          %v1688 = vld [vmem:[#allocation10 + $0x4] sm:$0xf]
          %v1689 = vpack.c.bf16 %v1672, %v1671
          %v1690 = vpack.c.bf16 %v1674, %v1673
          %v1691 = vpack.c.bf16 %v1676, %v1675
          %v1692 = vpack.c.bf16 %v1678, %v1677
          %v1693 = vpack.c.bf16 %v1680, %v1679
          %v1694 = vpack.c.bf16 %v1682, %v1681
          %v1695 = vpack.c.bf16 %v1684, %v1683
          %v1696 = vpack.c.bf16 %v1686, %v1685
          %v1697 = vld [vmem:[#allocation11] sm:$0x1]
          %v1699 = vlaneseq
          %v1700 = vshrl.u32 %v1699, 7
          %v1701 = vsub.s32 0, %v1700
          %v1702 = vrot.slane %v1697, %v1701
          %v1706 = vunpack.c.l.b16 %v1687
          %v1707 = vunpack.c.l.b16 %v1688
          %v1708 = vpack.c.b16 %v1707, %v1706
          %v1711 = vsel %vm1582, %v1689, 0
          %v1714 = vsel %vm1582, %v1690, 0
          %v1717 = vsel %vm1582, %v1691, 0
          %v1720 = vsel %vm1582, %v1692, 0
          %v1723 = vsel %vm1582, %v1693, 0
          %v1726 = vsel %vm1582, %v1694, 0
          %v1729 = vsel %vm1582, %v1695, 0
          %v1732 = vsel %vm1582, %v1696, 0
          %1734 = vmatprep.subr.bf16.mxu0 0
          %1735 = vmatpush1.bf16.msra.mxu0 %v1708
          %1736 = vmatprep.subr.bf16.mxu0 0
          %1737 = vmatpush1.bf16.msra.mxu0 0
          %1738 = vmatprep.subr.bf16.mxu0 0
          %1739 = vmatpush1.bf16.msra.mxu0 0
          %1740 = vmatprep.subr.bf16.mxu0 0
          %1741 = vmatpush1.bf16.msra.mxu0 0
          %1742 = vmatprep.subr.bf16.mxu0 0
          %1743 = vmatpush1.bf16.msra.mxu0 0
          %1744 = vmatprep.subr.bf16.mxu0 0
          %1745 = vmatpush1.bf16.msra.mxu0 0
          %1746 = vmatprep.subr.bf16.mxu0 0
          %1747 = vmatpush1.bf16.msra.mxu0 0
          %1748 = vmatprep.subr.bf16.mxu0 0
          %1749 = vmatpush1.bf16.msra.mxu0 0
          %1750 = vmatprep.subr.bf16.mxu0 0
          %1751 = vmatpush1.bf16.msra.mxu0 0
          %1752 = vmatprep.subr.bf16.mxu0 0
          %1753 = vmatpush1.bf16.msra.mxu0 0
          %1754 = vmatprep.subr.bf16.mxu0 0
          %1755 = vmatpush1.bf16.msra.mxu0 0
          %1756 = vmatprep.subr.bf16.mxu0 0
          %1757 = vmatpush1.bf16.msra.mxu0 0
          %1758 = vmatprep.subr.bf16.mxu0 0
          %1759 = vmatpush1.bf16.msra.mxu0 0
          %1760 = vmatprep.subr.bf16.mxu0 0
          %1761 = vmatpush1.bf16.msra.mxu0 0
          %1762 = vmatprep.subr.bf16.mxu0 0
          %1763 = vmatpush1.bf16.msra.mxu0 0
          %1764 = vmatprep.subr.bf16.mxu0 0
          %1765 = vmatpush1.bf16.msra.mxu0 0
          %1766 = vmatprep.mubr.bf16.mxu0 0
          %1767 = vmatmul.mubr.bf16.gmra.mrb[0].mxu0 %v1711
          %v1768 = vpop.f32.mrb[0].mxu0
          %v1769 = vadd.f32 %v1702, %v1768
          %v1770 = vpop.f32.mrb[0].mxu0
          %v1771 = vpop.f32.mrb[0].mxu0
          %v1772 = vadd.f32 %v1702, %v1771
          %v1773 = vpop.f32.mrb[0].mxu0
          %1774 = vmatprep.mubr.bf16.mxu0 0
          %1775 = vmatmul.mubr.bf16.gmra.mrb[0].mxu0 %v1714
          %v1776 = vpop.f32.mrb[0].mxu0
          %v1777 = vadd.f32 %v1702, %v1776
          %v1778 = vpop.f32.mrb[0].mxu0
          %v1779 = vpop.f32.mrb[0].mxu0
          %v1780 = vadd.f32 %v1702, %v1779
          %v1781 = vpop.f32.mrb[0].mxu0
          %1782 = vmatprep.mubr.bf16.mxu0 0
          %1783 = vmatmul.mubr.bf16.gmra.mrb[0].mxu0 %v1717
          %v1784 = vpop.f32.mrb[0].mxu0
          %v1785 = vadd.f32 %v1702, %v1784
          %v1786 = vpop.f32.mrb[0].mxu0
          %v1787 = vpop.f32.mrb[0].mxu0
          %v1788 = vadd.f32 %v1702, %v1787
          %v1789 = vpop.f32.mrb[0].mxu0
          %1790 = vmatprep.mubr.bf16.mxu0 0
          %1791 = vmatmul.mubr.bf16.gmra.mrb[0].mxu0 %v1720
          %v1792 = vpop.f32.mrb[0].mxu0
          %v1793 = vadd.f32 %v1702, %v1792
          %v1794 = vpop.f32.mrb[0].mxu0
          %v1795 = vpop.f32.mrb[0].mxu0
          %v1796 = vadd.f32 %v1702, %v1795
          %v1797 = vpop.f32.mrb[0].mxu0
          %1798 = vmatprep.mubr.bf16.mxu0 0
          %1799 = vmatmul.mubr.bf16.gmra.mrb[0].mxu0 %v1723
          %v1800 = vpop.f32.mrb[0].mxu0
          %v1801 = vadd.f32 %v1702, %v1800
          %v1802 = vpop.f32.mrb[0].mxu0
          %v1803 = vpop.f32.mrb[0].mxu0
          %v1804 = vadd.f32 %v1702, %v1803
          %v1805 = vpop.f32.mrb[0].mxu0
          %1806 = vmatprep.mubr.bf16.mxu0 0
          %1807 = vmatmul.mubr.bf16.gmra.mrb[0].mxu0 %v1726
          %v1808 = vpop.f32.mrb[0].mxu0
          %v1809 = vadd.f32 %v1702, %v1808
          %v1810 = vpop.f32.mrb[0].mxu0
          %v1811 = vpop.f32.mrb[0].mxu0
          %v1812 = vadd.f32 %v1702, %v1811
          %v1813 = vpop.f32.mrb[0].mxu0
          %1814 = vmatprep.mubr.bf16.mxu0 0
          %1815 = vmatmul.mubr.bf16.gmra.mrb[0].mxu0 %v1729
          %v1816 = vpop.f32.mrb[0].mxu0
          %v1817 = vadd.f32 %v1702, %v1816
          %v1818 = vpop.f32.mrb[0].mxu0
          %v1819 = vpop.f32.mrb[0].mxu0
          %v1820 = vadd.f32 %v1702, %v1819
          %v1821 = vpop.f32.mrb[0].mxu0
          %1822 = vmatprep.mubr.bf16.mxu0 0
          %1823 = vmatmul.mubr.bf16.gmra.mrb[0].mxu0 %v1732
          %v1824 = vpop.f32.mrb[0].mxu0
          %v1825 = vadd.f32 %v1702, %v1824
          %v1826 = vpop.f32.mrb[0].mxu0
          %v1827 = vpop.f32.mrb[0].mxu0
          %v1828 = vadd.f32 %v1702, %v1827
          %v1829 = vpop.f32.mrb[0].mxu0
          %1830 = vdwg.mxu0
          %1831 = vst.msk [vmem:[%s26] sm:$0xff] %vm1397, %v1769
          %1832 = vst.msk [vmem:[%s26 + $0x8] sm:$0xff] %vm1397, %v1772
          %1833 = vst.msk [vmem:[%s26 + $0x10] sm:$0xff] %vm1397, %v1777
          %1834 = vst.msk [vmem:[%s26 + $0x18] sm:$0xff] %vm1397, %v1780
          %1835 = vst.msk [vmem:[%s26 + $0x20] sm:$0xff] %vm1397, %v1785
          %1836 = vst.msk [vmem:[%s26 + $0x28] sm:$0xff] %vm1397, %v1788
          %1837 = vst.msk [vmem:[%s26 + $0x30] sm:$0xff] %vm1397, %v1793
          %1838 = vst.msk [vmem:[%s26 + $0x38] sm:$0xff] %vm1397, %v1796
          %1839 = vst.msk [vmem:[%s26 + $0x40] sm:$0xff] %vm1397, %v1801
          %1840 = vst.msk [vmem:[%s26 + $0x48] sm:$0xff] %vm1397, %v1804
          %1841 = vst.msk [vmem:[%s26 + $0x50] sm:$0xff] %vm1397, %v1809
          %1842 = vst.msk [vmem:[%s26 + $0x58] sm:$0xff] %vm1397, %v1812
          %1843 = vst.msk [vmem:[%s26 + $0x60] sm:$0xff] %vm1397, %v1817
          %1844 = vst.msk [vmem:[%s26 + $0x68] sm:$0xff] %vm1397, %v1820
          %1845 = vst.msk [vmem:[%s26 + $0x70] sm:$0xff] %vm1397, %v1825
          %1846 = vst.msk [vmem:[%s26 + $0x78] sm:$0xff] %vm1397, %v1828
          %1847 = vst.msk [vmem:[#allocation2] sm:$0xff] %vm1397, %v1769
          %1848 = vst.msk [vmem:[#allocation2 + $0x8] sm:$0xff] %vm1397, %v1772
          %1849 = vst.msk [vmem:[#allocation2 + $0x10] sm:$0xff] %vm1397, %v1777
          %1850 = vst.msk [vmem:[#allocation2 + $0x18] sm:$0xff] %vm1397, %v1780
          %1851 = vst.msk [vmem:[#allocation2 + $0x20] sm:$0xff] %vm1397, %v1785
          %1852 = vst.msk [vmem:[#allocation2 + $0x28] sm:$0xff] %vm1397, %v1788
          %1853 = vst.msk [vmem:[#allocation2 + $0x30] sm:$0xff] %vm1397, %v1793
          %1854 = vst.msk [vmem:[#allocation2 + $0x38] sm:$0xff] %vm1397, %v1796
          %1855 = vst.msk [vmem:[#allocation2 + $0x40] sm:$0xff] %vm1397, %v1801
          %1856 = vst.msk [vmem:[#allocation2 + $0x48] sm:$0xff] %vm1397, %v1804
          %1857 = vst.msk [vmem:[#allocation2 + $0x50] sm:$0xff] %vm1397, %v1809
          %1858 = vst.msk [vmem:[#allocation2 + $0x58] sm:$0xff] %vm1397, %v1812
          %1859 = vst.msk [vmem:[#allocation2 + $0x60] sm:$0xff] %vm1397, %v1817
          %1860 = vst.msk [vmem:[#allocation2 + $0x68] sm:$0xff] %vm1397, %v1820
          %1861 = vst.msk [vmem:[#allocation2 + $0x70] sm:$0xff] %vm1397, %v1825
          %1862 = vst.msk [vmem:[#allocation2 + $0x78] sm:$0xff] %vm1397, %v1828
        $region172: #{wipo_forward.1} parent=115 // pred_fallthru
          _
        %v1863 = vld [vmem:[#allocation2] sm:$0xff]
        %v1864 = vld [vmem:[#allocation2 + $0x8] sm:$0xff]
        %v1865 = vld [vmem:[#allocation2 + $0x10] sm:$0xff]
        %v1866 = vld [vmem:[#allocation2 + $0x18] sm:$0xff]
        %v1867 = vld [vmem:[#allocation2 + $0x20] sm:$0xff]
        %v1868 = vld [vmem:[#allocation2 + $0x28] sm:$0xff]
        %v1869 = vld [vmem:[#allocation2 + $0x30] sm:$0xff]
        %v1870 = vld [vmem:[#allocation2 + $0x38] sm:$0xff]
        %v1871 = vld [vmem:[#allocation2 + $0x40] sm:$0xff]
        %v1872 = vld [vmem:[#allocation2 + $0x48] sm:$0xff]
        %v1873 = vld [vmem:[#allocation2 + $0x50] sm:$0xff]
        %v1874 = vld [vmem:[#allocation2 + $0x58] sm:$0xff]
        %v1875 = vld [vmem:[#allocation2 + $0x60] sm:$0xff]
        %v1876 = vld [vmem:[#allocation2 + $0x68] sm:$0xff]
        %v1877 = vld [vmem:[#allocation2 + $0x70] sm:$0xff]
        %v1878 = vld [vmem:[#allocation2 + $0x78] sm:$0xff]
        %v1879 = vld [vmem:[%s1152] sm:$0x1]
        %v1880 = vmul.f32 %v1863, %v1863
        %v1881 = vmul.f32 %v1864, %v1864
        %v1882 = vmul.f32 %v1865, %v1865
        %v1883 = vmul.f32 %v1866, %v1866
        %v1884 = vmul.f32 %v1867, %v1867
        %v1885 = vmul.f32 %v1868, %v1868
        %v1886 = vmul.f32 %v1869, %v1869
        %v1887 = vmul.f32 %v1870, %v1870
        %v1888 = vmul.f32 %v1871, %v1871
        %v1889 = vmul.f32 %v1872, %v1872
        %v1890 = vmul.f32 %v1873, %v1873
        %v1891 = vmul.f32 %v1874, %v1874
        %v1892 = vmul.f32 %v1875, %v1875
        %v1893 = vmul.f32 %v1876, %v1876
        %v1894 = vmul.f32 %v1877, %v1877
        %v1895 = vmul.f32 %v1878, %v1878
        %vm1896 = vcmask 261120
        %v1897 = vsel %vm1896, %v1880, 0.0
        %1898 = vadd.xlane.f32.xlu0 %v1897
        %v1899 = vpop.xlane.xlu0 %1898
        %v1900 = vsel %vm1896, %v1881, 0.0
        %1901 = vadd.xlane.f32.xlu0 %v1900
        %v1902 = vpop.xlane.xlu0 %1901
        %v1903 = vsel %vm1896, %v1882, 0.0
        %1904 = vadd.xlane.f32.xlu0 %v1903
        %v1905 = vpop.xlane.xlu0 %1904
        %v1906 = vsel %vm1896, %v1883, 0.0
        %1907 = vadd.xlane.f32.xlu0 %v1906
        %v1908 = vpop.xlane.xlu0 %1907
        %v1909 = vsel %vm1896, %v1884, 0.0
        %1910 = vadd.xlane.f32.xlu0 %v1909
        %v1911 = vpop.xlane.xlu0 %1910
        %v1912 = vsel %vm1896, %v1885, 0.0
        %1913 = vadd.xlane.f32.xlu0 %v1912
        %v1914 = vpop.xlane.xlu0 %1913
        %v1915 = vsel %vm1896, %v1886, 0.0
        %1916 = vadd.xlane.f32.xlu0 %v1915
        %v1917 = vpop.xlane.xlu0 %1916
        %v1918 = vsel %vm1896, %v1887, 0.0
        %1919 = vadd.xlane.f32.xlu0 %v1918
        %v1920 = vpop.xlane.xlu0 %1919
        %v1921 = vsel %vm1896, %v1888, 0.0
        %1922 = vadd.xlane.f32.xlu0 %v1921
        %v1923 = vpop.xlane.xlu0 %1922
        %v1924 = vsel %vm1896, %v1889, 0.0
        %1925 = vadd.xlane.f32.xlu0 %v1924
        %v1926 = vpop.xlane.xlu0 %1925
        %v1927 = vsel %vm1896, %v1890, 0.0
        %1928 = vadd.xlane.f32.xlu0 %v1927
        %v1929 = vpop.xlane.xlu0 %1928
        %v1930 = vsel %vm1896, %v1891, 0.0
        %1931 = vadd.xlane.f32.xlu0 %v1930
        %v1932 = vpop.xlane.xlu0 %1931
        %v1933 = vsel %vm1896, %v1892, 0.0
        %1934 = vadd.xlane.f32.xlu0 %v1933
        %v1935 = vpop.xlane.xlu0 %1934
        %v1936 = vsel %vm1896, %v1893, 0.0
        %1937 = vadd.xlane.f32.xlu0 %v1936
        %v1938 = vpop.xlane.xlu0 %1937
        %v1939 = vsel %vm1896, %v1894, 0.0
        %1940 = vadd.xlane.f32.xlu0 %v1939
        %v1941 = vpop.xlane.xlu0 %1940
        %v1942 = vsel %vm1896, %v1895, 0.0
        %1943 = vadd.xlane.f32.xlu0 %v1942
        %v1944 = vpop.xlane.xlu0 %1943
        %v1945 = vrcp.pop 32.0
        %v1946 = vmul.f32 %v1899, %v1945
        %v1947 = vmul.f32 %v1902, %v1945
        %v1948 = vmul.f32 %v1905, %v1945
        %v1949 = vmul.f32 %v1908, %v1945
        %v1950 = vmul.f32 %v1911, %v1945
        %v1951 = vmul.f32 %v1914, %v1945
        %v1952 = vmul.f32 %v1917, %v1945
        %v1953 = vmul.f32 %v1920, %v1945
        %v1954 = vmul.f32 %v1923, %v1945
        %v1955 = vmul.f32 %v1926, %v1945
        %v1956 = vmul.f32 %v1929, %v1945
        %v1957 = vmul.f32 %v1932, %v1945
        %v1958 = vmul.f32 %v1935, %v1945
        %v1959 = vmul.f32 %v1938, %v1945
        %v1960 = vmul.f32 %v1941, %v1945
        %v1961 = vmul.f32 %v1944, %v1945
        %v1962 = vadd.f32 %v1946, 1.1920929e-07
        %v1963 = vadd.f32 %v1947, 1.1920929e-07
        %v1964 = vadd.f32 %v1948, 1.1920929e-07
        %v1965 = vadd.f32 %v1949, 1.1920929e-07
        %v1966 = vadd.f32 %v1950, 1.1920929e-07
        %v1967 = vadd.f32 %v1951, 1.1920929e-07
        %v1968 = vadd.f32 %v1952, 1.1920929e-07
        %v1969 = vadd.f32 %v1953, 1.1920929e-07
        %v1970 = vadd.f32 %v1954, 1.1920929e-07
        %v1971 = vadd.f32 %v1955, 1.1920929e-07
        %v1972 = vadd.f32 %v1956, 1.1920929e-07
        %v1973 = vadd.f32 %v1957, 1.1920929e-07
        %v1974 = vadd.f32 %v1958, 1.1920929e-07
        %v1975 = vadd.f32 %v1959, 1.1920929e-07
        %v1976 = vadd.f32 %v1960, 1.1920929e-07
        %v1977 = vadd.f32 %v1961, 1.1920929e-07
        %v1978 = vrsqrt.pop %v1962
        %v1979 = vrsqrt.pop %v1963
        %v1980 = vrsqrt.pop %v1964
        %v1981 = vrsqrt.pop %v1965
        %v1982 = vrsqrt.pop %v1966
        %v1983 = vrsqrt.pop %v1967
        %v1984 = vrsqrt.pop %v1968
        %v1985 = vrsqrt.pop %v1969
        %v1986 = vrsqrt.pop %v1970
        %v1987 = vrsqrt.pop %v1971
        %v1988 = vrsqrt.pop %v1972
        %v1989 = vrsqrt.pop %v1973
        %v1990 = vrsqrt.pop %v1974
        %v1991 = vrsqrt.pop %v1975
        %v1992 = vrsqrt.pop %v1976
        %v1993 = vrsqrt.pop %v1977
        %v1994 = vmul.f32 %v1863, %v1978
        %v1995 = vmul.f32 %v1864, %v1979
        %v1996 = vmul.f32 %v1865, %v1980
        %v1997 = vmul.f32 %v1866, %v1981
        %v1998 = vmul.f32 %v1867, %v1982
        %v1999 = vmul.f32 %v1868, %v1983
        %v2000 = vmul.f32 %v1869, %v1984
        %v2001 = vmul.f32 %v1870, %v1985
        %v2002 = vmul.f32 %v1871, %v1986
        %v2003 = vmul.f32 %v1872, %v1987
        %v2004 = vmul.f32 %v1873, %v1988
        %v2005 = vmul.f32 %v1874, %v1989
        %v2006 = vmul.f32 %v1875, %v1990
        %v2007 = vmul.f32 %v1876, %v1991
        %v2008 = vmul.f32 %v1877, %v1992
        %v2009 = vmul.f32 %v1878, %v1993
        %v2011 = vlaneseq
        %v2012 = vshrl.u32 %v2011, 7
        %v2013 = vsub.s32 0, %v2012
        %v2014 = vrot.slane %v1879, %v2013
        %v2016 = vmul.f32 %v1994, %v2014
        %v2017 = vmul.f32 %v1995, %v2014
        %v2018 = vmul.f32 %v1996, %v2014
        %v2019 = vmul.f32 %v1997, %v2014
        %v2020 = vmul.f32 %v1998, %v2014
        %v2021 = vmul.f32 %v1999, %v2014
        %v2022 = vmul.f32 %v2000, %v2014
        %v2023 = vmul.f32 %v2001, %v2014
        %v2024 = vmul.f32 %v2002, %v2014
        %v2025 = vmul.f32 %v2003, %v2014
        %v2026 = vmul.f32 %v2004, %v2014
        %v2027 = vmul.f32 %v2005, %v2014
        %v2028 = vmul.f32 %v2006, %v2014
        %v2029 = vmul.f32 %v2007, %v2014
        %v2030 = vmul.f32 %v2008, %v2014
        %v2031 = vmul.f32 %v2009, %v2014
        %v2032 = vld [vmem:[%s1157] sm:$0xf]
        %v2033 = vld [vmem:[%s1157 + $0x4] sm:$0xf]
        %v2034 = vld [vmem:[%s1157 + $0x8] sm:$0xf]
        %v2035 = vld [vmem:[%s1157 + $0xc] sm:$0xf]
        %v2036 = vpack.c.bf16 %v2017, %v2016
        %v2037 = vpack.c.bf16 %v2019, %v2018
        %v2038 = vpack.c.bf16 %v2021, %v2020
        %v2039 = vpack.c.bf16 %v2023, %v2022
        %v2040 = vpack.c.bf16 %v2025, %v2024
        %v2041 = vpack.c.bf16 %v2027, %v2026
        %v2042 = vpack.c.bf16 %v2029, %v2028
        %v2043 = vpack.c.bf16 %v2031, %v2030
        %v2044 = vld [vmem:[%s985] sm:$0x1]
        %v2046 = vlaneseq
        %v2047 = vshrl.u32 %v2046, 7
        %v2048 = vsub.s32 0, %v2047
        %v2049 = vrot.slane %v2044, %v2048
        %v2055 = vunpack.c.l.b16 %v2032
        %v2056 = vunpack.c.l.b16 %v2033
        %v2057 = vunpack.c.l.b16 %v2034
        %v2058 = vunpack.c.l.b16 %v2035
        %v2059 = vpack.c.b16 %v2056, %v2055
        %v2060 = vpack.c.b16 %v2058, %v2057
        %v2064 = vsel %vm1896, %v2036, 0
        %v2067 = vsel %vm1896, %v2037, 0
        %v2070 = vsel %vm1896, %v2038, 0
        %v2073 = vsel %vm1896, %v2039, 0
        %v2076 = vsel %vm1896, %v2040, 0
        %v2079 = vsel %vm1896, %v2041, 0
        %v2082 = vsel %vm1896, %v2042, 0
        %v2085 = vsel %vm1896, %v2043, 0
        %2087 = vmatprep.subr.bf16.mxu0 0
        %2088 = vmatpush1.bf16.msra.mxu0 %v2059
        %2089 = vmatprep.subr.bf16.mxu0 0
        %2090 = vmatpush1.bf16.msra.mxu0 %v2060
        %2091 = vmatprep.subr.bf16.mxu0 0
        %2092 = vmatpush1.bf16.msra.mxu0 0
        %2093 = vmatprep.subr.bf16.mxu0 0
        %2094 = vmatpush1.bf16.msra.mxu0 0
        %2095 = vmatprep.subr.bf16.mxu0 0
        %2096 = vmatpush1.bf16.msra.mxu0 0
        %2097 = vmatprep.subr.bf16.mxu0 0
        %2098 = vmatpush1.bf16.msra.mxu0 0
        %2099 = vmatprep.subr.bf16.mxu0 0
        %2100 = vmatpush1.bf16.msra.mxu0 0
        %2101 = vmatprep.subr.bf16.mxu0 0
        %2102 = vmatpush1.bf16.msra.mxu0 0
        %2103 = vmatprep.subr.bf16.mxu0 0
        %2104 = vmatpush1.bf16.msra.mxu0 0
        %2105 = vmatprep.subr.bf16.mxu0 0
        %2106 = vmatpush1.bf16.msra.mxu0 0
        %2107 = vmatprep.subr.bf16.mxu0 0
        %2108 = vmatpush1.bf16.msra.mxu0 0
        %2109 = vmatprep.subr.bf16.mxu0 0
        %2110 = vmatpush1.bf16.msra.mxu0 0
        %2111 = vmatprep.subr.bf16.mxu0 0
        %2112 = vmatpush1.bf16.msra.mxu0 0
        %2113 = vmatprep.subr.bf16.mxu0 0
        %2114 = vmatpush1.bf16.msra.mxu0 0
        %2115 = vmatprep.subr.bf16.mxu0 0
        %2116 = vmatpush1.bf16.msra.mxu0 0
        %2117 = vmatprep.subr.bf16.mxu0 0
        %2118 = vmatpush1.bf16.msra.mxu0 0
        %2119 = vmatprep.mubr.bf16.mxu0 0
        %2120 = vmatmul.mubr.bf16.gmra.mrb[0].mxu0 %v2064
        %v2121 = vpop.f32.mrb[0].mxu0
        %v2122 = vadd.f32 %v2049, %v2121
        %v2123 = vpop.f32.mrb[0].mxu0
        %v2124 = vpop.f32.mrb[0].mxu0
        %v2125 = vadd.f32 %v2049, %v2124
        %v2126 = vpop.f32.mrb[0].mxu0
        %2127 = vmatprep.mubr.bf16.mxu0 0
        %2128 = vmatmul.mubr.bf16.gmra.mrb[0].mxu0 %v2067
        %v2129 = vpop.f32.mrb[0].mxu0
        %v2130 = vadd.f32 %v2049, %v2129
        %v2131 = vpop.f32.mrb[0].mxu0
        %v2132 = vpop.f32.mrb[0].mxu0
        %v2133 = vadd.f32 %v2049, %v2132
        %v2134 = vpop.f32.mrb[0].mxu0
        %2135 = vmatprep.mubr.bf16.mxu0 0
        %2136 = vmatmul.mubr.bf16.gmra.mrb[0].mxu0 %v2070
        %v2137 = vpop.f32.mrb[0].mxu0
        %v2138 = vadd.f32 %v2049, %v2137
        %v2139 = vpop.f32.mrb[0].mxu0
        %v2140 = vpop.f32.mrb[0].mxu0
        %v2141 = vadd.f32 %v2049, %v2140
        %v2142 = vpop.f32.mrb[0].mxu0
        %2143 = vmatprep.mubr.bf16.mxu0 0
        %2144 = vmatmul.mubr.bf16.gmra.mrb[0].mxu0 %v2073
        %v2145 = vpop.f32.mrb[0].mxu0
        %v2146 = vadd.f32 %v2049, %v2145
        %v2147 = vpop.f32.mrb[0].mxu0
        %v2148 = vpop.f32.mrb[0].mxu0
        %v2149 = vadd.f32 %v2049, %v2148
        %v2150 = vpop.f32.mrb[0].mxu0
        %2151 = vmatprep.mubr.bf16.mxu0 0
        %2152 = vmatmul.mubr.bf16.gmra.mrb[0].mxu0 %v2076
        %v2153 = vpop.f32.mrb[0].mxu0
        %v2154 = vadd.f32 %v2049, %v2153
        %v2155 = vpop.f32.mrb[0].mxu0
        %v2156 = vpop.f32.mrb[0].mxu0
        %v2157 = vadd.f32 %v2049, %v2156
        %v2158 = vpop.f32.mrb[0].mxu0
        %2159 = vmatprep.mubr.bf16.mxu0 0
        %2160 = vmatmul.mubr.bf16.gmra.mrb[0].mxu0 %v2079
        %v2161 = vpop.f32.mrb[0].mxu0
        %v2162 = vadd.f32 %v2049, %v2161
        %v2163 = vpop.f32.mrb[0].mxu0
        %v2164 = vpop.f32.mrb[0].mxu0
        %v2165 = vadd.f32 %v2049, %v2164
        %v2166 = vpop.f32.mrb[0].mxu0
        %2167 = vmatprep.mubr.bf16.mxu0 0
        %2168 = vmatmul.mubr.bf16.gmra.mrb[0].mxu0 %v2082
        %v2169 = vpop.f32.mrb[0].mxu0
        %v2170 = vadd.f32 %v2049, %v2169
        %v2171 = vpop.f32.mrb[0].mxu0
        %v2172 = vpop.f32.mrb[0].mxu0
        %v2173 = vadd.f32 %v2049, %v2172
        %v2174 = vpop.f32.mrb[0].mxu0
        %2175 = vmatprep.mubr.bf16.mxu0 0
        %2176 = vmatmul.mubr.bf16.gmra.mrb[0].mxu0 %v2085
        %v2177 = vpop.f32.mrb[0].mxu0
        %v2178 = vadd.f32 %v2049, %v2177
        %v2179 = vpop.f32.mrb[0].mxu0
        %v2180 = vpop.f32.mrb[0].mxu0
        %v2181 = vadd.f32 %v2049, %v2180
        %v2182 = vpop.f32.mrb[0].mxu0
        %2183 = vdwg.mxu0
        %v2184 = vpack.c.bf16 %v2125, %v2122
        %v2185 = vpack.c.bf16 %v2133, %v2130
        %v2186 = vpack.c.bf16 %v2141, %v2138
        %v2187 = vpack.c.bf16 %v2149, %v2146
        %v2188 = vpack.c.bf16 %v2157, %v2154
        %v2189 = vpack.c.bf16 %v2165, %v2162
        %v2190 = vpack.c.bf16 %v2173, %v2170
        %v2191 = vpack.c.bf16 %v2181, %v2178
        %v2192 = vld [vmem:[%s1167] sm:$0xf]
        %v2193 = vld [vmem:[%s1167 + $0x4] sm:$0xf]
        %v2194 = vld [vmem:[%s1167 + $0x8] sm:$0xf]
        %v2195 = vld [vmem:[%s1167 + $0xc] sm:$0xf]
        %v2196 = vld [vmem:[%s1167 + $0x10] sm:$0xf]
        %v2197 = vld [vmem:[%s1167 + $0x14] sm:$0xf]
        %v2198 = vld [vmem:[%s1167 + $0x18] sm:$0xf]
        %v2199 = vld [vmem:[%s1167 + $0x1c] sm:$0xf]
        %v2200 = vunpack.c.l.bf16 %v2192
        %v2201 = vunpack.c.l.bf16 %v2193
        %v2202 = vunpack.c.l.bf16 %v2194
        %v2203 = vunpack.c.l.bf16 %v2195
        %v2204 = vunpack.c.l.bf16 %v2196
        %v2205 = vunpack.c.l.bf16 %v2197
        %v2206 = vunpack.c.l.bf16 %v2198
        %v2207 = vunpack.c.l.bf16 %v2199
        %2212 = vrot.lane.b32.xlu0 %v2184, 96
        %v2213 = vpop.permute.xlu0 %2212
        %2214 = vrot.lane.b32.xlu0 %v2185, 96
        %v2215 = vpop.permute.xlu0 %2214
        %2216 = vrot.lane.b32.xlu0 %v2186, 96
        %v2217 = vpop.permute.xlu0 %2216
        %2218 = vrot.lane.b32.xlu0 %v2187, 96
        %v2219 = vpop.permute.xlu0 %2218
        %vm2220 = vcmask 64512
        %v2222 = vsel %vm2220, %v2184, 0
        %v2225 = vsel %vm2220, %v2185, 0
        %v2228 = vsel %vm2220, %v2186, 0
        %v2231 = vsel %vm2220, %v2187, 0
        %v2234 = vsel %vm2220, %v2213, 0
        %v2237 = vsel %vm2220, %v2215, 0
        %v2240 = vsel %vm2220, %v2217, 0
        %v2243 = vsel %vm2220, %v2219, 0
        %2245 = vmatprep.subr.bf16.mxu0 0
        %2246 = vmatpush1.bf16.xpose.msra.mxu0 %v2234
        %2247 = vmatprep.subr.bf16.mxu0 0
        %2248 = vmatpush1.bf16.xpose.msra.mxu0 %v2237
        %2249 = vmatprep.subr.bf16.mxu0 0
        %2250 = vmatpush1.bf16.xpose.msra.mxu0 %v2240
        %2251 = vmatprep.subr.bf16.mxu0 0
        %2252 = vmatpush1.bf16.xpose.msra.mxu0 %v2243
        %2253 = vmatprep.subr.bf16.mxu0 0
        %2254 = vmatpush1.bf16.xpose.msra.mxu0 0
        %2255 = vmatprep.subr.bf16.mxu0 0
        %2256 = vmatpush1.bf16.xpose.msra.mxu0 0
        %2257 = vmatprep.subr.bf16.mxu0 0
        %2258 = vmatpush1.bf16.xpose.msra.mxu0 0
        %2259 = vmatprep.subr.bf16.mxu0 0
        %2260 = vmatpush1.bf16.xpose.msra.mxu0 0
        %2261 = vmatprep.subr.bf16.mxu0 0
        %2262 = vmatpush1.bf16.xpose.msra.mxu0 0
        %2263 = vmatprep.subr.bf16.mxu0 0
        %2264 = vmatpush1.bf16.xpose.msra.mxu0 0
        %2265 = vmatprep.subr.bf16.mxu0 0
        %2266 = vmatpush1.bf16.xpose.msra.mxu0 0
        %2267 = vmatprep.subr.bf16.mxu0 0
        %2268 = vmatpush1.bf16.xpose.msra.mxu0 0
        %2269 = vmatprep.subr.bf16.mxu0 0
        %2270 = vmatpush1.bf16.xpose.msra.mxu0 0
        %2271 = vmatprep.subr.bf16.mxu0 0
        %2272 = vmatpush1.bf16.xpose.msra.mxu0 0
        %2273 = vmatprep.subr.bf16.mxu0 0
        %2274 = vmatpush1.bf16.xpose.msra.mxu0 0
        %2275 = vmatprep.subr.bf16.mxu0 0
        %2276 = vmatpush1.bf16.xpose.msra.mxu0 0
        %2277 = vmatprep.mubr.bf16.mxu0 0
        %2278 = vmatmul.mubr.bf16.gmra.mrb[0].mxu0 %v2222
        %v2279 = vpop.f32.mrb[0].mxu0
        %v2280 = vadd.f32 %v2200, %v2279
        %v2281 = vpop.f32.mrb[0].mxu0
        %v2282 = vpop.f32.mrb[0].mxu0
        %v2283 = vadd.f32 %v2201, %v2282
        %v2284 = vpop.f32.mrb[0].mxu0
        %2285 = vmatprep.mubr.bf16.mxu0 0
        %2286 = vmatmul.mubr.bf16.gmra.mrb[0].mxu0 %v2225
        %v2287 = vpop.f32.mrb[0].mxu0
        %v2288 = vadd.f32 %v2202, %v2287
        %v2289 = vpop.f32.mrb[0].mxu0
        %v2290 = vpop.f32.mrb[0].mxu0
        %v2291 = vadd.f32 %v2203, %v2290
        %v2292 = vpop.f32.mrb[0].mxu0
        %2293 = vmatprep.mubr.bf16.mxu0 0
        %2294 = vmatmul.mubr.bf16.gmra.mrb[0].mxu0 %v2228
        %v2295 = vpop.f32.mrb[0].mxu0
        %v2296 = vadd.f32 %v2204, %v2295
        %v2297 = vpop.f32.mrb[0].mxu0
        %v2298 = vpop.f32.mrb[0].mxu0
        %v2299 = vadd.f32 %v2205, %v2298
        %v2300 = vpop.f32.mrb[0].mxu0
        %2301 = vmatprep.mubr.bf16.mxu0 0
        %2302 = vmatmul.mubr.bf16.gmra.mrb[0].mxu0 %v2231
        %v2303 = vpop.f32.mrb[0].mxu0
        %v2304 = vadd.f32 %v2206, %v2303
        %v2305 = vpop.f32.mrb[0].mxu0
        %v2306 = vpop.f32.mrb[0].mxu0
        %v2307 = vadd.f32 %v2207, %v2306
        %v2308 = vpop.f32.mrb[0].mxu0
        %2309 = vdwg.mxu0
        %2314 = vrot.lane.b32.xlu0 %v2188, 96
        %v2315 = vpop.permute.xlu0 %2314
        %2316 = vrot.lane.b32.xlu0 %v2189, 96
        %v2317 = vpop.permute.xlu0 %2316
        %2318 = vrot.lane.b32.xlu0 %v2190, 96
        %v2319 = vpop.permute.xlu0 %2318
        %2320 = vrot.lane.b32.xlu0 %v2191, 96
        %v2321 = vpop.permute.xlu0 %2320
        %v2323 = vsel %vm2220, %v2188, 0
        %v2326 = vsel %vm2220, %v2189, 0
        %v2329 = vsel %vm2220, %v2190, 0
        %v2332 = vsel %vm2220, %v2191, 0
        %v2335 = vsel %vm2220, %v2315, 0
        %v2338 = vsel %vm2220, %v2317, 0
        %v2341 = vsel %vm2220, %v2319, 0
        %v2344 = vsel %vm2220, %v2321, 0
        %2346 = vmatprep.subr.bf16.mxu0 0
        %2347 = vmatpush1.bf16.xpose.msra.mxu0 %v2335
        %2348 = vmatprep.subr.bf16.mxu0 0
        %2349 = vmatpush1.bf16.xpose.msra.mxu0 %v2338
        %2350 = vmatprep.subr.bf16.mxu0 0
        %2351 = vmatpush1.bf16.xpose.msra.mxu0 %v2341
        %2352 = vmatprep.subr.bf16.mxu0 0
        %2353 = vmatpush1.bf16.xpose.msra.mxu0 %v2344
        %2354 = vmatprep.subr.bf16.mxu0 0
        %2355 = vmatpush1.bf16.xpose.msra.mxu0 0
        %2356 = vmatprep.subr.bf16.mxu0 0
        %2357 = vmatpush1.bf16.xpose.msra.mxu0 0
        %2358 = vmatprep.subr.bf16.mxu0 0
        %2359 = vmatpush1.bf16.xpose.msra.mxu0 0
        %2360 = vmatprep.subr.bf16.mxu0 0
        %2361 = vmatpush1.bf16.xpose.msra.mxu0 0
        %2362 = vmatprep.subr.bf16.mxu0 0
        %2363 = vmatpush1.bf16.xpose.msra.mxu0 0
        %2364 = vmatprep.subr.bf16.mxu0 0
        %2365 = vmatpush1.bf16.xpose.msra.mxu0 0
        %2366 = vmatprep.subr.bf16.mxu0 0
        %2367 = vmatpush1.bf16.xpose.msra.mxu0 0
        %2368 = vmatprep.subr.bf16.mxu0 0
        %2369 = vmatpush1.bf16.xpose.msra.mxu0 0
        %2370 = vmatprep.subr.bf16.mxu0 0
        %2371 = vmatpush1.bf16.xpose.msra.mxu0 0
        %2372 = vmatprep.subr.bf16.mxu0 0
        %2373 = vmatpush1.bf16.xpose.msra.mxu0 0
        %2374 = vmatprep.subr.bf16.mxu0 0
        %2375 = vmatpush1.bf16.xpose.msra.mxu0 0
        %2376 = vmatprep.subr.bf16.mxu0 0
        %2377 = vmatpush1.bf16.xpose.msra.mxu0 0
        %2378 = vmatprep.mubr.bf16.mxu0 0
        %2379 = vmatmul.mubr.bf16.gmra.mrb[0].mxu0 %v2323
        %v2380 = vpop.f32.mrb[0].mxu0
        %v2381 = vadd.f32 %v2200, %v2380
        %v2382 = vpop.f32.mrb[0].mxu0
        %v2383 = vpop.f32.mrb[0].mxu0
        %v2384 = vadd.f32 %v2201, %v2383
        %v2385 = vpop.f32.mrb[0].mxu0
        %2386 = vmatprep.mubr.bf16.mxu0 0
        %2387 = vmatmul.mubr.bf16.gmra.mrb[0].mxu0 %v2326
        %v2388 = vpop.f32.mrb[0].mxu0
        %v2389 = vadd.f32 %v2202, %v2388
        %v2390 = vpop.f32.mrb[0].mxu0
        %v2391 = vpop.f32.mrb[0].mxu0
        %v2392 = vadd.f32 %v2203, %v2391
        %v2393 = vpop.f32.mrb[0].mxu0
        %2394 = vmatprep.mubr.bf16.mxu0 0
        %2395 = vmatmul.mubr.bf16.gmra.mrb[0].mxu0 %v2329
        %v2396 = vpop.f32.mrb[0].mxu0
        %v2397 = vadd.f32 %v2204, %v2396
        %v2398 = vpop.f32.mrb[0].mxu0
        %v2399 = vpop.f32.mrb[0].mxu0
        %v2400 = vadd.f32 %v2205, %v2399
        %v2401 = vpop.f32.mrb[0].mxu0
        %2402 = vmatprep.mubr.bf16.mxu0 0
        %2403 = vmatmul.mubr.bf16.gmra.mrb[0].mxu0 %v2332
        %v2404 = vpop.f32.mrb[0].mxu0
        %v2405 = vadd.f32 %v2206, %v2404
        %v2406 = vpop.f32.mrb[0].mxu0
        %v2407 = vpop.f32.mrb[0].mxu0
        %v2408 = vadd.f32 %v2207, %v2407
        %v2409 = vpop.f32.mrb[0].mxu0
        %2410 = vdwg.mxu0
        %vm2411 = vcmask 523264
        %v2412 = vsel %vm2411, %v2280, -inf
        %2413 = vmax.xlane.f32.xlu0 %v2412
        %v2414 = vpop.xlane.xlu0 %2413
        %v2415 = vsel %vm2411, %v2283, -inf
        %2416 = vmax.xlane.f32.xlu0 %v2415
        %v2417 = vpop.xlane.xlu0 %2416
        %v2418 = vsel %vm2411, %v2288, -inf
        %2419 = vmax.xlane.f32.xlu0 %v2418
        %v2420 = vpop.xlane.xlu0 %2419
        %v2421 = vsel %vm2411, %v2291, -inf
        %2422 = vmax.xlane.f32.xlu0 %v2421
        %v2423 = vpop.xlane.xlu0 %2422
        %v2424 = vsel %vm2411, %v2296, -inf
        %2425 = vmax.xlane.f32.xlu0 %v2424
        %v2426 = vpop.xlane.xlu0 %2425
        %v2427 = vsel %vm2411, %v2299, -inf
        %2428 = vmax.xlane.f32.xlu0 %v2427
        %v2429 = vpop.xlane.xlu0 %2428
        %v2430 = vsel %vm2411, %v2304, -inf
        %2431 = vmax.xlane.f32.xlu0 %v2430
        %v2432 = vpop.xlane.xlu0 %2431
        %v2433 = vsel %vm2411, %v2307, -inf
        %2434 = vmax.xlane.f32.xlu0 %v2433
        %v2435 = vpop.xlane.xlu0 %2434
        %v2436 = vsel %vm2411, %v2381, -inf
        %2437 = vmax.xlane.f32.xlu0 %v2436
        %v2438 = vpop.xlane.xlu0 %2437
        %v2439 = vsel %vm2411, %v2384, -inf
        %2440 = vmax.xlane.f32.xlu0 %v2439
        %v2441 = vpop.xlane.xlu0 %2440
        %v2442 = vsel %vm2411, %v2389, -inf
        %2443 = vmax.xlane.f32.xlu0 %v2442
        %v2444 = vpop.xlane.xlu0 %2443
        %v2445 = vsel %vm2411, %v2392, -inf
        %2446 = vmax.xlane.f32.xlu0 %v2445
        %v2447 = vpop.xlane.xlu0 %2446
        %v2448 = vsel %vm2411, %v2397, -inf
        %2449 = vmax.xlane.f32.xlu0 %v2448
        %v2450 = vpop.xlane.xlu0 %2449
        %v2451 = vsel %vm2411, %v2400, -inf
        %2452 = vmax.xlane.f32.xlu0 %v2451
        %v2453 = vpop.xlane.xlu0 %2452
        %v2454 = vsel %vm2411, %v2405, -inf
        %2455 = vmax.xlane.f32.xlu0 %v2454
        %v2456 = vpop.xlane.xlu0 %2455
        %v2457 = vsel %vm2411, %v2408, -inf
        %2458 = vmax.xlane.f32.xlu0 %v2457
        %v2459 = vpop.xlane.xlu0 %2458
        %v2460 = vsub.f32 %v2280, %v2414
        %v2461 = vsub.f32 %v2283, %v2417
        %v2462 = vsub.f32 %v2288, %v2420
        %v2463 = vsub.f32 %v2291, %v2423
        %v2464 = vsub.f32 %v2296, %v2426
        %v2465 = vsub.f32 %v2299, %v2429
        %v2466 = vsub.f32 %v2304, %v2432
        %v2467 = vsub.f32 %v2307, %v2435
        %v2468 = vsub.f32 %v2381, %v2438
        %v2469 = vsub.f32 %v2384, %v2441
        %v2470 = vsub.f32 %v2389, %v2444
        %v2471 = vsub.f32 %v2392, %v2447
        %v2472 = vsub.f32 %v2397, %v2450
        %v2473 = vsub.f32 %v2400, %v2453
        %v2474 = vsub.f32 %v2405, %v2456
        %v2475 = vsub.f32 %v2408, %v2459
        %v2476 = vmul.f32 %v2460, 1.442695
        %v2477 = vpow.pop %v2476
        %v2478 = vmul.f32 %v2461, 1.442695
        %v2479 = vpow.pop %v2478
        %v2480 = vmul.f32 %v2462, 1.442695
        %v2481 = vpow.pop %v2480
        %v2482 = vmul.f32 %v2463, 1.442695
        %v2483 = vpow.pop %v2482
        %v2484 = vmul.f32 %v2464, 1.442695
        %v2485 = vpow.pop %v2484
        %v2486 = vmul.f32 %v2465, 1.442695
        %v2487 = vpow.pop %v2486
        %v2488 = vmul.f32 %v2466, 1.442695
        %v2489 = vpow.pop %v2488
        %v2490 = vmul.f32 %v2467, 1.442695
        %v2491 = vpow.pop %v2490
        %v2492 = vmul.f32 %v2468, 1.442695
        %v2493 = vpow.pop %v2492
        %v2494 = vmul.f32 %v2469, 1.442695
        %v2495 = vpow.pop %v2494
        %v2496 = vmul.f32 %v2470, 1.442695
        %v2497 = vpow.pop %v2496
        %v2498 = vmul.f32 %v2471, 1.442695
        %v2499 = vpow.pop %v2498
        %v2500 = vmul.f32 %v2472, 1.442695
        %v2501 = vpow.pop %v2500
        %v2502 = vmul.f32 %v2473, 1.442695
        %v2503 = vpow.pop %v2502
        %v2504 = vmul.f32 %v2474, 1.442695
        %v2505 = vpow.pop %v2504
        %v2506 = vmul.f32 %v2475, 1.442695
        %v2507 = vpow.pop %v2506
        %v2508 = vsel %vm2411, %v2477, 0.0
        %2509 = vadd.xlane.f32.xlu0 %v2508
        %v2510 = vpop.xlane.xlu0 %2509
        %v2511 = vsel %vm2411, %v2479, 0.0
        %2512 = vadd.xlane.f32.xlu0 %v2511
        %v2513 = vpop.xlane.xlu0 %2512
        %v2514 = vsel %vm2411, %v2481, 0.0
        %2515 = vadd.xlane.f32.xlu0 %v2514
        %v2516 = vpop.xlane.xlu0 %2515
        %v2517 = vsel %vm2411, %v2483, 0.0
        %2518 = vadd.xlane.f32.xlu0 %v2517
        %v2519 = vpop.xlane.xlu0 %2518
        %v2520 = vsel %vm2411, %v2485, 0.0
        %2521 = vadd.xlane.f32.xlu0 %v2520
        %v2522 = vpop.xlane.xlu0 %2521
        %v2523 = vsel %vm2411, %v2487, 0.0
        %2524 = vadd.xlane.f32.xlu0 %v2523
        %v2525 = vpop.xlane.xlu0 %2524
        %v2526 = vsel %vm2411, %v2489, 0.0
        %2527 = vadd.xlane.f32.xlu0 %v2526
        %v2528 = vpop.xlane.xlu0 %2527
        %v2529 = vsel %vm2411, %v2491, 0.0
        %2530 = vadd.xlane.f32.xlu0 %v2529
        %v2531 = vpop.xlane.xlu0 %2530
        %v2532 = vsel %vm2411, %v2493, 0.0
        %2533 = vadd.xlane.f32.xlu0 %v2532
        %v2534 = vpop.xlane.xlu0 %2533
        %v2535 = vsel %vm2411, %v2495, 0.0
        %2536 = vadd.xlane.f32.xlu0 %v2535
        %v2537 = vpop.xlane.xlu0 %2536
        %v2538 = vsel %vm2411, %v2497, 0.0
        %2539 = vadd.xlane.f32.xlu0 %v2538
        %v2540 = vpop.xlane.xlu0 %2539
        %v2541 = vsel %vm2411, %v2499, 0.0
        %2542 = vadd.xlane.f32.xlu0 %v2541
        %v2543 = vpop.xlane.xlu0 %2542
        %v2544 = vsel %vm2411, %v2501, 0.0
        %2545 = vadd.xlane.f32.xlu0 %v2544
        %v2546 = vpop.xlane.xlu0 %2545
        %v2547 = vsel %vm2411, %v2503, 0.0
        %2548 = vadd.xlane.f32.xlu0 %v2547
        %v2549 = vpop.xlane.xlu0 %2548
        %v2550 = vsel %vm2411, %v2505, 0.0
        %2551 = vadd.xlane.f32.xlu0 %v2550
        %v2552 = vpop.xlane.xlu0 %2551
        %v2553 = vsel %vm2411, %v2507, 0.0
        %2554 = vadd.xlane.f32.xlu0 %v2553
        %v2555 = vpop.xlane.xlu0 %2554
        %v2556 = vrcp.pop %v2510
        %v2557 = vrcp.pop %v2513
        %v2558 = vrcp.pop %v2516
        %v2559 = vrcp.pop %v2519
        %v2560 = vrcp.pop %v2522
        %v2561 = vrcp.pop %v2525
        %v2562 = vrcp.pop %v2528
        %v2563 = vrcp.pop %v2531
        %v2564 = vrcp.pop %v2534
        %v2565 = vrcp.pop %v2537
        %v2566 = vrcp.pop %v2540
        %v2567 = vrcp.pop %v2543
        %v2568 = vrcp.pop %v2546
        %v2569 = vrcp.pop %v2549
        %v2570 = vrcp.pop %v2552
        %v2571 = vrcp.pop %v2555
        %v2572 = vmul.f32 %v2477, %v2556
        %v2573 = vmul.f32 %v2479, %v2557
        %v2574 = vmul.f32 %v2481, %v2558
        %v2575 = vmul.f32 %v2483, %v2559
        %v2576 = vmul.f32 %v2485, %v2560
        %v2577 = vmul.f32 %v2487, %v2561
        %v2578 = vmul.f32 %v2489, %v2562
        %v2579 = vmul.f32 %v2491, %v2563
        %v2580 = vmul.f32 %v2493, %v2564
        %v2581 = vmul.f32 %v2495, %v2565
        %v2582 = vmul.f32 %v2497, %v2566
        %v2583 = vmul.f32 %v2499, %v2567
        %v2584 = vmul.f32 %v2501, %v2568
        %v2585 = vmul.f32 %v2503, %v2569
        %v2586 = vmul.f32 %v2505, %v2570
        %v2587 = vmul.f32 %v2507, %v2571
        %v2588 = vpack.c.bf16 %v2573, %v2572
        %v2589 = vpack.c.bf16 %v2575, %v2574
        %v2590 = vpack.c.bf16 %v2577, %v2576
        %v2591 = vpack.c.bf16 %v2579, %v2578
        %v2592 = vpack.c.bf16 %v2581, %v2580
        %v2593 = vpack.c.bf16 %v2583, %v2582
        %v2594 = vpack.c.bf16 %v2585, %v2584
        %v2595 = vpack.c.bf16 %v2587, %v2586
        %2596 = vrot.lane.b32.xlu0 %v2184, 64
        %v2597 = vpop.permute.xlu0 %2596
        %2598 = vrot.lane.b32.xlu0 %v2185, 64
        %v2599 = vpop.permute.xlu0 %2598
        %2600 = vrot.lane.b32.xlu0 %v2186, 64
        %v2601 = vpop.permute.xlu0 %2600
        %2602 = vrot.lane.b32.xlu0 %v2187, 64
        %v2603 = vpop.permute.xlu0 %2602
        %v2609 = vsel %vm2411, %v2588, 0
        %v2612 = vsel %vm2411, %v2589, 0
        %v2615 = vsel %vm2411, %v2590, 0
        %v2618 = vsel %vm2411, %v2591, 0
        %2620 = vmatprep.subr.bf16.mxu0 0
        %2621 = vmatpush1.bf16.msra.mxu0 %v2597
        %2622 = vmatprep.subr.bf16.mxu0 0
        %2623 = vmatpush1.bf16.msra.mxu0 %v2599
        %2624 = vmatprep.subr.bf16.mxu0 0
        %2625 = vmatpush1.bf16.msra.mxu0 %v2601
        %2626 = vmatprep.subr.bf16.mxu0 0
        %2627 = vmatpush1.bf16.msra.mxu0 %v2603
        %2628 = vmatprep.subr.bf16.mxu0 0
        %2629 = vmatpush1.bf16.msra.mxu0 0
        %2630 = vmatprep.subr.bf16.mxu0 0
        %2631 = vmatpush1.bf16.msra.mxu0 0
        %2632 = vmatprep.subr.bf16.mxu0 0
        %2633 = vmatpush1.bf16.msra.mxu0 0
        %2634 = vmatprep.subr.bf16.mxu0 0
        %2635 = vmatpush1.bf16.msra.mxu0 0
        %2636 = vmatprep.subr.bf16.mxu0 0
        %2637 = vmatpush1.bf16.msra.mxu0 0
        %2638 = vmatprep.subr.bf16.mxu0 0
        %2639 = vmatpush1.bf16.msra.mxu0 0
        %2640 = vmatprep.subr.bf16.mxu0 0
        %2641 = vmatpush1.bf16.msra.mxu0 0
        %2642 = vmatprep.subr.bf16.mxu0 0
        %2643 = vmatpush1.bf16.msra.mxu0 0
        %2644 = vmatprep.subr.bf16.mxu0 0
        %2645 = vmatpush1.bf16.msra.mxu0 0
        %2646 = vmatprep.subr.bf16.mxu0 0
        %2647 = vmatpush1.bf16.msra.mxu0 0
        %2648 = vmatprep.subr.bf16.mxu0 0
        %2649 = vmatpush1.bf16.msra.mxu0 0
        %2650 = vmatprep.subr.bf16.mxu0 0
        %2651 = vmatpush1.bf16.msra.mxu0 0
        %2652 = vmatprep.mubr.bf16.mxu0 0
        %2653 = vmatmul.mubr.bf16.gmra.mrb[0].mxu0 %v2609
        %v2654 = vpop.f32.mrb[0].mxu0
        %v2655 = vadd.f32 0.0, %v2654
        %v2656 = vpop.f32.mrb[0].mxu0
        %v2657 = vpop.f32.mrb[0].mxu0
        %v2658 = vadd.f32 0.0, %v2657
        %v2659 = vpop.f32.mrb[0].mxu0
        %2660 = vmatprep.mubr.bf16.mxu0 0
        %2661 = vmatmul.mubr.bf16.gmra.mrb[0].mxu0 %v2612
        %v2662 = vpop.f32.mrb[0].mxu0
        %v2663 = vadd.f32 0.0, %v2662
        %v2664 = vpop.f32.mrb[0].mxu0
        %v2665 = vpop.f32.mrb[0].mxu0
        %v2666 = vadd.f32 0.0, %v2665
        %v2667 = vpop.f32.mrb[0].mxu0
        %2668 = vmatprep.mubr.bf16.mxu0 0
        %2669 = vmatmul.mubr.bf16.gmra.mrb[0].mxu0 %v2615
        %v2670 = vpop.f32.mrb[0].mxu0
        %v2671 = vadd.f32 0.0, %v2670
        %v2672 = vpop.f32.mrb[0].mxu0
        %v2673 = vpop.f32.mrb[0].mxu0
        %v2674 = vadd.f32 0.0, %v2673
        %v2675 = vpop.f32.mrb[0].mxu0
        %2676 = vmatprep.mubr.bf16.mxu0 0
        %2677 = vmatmul.mubr.bf16.gmra.mrb[0].mxu0 %v2618
        %v2678 = vpop.f32.mrb[0].mxu0
        %v2679 = vadd.f32 0.0, %v2678
        %v2680 = vpop.f32.mrb[0].mxu0
        %v2681 = vpop.f32.mrb[0].mxu0
        %v2682 = vadd.f32 0.0, %v2681
        %v2683 = vpop.f32.mrb[0].mxu0
        %2684 = vdwg.mxu0
        %2685 = vrot.lane.b32.xlu0 %v2188, 64
        %v2686 = vpop.permute.xlu0 %2685
        %2687 = vrot.lane.b32.xlu0 %v2189, 64
        %v2688 = vpop.permute.xlu0 %2687
        %2689 = vrot.lane.b32.xlu0 %v2190, 64
        %v2690 = vpop.permute.xlu0 %2689
        %2691 = vrot.lane.b32.xlu0 %v2191, 64
        %v2692 = vpop.permute.xlu0 %2691
        %v2698 = vsel %vm2411, %v2592, 0
        %v2701 = vsel %vm2411, %v2593, 0
        %v2704 = vsel %vm2411, %v2594, 0
        %v2707 = vsel %vm2411, %v2595, 0
        %2709 = vmatprep.subr.bf16.mxu0 0
        %2710 = vmatpush1.bf16.msra.mxu0 %v2686
        %2711 = vmatprep.subr.bf16.mxu0 0
        %2712 = vmatpush1.bf16.msra.mxu0 %v2688
        %2713 = vmatprep.subr.bf16.mxu0 0
        %2714 = vmatpush1.bf16.msra.mxu0 %v2690
        %2715 = vmatprep.subr.bf16.mxu0 0
        %2716 = vmatpush1.bf16.msra.mxu0 %v2692
        %2717 = vmatprep.subr.bf16.mxu0 0
        %2718 = vmatpush1.bf16.msra.mxu0 0
        %2719 = vmatprep.subr.bf16.mxu0 0
        %2720 = vmatpush1.bf16.msra.mxu0 0
        %2721 = vmatprep.subr.bf16.mxu0 0
        %2722 = vmatpush1.bf16.msra.mxu0 0
        %2723 = vmatprep.subr.bf16.mxu0 0
        %2724 = vmatpush1.bf16.msra.mxu0 0
        %2725 = vmatprep.subr.bf16.mxu0 0
        %2726 = vmatpush1.bf16.msra.mxu0 0
        %2727 = vmatprep.subr.bf16.mxu0 0
        %2728 = vmatpush1.bf16.msra.mxu0 0
        %2729 = vmatprep.subr.bf16.mxu0 0
        %2730 = vmatpush1.bf16.msra.mxu0 0
        %2731 = vmatprep.subr.bf16.mxu0 0
        %2732 = vmatpush1.bf16.msra.mxu0 0
        %2733 = vmatprep.subr.bf16.mxu0 0
        %2734 = vmatpush1.bf16.msra.mxu0 0
        %2735 = vmatprep.subr.bf16.mxu0 0
        %2736 = vmatpush1.bf16.msra.mxu0 0
        %2737 = vmatprep.subr.bf16.mxu0 0
        %2738 = vmatpush1.bf16.msra.mxu0 0
        %2739 = vmatprep.subr.bf16.mxu0 0
        %2740 = vmatpush1.bf16.msra.mxu0 0
        %2741 = vmatprep.mubr.bf16.mxu0 0
        %2742 = vmatmul.mubr.bf16.gmra.mrb[0].mxu0 %v2698
        %v2743 = vpop.f32.mrb[0].mxu0
        %v2744 = vadd.f32 0.0, %v2743
        %v2745 = vpop.f32.mrb[0].mxu0
        %v2746 = vpop.f32.mrb[0].mxu0
        %v2747 = vadd.f32 0.0, %v2746
        %v2748 = vpop.f32.mrb[0].mxu0
        %2749 = vmatprep.mubr.bf16.mxu0 0
        %2750 = vmatmul.mubr.bf16.gmra.mrb[0].mxu0 %v2701
        %v2751 = vpop.f32.mrb[0].mxu0
        %v2752 = vadd.f32 0.0, %v2751
        %v2753 = vpop.f32.mrb[0].mxu0
        %v2754 = vpop.f32.mrb[0].mxu0
        %v2755 = vadd.f32 0.0, %v2754
        %v2756 = vpop.f32.mrb[0].mxu0
        %2757 = vmatprep.mubr.bf16.mxu0 0
        %2758 = vmatmul.mubr.bf16.gmra.mrb[0].mxu0 %v2704
        %v2759 = vpop.f32.mrb[0].mxu0
        %v2760 = vadd.f32 0.0, %v2759
        %v2761 = vpop.f32.mrb[0].mxu0
        %v2762 = vpop.f32.mrb[0].mxu0
        %v2763 = vadd.f32 0.0, %v2762
        %v2764 = vpop.f32.mrb[0].mxu0
        %2765 = vmatprep.mubr.bf16.mxu0 0
        %2766 = vmatmul.mubr.bf16.gmra.mrb[0].mxu0 %v2707
        %v2767 = vpop.f32.mrb[0].mxu0
        %v2768 = vadd.f32 0.0, %v2767
        %v2769 = vpop.f32.mrb[0].mxu0
        %v2770 = vpop.f32.mrb[0].mxu0
        %v2771 = vadd.f32 0.0, %v2770
        %v2772 = vpop.f32.mrb[0].mxu0
        %2773 = vdwg.mxu0
        %2774 = vst.msk [vmem:[#allocation3] sm:$0xff] %vm2220, %v2655
        %2775 = vst.msk [vmem:[#allocation3 + $0x8] sm:$0xff] %vm2220, %v2658
        %2776 = vst.msk [vmem:[#allocation3 + $0x10] sm:$0xff] %vm2220, %v2663
        %2777 = vst.msk [vmem:[#allocation3 + $0x18] sm:$0xff] %vm2220, %v2666
        %2778 = vst.msk [vmem:[#allocation3 + $0x20] sm:$0xff] %vm2220, %v2671
        %2779 = vst.msk [vmem:[#allocation3 + $0x28] sm:$0xff] %vm2220, %v2674
        %2780 = vst.msk [vmem:[#allocation3 + $0x30] sm:$0xff] %vm2220, %v2679
        %2781 = vst.msk [vmem:[#allocation3 + $0x38] sm:$0xff] %vm2220, %v2682
        %2782 = vst.msk [vmem:[#allocation3 + $0x40] sm:$0xff] %vm2220, %v2744
        %2783 = vst.msk [vmem:[#allocation3 + $0x48] sm:$0xff] %vm2220, %v2747
        %2784 = vst.msk [vmem:[#allocation3 + $0x50] sm:$0xff] %vm2220, %v2752
        %2785 = vst.msk [vmem:[#allocation3 + $0x58] sm:$0xff] %vm2220, %v2755
        %2786 = vst.msk [vmem:[#allocation3 + $0x60] sm:$0xff] %vm2220, %v2760
        %2787 = vst.msk [vmem:[#allocation3 + $0x68] sm:$0xff] %vm2220, %v2763
        %2788 = vst.msk [vmem:[#allocation3 + $0x70] sm:$0xff] %vm2220, %v2768
        %2789 = vst.msk [vmem:[#allocation3 + $0x78] sm:$0xff] %vm2220, %v2771
        %s2790 = scalar_lea.vmem %s1167, 32
        %v2791 = vld [vmem:[%s2790] sm:$0xf]
        %v2792 = vld [vmem:[%s2790 + $0x4] sm:$0xf]
        %v2793 = vld [vmem:[%s2790 + $0x8] sm:$0xf]
        %v2794 = vld [vmem:[%s2790 + $0xc] sm:$0xf]
        %v2795 = vld [vmem:[%s2790 + $0x10] sm:$0xf]
        %v2796 = vld [vmem:[%s2790 + $0x14] sm:$0xf]
        %v2797 = vld [vmem:[%s2790 + $0x18] sm:$0xf]
        %v2798 = vld [vmem:[%s2790 + $0x1c] sm:$0xf]
        %v2799 = vunpack.c.l.bf16 %v2791
        %v2800 = vunpack.c.l.bf16 %v2792
        %v2801 = vunpack.c.l.bf16 %v2793
        %v2802 = vunpack.c.l.bf16 %v2794
        %v2803 = vunpack.c.l.bf16 %v2795
        %v2804 = vunpack.c.l.bf16 %v2796
        %v2805 = vunpack.c.l.bf16 %v2797
        %v2806 = vunpack.c.l.bf16 %v2798
        %2807 = vrot.lane.b32.xlu0 %v2184, 120
        %v2808 = vpop.permute.xlu0 %2807
        %2809 = vrot.lane.b32.xlu0 %v2185, 120
        %v2810 = vpop.permute.xlu0 %2809
        %2811 = vrot.lane.b32.xlu0 %v2186, 120
        %v2812 = vpop.permute.xlu0 %2811
        %2813 = vrot.lane.b32.xlu0 %v2187, 120
        %v2814 = vpop.permute.xlu0 %2813
        %2815 = vrot.lane.b32.xlu0 %v2184, 88
        %v2816 = vpop.permute.xlu0 %2815
        %2817 = vrot.lane.b32.xlu0 %v2185, 88
        %v2818 = vpop.permute.xlu0 %2817
        %2819 = vrot.lane.b32.xlu0 %v2186, 88
        %v2820 = vpop.permute.xlu0 %2819
        %2821 = vrot.lane.b32.xlu0 %v2187, 88
        %v2822 = vpop.permute.xlu0 %2821
        %v2824 = vsel %vm2220, %v2808, 0
        %v2827 = vsel %vm2220, %v2810, 0
        %v2830 = vsel %vm2220, %v2812, 0
        %v2833 = vsel %vm2220, %v2814, 0
        %v2836 = vsel %vm2220, %v2816, 0
        %v2839 = vsel %vm2220, %v2818, 0
        %v2842 = vsel %vm2220, %v2820, 0
        %v2845 = vsel %vm2220, %v2822, 0
        %2847 = vmatprep.subr.bf16.mxu0 0
        %2848 = vmatpush1.bf16.xpose.msra.mxu0 %v2836
        %2849 = vmatprep.subr.bf16.mxu0 0
        %2850 = vmatpush1.bf16.xpose.msra.mxu0 %v2839
        %2851 = vmatprep.subr.bf16.mxu0 0
        %2852 = vmatpush1.bf16.xpose.msra.mxu0 %v2842
        %2853 = vmatprep.subr.bf16.mxu0 0
        %2854 = vmatpush1.bf16.xpose.msra.mxu0 %v2845
        %2855 = vmatprep.subr.bf16.mxu0 0
        %2856 = vmatpush1.bf16.xpose.msra.mxu0 0
        %2857 = vmatprep.subr.bf16.mxu0 0
        %2858 = vmatpush1.bf16.xpose.msra.mxu0 0
        %2859 = vmatprep.subr.bf16.mxu0 0
        %2860 = vmatpush1.bf16.xpose.msra.mxu0 0
        %2861 = vmatprep.subr.bf16.mxu0 0
        %2862 = vmatpush1.bf16.xpose.msra.mxu0 0
        %2863 = vmatprep.subr.bf16.mxu0 0
        %2864 = vmatpush1.bf16.xpose.msra.mxu0 0
        %2865 = vmatprep.subr.bf16.mxu0 0
        %2866 = vmatpush1.bf16.xpose.msra.mxu0 0
        %2867 = vmatprep.subr.bf16.mxu0 0
        %2868 = vmatpush1.bf16.xpose.msra.mxu0 0
        %2869 = vmatprep.subr.bf16.mxu0 0
        %2870 = vmatpush1.bf16.xpose.msra.mxu0 0
        %2871 = vmatprep.subr.bf16.mxu0 0
        %2872 = vmatpush1.bf16.xpose.msra.mxu0 0
        %2873 = vmatprep.subr.bf16.mxu0 0
        %2874 = vmatpush1.bf16.xpose.msra.mxu0 0
        %2875 = vmatprep.subr.bf16.mxu0 0
        %2876 = vmatpush1.bf16.xpose.msra.mxu0 0
        %2877 = vmatprep.subr.bf16.mxu0 0
        %2878 = vmatpush1.bf16.xpose.msra.mxu0 0
        %2879 = vmatprep.mubr.bf16.mxu0 0
        %2880 = vmatmul.mubr.bf16.gmra.mrb[0].mxu0 %v2824
        %v2881 = vpop.f32.mrb[0].mxu0
        %v2882 = vadd.f32 %v2799, %v2881
        %v2883 = vpop.f32.mrb[0].mxu0
        %v2884 = vpop.f32.mrb[0].mxu0
        %v2885 = vadd.f32 %v2800, %v2884
        %v2886 = vpop.f32.mrb[0].mxu0
        %2887 = vmatprep.mubr.bf16.mxu0 0
        %2888 = vmatmul.mubr.bf16.gmra.mrb[0].mxu0 %v2827
        %v2889 = vpop.f32.mrb[0].mxu0
        %v2890 = vadd.f32 %v2801, %v2889
        %v2891 = vpop.f32.mrb[0].mxu0
        %v2892 = vpop.f32.mrb[0].mxu0
        %v2893 = vadd.f32 %v2802, %v2892
        %v2894 = vpop.f32.mrb[0].mxu0
        %2895 = vmatprep.mubr.bf16.mxu0 0
        %2896 = vmatmul.mubr.bf16.gmra.mrb[0].mxu0 %v2830
        %v2897 = vpop.f32.mrb[0].mxu0
        %v2898 = vadd.f32 %v2803, %v2897
        %v2899 = vpop.f32.mrb[0].mxu0
        %v2900 = vpop.f32.mrb[0].mxu0
        %v2901 = vadd.f32 %v2804, %v2900
        %v2902 = vpop.f32.mrb[0].mxu0
        %2903 = vmatprep.mubr.bf16.mxu0 0
        %2904 = vmatmul.mubr.bf16.gmra.mrb[0].mxu0 %v2833
        %v2905 = vpop.f32.mrb[0].mxu0
        %v2906 = vadd.f32 %v2805, %v2905
        %v2907 = vpop.f32.mrb[0].mxu0
        %v2908 = vpop.f32.mrb[0].mxu0
        %v2909 = vadd.f32 %v2806, %v2908
        %v2910 = vpop.f32.mrb[0].mxu0
        %2911 = vdwg.mxu0
        %2912 = vrot.lane.b32.xlu0 %v2188, 120
        %v2913 = vpop.permute.xlu0 %2912
        %2914 = vrot.lane.b32.xlu0 %v2189, 120
        %v2915 = vpop.permute.xlu0 %2914
        %2916 = vrot.lane.b32.xlu0 %v2190, 120
        %v2917 = vpop.permute.xlu0 %2916
        %2918 = vrot.lane.b32.xlu0 %v2191, 120
        %v2919 = vpop.permute.xlu0 %2918
        %2920 = vrot.lane.b32.xlu0 %v2188, 88
        %v2921 = vpop.permute.xlu0 %2920
        %2922 = vrot.lane.b32.xlu0 %v2189, 88
        %v2923 = vpop.permute.xlu0 %2922
        %2924 = vrot.lane.b32.xlu0 %v2190, 88
        %v2925 = vpop.permute.xlu0 %2924
        %2926 = vrot.lane.b32.xlu0 %v2191, 88
        %v2927 = vpop.permute.xlu0 %2926
        %v2929 = vsel %vm2220, %v2913, 0
        %v2932 = vsel %vm2220, %v2915, 0
        %v2935 = vsel %vm2220, %v2917, 0
        %v2938 = vsel %vm2220, %v2919, 0
        %v2941 = vsel %vm2220, %v2921, 0
        %v2944 = vsel %vm2220, %v2923, 0
        %v2947 = vsel %vm2220, %v2925, 0
        %v2950 = vsel %vm2220, %v2927, 0
        %2952 = vmatprep.subr.bf16.mxu0 0
        %2953 = vmatpush1.bf16.xpose.msra.mxu0 %v2941
        %2954 = vmatprep.subr.bf16.mxu0 0
        %2955 = vmatpush1.bf16.xpose.msra.mxu0 %v2944
        %2956 = vmatprep.subr.bf16.mxu0 0
        %2957 = vmatpush1.bf16.xpose.msra.mxu0 %v2947
        %2958 = vmatprep.subr.bf16.mxu0 0
        %2959 = vmatpush1.bf16.xpose.msra.mxu0 %v2950
        %2960 = vmatprep.subr.bf16.mxu0 0
        %2961 = vmatpush1.bf16.xpose.msra.mxu0 0
        %2962 = vmatprep.subr.bf16.mxu0 0
        %2963 = vmatpush1.bf16.xpose.msra.mxu0 0
        %2964 = vmatprep.subr.bf16.mxu0 0
        %2965 = vmatpush1.bf16.xpose.msra.mxu0 0
        %2966 = vmatprep.subr.bf16.mxu0 0
        %2967 = vmatpush1.bf16.xpose.msra.mxu0 0
        %2968 = vmatprep.subr.bf16.mxu0 0
        %2969 = vmatpush1.bf16.xpose.msra.mxu0 0
        %2970 = vmatprep.subr.bf16.mxu0 0
        %2971 = vmatpush1.bf16.xpose.msra.mxu0 0
        %2972 = vmatprep.subr.bf16.mxu0 0
        %2973 = vmatpush1.bf16.xpose.msra.mxu0 0
        %2974 = vmatprep.subr.bf16.mxu0 0
        %2975 = vmatpush1.bf16.xpose.msra.mxu0 0
        %2976 = vmatprep.subr.bf16.mxu0 0
        %2977 = vmatpush1.bf16.xpose.msra.mxu0 0
        %2978 = vmatprep.subr.bf16.mxu0 0
        %2979 = vmatpush1.bf16.xpose.msra.mxu0 0
        %2980 = vmatprep.subr.bf16.mxu0 0
        %2981 = vmatpush1.bf16.xpose.msra.mxu0 0
        %2982 = vmatprep.subr.bf16.mxu0 0
        %2983 = vmatpush1.bf16.xpose.msra.mxu0 0
        %2984 = vmatprep.mubr.bf16.mxu0 0
        %2985 = vmatmul.mubr.bf16.gmra.mrb[0].mxu0 %v2929
        %v2986 = vpop.f32.mrb[0].mxu0
        %v2987 = vadd.f32 %v2799, %v2986
        %v2988 = vpop.f32.mrb[0].mxu0
        %v2989 = vpop.f32.mrb[0].mxu0
        %v2990 = vadd.f32 %v2800, %v2989
        %v2991 = vpop.f32.mrb[0].mxu0
        %2992 = vmatprep.mubr.bf16.mxu0 0
        %2993 = vmatmul.mubr.bf16.gmra.mrb[0].mxu0 %v2932
        %v2994 = vpop.f32.mrb[0].mxu0
        %v2995 = vadd.f32 %v2801, %v2994
        %v2996 = vpop.f32.mrb[0].mxu0
        %v2997 = vpop.f32.mrb[0].mxu0
        %v2998 = vadd.f32 %v2802, %v2997
        %v2999 = vpop.f32.mrb[0].mxu0
        %3000 = vmatprep.mubr.bf16.mxu0 0
        %3001 = vmatmul.mubr.bf16.gmra.mrb[0].mxu0 %v2935
        %v3002 = vpop.f32.mrb[0].mxu0
        %v3003 = vadd.f32 %v2803, %v3002
        %v3004 = vpop.f32.mrb[0].mxu0
        %v3005 = vpop.f32.mrb[0].mxu0
        %v3006 = vadd.f32 %v2804, %v3005
        %v3007 = vpop.f32.mrb[0].mxu0
        %3008 = vmatprep.mubr.bf16.mxu0 0
        %3009 = vmatmul.mubr.bf16.gmra.mrb[0].mxu0 %v2938
        %v3010 = vpop.f32.mrb[0].mxu0
        %v3011 = vadd.f32 %v2805, %v3010
        %v3012 = vpop.f32.mrb[0].mxu0
        %v3013 = vpop.f32.mrb[0].mxu0
        %v3014 = vadd.f32 %v2806, %v3013
        %v3015 = vpop.f32.mrb[0].mxu0
        %3016 = vdwg.mxu0
        %v3017 = vsel %vm2411, %v2882, -inf
        %3018 = vmax.xlane.f32.xlu0 %v3017
        %v3019 = vpop.xlane.xlu0 %3018
        %v3020 = vsel %vm2411, %v2885, -inf
        %3021 = vmax.xlane.f32.xlu0 %v3020
        %v3022 = vpop.xlane.xlu0 %3021
        %v3023 = vsel %vm2411, %v2890, -inf
        %3024 = vmax.xlane.f32.xlu0 %v3023
        %v3025 = vpop.xlane.xlu0 %3024
        %v3026 = vsel %vm2411, %v2893, -inf
        %3027 = vmax.xlane.f32.xlu0 %v3026
        %v3028 = vpop.xlane.xlu0 %3027
        %v3029 = vsel %vm2411, %v2898, -inf
        %3030 = vmax.xlane.f32.xlu0 %v3029
        %v3031 = vpop.xlane.xlu0 %3030
        %v3032 = vsel %vm2411, %v2901, -inf
        %3033 = vmax.xlane.f32.xlu0 %v3032
        %v3034 = vpop.xlane.xlu0 %3033
        %v3035 = vsel %vm2411, %v2906, -inf
        %3036 = vmax.xlane.f32.xlu0 %v3035
        %v3037 = vpop.xlane.xlu0 %3036
        %v3038 = vsel %vm2411, %v2909, -inf
        %3039 = vmax.xlane.f32.xlu0 %v3038
        %v3040 = vpop.xlane.xlu0 %3039
        %v3041 = vsel %vm2411, %v2987, -inf
        %3042 = vmax.xlane.f32.xlu0 %v3041
        %v3043 = vpop.xlane.xlu0 %3042
        %v3044 = vsel %vm2411, %v2990, -inf
        %3045 = vmax.xlane.f32.xlu0 %v3044
        %v3046 = vpop.xlane.xlu0 %3045
        %v3047 = vsel %vm2411, %v2995, -inf
        %3048 = vmax.xlane.f32.xlu0 %v3047
        %v3049 = vpop.xlane.xlu0 %3048
        %v3050 = vsel %vm2411, %v2998, -inf
        %3051 = vmax.xlane.f32.xlu0 %v3050
        %v3052 = vpop.xlane.xlu0 %3051
        %v3053 = vsel %vm2411, %v3003, -inf
        %3054 = vmax.xlane.f32.xlu0 %v3053
        %v3055 = vpop.xlane.xlu0 %3054
        %v3056 = vsel %vm2411, %v3006, -inf
        %3057 = vmax.xlane.f32.xlu0 %v3056
        %v3058 = vpop.xlane.xlu0 %3057
        %v3059 = vsel %vm2411, %v3011, -inf
        %3060 = vmax.xlane.f32.xlu0 %v3059
        %v3061 = vpop.xlane.xlu0 %3060
        %v3062 = vsel %vm2411, %v3014, -inf
        %3063 = vmax.xlane.f32.xlu0 %v3062
        %v3064 = vpop.xlane.xlu0 %3063
        %v3065 = vsub.f32 %v2882, %v3019
        %v3066 = vsub.f32 %v2885, %v3022
        %v3067 = vsub.f32 %v2890, %v3025
        %v3068 = vsub.f32 %v2893, %v3028
        %v3069 = vsub.f32 %v2898, %v3031
        %v3070 = vsub.f32 %v2901, %v3034
        %v3071 = vsub.f32 %v2906, %v3037
        %v3072 = vsub.f32 %v2909, %v3040
        %v3073 = vsub.f32 %v2987, %v3043
        %v3074 = vsub.f32 %v2990, %v3046
        %v3075 = vsub.f32 %v2995, %v3049
        %v3076 = vsub.f32 %v2998, %v3052
        %v3077 = vsub.f32 %v3003, %v3055
        %v3078 = vsub.f32 %v3006, %v3058
        %v3079 = vsub.f32 %v3011, %v3061
        %v3080 = vsub.f32 %v3014, %v3064
        %v3081 = vmul.f32 %v3065, 1.442695
        %v3082 = vpow.pop %v3081
        %v3083 = vmul.f32 %v3066, 1.442695
        %v3084 = vpow.pop %v3083
        %v3085 = vmul.f32 %v3067, 1.442695
        %v3086 = vpow.pop %v3085
        %v3087 = vmul.f32 %v3068, 1.442695
        %v3088 = vpow.pop %v3087
        %v3089 = vmul.f32 %v3069, 1.442695
        %v3090 = vpow.pop %v3089
        %v3091 = vmul.f32 %v3070, 1.442695
        %v3092 = vpow.pop %v3091
        %v3093 = vmul.f32 %v3071, 1.442695
        %v3094 = vpow.pop %v3093
        %v3095 = vmul.f32 %v3072, 1.442695
        %v3096 = vpow.pop %v3095
        %v3097 = vmul.f32 %v3073, 1.442695
        %v3098 = vpow.pop %v3097
        %v3099 = vmul.f32 %v3074, 1.442695
        %v3100 = vpow.pop %v3099
        %v3101 = vmul.f32 %v3075, 1.442695
        %v3102 = vpow.pop %v3101
        %v3103 = vmul.f32 %v3076, 1.442695
        %v3104 = vpow.pop %v3103
        %v3105 = vmul.f32 %v3077, 1.442695
        %v3106 = vpow.pop %v3105
        %v3107 = vmul.f32 %v3078, 1.442695
        %v3108 = vpow.pop %v3107
        %v3109 = vmul.f32 %v3079, 1.442695
        %v3110 = vpow.pop %v3109
        %v3111 = vmul.f32 %v3080, 1.442695
        %v3112 = vpow.pop %v3111
        %v3113 = vsel %vm2411, %v3082, 0.0
        %3114 = vadd.xlane.f32.xlu0 %v3113
        %v3115 = vpop.xlane.xlu0 %3114
        %v3116 = vsel %vm2411, %v3084, 0.0
        %3117 = vadd.xlane.f32.xlu0 %v3116
        %v3118 = vpop.xlane.xlu0 %3117
        %v3119 = vsel %vm2411, %v3086, 0.0
        %3120 = vadd.xlane.f32.xlu0 %v3119
        %v3121 = vpop.xlane.xlu0 %3120
        %v3122 = vsel %vm2411, %v3088, 0.0
        %3123 = vadd.xlane.f32.xlu0 %v3122
        %v3124 = vpop.xlane.xlu0 %3123
        %v3125 = vsel %vm2411, %v3090, 0.0
        %3126 = vadd.xlane.f32.xlu0 %v3125
        %v3127 = vpop.xlane.xlu0 %3126
        %v3128 = vsel %vm2411, %v3092, 0.0
        %3129 = vadd.xlane.f32.xlu0 %v3128
        %v3130 = vpop.xlane.xlu0 %3129
        %v3131 = vsel %vm2411, %v3094, 0.0
        %3132 = vadd.xlane.f32.xlu0 %v3131
        %v3133 = vpop.xlane.xlu0 %3132
        %v3134 = vsel %vm2411, %v3096, 0.0
        %3135 = vadd.xlane.f32.xlu0 %v3134
        %v3136 = vpop.xlane.xlu0 %3135
        %v3137 = vsel %vm2411, %v3098, 0.0
        %3138 = vadd.xlane.f32.xlu0 %v3137
        %v3139 = vpop.xlane.xlu0 %3138
        %v3140 = vsel %vm2411, %v3100, 0.0
        %3141 = vadd.xlane.f32.xlu0 %v3140
        %v3142 = vpop.xlane.xlu0 %3141
        %v3143 = vsel %vm2411, %v3102, 0.0
        %3144 = vadd.xlane.f32.xlu0 %v3143
        %v3145 = vpop.xlane.xlu0 %3144
        %v3146 = vsel %vm2411, %v3104, 0.0
        %3147 = vadd.xlane.f32.xlu0 %v3146
        %v3148 = vpop.xlane.xlu0 %3147
        %v3149 = vsel %vm2411, %v3106, 0.0
        %3150 = vadd.xlane.f32.xlu0 %v3149
        %v3151 = vpop.xlane.xlu0 %3150
        %v3152 = vsel %vm2411, %v3108, 0.0
        %3153 = vadd.xlane.f32.xlu0 %v3152
        %v3154 = vpop.xlane.xlu0 %3153
        %v3155 = vsel %vm2411, %v3110, 0.0
        %3156 = vadd.xlane.f32.xlu0 %v3155
        %v3157 = vpop.xlane.xlu0 %3156
        %v3158 = vsel %vm2411, %v3112, 0.0
        %3159 = vadd.xlane.f32.xlu0 %v3158
        %v3160 = vpop.xlane.xlu0 %3159
        %v3161 = vrcp.pop %v3115
        %v3162 = vrcp.pop %v3118
        %v3163 = vrcp.pop %v3121
        %v3164 = vrcp.pop %v3124
        %v3165 = vrcp.pop %v3127
        %v3166 = vrcp.pop %v3130
        %v3167 = vrcp.pop %v3133
        %v3168 = vrcp.pop %v3136
        %v3169 = vrcp.pop %v3139
        %v3170 = vrcp.pop %v3142
        %v3171 = vrcp.pop %v3145
        %v3172 = vrcp.pop %v3148
        %v3173 = vrcp.pop %v3151
        %v3174 = vrcp.pop %v3154
        %v3175 = vrcp.pop %v3157
        %v3176 = vrcp.pop %v3160
        %v3177 = vmul.f32 %v3082, %v3161
        %v3178 = vmul.f32 %v3084, %v3162
        %v3179 = vmul.f32 %v3086, %v3163
        %v3180 = vmul.f32 %v3088, %v3164
        %v3181 = vmul.f32 %v3090, %v3165
        %v3182 = vmul.f32 %v3092, %v3166
        %v3183 = vmul.f32 %v3094, %v3167
        %v3184 = vmul.f32 %v3096, %v3168
        %v3185 = vmul.f32 %v3098, %v3169
        %v3186 = vmul.f32 %v3100, %v3170
        %v3187 = vmul.f32 %v3102, %v3171
        %v3188 = vmul.f32 %v3104, %v3172
        %v3189 = vmul.f32 %v3106, %v3173
        %v3190 = vmul.f32 %v3108, %v3174
        %v3191 = vmul.f32 %v3110, %v3175
        %v3192 = vmul.f32 %v3112, %v3176
        %v3193 = vpack.c.bf16 %v3178, %v3177
        %v3194 = vpack.c.bf16 %v3180, %v3179
        %v3195 = vpack.c.bf16 %v3182, %v3181
        %v3196 = vpack.c.bf16 %v3184, %v3183
        %v3197 = vpack.c.bf16 %v3186, %v3185
        %v3198 = vpack.c.bf16 %v3188, %v3187
        %v3199 = vpack.c.bf16 %v3190, %v3189
        %v3200 = vpack.c.bf16 %v3192, %v3191
        %3201 = vrot.lane.b32.xlu0 %v2184, 56
        %v3202 = vpop.permute.xlu0 %3201
        %3203 = vrot.lane.b32.xlu0 %v2185, 56
        %v3204 = vpop.permute.xlu0 %3203
        %3205 = vrot.lane.b32.xlu0 %v2186, 56
        %v3206 = vpop.permute.xlu0 %3205
        %3207 = vrot.lane.b32.xlu0 %v2187, 56
        %v3208 = vpop.permute.xlu0 %3207
        %v3214 = vsel %vm2411, %v3193, 0
        %v3217 = vsel %vm2411, %v3194, 0
        %v3220 = vsel %vm2411, %v3195, 0
        %v3223 = vsel %vm2411, %v3196, 0
        %3225 = vmatprep.subr.bf16.mxu0 0
        %3226 = vmatpush1.bf16.msra.mxu0 %v3202
        %3227 = vmatprep.subr.bf16.mxu0 0
        %3228 = vmatpush1.bf16.msra.mxu0 %v3204
        %3229 = vmatprep.subr.bf16.mxu0 0
        %3230 = vmatpush1.bf16.msra.mxu0 %v3206
        %3231 = vmatprep.subr.bf16.mxu0 0
        %3232 = vmatpush1.bf16.msra.mxu0 %v3208
        %3233 = vmatprep.subr.bf16.mxu0 0
        %3234 = vmatpush1.bf16.msra.mxu0 0
        %3235 = vmatprep.subr.bf16.mxu0 0
        %3236 = vmatpush1.bf16.msra.mxu0 0
        %3237 = vmatprep.subr.bf16.mxu0 0
        %3238 = vmatpush1.bf16.msra.mxu0 0
        %3239 = vmatprep.subr.bf16.mxu0 0
        %3240 = vmatpush1.bf16.msra.mxu0 0
        %3241 = vmatprep.subr.bf16.mxu0 0
        %3242 = vmatpush1.bf16.msra.mxu0 0
        %3243 = vmatprep.subr.bf16.mxu0 0
        %3244 = vmatpush1.bf16.msra.mxu0 0
        %3245 = vmatprep.subr.bf16.mxu0 0
        %3246 = vmatpush1.bf16.msra.mxu0 0
        %3247 = vmatprep.subr.bf16.mxu0 0
        %3248 = vmatpush1.bf16.msra.mxu0 0
        %3249 = vmatprep.subr.bf16.mxu0 0
        %3250 = vmatpush1.bf16.msra.mxu0 0
        %3251 = vmatprep.subr.bf16.mxu0 0
        %3252 = vmatpush1.bf16.msra.mxu0 0
        %3253 = vmatprep.subr.bf16.mxu0 0
        %3254 = vmatpush1.bf16.msra.mxu0 0
        %3255 = vmatprep.subr.bf16.mxu0 0
        %3256 = vmatpush1.bf16.msra.mxu0 0
        %3257 = vmatprep.mubr.bf16.mxu0 0
        %3258 = vmatmul.mubr.bf16.gmra.mrb[0].mxu0 %v3214
        %v3259 = vpop.f32.mrb[0].mxu0
        %v3260 = vadd.f32 0.0, %v3259
        %v3261 = vpop.f32.mrb[0].mxu0
        %v3262 = vpop.f32.mrb[0].mxu0
        %v3263 = vadd.f32 0.0, %v3262
        %v3264 = vpop.f32.mrb[0].mxu0
        %3265 = vmatprep.mubr.bf16.mxu0 0
        %3266 = vmatmul.mubr.bf16.gmra.mrb[0].mxu0 %v3217
        %v3267 = vpop.f32.mrb[0].mxu0
        %v3268 = vadd.f32 0.0, %v3267
        %v3269 = vpop.f32.mrb[0].mxu0
        %v3270 = vpop.f32.mrb[0].mxu0
        %v3271 = vadd.f32 0.0, %v3270
        %v3272 = vpop.f32.mrb[0].mxu0
        %3273 = vmatprep.mubr.bf16.mxu0 0
        %3274 = vmatmul.mubr.bf16.gmra.mrb[0].mxu0 %v3220
        %v3275 = vpop.f32.mrb[0].mxu0
        %v3276 = vadd.f32 0.0, %v3275
        %v3277 = vpop.f32.mrb[0].mxu0
        %v3278 = vpop.f32.mrb[0].mxu0
        %v3279 = vadd.f32 0.0, %v3278
        %v3280 = vpop.f32.mrb[0].mxu0
        %3281 = vmatprep.mubr.bf16.mxu0 0
        %3282 = vmatmul.mubr.bf16.gmra.mrb[0].mxu0 %v3223
        %v3283 = vpop.f32.mrb[0].mxu0
        %v3284 = vadd.f32 0.0, %v3283
        %v3285 = vpop.f32.mrb[0].mxu0
        %v3286 = vpop.f32.mrb[0].mxu0
        %v3287 = vadd.f32 0.0, %v3286
        %v3288 = vpop.f32.mrb[0].mxu0
        %3289 = vdwg.mxu0
        %3290 = vrot.lane.b32.xlu0 %v2188, 56
        %v3291 = vpop.permute.xlu0 %3290
        %3292 = vrot.lane.b32.xlu0 %v2189, 56
        %v3293 = vpop.permute.xlu0 %3292
        %3294 = vrot.lane.b32.xlu0 %v2190, 56
        %v3295 = vpop.permute.xlu0 %3294
        %3296 = vrot.lane.b32.xlu0 %v2191, 56
        %v3297 = vpop.permute.xlu0 %3296
        %v3303 = vsel %vm2411, %v3197, 0
        %v3306 = vsel %vm2411, %v3198, 0
        %v3309 = vsel %vm2411, %v3199, 0
        %v3312 = vsel %vm2411, %v3200, 0
        %3314 = vmatprep.subr.bf16.mxu0 0
        %3315 = vmatpush1.bf16.msra.mxu0 %v3291
        %3316 = vmatprep.subr.bf16.mxu0 0
        %3317 = vmatpush1.bf16.msra.mxu0 %v3293
        %3318 = vmatprep.subr.bf16.mxu0 0
        %3319 = vmatpush1.bf16.msra.mxu0 %v3295
        %3320 = vmatprep.subr.bf16.mxu0 0
        %3321 = vmatpush1.bf16.msra.mxu0 %v3297
        %3322 = vmatprep.subr.bf16.mxu0 0
        %3323 = vmatpush1.bf16.msra.mxu0 0
        %3324 = vmatprep.subr.bf16.mxu0 0
        %3325 = vmatpush1.bf16.msra.mxu0 0
        %3326 = vmatprep.subr.bf16.mxu0 0
        %3327 = vmatpush1.bf16.msra.mxu0 0
        %3328 = vmatprep.subr.bf16.mxu0 0
        %3329 = vmatpush1.bf16.msra.mxu0 0
        %3330 = vmatprep.subr.bf16.mxu0 0
        %3331 = vmatpush1.bf16.msra.mxu0 0
        %3332 = vmatprep.subr.bf16.mxu0 0
        %3333 = vmatpush1.bf16.msra.mxu0 0
        %3334 = vmatprep.subr.bf16.mxu0 0
        %3335 = vmatpush1.bf16.msra.mxu0 0
        %3336 = vmatprep.subr.bf16.mxu0 0
        %3337 = vmatpush1.bf16.msra.mxu0 0
        %3338 = vmatprep.subr.bf16.mxu0 0
        %3339 = vmatpush1.bf16.msra.mxu0 0
        %3340 = vmatprep.subr.bf16.mxu0 0
        %3341 = vmatpush1.bf16.msra.mxu0 0
        %3342 = vmatprep.subr.bf16.mxu0 0
        %3343 = vmatpush1.bf16.msra.mxu0 0
        %3344 = vmatprep.subr.bf16.mxu0 0
        %3345 = vmatpush1.bf16.msra.mxu0 0
        %3346 = vmatprep.mubr.bf16.mxu0 0
        %3347 = vmatmul.mubr.bf16.gmra.mrb[0].mxu0 %v3303
        %v3348 = vpop.f32.mrb[0].mxu0
        %v3349 = vadd.f32 0.0, %v3348
        %v3350 = vpop.f32.mrb[0].mxu0
        %v3351 = vpop.f32.mrb[0].mxu0
        %v3352 = vadd.f32 0.0, %v3351
        %v3353 = vpop.f32.mrb[0].mxu0
        %3354 = vmatprep.mubr.bf16.mxu0 0
        %3355 = vmatmul.mubr.bf16.gmra.mrb[0].mxu0 %v3306
        %v3356 = vpop.f32.mrb[0].mxu0
        %v3357 = vadd.f32 0.0, %v3356
        %v3358 = vpop.f32.mrb[0].mxu0
        %v3359 = vpop.f32.mrb[0].mxu0
        %v3360 = vadd.f32 0.0, %v3359
        %v3361 = vpop.f32.mrb[0].mxu0
        %3362 = vmatprep.mubr.bf16.mxu0 0
        %3363 = vmatmul.mubr.bf16.gmra.mrb[0].mxu0 %v3309
        %v3364 = vpop.f32.mrb[0].mxu0
        %v3365 = vadd.f32 0.0, %v3364
        %v3366 = vpop.f32.mrb[0].mxu0
        %v3367 = vpop.f32.mrb[0].mxu0
        %v3368 = vadd.f32 0.0, %v3367
        %v3369 = vpop.f32.mrb[0].mxu0
        %3370 = vmatprep.mubr.bf16.mxu0 0
        %3371 = vmatmul.mubr.bf16.gmra.mrb[0].mxu0 %v3312
        %v3372 = vpop.f32.mrb[0].mxu0
        %v3373 = vadd.f32 0.0, %v3372
        %v3374 = vpop.f32.mrb[0].mxu0
        %v3375 = vpop.f32.mrb[0].mxu0
        %v3376 = vadd.f32 0.0, %v3375
        %v3377 = vpop.f32.mrb[0].mxu0
        %3378 = vdwg.mxu0
        %3395 = vrot.lane.b32.xlu0 %v3260, 8
        %v3396 = vpop.permute.xlu0 %3395
        %3397 = vrot.lane.b32.xlu0 %v3263, 8
        %v3398 = vpop.permute.xlu0 %3397
        %3399 = vrot.lane.b32.xlu0 %v3268, 8
        %v3400 = vpop.permute.xlu0 %3399
        %3401 = vrot.lane.b32.xlu0 %v3271, 8
        %v3402 = vpop.permute.xlu0 %3401
        %3403 = vrot.lane.b32.xlu0 %v3276, 8
        %v3404 = vpop.permute.xlu0 %3403
        %3405 = vrot.lane.b32.xlu0 %v3279, 8
        %v3406 = vpop.permute.xlu0 %3405
        %3407 = vrot.lane.b32.xlu0 %v3284, 8
        %v3408 = vpop.permute.xlu0 %3407
        %3409 = vrot.lane.b32.xlu0 %v3287, 8
        %v3410 = vpop.permute.xlu0 %3409
        %3411 = vrot.lane.b32.xlu0 %v3349, 8
        %v3412 = vpop.permute.xlu0 %3411
        %3413 = vrot.lane.b32.xlu0 %v3352, 8
        %v3414 = vpop.permute.xlu0 %3413
        %3415 = vrot.lane.b32.xlu0 %v3357, 8
        %v3416 = vpop.permute.xlu0 %3415
        %3417 = vrot.lane.b32.xlu0 %v3360, 8
        %v3418 = vpop.permute.xlu0 %3417
        %3419 = vrot.lane.b32.xlu0 %v3365, 8
        %v3420 = vpop.permute.xlu0 %3419
        %3421 = vrot.lane.b32.xlu0 %v3368, 8
        %v3422 = vpop.permute.xlu0 %3421
        %3423 = vrot.lane.b32.xlu0 %v3373, 8
        %v3424 = vpop.permute.xlu0 %3423
        %3425 = vrot.lane.b32.xlu0 %v3376, 8
        %v3426 = vpop.permute.xlu0 %3425
        %vm3443 = vcmask 130112
        %3444 = vst.msk [vmem:[#allocation3] sm:$0xff] %vm3443, %v3396
        %3445 = vst.msk [vmem:[#allocation3 + $0x8] sm:$0xff] %vm3443, %v3398
        %3446 = vst.msk [vmem:[#allocation3 + $0x10] sm:$0xff] %vm3443, %v3400
        %3447 = vst.msk [vmem:[#allocation3 + $0x18] sm:$0xff] %vm3443, %v3402
        %3448 = vst.msk [vmem:[#allocation3 + $0x20] sm:$0xff] %vm3443, %v3404
        %3449 = vst.msk [vmem:[#allocation3 + $0x28] sm:$0xff] %vm3443, %v3406
        %3450 = vst.msk [vmem:[#allocation3 + $0x30] sm:$0xff] %vm3443, %v3408
        %3451 = vst.msk [vmem:[#allocation3 + $0x38] sm:$0xff] %vm3443, %v3410
        %3452 = vst.msk [vmem:[#allocation3 + $0x40] sm:$0xff] %vm3443, %v3412
        %3453 = vst.msk [vmem:[#allocation3 + $0x48] sm:$0xff] %vm3443, %v3414
        %3454 = vst.msk [vmem:[#allocation3 + $0x50] sm:$0xff] %vm3443, %v3416
        %3455 = vst.msk [vmem:[#allocation3 + $0x58] sm:$0xff] %vm3443, %v3418
        %3456 = vst.msk [vmem:[#allocation3 + $0x60] sm:$0xff] %vm3443, %v3420
        %3457 = vst.msk [vmem:[#allocation3 + $0x68] sm:$0xff] %vm3443, %v3422
        %3458 = vst.msk [vmem:[#allocation3 + $0x70] sm:$0xff] %vm3443, %v3424
        %3459 = vst.msk [vmem:[#allocation3 + $0x78] sm:$0xff] %vm3443, %v3426
        %s3460 = scalar_lea.vmem %s1167, 64
        %v3461 = vld [vmem:[%s3460] sm:$0xf]
        %v3462 = vld [vmem:[%s3460 + $0x4] sm:$0xf]
        %v3463 = vld [vmem:[%s3460 + $0x8] sm:$0xf]
        %v3464 = vld [vmem:[%s3460 + $0xc] sm:$0xf]
        %v3465 = vld [vmem:[%s3460 + $0x10] sm:$0xf]
        %v3466 = vld [vmem:[%s3460 + $0x14] sm:$0xf]
        %v3467 = vld [vmem:[%s3460 + $0x18] sm:$0xf]
        %v3468 = vld [vmem:[%s3460 + $0x1c] sm:$0xf]
        %v3469 = vunpack.c.l.bf16 %v3461
        %v3470 = vunpack.c.l.bf16 %v3462
        %v3471 = vunpack.c.l.bf16 %v3463
        %v3472 = vunpack.c.l.bf16 %v3464
        %v3473 = vunpack.c.l.bf16 %v3465
        %v3474 = vunpack.c.l.bf16 %v3466
        %v3475 = vunpack.c.l.bf16 %v3467
        %v3476 = vunpack.c.l.bf16 %v3468
        %3477 = vrot.lane.b32.xlu0 %v2184, 112
        %v3478 = vpop.permute.xlu0 %3477
        %3479 = vrot.lane.b32.xlu0 %v2185, 112
        %v3480 = vpop.permute.xlu0 %3479
        %3481 = vrot.lane.b32.xlu0 %v2186, 112
        %v3482 = vpop.permute.xlu0 %3481
        %3483 = vrot.lane.b32.xlu0 %v2187, 112
        %v3484 = vpop.permute.xlu0 %3483
        %3485 = vrot.lane.b32.xlu0 %v2184, 80
        %v3486 = vpop.permute.xlu0 %3485
        %3487 = vrot.lane.b32.xlu0 %v2185, 80
        %v3488 = vpop.permute.xlu0 %3487
        %3489 = vrot.lane.b32.xlu0 %v2186, 80
        %v3490 = vpop.permute.xlu0 %3489
        %3491 = vrot.lane.b32.xlu0 %v2187, 80
        %v3492 = vpop.permute.xlu0 %3491
        %v3494 = vsel %vm2220, %v3478, 0
        %v3497 = vsel %vm2220, %v3480, 0
        %v3500 = vsel %vm2220, %v3482, 0
        %v3503 = vsel %vm2220, %v3484, 0
        %v3506 = vsel %vm2220, %v3486, 0
        %v3509 = vsel %vm2220, %v3488, 0
        %v3512 = vsel %vm2220, %v3490, 0
        %v3515 = vsel %vm2220, %v3492, 0
        %3517 = vmatprep.subr.bf16.mxu0 0
        %3518 = vmatpush1.bf16.xpose.msra.mxu0 %v3506
        %3519 = vmatprep.subr.bf16.mxu0 0
        %3520 = vmatpush1.bf16.xpose.msra.mxu0 %v3509
        %3521 = vmatprep.subr.bf16.mxu0 0
        %3522 = vmatpush1.bf16.xpose.msra.mxu0 %v3512
        %3523 = vmatprep.subr.bf16.mxu0 0
        %3524 = vmatpush1.bf16.xpose.msra.mxu0 %v3515
        %3525 = vmatprep.subr.bf16.mxu0 0
        %3526 = vmatpush1.bf16.xpose.msra.mxu0 0
        %3527 = vmatprep.subr.bf16.mxu0 0
        %3528 = vmatpush1.bf16.xpose.msra.mxu0 0
        %3529 = vmatprep.subr.bf16.mxu0 0
        %3530 = vmatpush1.bf16.xpose.msra.mxu0 0
        %3531 = vmatprep.subr.bf16.mxu0 0
        %3532 = vmatpush1.bf16.xpose.msra.mxu0 0
        %3533 = vmatprep.subr.bf16.mxu0 0
        %3534 = vmatpush1.bf16.xpose.msra.mxu0 0
        %3535 = vmatprep.subr.bf16.mxu0 0
        %3536 = vmatpush1.bf16.xpose.msra.mxu0 0
        %3537 = vmatprep.subr.bf16.mxu0 0
        %3538 = vmatpush1.bf16.xpose.msra.mxu0 0
        %3539 = vmatprep.subr.bf16.mxu0 0
        %3540 = vmatpush1.bf16.xpose.msra.mxu0 0
        %3541 = vmatprep.subr.bf16.mxu0 0
        %3542 = vmatpush1.bf16.xpose.msra.mxu0 0
        %3543 = vmatprep.subr.bf16.mxu0 0
        %3544 = vmatpush1.bf16.xpose.msra.mxu0 0
        %3545 = vmatprep.subr.bf16.mxu0 0
        %3546 = vmatpush1.bf16.xpose.msra.mxu0 0
        %3547 = vmatprep.subr.bf16.mxu0 0
        %3548 = vmatpush1.bf16.xpose.msra.mxu0 0
        %3549 = vmatprep.mubr.bf16.mxu0 0
        %3550 = vmatmul.mubr.bf16.gmra.mrb[0].mxu0 %v3494
        %v3551 = vpop.f32.mrb[0].mxu0
        %v3552 = vadd.f32 %v3469, %v3551
        %v3553 = vpop.f32.mrb[0].mxu0
        %v3554 = vpop.f32.mrb[0].mxu0
        %v3555 = vadd.f32 %v3470, %v3554
        %v3556 = vpop.f32.mrb[0].mxu0
        %3557 = vmatprep.mubr.bf16.mxu0 0
        %3558 = vmatmul.mubr.bf16.gmra.mrb[0].mxu0 %v3497
        %v3559 = vpop.f32.mrb[0].mxu0
        %v3560 = vadd.f32 %v3471, %v3559
        %v3561 = vpop.f32.mrb[0].mxu0
        %v3562 = vpop.f32.mrb[0].mxu0
        %v3563 = vadd.f32 %v3472, %v3562
        %v3564 = vpop.f32.mrb[0].mxu0
        %3565 = vmatprep.mubr.bf16.mxu0 0
        %3566 = vmatmul.mubr.bf16.gmra.mrb[0].mxu0 %v3500
        %v3567 = vpop.f32.mrb[0].mxu0
        %v3568 = vadd.f32 %v3473, %v3567
        %v3569 = vpop.f32.mrb[0].mxu0
        %v3570 = vpop.f32.mrb[0].mxu0
        %v3571 = vadd.f32 %v3474, %v3570
        %v3572 = vpop.f32.mrb[0].mxu0
        %3573 = vmatprep.mubr.bf16.mxu0 0
        %3574 = vmatmul.mubr.bf16.gmra.mrb[0].mxu0 %v3503
        %v3575 = vpop.f32.mrb[0].mxu0
        %v3576 = vadd.f32 %v3475, %v3575
        %v3577 = vpop.f32.mrb[0].mxu0
        %v3578 = vpop.f32.mrb[0].mxu0
        %v3579 = vadd.f32 %v3476, %v3578
        %v3580 = vpop.f32.mrb[0].mxu0
        %3581 = vdwg.mxu0
        %3582 = vrot.lane.b32.xlu0 %v2188, 112
        %v3583 = vpop.permute.xlu0 %3582
        %3584 = vrot.lane.b32.xlu0 %v2189, 112
        %v3585 = vpop.permute.xlu0 %3584
        %3586 = vrot.lane.b32.xlu0 %v2190, 112
        %v3587 = vpop.permute.xlu0 %3586
        %3588 = vrot.lane.b32.xlu0 %v2191, 112
        %v3589 = vpop.permute.xlu0 %3588
        %3590 = vrot.lane.b32.xlu0 %v2188, 80
        %v3591 = vpop.permute.xlu0 %3590
        %3592 = vrot.lane.b32.xlu0 %v2189, 80
        %v3593 = vpop.permute.xlu0 %3592
        %3594 = vrot.lane.b32.xlu0 %v2190, 80
        %v3595 = vpop.permute.xlu0 %3594
        %3596 = vrot.lane.b32.xlu0 %v2191, 80
        %v3597 = vpop.permute.xlu0 %3596
        %v3599 = vsel %vm2220, %v3583, 0
        %v3602 = vsel %vm2220, %v3585, 0
        %v3605 = vsel %vm2220, %v3587, 0
        %v3608 = vsel %vm2220, %v3589, 0
        %v3611 = vsel %vm2220, %v3591, 0
        %v3614 = vsel %vm2220, %v3593, 0
        %v3617 = vsel %vm2220, %v3595, 0
        %v3620 = vsel %vm2220, %v3597, 0
        %3622 = vmatprep.subr.bf16.mxu0 0
        %3623 = vmatpush1.bf16.xpose.msra.mxu0 %v3611
        %3624 = vmatprep.subr.bf16.mxu0 0
        %3625 = vmatpush1.bf16.xpose.msra.mxu0 %v3614
        %3626 = vmatprep.subr.bf16.mxu0 0
        %3627 = vmatpush1.bf16.xpose.msra.mxu0 %v3617
        %3628 = vmatprep.subr.bf16.mxu0 0
        %3629 = vmatpush1.bf16.xpose.msra.mxu0 %v3620
        %3630 = vmatprep.subr.bf16.mxu0 0
        %3631 = vmatpush1.bf16.xpose.msra.mxu0 0
        %3632 = vmatprep.subr.bf16.mxu0 0
        %3633 = vmatpush1.bf16.xpose.msra.mxu0 0
        %3634 = vmatprep.subr.bf16.mxu0 0
        %3635 = vmatpush1.bf16.xpose.msra.mxu0 0
        %3636 = vmatprep.subr.bf16.mxu0 0
        %3637 = vmatpush1.bf16.xpose.msra.mxu0 0
        %3638 = vmatprep.subr.bf16.mxu0 0
        %3639 = vmatpush1.bf16.xpose.msra.mxu0 0
        %3640 = vmatprep.subr.bf16.mxu0 0
        %3641 = vmatpush1.bf16.xpose.msra.mxu0 0
        %3642 = vmatprep.subr.bf16.mxu0 0
        %3643 = vmatpush1.bf16.xpose.msra.mxu0 0
        %3644 = vmatprep.subr.bf16.mxu0 0
        %3645 = vmatpush1.bf16.xpose.msra.mxu0 0
        %3646 = vmatprep.subr.bf16.mxu0 0
        %3647 = vmatpush1.bf16.xpose.msra.mxu0 0
        %3648 = vmatprep.subr.bf16.mxu0 0
        %3649 = vmatpush1.bf16.xpose.msra.mxu0 0
        %3650 = vmatprep.subr.bf16.mxu0 0
        %3651 = vmatpush1.bf16.xpose.msra.mxu0 0
        %3652 = vmatprep.subr.bf16.mxu0 0
        %3653 = vmatpush1.bf16.xpose.msra.mxu0 0
        %3654 = vmatprep.mubr.bf16.mxu0 0
        %3655 = vmatmul.mubr.bf16.gmra.mrb[0].mxu0 %v3599
        %v3656 = vpop.f32.mrb[0].mxu0
        %v3657 = vadd.f32 %v3469, %v3656
        %v3658 = vpop.f32.mrb[0].mxu0
        %v3659 = vpop.f32.mrb[0].mxu0
        %v3660 = vadd.f32 %v3470, %v3659
        %v3661 = vpop.f32.mrb[0].mxu0
        %3662 = vmatprep.mubr.bf16.mxu0 0
        %3663 = vmatmul.mubr.bf16.gmra.mrb[0].mxu0 %v3602
        %v3664 = vpop.f32.mrb[0].mxu0
        %v3665 = vadd.f32 %v3471, %v3664
        %v3666 = vpop.f32.mrb[0].mxu0
        %v3667 = vpop.f32.mrb[0].mxu0
        %v3668 = vadd.f32 %v3472, %v3667
        %v3669 = vpop.f32.mrb[0].mxu0
        %3670 = vmatprep.mubr.bf16.mxu0 0
        %3671 = vmatmul.mubr.bf16.gmra.mrb[0].mxu0 %v3605
        %v3672 = vpop.f32.mrb[0].mxu0
        %v3673 = vadd.f32 %v3473, %v3672
        %v3674 = vpop.f32.mrb[0].mxu0
        %v3675 = vpop.f32.mrb[0].mxu0
        %v3676 = vadd.f32 %v3474, %v3675
        %v3677 = vpop.f32.mrb[0].mxu0
        %3678 = vmatprep.mubr.bf16.mxu0 0
        %3679 = vmatmul.mubr.bf16.gmra.mrb[0].mxu0 %v3608
        %v3680 = vpop.f32.mrb[0].mxu0
        %v3681 = vadd.f32 %v3475, %v3680
        %v3682 = vpop.f32.mrb[0].mxu0
        %v3683 = vpop.f32.mrb[0].mxu0
        %v3684 = vadd.f32 %v3476, %v3683
        %v3685 = vpop.f32.mrb[0].mxu0
        %3686 = vdwg.mxu0
        %v3687 = vsel %vm2411, %v3552, -inf
        %3688 = vmax.xlane.f32.xlu0 %v3687
        %v3689 = vpop.xlane.xlu0 %3688
        %v3690 = vsel %vm2411, %v3555, -inf
        %3691 = vmax.xlane.f32.xlu0 %v3690
        %v3692 = vpop.xlane.xlu0 %3691
        %v3693 = vsel %vm2411, %v3560, -inf
        %3694 = vmax.xlane.f32.xlu0 %v3693
        %v3695 = vpop.xlane.xlu0 %3694
        %v3696 = vsel %vm2411, %v3563, -inf
        %3697 = vmax.xlane.f32.xlu0 %v3696
        %v3698 = vpop.xlane.xlu0 %3697
        %v3699 = vsel %vm2411, %v3568, -inf
        %3700 = vmax.xlane.f32.xlu0 %v3699
        %v3701 = vpop.xlane.xlu0 %3700
        %v3702 = vsel %vm2411, %v3571, -inf
        %3703 = vmax.xlane.f32.xlu0 %v3702
        %v3704 = vpop.xlane.xlu0 %3703
        %v3705 = vsel %vm2411, %v3576, -inf
        %3706 = vmax.xlane.f32.xlu0 %v3705
        %v3707 = vpop.xlane.xlu0 %3706
        %v3708 = vsel %vm2411, %v3579, -inf
        %3709 = vmax.xlane.f32.xlu0 %v3708
        %v3710 = vpop.xlane.xlu0 %3709
        %v3711 = vsel %vm2411, %v3657, -inf
        %3712 = vmax.xlane.f32.xlu0 %v3711
        %v3713 = vpop.xlane.xlu0 %3712
        %v3714 = vsel %vm2411, %v3660, -inf
        %3715 = vmax.xlane.f32.xlu0 %v3714
        %v3716 = vpop.xlane.xlu0 %3715
        %v3717 = vsel %vm2411, %v3665, -inf
        %3718 = vmax.xlane.f32.xlu0 %v3717
        %v3719 = vpop.xlane.xlu0 %3718
        %v3720 = vsel %vm2411, %v3668, -inf
        %3721 = vmax.xlane.f32.xlu0 %v3720
        %v3722 = vpop.xlane.xlu0 %3721
        %v3723 = vsel %vm2411, %v3673, -inf
        %3724 = vmax.xlane.f32.xlu0 %v3723
        %v3725 = vpop.xlane.xlu0 %3724
        %v3726 = vsel %vm2411, %v3676, -inf
        %3727 = vmax.xlane.f32.xlu0 %v3726
        %v3728 = vpop.xlane.xlu0 %3727
        %v3729 = vsel %vm2411, %v3681, -inf
        %3730 = vmax.xlane.f32.xlu0 %v3729
        %v3731 = vpop.xlane.xlu0 %3730
        %v3732 = vsel %vm2411, %v3684, -inf
        %3733 = vmax.xlane.f32.xlu0 %v3732
        %v3734 = vpop.xlane.xlu0 %3733
        %v3735 = vsub.f32 %v3552, %v3689
        %v3736 = vsub.f32 %v3555, %v3692
        %v3737 = vsub.f32 %v3560, %v3695
        %v3738 = vsub.f32 %v3563, %v3698
        %v3739 = vsub.f32 %v3568, %v3701
        %v3740 = vsub.f32 %v3571, %v3704
        %v3741 = vsub.f32 %v3576, %v3707
        %v3742 = vsub.f32 %v3579, %v3710
        %v3743 = vsub.f32 %v3657, %v3713
        %v3744 = vsub.f32 %v3660, %v3716
        %v3745 = vsub.f32 %v3665, %v3719
        %v3746 = vsub.f32 %v3668, %v3722
        %v3747 = vsub.f32 %v3673, %v3725
        %v3748 = vsub.f32 %v3676, %v3728
        %v3749 = vsub.f32 %v3681, %v3731
        %v3750 = vsub.f32 %v3684, %v3734
        %v3751 = vmul.f32 %v3735, 1.442695
        %v3752 = vpow.pop %v3751
        %v3753 = vmul.f32 %v3736, 1.442695
        %v3754 = vpow.pop %v3753
        %v3755 = vmul.f32 %v3737, 1.442695
        %v3756 = vpow.pop %v3755
        %v3757 = vmul.f32 %v3738, 1.442695
        %v3758 = vpow.pop %v3757
        %v3759 = vmul.f32 %v3739, 1.442695
        %v3760 = vpow.pop %v3759
        %v3761 = vmul.f32 %v3740, 1.442695
        %v3762 = vpow.pop %v3761
        %v3763 = vmul.f32 %v3741, 1.442695
        %v3764 = vpow.pop %v3763
        %v3765 = vmul.f32 %v3742, 1.442695
        %v3766 = vpow.pop %v3765
        %v3767 = vmul.f32 %v3743, 1.442695
        %v3768 = vpow.pop %v3767
        %v3769 = vmul.f32 %v3744, 1.442695
        %v3770 = vpow.pop %v3769
        %v3771 = vmul.f32 %v3745, 1.442695
        %v3772 = vpow.pop %v3771
        %v3773 = vmul.f32 %v3746, 1.442695
        %v3774 = vpow.pop %v3773
        %v3775 = vmul.f32 %v3747, 1.442695
        %v3776 = vpow.pop %v3775
        %v3777 = vmul.f32 %v3748, 1.442695
        %v3778 = vpow.pop %v3777
        %v3779 = vmul.f32 %v3749, 1.442695
        %v3780 = vpow.pop %v3779
        %v3781 = vmul.f32 %v3750, 1.442695
        %v3782 = vpow.pop %v3781
        %v3783 = vsel %vm2411, %v3752, 0.0
        %3784 = vadd.xlane.f32.xlu0 %v3783
        %v3785 = vpop.xlane.xlu0 %3784
        %v3786 = vsel %vm2411, %v3754, 0.0
        %3787 = vadd.xlane.f32.xlu0 %v3786
        %v3788 = vpop.xlane.xlu0 %3787
        %v3789 = vsel %vm2411, %v3756, 0.0
        %3790 = vadd.xlane.f32.xlu0 %v3789
        %v3791 = vpop.xlane.xlu0 %3790
        %v3792 = vsel %vm2411, %v3758, 0.0
        %3793 = vadd.xlane.f32.xlu0 %v3792
        %v3794 = vpop.xlane.xlu0 %3793
        %v3795 = vsel %vm2411, %v3760, 0.0
        %3796 = vadd.xlane.f32.xlu0 %v3795
        %v3797 = vpop.xlane.xlu0 %3796
        %v3798 = vsel %vm2411, %v3762, 0.0
        %3799 = vadd.xlane.f32.xlu0 %v3798
        %v3800 = vpop.xlane.xlu0 %3799
        %v3801 = vsel %vm2411, %v3764, 0.0
        %3802 = vadd.xlane.f32.xlu0 %v3801
        %v3803 = vpop.xlane.xlu0 %3802
        %v3804 = vsel %vm2411, %v3766, 0.0
        %3805 = vadd.xlane.f32.xlu0 %v3804
        %v3806 = vpop.xlane.xlu0 %3805
        %v3807 = vsel %vm2411, %v3768, 0.0
        %3808 = vadd.xlane.f32.xlu0 %v3807
        %v3809 = vpop.xlane.xlu0 %3808
        %v3810 = vsel %vm2411, %v3770, 0.0
        %3811 = vadd.xlane.f32.xlu0 %v3810
        %v3812 = vpop.xlane.xlu0 %3811
        %v3813 = vsel %vm2411, %v3772, 0.0
        %3814 = vadd.xlane.f32.xlu0 %v3813
        %v3815 = vpop.xlane.xlu0 %3814
        %v3816 = vsel %vm2411, %v3774, 0.0
        %3817 = vadd.xlane.f32.xlu0 %v3816
        %v3818 = vpop.xlane.xlu0 %3817
        %v3819 = vsel %vm2411, %v3776, 0.0
        %3820 = vadd.xlane.f32.xlu0 %v3819
        %v3821 = vpop.xlane.xlu0 %3820
        %v3822 = vsel %vm2411, %v3778, 0.0
        %3823 = vadd.xlane.f32.xlu0 %v3822
        %v3824 = vpop.xlane.xlu0 %3823
        %v3825 = vsel %vm2411, %v3780, 0.0
        %3826 = vadd.xlane.f32.xlu0 %v3825
        %v3827 = vpop.xlane.xlu0 %3826
        %v3828 = vsel %vm2411, %v3782, 0.0
        %3829 = vadd.xlane.f32.xlu0 %v3828
        %v3830 = vpop.xlane.xlu0 %3829
        %v3831 = vrcp.pop %v3785
        %v3832 = vrcp.pop %v3788
        %v3833 = vrcp.pop %v3791
        %v3834 = vrcp.pop %v3794
        %v3835 = vrcp.pop %v3797
        %v3836 = vrcp.pop %v3800
        %v3837 = vrcp.pop %v3803
        %v3838 = vrcp.pop %v3806
        %v3839 = vrcp.pop %v3809
        %v3840 = vrcp.pop %v3812
        %v3841 = vrcp.pop %v3815
        %v3842 = vrcp.pop %v3818
        %v3843 = vrcp.pop %v3821
        %v3844 = vrcp.pop %v3824
        %v3845 = vrcp.pop %v3827
        %v3846 = vrcp.pop %v3830
        %v3847 = vmul.f32 %v3752, %v3831
        %v3848 = vmul.f32 %v3754, %v3832
        %v3849 = vmul.f32 %v3756, %v3833
        %v3850 = vmul.f32 %v3758, %v3834
        %v3851 = vmul.f32 %v3760, %v3835
        %v3852 = vmul.f32 %v3762, %v3836
        %v3853 = vmul.f32 %v3764, %v3837
        %v3854 = vmul.f32 %v3766, %v3838
        %v3855 = vmul.f32 %v3768, %v3839
        %v3856 = vmul.f32 %v3770, %v3840
        %v3857 = vmul.f32 %v3772, %v3841
        %v3858 = vmul.f32 %v3774, %v3842
        %v3859 = vmul.f32 %v3776, %v3843
        %v3860 = vmul.f32 %v3778, %v3844
        %v3861 = vmul.f32 %v3780, %v3845
        %v3862 = vmul.f32 %v3782, %v3846
        %v3863 = vpack.c.bf16 %v3848, %v3847
        %v3864 = vpack.c.bf16 %v3850, %v3849
        %v3865 = vpack.c.bf16 %v3852, %v3851
        %v3866 = vpack.c.bf16 %v3854, %v3853
        %v3867 = vpack.c.bf16 %v3856, %v3855
        %v3868 = vpack.c.bf16 %v3858, %v3857
        %v3869 = vpack.c.bf16 %v3860, %v3859
        %v3870 = vpack.c.bf16 %v3862, %v3861
        %3871 = vrot.lane.b32.xlu0 %v2184, 48
        %v3872 = vpop.permute.xlu0 %3871
        %3873 = vrot.lane.b32.xlu0 %v2185, 48
        %v3874 = vpop.permute.xlu0 %3873
        %3875 = vrot.lane.b32.xlu0 %v2186, 48
        %v3876 = vpop.permute.xlu0 %3875
        %3877 = vrot.lane.b32.xlu0 %v2187, 48
        %v3878 = vpop.permute.xlu0 %3877
        %v3884 = vsel %vm2411, %v3863, 0
        %v3887 = vsel %vm2411, %v3864, 0
        %v3890 = vsel %vm2411, %v3865, 0
        %v3893 = vsel %vm2411, %v3866, 0
        %3895 = vmatprep.subr.bf16.mxu0 0
        %3896 = vmatpush1.bf16.msra.mxu0 %v3872
        %3897 = vmatprep.subr.bf16.mxu0 0
        %3898 = vmatpush1.bf16.msra.mxu0 %v3874
        %3899 = vmatprep.subr.bf16.mxu0 0
        %3900 = vmatpush1.bf16.msra.mxu0 %v3876
        %3901 = vmatprep.subr.bf16.mxu0 0
        %3902 = vmatpush1.bf16.msra.mxu0 %v3878
        %3903 = vmatprep.subr.bf16.mxu0 0
        %3904 = vmatpush1.bf16.msra.mxu0 0
        %3905 = vmatprep.subr.bf16.mxu0 0
        %3906 = vmatpush1.bf16.msra.mxu0 0
        %3907 = vmatprep.subr.bf16.mxu0 0
        %3908 = vmatpush1.bf16.msra.mxu0 0
        %3909 = vmatprep.subr.bf16.mxu0 0
        %3910 = vmatpush1.bf16.msra.mxu0 0
        %3911 = vmatprep.subr.bf16.mxu0 0
        %3912 = vmatpush1.bf16.msra.mxu0 0
        %3913 = vmatprep.subr.bf16.mxu0 0
        %3914 = vmatpush1.bf16.msra.mxu0 0
        %3915 = vmatprep.subr.bf16.mxu0 0
        %3916 = vmatpush1.bf16.msra.mxu0 0
        %3917 = vmatprep.subr.bf16.mxu0 0
        %3918 = vmatpush1.bf16.msra.mxu0 0
        %3919 = vmatprep.subr.bf16.mxu0 0
        %3920 = vmatpush1.bf16.msra.mxu0 0
        %3921 = vmatprep.subr.bf16.mxu0 0
        %3922 = vmatpush1.bf16.msra.mxu0 0
        %3923 = vmatprep.subr.bf16.mxu0 0
        %3924 = vmatpush1.bf16.msra.mxu0 0
        %3925 = vmatprep.subr.bf16.mxu0 0
        %3926 = vmatpush1.bf16.msra.mxu0 0
        %3927 = vmatprep.mubr.bf16.mxu0 0
        %3928 = vmatmul.mubr.bf16.gmra.mrb[0].mxu0 %v3884
        %v3929 = vpop.f32.mrb[0].mxu0
        %v3930 = vadd.f32 0.0, %v3929
        %v3931 = vpop.f32.mrb[0].mxu0
        %v3932 = vpop.f32.mrb[0].mxu0
        %v3933 = vadd.f32 0.0, %v3932
        %v3934 = vpop.f32.mrb[0].mxu0
        %3935 = vmatprep.mubr.bf16.mxu0 0
        %3936 = vmatmul.mubr.bf16.gmra.mrb[0].mxu0 %v3887
        %v3937 = vpop.f32.mrb[0].mxu0
        %v3938 = vadd.f32 0.0, %v3937
        %v3939 = vpop.f32.mrb[0].mxu0
        %v3940 = vpop.f32.mrb[0].mxu0
        %v3941 = vadd.f32 0.0, %v3940
        %v3942 = vpop.f32.mrb[0].mxu0
        %3943 = vmatprep.mubr.bf16.mxu0 0
        %3944 = vmatmul.mubr.bf16.gmra.mrb[0].mxu0 %v3890
        %v3945 = vpop.f32.mrb[0].mxu0
        %v3946 = vadd.f32 0.0, %v3945
        %v3947 = vpop.f32.mrb[0].mxu0
        %v3948 = vpop.f32.mrb[0].mxu0
        %v3949 = vadd.f32 0.0, %v3948
        %v3950 = vpop.f32.mrb[0].mxu0
        %3951 = vmatprep.mubr.bf16.mxu0 0
        %3952 = vmatmul.mubr.bf16.gmra.mrb[0].mxu0 %v3893
        %v3953 = vpop.f32.mrb[0].mxu0
        %v3954 = vadd.f32 0.0, %v3953
        %v3955 = vpop.f32.mrb[0].mxu0
        %v3956 = vpop.f32.mrb[0].mxu0
        %v3957 = vadd.f32 0.0, %v3956
        %v3958 = vpop.f32.mrb[0].mxu0
        %3959 = vdwg.mxu0
        %3960 = vrot.lane.b32.xlu0 %v2188, 48
        %v3961 = vpop.permute.xlu0 %3960
        %3962 = vrot.lane.b32.xlu0 %v2189, 48
        %v3963 = vpop.permute.xlu0 %3962
        %3964 = vrot.lane.b32.xlu0 %v2190, 48
        %v3965 = vpop.permute.xlu0 %3964
        %3966 = vrot.lane.b32.xlu0 %v2191, 48
        %v3967 = vpop.permute.xlu0 %3966
        %v3973 = vsel %vm2411, %v3867, 0
        %v3976 = vsel %vm2411, %v3868, 0
        %v3979 = vsel %vm2411, %v3869, 0
        %v3982 = vsel %vm2411, %v3870, 0
        %3984 = vmatprep.subr.bf16.mxu0 0
        %3985 = vmatpush1.bf16.msra.mxu0 %v3961
        %3986 = vmatprep.subr.bf16.mxu0 0
        %3987 = vmatpush1.bf16.msra.mxu0 %v3963
        %3988 = vmatprep.subr.bf16.mxu0 0
        %3989 = vmatpush1.bf16.msra.mxu0 %v3965
        %3990 = vmatprep.subr.bf16.mxu0 0
        %3991 = vmatpush1.bf16.msra.mxu0 %v3967
        %3992 = vmatprep.subr.bf16.mxu0 0
        %3993 = vmatpush1.bf16.msra.mxu0 0
        %3994 = vmatprep.subr.bf16.mxu0 0
        %3995 = vmatpush1.bf16.msra.mxu0 0
        %3996 = vmatprep.subr.bf16.mxu0 0
        %3997 = vmatpush1.bf16.msra.mxu0 0
        %3998 = vmatprep.subr.bf16.mxu0 0
        %3999 = vmatpush1.bf16.msra.mxu0 0
        %4000 = vmatprep.subr.bf16.mxu0 0
        %4001 = vmatpush1.bf16.msra.mxu0 0
        %4002 = vmatprep.subr.bf16.mxu0 0
        %4003 = vmatpush1.bf16.msra.mxu0 0
        %4004 = vmatprep.subr.bf16.mxu0 0
        %4005 = vmatpush1.bf16.msra.mxu0 0
        %4006 = vmatprep.subr.bf16.mxu0 0
        %4007 = vmatpush1.bf16.msra.mxu0 0
        %4008 = vmatprep.subr.bf16.mxu0 0
        %4009 = vmatpush1.bf16.msra.mxu0 0
        %4010 = vmatprep.subr.bf16.mxu0 0
        %4011 = vmatpush1.bf16.msra.mxu0 0
        %4012 = vmatprep.subr.bf16.mxu0 0
        %4013 = vmatpush1.bf16.msra.mxu0 0
        %4014 = vmatprep.subr.bf16.mxu0 0
        %4015 = vmatpush1.bf16.msra.mxu0 0
        %4016 = vmatprep.mubr.bf16.mxu0 0
        %4017 = vmatmul.mubr.bf16.gmra.mrb[0].mxu0 %v3973
        %v4018 = vpop.f32.mrb[0].mxu0
        %v4019 = vadd.f32 0.0, %v4018
        %v4020 = vpop.f32.mrb[0].mxu0
        %v4021 = vpop.f32.mrb[0].mxu0
        %v4022 = vadd.f32 0.0, %v4021
        %v4023 = vpop.f32.mrb[0].mxu0
        %4024 = vmatprep.mubr.bf16.mxu0 0
        %4025 = vmatmul.mubr.bf16.gmra.mrb[0].mxu0 %v3976
        %v4026 = vpop.f32.mrb[0].mxu0
        %v4027 = vadd.f32 0.0, %v4026
        %v4028 = vpop.f32.mrb[0].mxu0
        %v4029 = vpop.f32.mrb[0].mxu0
        %v4030 = vadd.f32 0.0, %v4029
        %v4031 = vpop.f32.mrb[0].mxu0
        %4032 = vmatprep.mubr.bf16.mxu0 0
        %4033 = vmatmul.mubr.bf16.gmra.mrb[0].mxu0 %v3979
        %v4034 = vpop.f32.mrb[0].mxu0
        %v4035 = vadd.f32 0.0, %v4034
        %v4036 = vpop.f32.mrb[0].mxu0
        %v4037 = vpop.f32.mrb[0].mxu0
        %v4038 = vadd.f32 0.0, %v4037
        %v4039 = vpop.f32.mrb[0].mxu0
        %4040 = vmatprep.mubr.bf16.mxu0 0
        %4041 = vmatmul.mubr.bf16.gmra.mrb[0].mxu0 %v3982
        %v4042 = vpop.f32.mrb[0].mxu0
        %v4043 = vadd.f32 0.0, %v4042
        %v4044 = vpop.f32.mrb[0].mxu0
        %v4045 = vpop.f32.mrb[0].mxu0
        %v4046 = vadd.f32 0.0, %v4045
        %v4047 = vpop.f32.mrb[0].mxu0
        %4048 = vdwg.mxu0
        %4065 = vrot.lane.b32.xlu0 %v3930, 16
        %v4066 = vpop.permute.xlu0 %4065
        %4067 = vrot.lane.b32.xlu0 %v3933, 16
        %v4068 = vpop.permute.xlu0 %4067
        %4069 = vrot.lane.b32.xlu0 %v3938, 16
        %v4070 = vpop.permute.xlu0 %4069
        %4071 = vrot.lane.b32.xlu0 %v3941, 16
        %v4072 = vpop.permute.xlu0 %4071
        %4073 = vrot.lane.b32.xlu0 %v3946, 16
        %v4074 = vpop.permute.xlu0 %4073
        %4075 = vrot.lane.b32.xlu0 %v3949, 16
        %v4076 = vpop.permute.xlu0 %4075
        %4077 = vrot.lane.b32.xlu0 %v3954, 16
        %v4078 = vpop.permute.xlu0 %4077
        %4079 = vrot.lane.b32.xlu0 %v3957, 16
        %v4080 = vpop.permute.xlu0 %4079
        %4081 = vrot.lane.b32.xlu0 %v4019, 16
        %v4082 = vpop.permute.xlu0 %4081
        %4083 = vrot.lane.b32.xlu0 %v4022, 16
        %v4084 = vpop.permute.xlu0 %4083
        %4085 = vrot.lane.b32.xlu0 %v4027, 16
        %v4086 = vpop.permute.xlu0 %4085
        %4087 = vrot.lane.b32.xlu0 %v4030, 16
        %v4088 = vpop.permute.xlu0 %4087
        %4089 = vrot.lane.b32.xlu0 %v4035, 16
        %v4090 = vpop.permute.xlu0 %4089
        %4091 = vrot.lane.b32.xlu0 %v4038, 16
        %v4092 = vpop.permute.xlu0 %4091
        %4093 = vrot.lane.b32.xlu0 %v4043, 16
        %v4094 = vpop.permute.xlu0 %4093
        %4095 = vrot.lane.b32.xlu0 %v4046, 16
        %v4096 = vpop.permute.xlu0 %4095
        %vm4113 = vcmask 195712
        %4114 = vst.msk [vmem:[#allocation3] sm:$0xff] %vm4113, %v4066
        %4115 = vst.msk [vmem:[#allocation3 + $0x8] sm:$0xff] %vm4113, %v4068
        %4116 = vst.msk [vmem:[#allocation3 + $0x10] sm:$0xff] %vm4113, %v4070
        %4117 = vst.msk [vmem:[#allocation3 + $0x18] sm:$0xff] %vm4113, %v4072
        %4118 = vst.msk [vmem:[#allocation3 + $0x20] sm:$0xff] %vm4113, %v4074
        %4119 = vst.msk [vmem:[#allocation3 + $0x28] sm:$0xff] %vm4113, %v4076
        %4120 = vst.msk [vmem:[#allocation3 + $0x30] sm:$0xff] %vm4113, %v4078
        %4121 = vst.msk [vmem:[#allocation3 + $0x38] sm:$0xff] %vm4113, %v4080
        %4122 = vst.msk [vmem:[#allocation3 + $0x40] sm:$0xff] %vm4113, %v4082
        %4123 = vst.msk [vmem:[#allocation3 + $0x48] sm:$0xff] %vm4113, %v4084
        %4124 = vst.msk [vmem:[#allocation3 + $0x50] sm:$0xff] %vm4113, %v4086
        %4125 = vst.msk [vmem:[#allocation3 + $0x58] sm:$0xff] %vm4113, %v4088
        %4126 = vst.msk [vmem:[#allocation3 + $0x60] sm:$0xff] %vm4113, %v4090
        %4127 = vst.msk [vmem:[#allocation3 + $0x68] sm:$0xff] %vm4113, %v4092
        %4128 = vst.msk [vmem:[#allocation3 + $0x70] sm:$0xff] %vm4113, %v4094
        %4129 = vst.msk [vmem:[#allocation3 + $0x78] sm:$0xff] %vm4113, %v4096
        %s4130 = scalar_lea.vmem %s1167, 96
        %v4131 = vld [vmem:[%s4130] sm:$0xf]
        %v4132 = vld [vmem:[%s4130 + $0x4] sm:$0xf]
        %v4133 = vld [vmem:[%s4130 + $0x8] sm:$0xf]
        %v4134 = vld [vmem:[%s4130 + $0xc] sm:$0xf]
        %v4135 = vld [vmem:[%s4130 + $0x10] sm:$0xf]
        %v4136 = vld [vmem:[%s4130 + $0x14] sm:$0xf]
        %v4137 = vld [vmem:[%s4130 + $0x18] sm:$0xf]
        %v4138 = vld [vmem:[%s4130 + $0x1c] sm:$0xf]
        %v4139 = vunpack.c.l.bf16 %v4131
        %v4140 = vunpack.c.l.bf16 %v4132
        %v4141 = vunpack.c.l.bf16 %v4133
        %v4142 = vunpack.c.l.bf16 %v4134
        %v4143 = vunpack.c.l.bf16 %v4135
        %v4144 = vunpack.c.l.bf16 %v4136
        %v4145 = vunpack.c.l.bf16 %v4137
        %v4146 = vunpack.c.l.bf16 %v4138
        %4147 = vrot.lane.b32.xlu0 %v2184, 104
        %v4148 = vpop.permute.xlu0 %4147
        %4149 = vrot.lane.b32.xlu0 %v2185, 104
        %v4150 = vpop.permute.xlu0 %4149
        %4151 = vrot.lane.b32.xlu0 %v2186, 104
        %v4152 = vpop.permute.xlu0 %4151
        %4153 = vrot.lane.b32.xlu0 %v2187, 104
        %v4154 = vpop.permute.xlu0 %4153
        %4155 = vrot.lane.b32.xlu0 %v2184, 72
        %v4156 = vpop.permute.xlu0 %4155
        %4157 = vrot.lane.b32.xlu0 %v2185, 72
        %v4158 = vpop.permute.xlu0 %4157
        %4159 = vrot.lane.b32.xlu0 %v2186, 72
        %v4160 = vpop.permute.xlu0 %4159
        %4161 = vrot.lane.b32.xlu0 %v2187, 72
        %v4162 = vpop.permute.xlu0 %4161
        %v4164 = vsel %vm2220, %v4148, 0
        %v4167 = vsel %vm2220, %v4150, 0
        %v4170 = vsel %vm2220, %v4152, 0
        %v4173 = vsel %vm2220, %v4154, 0
        %v4176 = vsel %vm2220, %v4156, 0
        %v4179 = vsel %vm2220, %v4158, 0
        %v4182 = vsel %vm2220, %v4160, 0
        %v4185 = vsel %vm2220, %v4162, 0
        %4187 = vmatprep.subr.bf16.mxu0 0
        %4188 = vmatpush1.bf16.xpose.msra.mxu0 %v4176
        %4189 = vmatprep.subr.bf16.mxu0 0
        %4190 = vmatpush1.bf16.xpose.msra.mxu0 %v4179
        %4191 = vmatprep.subr.bf16.mxu0 0
        %4192 = vmatpush1.bf16.xpose.msra.mxu0 %v4182
        %4193 = vmatprep.subr.bf16.mxu0 0
        %4194 = vmatpush1.bf16.xpose.msra.mxu0 %v4185
        %4195 = vmatprep.subr.bf16.mxu0 0
        %4196 = vmatpush1.bf16.xpose.msra.mxu0 0
        %4197 = vmatprep.subr.bf16.mxu0 0
        %4198 = vmatpush1.bf16.xpose.msra.mxu0 0
        %4199 = vmatprep.subr.bf16.mxu0 0
        %4200 = vmatpush1.bf16.xpose.msra.mxu0 0
        %4201 = vmatprep.subr.bf16.mxu0 0
        %4202 = vmatpush1.bf16.xpose.msra.mxu0 0
        %4203 = vmatprep.subr.bf16.mxu0 0
        %4204 = vmatpush1.bf16.xpose.msra.mxu0 0
        %4205 = vmatprep.subr.bf16.mxu0 0
        %4206 = vmatpush1.bf16.xpose.msra.mxu0 0
        %4207 = vmatprep.subr.bf16.mxu0 0
        %4208 = vmatpush1.bf16.xpose.msra.mxu0 0
        %4209 = vmatprep.subr.bf16.mxu0 0
        %4210 = vmatpush1.bf16.xpose.msra.mxu0 0
        %4211 = vmatprep.subr.bf16.mxu0 0
        %4212 = vmatpush1.bf16.xpose.msra.mxu0 0
        %4213 = vmatprep.subr.bf16.mxu0 0
        %4214 = vmatpush1.bf16.xpose.msra.mxu0 0
        %4215 = vmatprep.subr.bf16.mxu0 0
        %4216 = vmatpush1.bf16.xpose.msra.mxu0 0
        %4217 = vmatprep.subr.bf16.mxu0 0
        %4218 = vmatpush1.bf16.xpose.msra.mxu0 0
        %4219 = vmatprep.mubr.bf16.mxu0 0
        %4220 = vmatmul.mubr.bf16.gmra.mrb[0].mxu0 %v4164
        %v4221 = vpop.f32.mrb[0].mxu0
        %v4222 = vadd.f32 %v4139, %v4221
        %v4223 = vpop.f32.mrb[0].mxu0
        %v4224 = vpop.f32.mrb[0].mxu0
        %v4225 = vadd.f32 %v4140, %v4224
        %v4226 = vpop.f32.mrb[0].mxu0
        %4227 = vmatprep.mubr.bf16.mxu0 0
        %4228 = vmatmul.mubr.bf16.gmra.mrb[0].mxu0 %v4167
        %v4229 = vpop.f32.mrb[0].mxu0
        %v4230 = vadd.f32 %v4141, %v4229
        %v4231 = vpop.f32.mrb[0].mxu0
        %v4232 = vpop.f32.mrb[0].mxu0
        %v4233 = vadd.f32 %v4142, %v4232
        %v4234 = vpop.f32.mrb[0].mxu0
        %4235 = vmatprep.mubr.bf16.mxu0 0
        %4236 = vmatmul.mubr.bf16.gmra.mrb[0].mxu0 %v4170
        %v4237 = vpop.f32.mrb[0].mxu0
        %v4238 = vadd.f32 %v4143, %v4237
        %v4239 = vpop.f32.mrb[0].mxu0
        %v4240 = vpop.f32.mrb[0].mxu0
        %v4241 = vadd.f32 %v4144, %v4240
        %v4242 = vpop.f32.mrb[0].mxu0
        %4243 = vmatprep.mubr.bf16.mxu0 0
        %4244 = vmatmul.mubr.bf16.gmra.mrb[0].mxu0 %v4173
        %v4245 = vpop.f32.mrb[0].mxu0
        %v4246 = vadd.f32 %v4145, %v4245
        %v4247 = vpop.f32.mrb[0].mxu0
        %v4248 = vpop.f32.mrb[0].mxu0
        %v4249 = vadd.f32 %v4146, %v4248
        %v4250 = vpop.f32.mrb[0].mxu0
        %4251 = vdwg.mxu0
        %4252 = vrot.lane.b32.xlu0 %v2188, 104
        %v4253 = vpop.permute.xlu0 %4252
        %4254 = vrot.lane.b32.xlu0 %v2189, 104
        %v4255 = vpop.permute.xlu0 %4254
        %4256 = vrot.lane.b32.xlu0 %v2190, 104
        %v4257 = vpop.permute.xlu0 %4256
        %4258 = vrot.lane.b32.xlu0 %v2191, 104
        %v4259 = vpop.permute.xlu0 %4258
        %4260 = vrot.lane.b32.xlu0 %v2188, 72
        %v4261 = vpop.permute.xlu0 %4260
        %4262 = vrot.lane.b32.xlu0 %v2189, 72
        %v4263 = vpop.permute.xlu0 %4262
        %4264 = vrot.lane.b32.xlu0 %v2190, 72
        %v4265 = vpop.permute.xlu0 %4264
        %4266 = vrot.lane.b32.xlu0 %v2191, 72
        %v4267 = vpop.permute.xlu0 %4266
        %v4269 = vsel %vm2220, %v4253, 0
        %v4272 = vsel %vm2220, %v4255, 0
        %v4275 = vsel %vm2220, %v4257, 0
        %v4278 = vsel %vm2220, %v4259, 0
        %v4281 = vsel %vm2220, %v4261, 0
        %v4284 = vsel %vm2220, %v4263, 0
        %v4287 = vsel %vm2220, %v4265, 0
        %v4290 = vsel %vm2220, %v4267, 0
        %4292 = vmatprep.subr.bf16.mxu0 0
        %4293 = vmatpush1.bf16.xpose.msra.mxu0 %v4281
        %4294 = vmatprep.subr.bf16.mxu0 0
        %4295 = vmatpush1.bf16.xpose.msra.mxu0 %v4284
        %4296 = vmatprep.subr.bf16.mxu0 0
        %4297 = vmatpush1.bf16.xpose.msra.mxu0 %v4287
        %4298 = vmatprep.subr.bf16.mxu0 0
        %4299 = vmatpush1.bf16.xpose.msra.mxu0 %v4290
        %4300 = vmatprep.subr.bf16.mxu0 0
        %4301 = vmatpush1.bf16.xpose.msra.mxu0 0
        %4302 = vmatprep.subr.bf16.mxu0 0
        %4303 = vmatpush1.bf16.xpose.msra.mxu0 0
        %4304 = vmatprep.subr.bf16.mxu0 0
        %4305 = vmatpush1.bf16.xpose.msra.mxu0 0
        %4306 = vmatprep.subr.bf16.mxu0 0
        %4307 = vmatpush1.bf16.xpose.msra.mxu0 0
        %4308 = vmatprep.subr.bf16.mxu0 0
        %4309 = vmatpush1.bf16.xpose.msra.mxu0 0
        %4310 = vmatprep.subr.bf16.mxu0 0
        %4311 = vmatpush1.bf16.xpose.msra.mxu0 0
        %4312 = vmatprep.subr.bf16.mxu0 0
        %4313 = vmatpush1.bf16.xpose.msra.mxu0 0
        %4314 = vmatprep.subr.bf16.mxu0 0
        %4315 = vmatpush1.bf16.xpose.msra.mxu0 0
        %4316 = vmatprep.subr.bf16.mxu0 0
        %4317 = vmatpush1.bf16.xpose.msra.mxu0 0
        %4318 = vmatprep.subr.bf16.mxu0 0
        %4319 = vmatpush1.bf16.xpose.msra.mxu0 0
        %4320 = vmatprep.subr.bf16.mxu0 0
        %4321 = vmatpush1.bf16.xpose.msra.mxu0 0
        %4322 = vmatprep.subr.bf16.mxu0 0
        %4323 = vmatpush1.bf16.xpose.msra.mxu0 0
        %4324 = vmatprep.mubr.bf16.mxu0 0
        %4325 = vmatmul.mubr.bf16.gmra.mrb[0].mxu0 %v4269
        %v4326 = vpop.f32.mrb[0].mxu0
        %v4327 = vadd.f32 %v4139, %v4326
        %v4328 = vpop.f32.mrb[0].mxu0
        %v4329 = vpop.f32.mrb[0].mxu0
        %v4330 = vadd.f32 %v4140, %v4329
        %v4331 = vpop.f32.mrb[0].mxu0
        %4332 = vmatprep.mubr.bf16.mxu0 0
        %4333 = vmatmul.mubr.bf16.gmra.mrb[0].mxu0 %v4272
        %v4334 = vpop.f32.mrb[0].mxu0
        %v4335 = vadd.f32 %v4141, %v4334
        %v4336 = vpop.f32.mrb[0].mxu0
        %v4337 = vpop.f32.mrb[0].mxu0
        %v4338 = vadd.f32 %v4142, %v4337
        %v4339 = vpop.f32.mrb[0].mxu0
        %4340 = vmatprep.mubr.bf16.mxu0 0
        %4341 = vmatmul.mubr.bf16.gmra.mrb[0].mxu0 %v4275
        %v4342 = vpop.f32.mrb[0].mxu0
        %v4343 = vadd.f32 %v4143, %v4342
        %v4344 = vpop.f32.mrb[0].mxu0
        %v4345 = vpop.f32.mrb[0].mxu0
        %v4346 = vadd.f32 %v4144, %v4345
        %v4347 = vpop.f32.mrb[0].mxu0
        %4348 = vmatprep.mubr.bf16.mxu0 0
        %4349 = vmatmul.mubr.bf16.gmra.mrb[0].mxu0 %v4278
        %v4350 = vpop.f32.mrb[0].mxu0
        %v4351 = vadd.f32 %v4145, %v4350
        %v4352 = vpop.f32.mrb[0].mxu0
        %v4353 = vpop.f32.mrb[0].mxu0
        %v4354 = vadd.f32 %v4146, %v4353
        %v4355 = vpop.f32.mrb[0].mxu0
        %4356 = vdwg.mxu0
        %v4357 = vsel %vm2411, %v4222, -inf
        %4358 = vmax.xlane.f32.xlu0 %v4357
        %v4359 = vpop.xlane.xlu0 %4358
        %v4360 = vsel %vm2411, %v4225, -inf
        %4361 = vmax.xlane.f32.xlu0 %v4360
        %v4362 = vpop.xlane.xlu0 %4361
        %v4363 = vsel %vm2411, %v4230, -inf
        %4364 = vmax.xlane.f32.xlu0 %v4363
        %v4365 = vpop.xlane.xlu0 %4364
        %v4366 = vsel %vm2411, %v4233, -inf
        %4367 = vmax.xlane.f32.xlu0 %v4366
        %v4368 = vpop.xlane.xlu0 %4367
        %v4369 = vsel %vm2411, %v4238, -inf
        %4370 = vmax.xlane.f32.xlu0 %v4369
        %v4371 = vpop.xlane.xlu0 %4370
        %v4372 = vsel %vm2411, %v4241, -inf
        %4373 = vmax.xlane.f32.xlu0 %v4372
        %v4374 = vpop.xlane.xlu0 %4373
        %v4375 = vsel %vm2411, %v4246, -inf
        %4376 = vmax.xlane.f32.xlu0 %v4375
        %v4377 = vpop.xlane.xlu0 %4376
        %v4378 = vsel %vm2411, %v4249, -inf
        %4379 = vmax.xlane.f32.xlu0 %v4378
        %v4380 = vpop.xlane.xlu0 %4379
        %v4381 = vsel %vm2411, %v4327, -inf
        %4382 = vmax.xlane.f32.xlu0 %v4381
        %v4383 = vpop.xlane.xlu0 %4382
        %v4384 = vsel %vm2411, %v4330, -inf
        %4385 = vmax.xlane.f32.xlu0 %v4384
        %v4386 = vpop.xlane.xlu0 %4385
        %v4387 = vsel %vm2411, %v4335, -inf
        %4388 = vmax.xlane.f32.xlu0 %v4387
        %v4389 = vpop.xlane.xlu0 %4388
        %v4390 = vsel %vm2411, %v4338, -inf
        %4391 = vmax.xlane.f32.xlu0 %v4390
        %v4392 = vpop.xlane.xlu0 %4391
        %v4393 = vsel %vm2411, %v4343, -inf
        %4394 = vmax.xlane.f32.xlu0 %v4393
        %v4395 = vpop.xlane.xlu0 %4394
        %v4396 = vsel %vm2411, %v4346, -inf
        %4397 = vmax.xlane.f32.xlu0 %v4396
        %v4398 = vpop.xlane.xlu0 %4397
        %v4399 = vsel %vm2411, %v4351, -inf
        %4400 = vmax.xlane.f32.xlu0 %v4399
        %v4401 = vpop.xlane.xlu0 %4400
        %v4402 = vsel %vm2411, %v4354, -inf
        %4403 = vmax.xlane.f32.xlu0 %v4402
        %v4404 = vpop.xlane.xlu0 %4403
        %v4405 = vsub.f32 %v4222, %v4359
        %v4406 = vsub.f32 %v4225, %v4362
        %v4407 = vsub.f32 %v4230, %v4365
        %v4408 = vsub.f32 %v4233, %v4368
        %v4409 = vsub.f32 %v4238, %v4371
        %v4410 = vsub.f32 %v4241, %v4374
        %v4411 = vsub.f32 %v4246, %v4377
        %v4412 = vsub.f32 %v4249, %v4380
        %v4413 = vsub.f32 %v4327, %v4383
        %v4414 = vsub.f32 %v4330, %v4386
        %v4415 = vsub.f32 %v4335, %v4389
        %v4416 = vsub.f32 %v4338, %v4392
        %v4417 = vsub.f32 %v4343, %v4395
        %v4418 = vsub.f32 %v4346, %v4398
        %v4419 = vsub.f32 %v4351, %v4401
        %v4420 = vsub.f32 %v4354, %v4404
        %v4421 = vmul.f32 %v4405, 1.442695
        %v4422 = vpow.pop %v4421
        %v4423 = vmul.f32 %v4406, 1.442695
        %v4424 = vpow.pop %v4423
        %v4425 = vmul.f32 %v4407, 1.442695
        %v4426 = vpow.pop %v4425
        %v4427 = vmul.f32 %v4408, 1.442695
        %v4428 = vpow.pop %v4427
        %v4429 = vmul.f32 %v4409, 1.442695
        %v4430 = vpow.pop %v4429
        %v4431 = vmul.f32 %v4410, 1.442695
        %v4432 = vpow.pop %v4431
        %v4433 = vmul.f32 %v4411, 1.442695
        %v4434 = vpow.pop %v4433
        %v4435 = vmul.f32 %v4412, 1.442695
        %v4436 = vpow.pop %v4435
        %v4437 = vmul.f32 %v4413, 1.442695
        %v4438 = vpow.pop %v4437
        %v4439 = vmul.f32 %v4414, 1.442695
        %v4440 = vpow.pop %v4439
        %v4441 = vmul.f32 %v4415, 1.442695
        %v4442 = vpow.pop %v4441
        %v4443 = vmul.f32 %v4416, 1.442695
        %v4444 = vpow.pop %v4443
        %v4445 = vmul.f32 %v4417, 1.442695
        %v4446 = vpow.pop %v4445
        %v4447 = vmul.f32 %v4418, 1.442695
        %v4448 = vpow.pop %v4447
        %v4449 = vmul.f32 %v4419, 1.442695
        %v4450 = vpow.pop %v4449
        %v4451 = vmul.f32 %v4420, 1.442695
        %v4452 = vpow.pop %v4451
        %v4453 = vsel %vm2411, %v4422, 0.0
        %4454 = vadd.xlane.f32.xlu0 %v4453
        %v4455 = vpop.xlane.xlu0 %4454
        %v4456 = vsel %vm2411, %v4424, 0.0
        %4457 = vadd.xlane.f32.xlu0 %v4456
        %v4458 = vpop.xlane.xlu0 %4457
        %v4459 = vsel %vm2411, %v4426, 0.0
        %4460 = vadd.xlane.f32.xlu0 %v4459
        %v4461 = vpop.xlane.xlu0 %4460
        %v4462 = vsel %vm2411, %v4428, 0.0
        %4463 = vadd.xlane.f32.xlu0 %v4462
        %v4464 = vpop.xlane.xlu0 %4463
        %v4465 = vsel %vm2411, %v4430, 0.0
        %4466 = vadd.xlane.f32.xlu0 %v4465
        %v4467 = vpop.xlane.xlu0 %4466
        %v4468 = vsel %vm2411, %v4432, 0.0
        %4469 = vadd.xlane.f32.xlu0 %v4468
        %v4470 = vpop.xlane.xlu0 %4469
        %v4471 = vsel %vm2411, %v4434, 0.0
        %4472 = vadd.xlane.f32.xlu0 %v4471
        %v4473 = vpop.xlane.xlu0 %4472
        %v4474 = vsel %vm2411, %v4436, 0.0
        %4475 = vadd.xlane.f32.xlu0 %v4474
        %v4476 = vpop.xlane.xlu0 %4475
        %v4477 = vsel %vm2411, %v4438, 0.0
        %4478 = vadd.xlane.f32.xlu0 %v4477
        %v4479 = vpop.xlane.xlu0 %4478
        %v4480 = vsel %vm2411, %v4440, 0.0
        %4481 = vadd.xlane.f32.xlu0 %v4480
        %v4482 = vpop.xlane.xlu0 %4481
        %v4483 = vsel %vm2411, %v4442, 0.0
        %4484 = vadd.xlane.f32.xlu0 %v4483
        %v4485 = vpop.xlane.xlu0 %4484
        %v4486 = vsel %vm2411, %v4444, 0.0
        %4487 = vadd.xlane.f32.xlu0 %v4486
        %v4488 = vpop.xlane.xlu0 %4487
        %v4489 = vsel %vm2411, %v4446, 0.0
        %4490 = vadd.xlane.f32.xlu0 %v4489
        %v4491 = vpop.xlane.xlu0 %4490
        %v4492 = vsel %vm2411, %v4448, 0.0
        %4493 = vadd.xlane.f32.xlu0 %v4492
        %v4494 = vpop.xlane.xlu0 %4493
        %v4495 = vsel %vm2411, %v4450, 0.0
        %4496 = vadd.xlane.f32.xlu0 %v4495
        %v4497 = vpop.xlane.xlu0 %4496
        %v4498 = vsel %vm2411, %v4452, 0.0
        %4499 = vadd.xlane.f32.xlu0 %v4498
        %v4500 = vpop.xlane.xlu0 %4499
        %v4501 = vrcp.pop %v4455
        %v4502 = vrcp.pop %v4458
        %v4503 = vrcp.pop %v4461
        %v4504 = vrcp.pop %v4464
        %v4505 = vrcp.pop %v4467
        %v4506 = vrcp.pop %v4470
        %v4507 = vrcp.pop %v4473
        %v4508 = vrcp.pop %v4476
        %v4509 = vrcp.pop %v4479
        %v4510 = vrcp.pop %v4482
        %v4511 = vrcp.pop %v4485
        %v4512 = vrcp.pop %v4488
        %v4513 = vrcp.pop %v4491
        %v4514 = vrcp.pop %v4494
        %v4515 = vrcp.pop %v4497
        %v4516 = vrcp.pop %v4500
        %v4517 = vmul.f32 %v4422, %v4501
        %v4518 = vmul.f32 %v4424, %v4502
        %v4519 = vmul.f32 %v4426, %v4503
        %v4520 = vmul.f32 %v4428, %v4504
        %v4521 = vmul.f32 %v4430, %v4505
        %v4522 = vmul.f32 %v4432, %v4506
        %v4523 = vmul.f32 %v4434, %v4507
        %v4524 = vmul.f32 %v4436, %v4508
        %v4525 = vmul.f32 %v4438, %v4509
        %v4526 = vmul.f32 %v4440, %v4510
        %v4527 = vmul.f32 %v4442, %v4511
        %v4528 = vmul.f32 %v4444, %v4512
        %v4529 = vmul.f32 %v4446, %v4513
        %v4530 = vmul.f32 %v4448, %v4514
        %v4531 = vmul.f32 %v4450, %v4515
        %v4532 = vmul.f32 %v4452, %v4516
        %v4533 = vpack.c.bf16 %v4518, %v4517
        %v4534 = vpack.c.bf16 %v4520, %v4519
        %v4535 = vpack.c.bf16 %v4522, %v4521
        %v4536 = vpack.c.bf16 %v4524, %v4523
        %v4537 = vpack.c.bf16 %v4526, %v4525
        %v4538 = vpack.c.bf16 %v4528, %v4527
        %v4539 = vpack.c.bf16 %v4530, %v4529
        %v4540 = vpack.c.bf16 %v4532, %v4531
        %4541 = vrot.lane.b32.xlu0 %v2184, 40
        %v4542 = vpop.permute.xlu0 %4541
        %4543 = vrot.lane.b32.xlu0 %v2185, 40
        %v4544 = vpop.permute.xlu0 %4543
        %4545 = vrot.lane.b32.xlu0 %v2186, 40
        %v4546 = vpop.permute.xlu0 %4545
        %4547 = vrot.lane.b32.xlu0 %v2187, 40
        %v4548 = vpop.permute.xlu0 %4547
        %v4554 = vsel %vm2411, %v4533, 0
        %v4557 = vsel %vm2411, %v4534, 0
        %v4560 = vsel %vm2411, %v4535, 0
        %v4563 = vsel %vm2411, %v4536, 0
        %4565 = vmatprep.subr.bf16.mxu0 0
        %4566 = vmatpush1.bf16.msra.mxu0 %v4542
        %4567 = vmatprep.subr.bf16.mxu0 0
        %4568 = vmatpush1.bf16.msra.mxu0 %v4544
        %4569 = vmatprep.subr.bf16.mxu0 0
        %4570 = vmatpush1.bf16.msra.mxu0 %v4546
        %4571 = vmatprep.subr.bf16.mxu0 0
        %4572 = vmatpush1.bf16.msra.mxu0 %v4548
        %4573 = vmatprep.subr.bf16.mxu0 0
        %4574 = vmatpush1.bf16.msra.mxu0 0
        %4575 = vmatprep.subr.bf16.mxu0 0
        %4576 = vmatpush1.bf16.msra.mxu0 0
        %4577 = vmatprep.subr.bf16.mxu0 0
        %4578 = vmatpush1.bf16.msra.mxu0 0
        %4579 = vmatprep.subr.bf16.mxu0 0
        %4580 = vmatpush1.bf16.msra.mxu0 0
        %4581 = vmatprep.subr.bf16.mxu0 0
        %4582 = vmatpush1.bf16.msra.mxu0 0
        %4583 = vmatprep.subr.bf16.mxu0 0
        %4584 = vmatpush1.bf16.msra.mxu0 0
        %4585 = vmatprep.subr.bf16.mxu0 0
        %4586 = vmatpush1.bf16.msra.mxu0 0
        %4587 = vmatprep.subr.bf16.mxu0 0
        %4588 = vmatpush1.bf16.msra.mxu0 0
        %4589 = vmatprep.subr.bf16.mxu0 0
        %4590 = vmatpush1.bf16.msra.mxu0 0
        %4591 = vmatprep.subr.bf16.mxu0 0
        %4592 = vmatpush1.bf16.msra.mxu0 0
        %4593 = vmatprep.subr.bf16.mxu0 0
        %4594 = vmatpush1.bf16.msra.mxu0 0
        %4595 = vmatprep.subr.bf16.mxu0 0
        %4596 = vmatpush1.bf16.msra.mxu0 0
        %4597 = vmatprep.mubr.bf16.mxu0 0
        %4598 = vmatmul.mubr.bf16.gmra.mrb[0].mxu0 %v4554
        %v4599 = vpop.f32.mrb[0].mxu0
        %v4600 = vadd.f32 0.0, %v4599
        %v4601 = vpop.f32.mrb[0].mxu0
        %v4602 = vpop.f32.mrb[0].mxu0
        %v4603 = vadd.f32 0.0, %v4602
        %v4604 = vpop.f32.mrb[0].mxu0
        %4605 = vmatprep.mubr.bf16.mxu0 0
        %4606 = vmatmul.mubr.bf16.gmra.mrb[0].mxu0 %v4557
        %v4607 = vpop.f32.mrb[0].mxu0
        %v4608 = vadd.f32 0.0, %v4607
        %v4609 = vpop.f32.mrb[0].mxu0
        %v4610 = vpop.f32.mrb[0].mxu0
        %v4611 = vadd.f32 0.0, %v4610
        %v4612 = vpop.f32.mrb[0].mxu0
        %4613 = vmatprep.mubr.bf16.mxu0 0
        %4614 = vmatmul.mubr.bf16.gmra.mrb[0].mxu0 %v4560
        %v4615 = vpop.f32.mrb[0].mxu0
        %v4616 = vadd.f32 0.0, %v4615
        %v4617 = vpop.f32.mrb[0].mxu0
        %v4618 = vpop.f32.mrb[0].mxu0
        %v4619 = vadd.f32 0.0, %v4618
        %v4620 = vpop.f32.mrb[0].mxu0
        %4621 = vmatprep.mubr.bf16.mxu0 0
        %4622 = vmatmul.mubr.bf16.gmra.mrb[0].mxu0 %v4563
        %v4623 = vpop.f32.mrb[0].mxu0
        %v4624 = vadd.f32 0.0, %v4623
        %v4625 = vpop.f32.mrb[0].mxu0
        %v4626 = vpop.f32.mrb[0].mxu0
        %v4627 = vadd.f32 0.0, %v4626
        %v4628 = vpop.f32.mrb[0].mxu0
        %4629 = vdwg.mxu0
        %4630 = vrot.lane.b32.xlu0 %v2188, 40
        %v4631 = vpop.permute.xlu0 %4630
        %4632 = vrot.lane.b32.xlu0 %v2189, 40
        %v4633 = vpop.permute.xlu0 %4632
        %4634 = vrot.lane.b32.xlu0 %v2190, 40
        %v4635 = vpop.permute.xlu0 %4634
        %4636 = vrot.lane.b32.xlu0 %v2191, 40
        %v4637 = vpop.permute.xlu0 %4636
        %v4643 = vsel %vm2411, %v4537, 0
        %v4646 = vsel %vm2411, %v4538, 0
        %v4649 = vsel %vm2411, %v4539, 0
        %v4652 = vsel %vm2411, %v4540, 0
        %4654 = vmatprep.subr.bf16.mxu0 0
        %4655 = vmatpush1.bf16.msra.mxu0 %v4631
        %4656 = vmatprep.subr.bf16.mxu0 0
        %4657 = vmatpush1.bf16.msra.mxu0 %v4633
        %4658 = vmatprep.subr.bf16.mxu0 0
        %4659 = vmatpush1.bf16.msra.mxu0 %v4635
        %4660 = vmatprep.subr.bf16.mxu0 0
        %4661 = vmatpush1.bf16.msra.mxu0 %v4637
        %4662 = vmatprep.subr.bf16.mxu0 0
        %4663 = vmatpush1.bf16.msra.mxu0 0
        %4664 = vmatprep.subr.bf16.mxu0 0
        %4665 = vmatpush1.bf16.msra.mxu0 0
        %4666 = vmatprep.subr.bf16.mxu0 0
        %4667 = vmatpush1.bf16.msra.mxu0 0
        %4668 = vmatprep.subr.bf16.mxu0 0
        %4669 = vmatpush1.bf16.msra.mxu0 0
        %4670 = vmatprep.subr.bf16.mxu0 0
        %4671 = vmatpush1.bf16.msra.mxu0 0
        %4672 = vmatprep.subr.bf16.mxu0 0
        %4673 = vmatpush1.bf16.msra.mxu0 0
        %4674 = vmatprep.subr.bf16.mxu0 0
        %4675 = vmatpush1.bf16.msra.mxu0 0
        %4676 = vmatprep.subr.bf16.mxu0 0
        %4677 = vmatpush1.bf16.msra.mxu0 0
        %4678 = vmatprep.subr.bf16.mxu0 0
        %4679 = vmatpush1.bf16.msra.mxu0 0
        %4680 = vmatprep.subr.bf16.mxu0 0
        %4681 = vmatpush1.bf16.msra.mxu0 0
        %4682 = vmatprep.subr.bf16.mxu0 0
        %4683 = vmatpush1.bf16.msra.mxu0 0
        %4684 = vmatprep.subr.bf16.mxu0 0
        %4685 = vmatpush1.bf16.msra.mxu0 0
        %4686 = vmatprep.mubr.bf16.mxu0 0
        %4687 = vmatmul.mubr.bf16.gmra.mrb[0].mxu0 %v4643
        %v4688 = vpop.f32.mrb[0].mxu0
        %v4689 = vadd.f32 0.0, %v4688
        %v4690 = vpop.f32.mrb[0].mxu0
        %v4691 = vpop.f32.mrb[0].mxu0
        %v4692 = vadd.f32 0.0, %v4691
        %v4693 = vpop.f32.mrb[0].mxu0
        %4694 = vmatprep.mubr.bf16.mxu0 0
        %4695 = vmatmul.mubr.bf16.gmra.mrb[0].mxu0 %v4646
        %v4696 = vpop.f32.mrb[0].mxu0
        %v4697 = vadd.f32 0.0, %v4696
        %v4698 = vpop.f32.mrb[0].mxu0
        %v4699 = vpop.f32.mrb[0].mxu0
        %v4700 = vadd.f32 0.0, %v4699
        %v4701 = vpop.f32.mrb[0].mxu0
        %4702 = vmatprep.mubr.bf16.mxu0 0
        %4703 = vmatmul.mubr.bf16.gmra.mrb[0].mxu0 %v4649
        %v4704 = vpop.f32.mrb[0].mxu0
        %v4705 = vadd.f32 0.0, %v4704
        %v4706 = vpop.f32.mrb[0].mxu0
        %v4707 = vpop.f32.mrb[0].mxu0
        %v4708 = vadd.f32 0.0, %v4707
        %v4709 = vpop.f32.mrb[0].mxu0
        %4710 = vmatprep.mubr.bf16.mxu0 0
        %4711 = vmatmul.mubr.bf16.gmra.mrb[0].mxu0 %v4652
        %v4712 = vpop.f32.mrb[0].mxu0
        %v4713 = vadd.f32 0.0, %v4712
        %v4714 = vpop.f32.mrb[0].mxu0
        %v4715 = vpop.f32.mrb[0].mxu0
        %v4716 = vadd.f32 0.0, %v4715
        %v4717 = vpop.f32.mrb[0].mxu0
        %4718 = vdwg.mxu0
        %4735 = vrot.lane.b32.xlu0 %v4600, 24
        %v4736 = vpop.permute.xlu0 %4735
        %4737 = vrot.lane.b32.xlu0 %v4603, 24
        %v4738 = vpop.permute.xlu0 %4737
        %4739 = vrot.lane.b32.xlu0 %v4608, 24
        %v4740 = vpop.permute.xlu0 %4739
        %4741 = vrot.lane.b32.xlu0 %v4611, 24
        %v4742 = vpop.permute.xlu0 %4741
        %4743 = vrot.lane.b32.xlu0 %v4616, 24
        %v4744 = vpop.permute.xlu0 %4743
        %4745 = vrot.lane.b32.xlu0 %v4619, 24
        %v4746 = vpop.permute.xlu0 %4745
        %4747 = vrot.lane.b32.xlu0 %v4624, 24
        %v4748 = vpop.permute.xlu0 %4747
        %4749 = vrot.lane.b32.xlu0 %v4627, 24
        %v4750 = vpop.permute.xlu0 %4749
        %4751 = vrot.lane.b32.xlu0 %v4689, 24
        %v4752 = vpop.permute.xlu0 %4751
        %4753 = vrot.lane.b32.xlu0 %v4692, 24
        %v4754 = vpop.permute.xlu0 %4753
        %4755 = vrot.lane.b32.xlu0 %v4697, 24
        %v4756 = vpop.permute.xlu0 %4755
        %4757 = vrot.lane.b32.xlu0 %v4700, 24
        %v4758 = vpop.permute.xlu0 %4757
        %4759 = vrot.lane.b32.xlu0 %v4705, 24
        %v4760 = vpop.permute.xlu0 %4759
        %4761 = vrot.lane.b32.xlu0 %v4708, 24
        %v4762 = vpop.permute.xlu0 %4761
        %4763 = vrot.lane.b32.xlu0 %v4713, 24
        %v4764 = vpop.permute.xlu0 %4763
        %4765 = vrot.lane.b32.xlu0 %v4716, 24
        %v4766 = vpop.permute.xlu0 %4765
        %vm4783 = vcmask 261312
        %4784 = vst.msk [vmem:[#allocation3] sm:$0xff] %vm4783, %v4736
        %4785 = vst.msk [vmem:[#allocation3 + $0x8] sm:$0xff] %vm4783, %v4738
        %4786 = vst.msk [vmem:[#allocation3 + $0x10] sm:$0xff] %vm4783, %v4740
        %4787 = vst.msk [vmem:[#allocation3 + $0x18] sm:$0xff] %vm4783, %v4742
        %4788 = vst.msk [vmem:[#allocation3 + $0x20] sm:$0xff] %vm4783, %v4744
        %4789 = vst.msk [vmem:[#allocation3 + $0x28] sm:$0xff] %vm4783, %v4746
        %4790 = vst.msk [vmem:[#allocation3 + $0x30] sm:$0xff] %vm4783, %v4748
        %4791 = vst.msk [vmem:[#allocation3 + $0x38] sm:$0xff] %vm4783, %v4750
        %4792 = vst.msk [vmem:[#allocation3 + $0x40] sm:$0xff] %vm4783, %v4752
        %4793 = vst.msk [vmem:[#allocation3 + $0x48] sm:$0xff] %vm4783, %v4754
        %4794 = vst.msk [vmem:[#allocation3 + $0x50] sm:$0xff] %vm4783, %v4756
        %4795 = vst.msk [vmem:[#allocation3 + $0x58] sm:$0xff] %vm4783, %v4758
        %4796 = vst.msk [vmem:[#allocation3 + $0x60] sm:$0xff] %vm4783, %v4760
        %4797 = vst.msk [vmem:[#allocation3 + $0x68] sm:$0xff] %vm4783, %v4762
        %4798 = vst.msk [vmem:[#allocation3 + $0x70] sm:$0xff] %vm4783, %v4764
        %4799 = vst.msk [vmem:[#allocation3 + $0x78] sm:$0xff] %vm4783, %v4766
        %v4800 = vld [vmem:[#allocation3] sm:$0xff]
        %v4801 = vld [vmem:[#allocation3 + $0x8] sm:$0xff]
        %v4802 = vld [vmem:[#allocation3 + $0x10] sm:$0xff]
        %v4803 = vld [vmem:[#allocation3 + $0x18] sm:$0xff]
        %v4804 = vld [vmem:[#allocation3 + $0x20] sm:$0xff]
        %v4805 = vld [vmem:[#allocation3 + $0x28] sm:$0xff]
        %v4806 = vld [vmem:[#allocation3 + $0x30] sm:$0xff]
        %v4807 = vld [vmem:[#allocation3 + $0x38] sm:$0xff]
        %v4808 = vld [vmem:[#allocation3 + $0x40] sm:$0xff]
        %v4809 = vld [vmem:[#allocation3 + $0x48] sm:$0xff]
        %v4810 = vld [vmem:[#allocation3 + $0x50] sm:$0xff]
        %v4811 = vld [vmem:[#allocation3 + $0x58] sm:$0xff]
        %v4812 = vld [vmem:[#allocation3 + $0x60] sm:$0xff]
        %v4813 = vld [vmem:[#allocation3 + $0x68] sm:$0xff]
        %v4814 = vld [vmem:[#allocation3 + $0x70] sm:$0xff]
        %v4815 = vld [vmem:[#allocation3 + $0x78] sm:$0xff]
        %v4816 = vld [vmem:[%s1162] sm:$0xf]
        %v4817 = vld [vmem:[%s1162 + $0x4] sm:$0xf]
        %v4818 = vld [vmem:[%s1162 + $0x8] sm:$0xf]
        %v4819 = vld [vmem:[%s1162 + $0xc] sm:$0xf]
        %v4820 = vpack.c.bf16 %v4801, %v4800
        %v4821 = vpack.c.bf16 %v4803, %v4802
        %v4822 = vpack.c.bf16 %v4805, %v4804
        %v4823 = vpack.c.bf16 %v4807, %v4806
        %v4824 = vpack.c.bf16 %v4809, %v4808
        %v4825 = vpack.c.bf16 %v4811, %v4810
        %v4826 = vpack.c.bf16 %v4813, %v4812
        %v4827 = vpack.c.bf16 %v4815, %v4814
        %v4828 = vld [vmem:[%s993] sm:$0x1]
        %v4830 = vlaneseq
        %v4831 = vshrl.u32 %v4830, 7
        %v4832 = vsub.s32 0, %v4831
        %v4833 = vrot.slane %v4828, %v4832
        %v4839 = vunpack.c.l.b16 %v4816
        %v4840 = vunpack.c.l.b16 %v4817
        %v4841 = vunpack.c.l.b16 %v4818
        %v4842 = vunpack.c.l.b16 %v4819
        %v4843 = vpack.c.b16 %v4840, %v4839
        %v4844 = vpack.c.b16 %v4842, %v4841
        %v4848 = vsel %vm1896, %v4820, 0
        %v4851 = vsel %vm1896, %v4821, 0
        %v4854 = vsel %vm1896, %v4822, 0
        %v4857 = vsel %vm1896, %v4823, 0
        %v4860 = vsel %vm1896, %v4824, 0
        %v4863 = vsel %vm1896, %v4825, 0
        %v4866 = vsel %vm1896, %v4826, 0
        %v4869 = vsel %vm1896, %v4827, 0
        %4871 = vmatprep.subr.bf16.mxu0 0
        %4872 = vmatpush1.bf16.msra.mxu0 %v4843
        %4873 = vmatprep.subr.bf16.mxu0 0
        %4874 = vmatpush1.bf16.msra.mxu0 %v4844
        %4875 = vmatprep.subr.bf16.mxu0 0
        %4876 = vmatpush1.bf16.msra.mxu0 0
        %4877 = vmatprep.subr.bf16.mxu0 0
        %4878 = vmatpush1.bf16.msra.mxu0 0
        %4879 = vmatprep.subr.bf16.mxu0 0
        %4880 = vmatpush1.bf16.msra.mxu0 0
        %4881 = vmatprep.subr.bf16.mxu0 0
        %4882 = vmatpush1.bf16.msra.mxu0 0
        %4883 = vmatprep.subr.bf16.mxu0 0
        %4884 = vmatpush1.bf16.msra.mxu0 0
        %4885 = vmatprep.subr.bf16.mxu0 0
        %4886 = vmatpush1.bf16.msra.mxu0 0
        %4887 = vmatprep.subr.bf16.mxu0 0
        %4888 = vmatpush1.bf16.msra.mxu0 0
        %4889 = vmatprep.subr.bf16.mxu0 0
        %4890 = vmatpush1.bf16.msra.mxu0 0
        %4891 = vmatprep.subr.bf16.mxu0 0
        %4892 = vmatpush1.bf16.msra.mxu0 0
        %4893 = vmatprep.subr.bf16.mxu0 0
        %4894 = vmatpush1.bf16.msra.mxu0 0
        %4895 = vmatprep.subr.bf16.mxu0 0
        %4896 = vmatpush1.bf16.msra.mxu0 0
        %4897 = vmatprep.subr.bf16.mxu0 0
        %4898 = vmatpush1.bf16.msra.mxu0 0
        %4899 = vmatprep.subr.bf16.mxu0 0
        %4900 = vmatpush1.bf16.msra.mxu0 0
        %4901 = vmatprep.subr.bf16.mxu0 0
        %4902 = vmatpush1.bf16.msra.mxu0 0
        %4903 = vmatprep.mubr.bf16.mxu0 0
        %4904 = vmatmul.mubr.bf16.gmra.mrb[0].mxu0 %v4848
        %v4905 = vpop.f32.mrb[0].mxu0
        %v4906 = vadd.f32 %v4833, %v4905
        %v4907 = vpop.f32.mrb[0].mxu0
        %v4908 = vpop.f32.mrb[0].mxu0
        %v4909 = vadd.f32 %v4833, %v4908
        %v4910 = vpop.f32.mrb[0].mxu0
        %4911 = vmatprep.mubr.bf16.mxu0 0
        %4912 = vmatmul.mubr.bf16.gmra.mrb[0].mxu0 %v4851
        %v4913 = vpop.f32.mrb[0].mxu0
        %v4914 = vadd.f32 %v4833, %v4913
        %v4915 = vpop.f32.mrb[0].mxu0
        %v4916 = vpop.f32.mrb[0].mxu0
        %v4917 = vadd.f32 %v4833, %v4916
        %v4918 = vpop.f32.mrb[0].mxu0
        %4919 = vmatprep.mubr.bf16.mxu0 0
        %4920 = vmatmul.mubr.bf16.gmra.mrb[0].mxu0 %v4854
        %v4921 = vpop.f32.mrb[0].mxu0
        %v4922 = vadd.f32 %v4833, %v4921
        %v4923 = vpop.f32.mrb[0].mxu0
        %v4924 = vpop.f32.mrb[0].mxu0
        %v4925 = vadd.f32 %v4833, %v4924
        %v4926 = vpop.f32.mrb[0].mxu0
        %4927 = vmatprep.mubr.bf16.mxu0 0
        %4928 = vmatmul.mubr.bf16.gmra.mrb[0].mxu0 %v4857
        %v4929 = vpop.f32.mrb[0].mxu0
        %v4930 = vadd.f32 %v4833, %v4929
        %v4931 = vpop.f32.mrb[0].mxu0
        %v4932 = vpop.f32.mrb[0].mxu0
        %v4933 = vadd.f32 %v4833, %v4932
        %v4934 = vpop.f32.mrb[0].mxu0
        %4935 = vmatprep.mubr.bf16.mxu0 0
        %4936 = vmatmul.mubr.bf16.gmra.mrb[0].mxu0 %v4860
        %v4937 = vpop.f32.mrb[0].mxu0
        %v4938 = vadd.f32 %v4833, %v4937
        %v4939 = vpop.f32.mrb[0].mxu0
        %v4940 = vpop.f32.mrb[0].mxu0
        %v4941 = vadd.f32 %v4833, %v4940
        %v4942 = vpop.f32.mrb[0].mxu0
        %4943 = vmatprep.mubr.bf16.mxu0 0
        %4944 = vmatmul.mubr.bf16.gmra.mrb[0].mxu0 %v4863
        %v4945 = vpop.f32.mrb[0].mxu0
        %v4946 = vadd.f32 %v4833, %v4945
        %v4947 = vpop.f32.mrb[0].mxu0
        %v4948 = vpop.f32.mrb[0].mxu0
        %v4949 = vadd.f32 %v4833, %v4948
        %v4950 = vpop.f32.mrb[0].mxu0
        %4951 = vmatprep.mubr.bf16.mxu0 0
        %4952 = vmatmul.mubr.bf16.gmra.mrb[0].mxu0 %v4866
        %v4953 = vpop.f32.mrb[0].mxu0
        %v4954 = vadd.f32 %v4833, %v4953
        %v4955 = vpop.f32.mrb[0].mxu0
        %v4956 = vpop.f32.mrb[0].mxu0
        %v4957 = vadd.f32 %v4833, %v4956
        %v4958 = vpop.f32.mrb[0].mxu0
        %4959 = vmatprep.mubr.bf16.mxu0 0
        %4960 = vmatmul.mubr.bf16.gmra.mrb[0].mxu0 %v4869
        %v4961 = vpop.f32.mrb[0].mxu0
        %v4962 = vadd.f32 %v4833, %v4961
        %v4963 = vpop.f32.mrb[0].mxu0
        %v4964 = vpop.f32.mrb[0].mxu0
        %v4965 = vadd.f32 %v4833, %v4964
        %v4966 = vpop.f32.mrb[0].mxu0
        %4967 = vdwg.mxu0
        %v4968 = vadd.f32 %v1863, %v4906
        %v4969 = vadd.f32 %v1864, %v4909
        %v4970 = vadd.f32 %v1865, %v4914
        %v4971 = vadd.f32 %v1866, %v4917
        %v4972 = vadd.f32 %v1867, %v4922
        %v4973 = vadd.f32 %v1868, %v4925
        %v4974 = vadd.f32 %v1869, %v4930
        %v4975 = vadd.f32 %v1870, %v4933
        %v4976 = vadd.f32 %v1871, %v4938
        %v4977 = vadd.f32 %v1872, %v4941
        %v4978 = vadd.f32 %v1873, %v4946
        %v4979 = vadd.f32 %v1874, %v4949
        %v4980 = vadd.f32 %v1875, %v4954
        %v4981 = vadd.f32 %v1876, %v4957
        %v4982 = vadd.f32 %v1877, %v4962
        %v4983 = vadd.f32 %v1878, %v4965
        %v4984 = vld [vmem:[%s977] sm:$0x1]
        %v4985 = vmul.f32 %v4968, %v4968
        %v4986 = vmul.f32 %v4969, %v4969
        %v4987 = vmul.f32 %v4970, %v4970
        %v4988 = vmul.f32 %v4971, %v4971
        %v4989 = vmul.f32 %v4972, %v4972
        %v4990 = vmul.f32 %v4973, %v4973
        %v4991 = vmul.f32 %v4974, %v4974
        %v4992 = vmul.f32 %v4975, %v4975
        %v4993 = vmul.f32 %v4976, %v4976
        %v4994 = vmul.f32 %v4977, %v4977
        %v4995 = vmul.f32 %v4978, %v4978
        %v4996 = vmul.f32 %v4979, %v4979
        %v4997 = vmul.f32 %v4980, %v4980
        %v4998 = vmul.f32 %v4981, %v4981
        %v4999 = vmul.f32 %v4982, %v4982
        %v5000 = vmul.f32 %v4983, %v4983
        %v5001 = vsel %vm1896, %v4985, 0.0
        %5002 = vadd.xlane.f32.xlu0 %v5001
        %v5003 = vpop.xlane.xlu0 %5002
        %v5004 = vsel %vm1896, %v4986, 0.0
        %5005 = vadd.xlane.f32.xlu0 %v5004
        %v5006 = vpop.xlane.xlu0 %5005
        %v5007 = vsel %vm1896, %v4987, 0.0
        %5008 = vadd.xlane.f32.xlu0 %v5007
        %v5009 = vpop.xlane.xlu0 %5008
        %v5010 = vsel %vm1896, %v4988, 0.0
        %5011 = vadd.xlane.f32.xlu0 %v5010
        %v5012 = vpop.xlane.xlu0 %5011
        %v5013 = vsel %vm1896, %v4989, 0.0
        %5014 = vadd.xlane.f32.xlu0 %v5013
        %v5015 = vpop.xlane.xlu0 %5014
        %v5016 = vsel %vm1896, %v4990, 0.0
        %5017 = vadd.xlane.f32.xlu0 %v5016
        %v5018 = vpop.xlane.xlu0 %5017
        %v5019 = vsel %vm1896, %v4991, 0.0
        %5020 = vadd.xlane.f32.xlu0 %v5019
        %v5021 = vpop.xlane.xlu0 %5020
        %v5022 = vsel %vm1896, %v4992, 0.0
        %5023 = vadd.xlane.f32.xlu0 %v5022
        %v5024 = vpop.xlane.xlu0 %5023
        %v5025 = vsel %vm1896, %v4993, 0.0
        %5026 = vadd.xlane.f32.xlu0 %v5025
        %v5027 = vpop.xlane.xlu0 %5026
        %v5028 = vsel %vm1896, %v4994, 0.0
        %5029 = vadd.xlane.f32.xlu0 %v5028
        %v5030 = vpop.xlane.xlu0 %5029
        %v5031 = vsel %vm1896, %v4995, 0.0
        %5032 = vadd.xlane.f32.xlu0 %v5031
        %v5033 = vpop.xlane.xlu0 %5032
        %v5034 = vsel %vm1896, %v4996, 0.0
        %5035 = vadd.xlane.f32.xlu0 %v5034
        %v5036 = vpop.xlane.xlu0 %5035
        %v5037 = vsel %vm1896, %v4997, 0.0
        %5038 = vadd.xlane.f32.xlu0 %v5037
        %v5039 = vpop.xlane.xlu0 %5038
        %v5040 = vsel %vm1896, %v4998, 0.0
        %5041 = vadd.xlane.f32.xlu0 %v5040
        %v5042 = vpop.xlane.xlu0 %5041
        %v5043 = vsel %vm1896, %v4999, 0.0
        %5044 = vadd.xlane.f32.xlu0 %v5043
        %v5045 = vpop.xlane.xlu0 %5044
        %v5046 = vsel %vm1896, %v5000, 0.0
        %5047 = vadd.xlane.f32.xlu0 %v5046
        %v5048 = vpop.xlane.xlu0 %5047
        %v5049 = vmul.f32 %v5003, %v1945
        %v5050 = vmul.f32 %v5006, %v1945
        %v5051 = vmul.f32 %v5009, %v1945
        %v5052 = vmul.f32 %v5012, %v1945
        %v5053 = vmul.f32 %v5015, %v1945
        %v5054 = vmul.f32 %v5018, %v1945
        %v5055 = vmul.f32 %v5021, %v1945
        %v5056 = vmul.f32 %v5024, %v1945
        %v5057 = vmul.f32 %v5027, %v1945
        %v5058 = vmul.f32 %v5030, %v1945
        %v5059 = vmul.f32 %v5033, %v1945
        %v5060 = vmul.f32 %v5036, %v1945
        %v5061 = vmul.f32 %v5039, %v1945
        %v5062 = vmul.f32 %v5042, %v1945
        %v5063 = vmul.f32 %v5045, %v1945
        %v5064 = vmul.f32 %v5048, %v1945
        %v5065 = vadd.f32 %v5049, 1.1920929e-07
        %v5066 = vadd.f32 %v5050, 1.1920929e-07
        %v5067 = vadd.f32 %v5051, 1.1920929e-07
        %v5068 = vadd.f32 %v5052, 1.1920929e-07
        %v5069 = vadd.f32 %v5053, 1.1920929e-07
        %v5070 = vadd.f32 %v5054, 1.1920929e-07
        %v5071 = vadd.f32 %v5055, 1.1920929e-07
        %v5072 = vadd.f32 %v5056, 1.1920929e-07
        %v5073 = vadd.f32 %v5057, 1.1920929e-07
        %v5074 = vadd.f32 %v5058, 1.1920929e-07
        %v5075 = vadd.f32 %v5059, 1.1920929e-07
        %v5076 = vadd.f32 %v5060, 1.1920929e-07
        %v5077 = vadd.f32 %v5061, 1.1920929e-07
        %v5078 = vadd.f32 %v5062, 1.1920929e-07
        %v5079 = vadd.f32 %v5063, 1.1920929e-07
        %v5080 = vadd.f32 %v5064, 1.1920929e-07
        %v5081 = vrsqrt.pop %v5065
        %v5082 = vrsqrt.pop %v5066
        %v5083 = vrsqrt.pop %v5067
        %v5084 = vrsqrt.pop %v5068
        %v5085 = vrsqrt.pop %v5069
        %v5086 = vrsqrt.pop %v5070
        %v5087 = vrsqrt.pop %v5071
        %v5088 = vrsqrt.pop %v5072
        %v5089 = vrsqrt.pop %v5073
        %v5090 = vrsqrt.pop %v5074
        %v5091 = vrsqrt.pop %v5075
        %v5092 = vrsqrt.pop %v5076
        %v5093 = vrsqrt.pop %v5077
        %v5094 = vrsqrt.pop %v5078
        %v5095 = vrsqrt.pop %v5079
        %v5096 = vrsqrt.pop %v5080
        %v5097 = vmul.f32 %v4968, %v5081
        %v5098 = vmul.f32 %v4969, %v5082
        %v5099 = vmul.f32 %v4970, %v5083
        %v5100 = vmul.f32 %v4971, %v5084
        %v5101 = vmul.f32 %v4972, %v5085
        %v5102 = vmul.f32 %v4973, %v5086
        %v5103 = vmul.f32 %v4974, %v5087
        %v5104 = vmul.f32 %v4975, %v5088
        %v5105 = vmul.f32 %v4976, %v5089
        %v5106 = vmul.f32 %v4977, %v5090
        %v5107 = vmul.f32 %v4978, %v5091
        %v5108 = vmul.f32 %v4979, %v5092
        %v5109 = vmul.f32 %v4980, %v5093
        %v5110 = vmul.f32 %v4981, %v5094
        %v5111 = vmul.f32 %v4982, %v5095
        %v5112 = vmul.f32 %v4983, %v5096
        %v5114 = vlaneseq
        %v5115 = vshrl.u32 %v5114, 7
        %v5116 = vsub.s32 0, %v5115
        %v5117 = vrot.slane %v4984, %v5116
        %v5119 = vmul.f32 %v5097, %v5117
        %v5120 = vmul.f32 %v5098, %v5117
        %v5121 = vmul.f32 %v5099, %v5117
        %v5122 = vmul.f32 %v5100, %v5117
        %v5123 = vmul.f32 %v5101, %v5117
        %v5124 = vmul.f32 %v5102, %v5117
        %v5125 = vmul.f32 %v5103, %v5117
        %v5126 = vmul.f32 %v5104, %v5117
        %v5127 = vmul.f32 %v5105, %v5117
        %v5128 = vmul.f32 %v5106, %v5117
        %v5129 = vmul.f32 %v5107, %v5117
        %v5130 = vmul.f32 %v5108, %v5117
        %v5131 = vmul.f32 %v5109, %v5117
        %v5132 = vmul.f32 %v5110, %v5117
        %v5133 = vmul.f32 %v5111, %v5117
        %v5134 = vmul.f32 %v5112, %v5117
        %v5135 = vld [vmem:[%s1172] sm:$0xf]
        %v5136 = vld [vmem:[%s1172 + $0x4] sm:$0xf]
        %v5137 = vld [vmem:[%s1172 + $0x8] sm:$0xf]
        %v5138 = vld [vmem:[%s1172 + $0xc] sm:$0xf]
        %v5139 = vpack.c.bf16 %v5120, %v5119
        %v5140 = vpack.c.bf16 %v5122, %v5121
        %v5141 = vpack.c.bf16 %v5124, %v5123
        %v5142 = vpack.c.bf16 %v5126, %v5125
        %v5143 = vpack.c.bf16 %v5128, %v5127
        %v5144 = vpack.c.bf16 %v5130, %v5129
        %v5145 = vpack.c.bf16 %v5132, %v5131
        %v5146 = vpack.c.bf16 %v5134, %v5133
        %v5147 = vld [vmem:[%s1001] sm:$0x1]
        %v5149 = vlaneseq
        %v5150 = vshrl.u32 %v5149, 7
        %v5151 = vsub.s32 0, %v5150
        %v5152 = vrot.slane %v5147, %v5151
        %v5158 = vunpack.c.l.b16 %v5135
        %v5159 = vunpack.c.l.b16 %v5136
        %v5160 = vunpack.c.l.b16 %v5137
        %v5161 = vunpack.c.l.b16 %v5138
        %v5162 = vpack.c.b16 %v5159, %v5158
        %v5163 = vpack.c.b16 %v5161, %v5160
        %v5167 = vsel %vm1896, %v5139, 0
        %v5170 = vsel %vm1896, %v5140, 0
        %v5173 = vsel %vm1896, %v5141, 0
        %v5176 = vsel %vm1896, %v5142, 0
        %v5179 = vsel %vm1896, %v5143, 0
        %v5182 = vsel %vm1896, %v5144, 0
        %v5185 = vsel %vm1896, %v5145, 0
        %v5188 = vsel %vm1896, %v5146, 0
        %5190 = vmatprep.subr.bf16.mxu0 0
        %5191 = vmatpush1.bf16.msra.mxu0 %v5162
        %5192 = vmatprep.subr.bf16.mxu0 0
        %5193 = vmatpush1.bf16.msra.mxu0 %v5163
        %5194 = vmatprep.subr.bf16.mxu0 0
        %5195 = vmatpush1.bf16.msra.mxu0 0
        %5196 = vmatprep.subr.bf16.mxu0 0
        %5197 = vmatpush1.bf16.msra.mxu0 0
        %5198 = vmatprep.subr.bf16.mxu0 0
        %5199 = vmatpush1.bf16.msra.mxu0 0
        %5200 = vmatprep.subr.bf16.mxu0 0
        %5201 = vmatpush1.bf16.msra.mxu0 0
        %5202 = vmatprep.subr.bf16.mxu0 0
        %5203 = vmatpush1.bf16.msra.mxu0 0
        %5204 = vmatprep.subr.bf16.mxu0 0
        %5205 = vmatpush1.bf16.msra.mxu0 0
        %5206 = vmatprep.subr.bf16.mxu0 0
        %5207 = vmatpush1.bf16.msra.mxu0 0
        %5208 = vmatprep.subr.bf16.mxu0 0
        %5209 = vmatpush1.bf16.msra.mxu0 0
        %5210 = vmatprep.subr.bf16.mxu0 0
        %5211 = vmatpush1.bf16.msra.mxu0 0
        %5212 = vmatprep.subr.bf16.mxu0 0
        %5213 = vmatpush1.bf16.msra.mxu0 0
        %5214 = vmatprep.subr.bf16.mxu0 0
        %5215 = vmatpush1.bf16.msra.mxu0 0
        %5216 = vmatprep.subr.bf16.mxu0 0
        %5217 = vmatpush1.bf16.msra.mxu0 0
        %5218 = vmatprep.subr.bf16.mxu0 0
        %5219 = vmatpush1.bf16.msra.mxu0 0
        %5220 = vmatprep.subr.bf16.mxu0 0
        %5221 = vmatpush1.bf16.msra.mxu0 0
        %5222 = vmatprep.mubr.bf16.mxu0 0
        %5223 = vmatmul.mubr.bf16.gmra.mrb[0].mxu0 %v5167
        %v5224 = vpop.f32.mrb[0].mxu0
        %v5225 = vadd.f32 %v5152, %v5224
        %v5226 = vpop.f32.mrb[0].mxu0
        %v5227 = vpop.f32.mrb[0].mxu0
        %v5228 = vadd.f32 %v5152, %v5227
        %v5229 = vpop.f32.mrb[0].mxu0
        %5230 = vmatprep.mubr.bf16.mxu0 0
        %5231 = vmatmul.mubr.bf16.gmra.mrb[0].mxu0 %v5170
        %v5232 = vpop.f32.mrb[0].mxu0
        %v5233 = vadd.f32 %v5152, %v5232
        %v5234 = vpop.f32.mrb[0].mxu0
        %v5235 = vpop.f32.mrb[0].mxu0
        %v5236 = vadd.f32 %v5152, %v5235
        %v5237 = vpop.f32.mrb[0].mxu0
        %5238 = vmatprep.mubr.bf16.mxu0 0
        %5239 = vmatmul.mubr.bf16.gmra.mrb[0].mxu0 %v5173
        %v5240 = vpop.f32.mrb[0].mxu0
        %v5241 = vadd.f32 %v5152, %v5240
        %v5242 = vpop.f32.mrb[0].mxu0
        %v5243 = vpop.f32.mrb[0].mxu0
        %v5244 = vadd.f32 %v5152, %v5243
        %v5245 = vpop.f32.mrb[0].mxu0
        %5246 = vmatprep.mubr.bf16.mxu0 0
        %5247 = vmatmul.mubr.bf16.gmra.mrb[0].mxu0 %v5176
        %v5248 = vpop.f32.mrb[0].mxu0
        %v5249 = vadd.f32 %v5152, %v5248
        %v5250 = vpop.f32.mrb[0].mxu0
        %v5251 = vpop.f32.mrb[0].mxu0
        %v5252 = vadd.f32 %v5152, %v5251
        %v5253 = vpop.f32.mrb[0].mxu0
        %5254 = vmatprep.mubr.bf16.mxu0 0
        %5255 = vmatmul.mubr.bf16.gmra.mrb[0].mxu0 %v5179
        %v5256 = vpop.f32.mrb[0].mxu0
        %v5257 = vadd.f32 %v5152, %v5256
        %v5258 = vpop.f32.mrb[0].mxu0
        %v5259 = vpop.f32.mrb[0].mxu0
        %v5260 = vadd.f32 %v5152, %v5259
        %v5261 = vpop.f32.mrb[0].mxu0
        %5262 = vmatprep.mubr.bf16.mxu0 0
        %5263 = vmatmul.mubr.bf16.gmra.mrb[0].mxu0 %v5182
        %v5264 = vpop.f32.mrb[0].mxu0
        %v5265 = vadd.f32 %v5152, %v5264
        %v5266 = vpop.f32.mrb[0].mxu0
        %v5267 = vpop.f32.mrb[0].mxu0
        %v5268 = vadd.f32 %v5152, %v5267
        %v5269 = vpop.f32.mrb[0].mxu0
        %5270 = vmatprep.mubr.bf16.mxu0 0
        %5271 = vmatmul.mubr.bf16.gmra.mrb[0].mxu0 %v5185
        %v5272 = vpop.f32.mrb[0].mxu0
        %v5273 = vadd.f32 %v5152, %v5272
        %v5274 = vpop.f32.mrb[0].mxu0
        %v5275 = vpop.f32.mrb[0].mxu0
        %v5276 = vadd.f32 %v5152, %v5275
        %v5277 = vpop.f32.mrb[0].mxu0
        %5278 = vmatprep.mubr.bf16.mxu0 0
        %5279 = vmatmul.mubr.bf16.gmra.mrb[0].mxu0 %v5188
        %v5280 = vpop.f32.mrb[0].mxu0
        %v5281 = vadd.f32 %v5152, %v5280
        %v5282 = vpop.f32.mrb[0].mxu0
        %v5283 = vpop.f32.mrb[0].mxu0
        %v5284 = vadd.f32 %v5152, %v5283
        %v5285 = vpop.f32.mrb[0].mxu0
        %5286 = vdwg.mxu0
        %v5287 = vmul.f32 %v5225, %v5225
        %v5288 = vmul.f32 %v5228, %v5228
        %v5289 = vmul.f32 %v5233, %v5233
        %v5290 = vmul.f32 %v5236, %v5236
        %v5291 = vmul.f32 %v5241, %v5241
        %v5292 = vmul.f32 %v5244, %v5244
        %v5293 = vmul.f32 %v5249, %v5249
        %v5294 = vmul.f32 %v5252, %v5252
        %v5295 = vmul.f32 %v5257, %v5257
        %v5296 = vmul.f32 %v5260, %v5260
        %v5297 = vmul.f32 %v5265, %v5265
        %v5298 = vmul.f32 %v5268, %v5268
        %v5299 = vmul.f32 %v5273, %v5273
        %v5300 = vmul.f32 %v5276, %v5276
        %v5301 = vmul.f32 %v5281, %v5281
        %v5302 = vmul.f32 %v5284, %v5284
        %v5303 = vmul.f32 %v5225, %v5287
        %v5304 = vmul.f32 %v5228, %v5288
        %v5305 = vmul.f32 %v5233, %v5289
        %v5306 = vmul.f32 %v5236, %v5290
        %v5307 = vmul.f32 %v5241, %v5291
        %v5308 = vmul.f32 %v5244, %v5292
        %v5309 = vmul.f32 %v5249, %v5293
        %v5310 = vmul.f32 %v5252, %v5294
        %v5311 = vmul.f32 %v5257, %v5295
        %v5312 = vmul.f32 %v5260, %v5296
        %v5313 = vmul.f32 %v5265, %v5297
        %v5314 = vmul.f32 %v5268, %v5298
        %v5315 = vmul.f32 %v5273, %v5299
        %v5316 = vmul.f32 %v5276, %v5300
        %v5317 = vmul.f32 %v5281, %v5301
        %v5318 = vmul.f32 %v5284, %v5302
        %v5319 = vmul.f32 %v5303, 0.044715
        %v5320 = vmul.f32 %v5304, 0.044715
        %v5321 = vmul.f32 %v5305, 0.044715
        %v5322 = vmul.f32 %v5306, 0.044715
        %v5323 = vmul.f32 %v5307, 0.044715
        %v5324 = vmul.f32 %v5308, 0.044715
        %v5325 = vmul.f32 %v5309, 0.044715
        %v5326 = vmul.f32 %v5310, 0.044715
        %v5327 = vmul.f32 %v5311, 0.044715
        %v5328 = vmul.f32 %v5312, 0.044715
        %v5329 = vmul.f32 %v5313, 0.044715
        %v5330 = vmul.f32 %v5314, 0.044715
        %v5331 = vmul.f32 %v5315, 0.044715
        %v5332 = vmul.f32 %v5316, 0.044715
        %v5333 = vmul.f32 %v5317, 0.044715
        %v5334 = vmul.f32 %v5318, 0.044715
        %v5335 = vadd.f32 %v5225, %v5319
        %v5336 = vadd.f32 %v5228, %v5320
        %v5337 = vadd.f32 %v5233, %v5321
        %v5338 = vadd.f32 %v5236, %v5322
        %v5339 = vadd.f32 %v5241, %v5323
        %v5340 = vadd.f32 %v5244, %v5324
        %v5341 = vadd.f32 %v5249, %v5325
        %v5342 = vadd.f32 %v5252, %v5326
        %v5343 = vadd.f32 %v5257, %v5327
        %v5344 = vadd.f32 %v5260, %v5328
        %v5345 = vadd.f32 %v5265, %v5329
        %v5346 = vadd.f32 %v5268, %v5330
        %v5347 = vadd.f32 %v5273, %v5331
        %v5348 = vadd.f32 %v5276, %v5332
        %v5349 = vadd.f32 %v5281, %v5333
        %v5350 = vadd.f32 %v5284, %v5334
        %v5351 = vmul.f32 %v5335, 0.7978846
        %v5352 = vmul.f32 %v5336, 0.7978846
        %v5353 = vmul.f32 %v5337, 0.7978846
        %v5354 = vmul.f32 %v5338, 0.7978846
        %v5355 = vmul.f32 %v5339, 0.7978846
        %v5356 = vmul.f32 %v5340, 0.7978846
        %v5357 = vmul.f32 %v5341, 0.7978846
        %v5358 = vmul.f32 %v5342, 0.7978846
        %v5359 = vmul.f32 %v5343, 0.7978846
        %v5360 = vmul.f32 %v5344, 0.7978846
        %v5361 = vmul.f32 %v5345, 0.7978846
        %v5362 = vmul.f32 %v5346, 0.7978846
        %v5363 = vmul.f32 %v5347, 0.7978846
        %v5364 = vmul.f32 %v5348, 0.7978846
        %v5365 = vmul.f32 %v5349, 0.7978846
        %v5366 = vmul.f32 %v5350, 0.7978846
        %v5367 = vtanh.pop %v5351
        %v5368 = vtanh.pop %v5352
        %v5369 = vtanh.pop %v5353
        %v5370 = vtanh.pop %v5354
        %v5371 = vtanh.pop %v5355
        %v5372 = vtanh.pop %v5356
        %v5373 = vtanh.pop %v5357
        %v5374 = vtanh.pop %v5358
        %v5375 = vtanh.pop %v5359
        %v5376 = vtanh.pop %v5360
        %v5377 = vtanh.pop %v5361
        %v5378 = vtanh.pop %v5362
        %v5379 = vtanh.pop %v5363
        %v5380 = vtanh.pop %v5364
        %v5381 = vtanh.pop %v5365
        %v5382 = vtanh.pop %v5366
        %v5383 = vadd.f32 %v5367, 1.0
        %v5384 = vadd.f32 %v5368, 1.0
        %v5385 = vadd.f32 %v5369, 1.0
        %v5386 = vadd.f32 %v5370, 1.0
        %v5387 = vadd.f32 %v5371, 1.0
        %v5388 = vadd.f32 %v5372, 1.0
        %v5389 = vadd.f32 %v5373, 1.0
        %v5390 = vadd.f32 %v5374, 1.0
        %v5391 = vadd.f32 %v5375, 1.0
        %v5392 = vadd.f32 %v5376, 1.0
        %v5393 = vadd.f32 %v5377, 1.0
        %v5394 = vadd.f32 %v5378, 1.0
        %v5395 = vadd.f32 %v5379, 1.0
        %v5396 = vadd.f32 %v5380, 1.0
        %v5397 = vadd.f32 %v5381, 1.0
        %v5398 = vadd.f32 %v5382, 1.0
        %v5399 = vmul.f32 %v5383, 0.5
        %v5400 = vmul.f32 %v5384, 0.5
        %v5401 = vmul.f32 %v5385, 0.5
        %v5402 = vmul.f32 %v5386, 0.5
        %v5403 = vmul.f32 %v5387, 0.5
        %v5404 = vmul.f32 %v5388, 0.5
        %v5405 = vmul.f32 %v5389, 0.5
        %v5406 = vmul.f32 %v5390, 0.5
        %v5407 = vmul.f32 %v5391, 0.5
        %v5408 = vmul.f32 %v5392, 0.5
        %v5409 = vmul.f32 %v5393, 0.5
        %v5410 = vmul.f32 %v5394, 0.5
        %v5411 = vmul.f32 %v5395, 0.5
        %v5412 = vmul.f32 %v5396, 0.5
        %v5413 = vmul.f32 %v5397, 0.5
        %v5414 = vmul.f32 %v5398, 0.5
        %v5415 = vmul.f32 %v5225, %v5399
        %v5416 = vmul.f32 %v5228, %v5400
        %v5417 = vmul.f32 %v5233, %v5401
        %v5418 = vmul.f32 %v5236, %v5402
        %v5419 = vmul.f32 %v5241, %v5403
        %v5420 = vmul.f32 %v5244, %v5404
        %v5421 = vmul.f32 %v5249, %v5405
        %v5422 = vmul.f32 %v5252, %v5406
        %v5423 = vmul.f32 %v5257, %v5407
        %v5424 = vmul.f32 %v5260, %v5408
        %v5425 = vmul.f32 %v5265, %v5409
        %v5426 = vmul.f32 %v5268, %v5410
        %v5427 = vmul.f32 %v5273, %v5411
        %v5428 = vmul.f32 %v5276, %v5412
        %v5429 = vmul.f32 %v5281, %v5413
        %v5430 = vmul.f32 %v5284, %v5414
        %v5431 = vld [vmem:[%s1177] sm:$0xf]
        %v5432 = vld [vmem:[%s1177 + $0x4] sm:$0xf]
        %v5433 = vld [vmem:[%s1177 + $0x8] sm:$0xf]
        %v5434 = vld [vmem:[%s1177 + $0xc] sm:$0xf]
        %v5435 = vld [vmem:[%s1177 + $0x10] sm:$0xf]
        %v5436 = vld [vmem:[%s1177 + $0x14] sm:$0xf]
        %v5437 = vld [vmem:[%s1177 + $0x18] sm:$0xf]
        %v5438 = vld [vmem:[%s1177 + $0x1c] sm:$0xf]
        %v5439 = vld [vmem:[%s1177 + $0x20] sm:$0xf]
        %v5440 = vld [vmem:[%s1177 + $0x24] sm:$0xf]
        %v5441 = vld [vmem:[%s1177 + $0x28] sm:$0xf]
        %v5442 = vld [vmem:[%s1177 + $0x2c] sm:$0xf]
        %v5443 = vld [vmem:[%s1177 + $0x30] sm:$0xf]
        %v5444 = vld [vmem:[%s1177 + $0x34] sm:$0xf]
        %v5445 = vld [vmem:[%s1177 + $0x38] sm:$0xf]
        %v5446 = vld [vmem:[%s1177 + $0x3c] sm:$0xf]
        %v5447 = vpack.c.bf16 %v5416, %v5415
        %v5448 = vpack.c.bf16 %v5418, %v5417
        %v5449 = vpack.c.bf16 %v5420, %v5419
        %v5450 = vpack.c.bf16 %v5422, %v5421
        %v5451 = vpack.c.bf16 %v5424, %v5423
        %v5452 = vpack.c.bf16 %v5426, %v5425
        %v5453 = vpack.c.bf16 %v5428, %v5427
        %v5454 = vpack.c.bf16 %v5430, %v5429
        %v5455 = vld [vmem:[%s1009] sm:$0x1]
        %v5457 = vlaneseq
        %v5458 = vshrl.u32 %v5457, 7
        %v5459 = vsub.s32 0, %v5458
        %v5460 = vrot.slane %v5455, %v5459
        %v5478 = vunpack.c.l.b16 %v5431
        %v5479 = vunpack.c.l.b16 %v5432
        %v5480 = vunpack.c.l.b16 %v5433
        %v5481 = vunpack.c.l.b16 %v5434
        %v5482 = vunpack.c.l.b16 %v5435
        %v5483 = vunpack.c.l.b16 %v5436
        %v5484 = vunpack.c.l.b16 %v5437
        %v5485 = vunpack.c.l.b16 %v5438
        %v5486 = vunpack.c.l.b16 %v5439
        %v5487 = vunpack.c.l.b16 %v5440
        %v5488 = vunpack.c.l.b16 %v5441
        %v5489 = vunpack.c.l.b16 %v5442
        %v5490 = vunpack.c.l.b16 %v5443
        %v5491 = vunpack.c.l.b16 %v5444
        %v5492 = vunpack.c.l.b16 %v5445
        %v5493 = vunpack.c.l.b16 %v5446
        %v5494 = vpack.c.b16 %v5479, %v5478
        %v5495 = vpack.c.b16 %v5481, %v5480
        %v5496 = vpack.c.b16 %v5483, %v5482
        %v5497 = vpack.c.b16 %v5485, %v5484
        %v5498 = vpack.c.b16 %v5487, %v5486
        %v5499 = vpack.c.b16 %v5489, %v5488
        %v5500 = vpack.c.b16 %v5491, %v5490
        %v5501 = vpack.c.b16 %v5493, %v5492
        %5510 = vmatprep.subr.bf16.mxu0 0
        %5511 = vmatpush1.bf16.msra.mxu0 %v5494
        %5512 = vmatprep.subr.bf16.mxu0 0
        %5513 = vmatpush1.bf16.msra.mxu0 %v5495
        %5514 = vmatprep.subr.bf16.mxu0 0
        %5515 = vmatpush1.bf16.msra.mxu0 %v5496
        %5516 = vmatprep.subr.bf16.mxu0 0
        %5517 = vmatpush1.bf16.msra.mxu0 %v5497
        %5518 = vmatprep.subr.bf16.mxu0 0
        %5519 = vmatpush1.bf16.msra.mxu0 %v5498
        %5520 = vmatprep.subr.bf16.mxu0 0
        %5521 = vmatpush1.bf16.msra.mxu0 %v5499
        %5522 = vmatprep.subr.bf16.mxu0 0
        %5523 = vmatpush1.bf16.msra.mxu0 %v5500
        %5524 = vmatprep.subr.bf16.mxu0 0
        %5525 = vmatpush1.bf16.msra.mxu0 %v5501
        %5526 = vmatprep.subr.bf16.mxu0 0
        %5527 = vmatpush1.bf16.msra.mxu0 0
        %5528 = vmatprep.subr.bf16.mxu0 0
        %5529 = vmatpush1.bf16.msra.mxu0 0
        %5530 = vmatprep.subr.bf16.mxu0 0
        %5531 = vmatpush1.bf16.msra.mxu0 0
        %5532 = vmatprep.subr.bf16.mxu0 0
        %5533 = vmatpush1.bf16.msra.mxu0 0
        %5534 = vmatprep.subr.bf16.mxu0 0
        %5535 = vmatpush1.bf16.msra.mxu0 0
        %5536 = vmatprep.subr.bf16.mxu0 0
        %5537 = vmatpush1.bf16.msra.mxu0 0
        %5538 = vmatprep.subr.bf16.mxu0 0
        %5539 = vmatpush1.bf16.msra.mxu0 0
        %5540 = vmatprep.subr.bf16.mxu0 0
        %5541 = vmatpush1.bf16.msra.mxu0 0
        %5542 = vmatprep.mubr.bf16.mxu0 0
        %5543 = vmatmul.mubr.bf16.gmra.mrb[0].mxu0 %v5447
        %v5544 = vpop.f32.mrb[0].mxu0
        %v5545 = vadd.f32 %v5460, %v5544
        %v5546 = vpop.f32.mrb[0].mxu0
        %v5547 = vpop.f32.mrb[0].mxu0
        %v5548 = vadd.f32 %v5460, %v5547
        %v5549 = vpop.f32.mrb[0].mxu0
        %5550 = vmatprep.mubr.bf16.mxu0 0
        %5551 = vmatmul.mubr.bf16.gmra.mrb[0].mxu0 %v5448
        %v5552 = vpop.f32.mrb[0].mxu0
        %v5553 = vadd.f32 %v5460, %v5552
        %v5554 = vpop.f32.mrb[0].mxu0
        %v5555 = vpop.f32.mrb[0].mxu0
        %v5556 = vadd.f32 %v5460, %v5555
        %v5557 = vpop.f32.mrb[0].mxu0
        %5558 = vmatprep.mubr.bf16.mxu0 0
        %5559 = vmatmul.mubr.bf16.gmra.mrb[0].mxu0 %v5449
        %v5560 = vpop.f32.mrb[0].mxu0
        %v5561 = vadd.f32 %v5460, %v5560
        %v5562 = vpop.f32.mrb[0].mxu0
        %v5563 = vpop.f32.mrb[0].mxu0
        %v5564 = vadd.f32 %v5460, %v5563
        %v5565 = vpop.f32.mrb[0].mxu0
        %5566 = vmatprep.mubr.bf16.mxu0 0
        %5567 = vmatmul.mubr.bf16.gmra.mrb[0].mxu0 %v5450
        %v5568 = vpop.f32.mrb[0].mxu0
        %v5569 = vadd.f32 %v5460, %v5568
        %v5570 = vpop.f32.mrb[0].mxu0
        %v5571 = vpop.f32.mrb[0].mxu0
        %v5572 = vadd.f32 %v5460, %v5571
        %v5573 = vpop.f32.mrb[0].mxu0
        %5574 = vmatprep.mubr.bf16.mxu0 0
        %5575 = vmatmul.mubr.bf16.gmra.mrb[0].mxu0 %v5451
        %v5576 = vpop.f32.mrb[0].mxu0
        %v5577 = vadd.f32 %v5460, %v5576
        %v5578 = vpop.f32.mrb[0].mxu0
        %v5579 = vpop.f32.mrb[0].mxu0
        %v5580 = vadd.f32 %v5460, %v5579
        %v5581 = vpop.f32.mrb[0].mxu0
        %5582 = vmatprep.mubr.bf16.mxu0 0
        %5583 = vmatmul.mubr.bf16.gmra.mrb[0].mxu0 %v5452
        %v5584 = vpop.f32.mrb[0].mxu0
        %v5585 = vadd.f32 %v5460, %v5584
        %v5586 = vpop.f32.mrb[0].mxu0
        %v5587 = vpop.f32.mrb[0].mxu0
        %v5588 = vadd.f32 %v5460, %v5587
        %v5589 = vpop.f32.mrb[0].mxu0
        %5590 = vmatprep.mubr.bf16.mxu0 0
        %5591 = vmatmul.mubr.bf16.gmra.mrb[0].mxu0 %v5453
        %v5592 = vpop.f32.mrb[0].mxu0
        %v5593 = vadd.f32 %v5460, %v5592
        %v5594 = vpop.f32.mrb[0].mxu0
        %v5595 = vpop.f32.mrb[0].mxu0
        %v5596 = vadd.f32 %v5460, %v5595
        %v5597 = vpop.f32.mrb[0].mxu0
        %5598 = vmatprep.mubr.bf16.mxu0 0
        %5599 = vmatmul.mubr.bf16.gmra.mrb[0].mxu0 %v5454
        %v5600 = vpop.f32.mrb[0].mxu0
        %v5601 = vadd.f32 %v5460, %v5600
        %v5602 = vpop.f32.mrb[0].mxu0
        %v5603 = vpop.f32.mrb[0].mxu0
        %v5604 = vadd.f32 %v5460, %v5603
        %v5605 = vpop.f32.mrb[0].mxu0
        %5606 = vdwg.mxu0
        %v5607 = vld [vmem:[%s1182] sm:$0xf]
        %v5608 = vld [vmem:[%s1182 + $0x4] sm:$0xf]
        %v5609 = vld [vmem:[%s1182 + $0x8] sm:$0xf]
        %v5610 = vld [vmem:[%s1182 + $0xc] sm:$0xf]
        %v5611 = vld [vmem:[%s1017] sm:$0x1]
        %v5613 = vlaneseq
        %v5614 = vshrl.u32 %v5613, 7
        %v5615 = vsub.s32 0, %v5614
        %v5616 = vrot.slane %v5611, %v5615
        %v5622 = vunpack.c.l.b16 %v5607
        %v5623 = vunpack.c.l.b16 %v5608
        %v5624 = vunpack.c.l.b16 %v5609
        %v5625 = vunpack.c.l.b16 %v5610
        %v5626 = vpack.c.b16 %v5623, %v5622
        %v5627 = vpack.c.b16 %v5625, %v5624
        %5630 = vmatprep.subr.bf16.mxu0 0
        %5631 = vmatpush1.bf16.msra.mxu0 %v5626
        %5632 = vmatprep.subr.bf16.mxu0 0
        %5633 = vmatpush1.bf16.msra.mxu0 %v5627
        %5634 = vmatprep.subr.bf16.mxu0 0
        %5635 = vmatpush1.bf16.msra.mxu0 0
        %5636 = vmatprep.subr.bf16.mxu0 0
        %5637 = vmatpush1.bf16.msra.mxu0 0
        %5638 = vmatprep.subr.bf16.mxu0 0
        %5639 = vmatpush1.bf16.msra.mxu0 0
        %5640 = vmatprep.subr.bf16.mxu0 0
        %5641 = vmatpush1.bf16.msra.mxu0 0
        %5642 = vmatprep.subr.bf16.mxu0 0
        %5643 = vmatpush1.bf16.msra.mxu0 0
        %5644 = vmatprep.subr.bf16.mxu0 0
        %5645 = vmatpush1.bf16.msra.mxu0 0
        %5646 = vmatprep.subr.bf16.mxu0 0
        %5647 = vmatpush1.bf16.msra.mxu0 0
        %5648 = vmatprep.subr.bf16.mxu0 0
        %5649 = vmatpush1.bf16.msra.mxu0 0
        %5650 = vmatprep.subr.bf16.mxu0 0
        %5651 = vmatpush1.bf16.msra.mxu0 0
        %5652 = vmatprep.subr.bf16.mxu0 0
        %5653 = vmatpush1.bf16.msra.mxu0 0
        %5654 = vmatprep.subr.bf16.mxu0 0
        %5655 = vmatpush1.bf16.msra.mxu0 0
        %5656 = vmatprep.subr.bf16.mxu0 0
        %5657 = vmatpush1.bf16.msra.mxu0 0
        %5658 = vmatprep.subr.bf16.mxu0 0
        %5659 = vmatpush1.bf16.msra.mxu0 0
        %5660 = vmatprep.subr.bf16.mxu0 0
        %5661 = vmatpush1.bf16.msra.mxu0 0
        %5662 = vmatprep.mubr.bf16.mxu0 0
        %5663 = vmatmul.mubr.bf16.gmra.mrb[0].mxu0 %v5167
        %v5664 = vpop.f32.mrb[0].mxu0
        %v5665 = vadd.f32 %v5616, %v5664
        %v5666 = vpop.f32.mrb[0].mxu0
        %v5667 = vpop.f32.mrb[0].mxu0
        %v5668 = vadd.f32 %v5616, %v5667
        %v5669 = vpop.f32.mrb[0].mxu0
        %5670 = vmatprep.mubr.bf16.mxu0 0
        %5671 = vmatmul.mubr.bf16.gmra.mrb[0].mxu0 %v5170
        %v5672 = vpop.f32.mrb[0].mxu0
        %v5673 = vadd.f32 %v5616, %v5672
        %v5674 = vpop.f32.mrb[0].mxu0
        %v5675 = vpop.f32.mrb[0].mxu0
        %v5676 = vadd.f32 %v5616, %v5675
        %v5677 = vpop.f32.mrb[0].mxu0
        %5678 = vmatprep.mubr.bf16.mxu0 0
        %5679 = vmatmul.mubr.bf16.gmra.mrb[0].mxu0 %v5173
        %v5680 = vpop.f32.mrb[0].mxu0
        %v5681 = vadd.f32 %v5616, %v5680
        %v5682 = vpop.f32.mrb[0].mxu0
        %v5683 = vpop.f32.mrb[0].mxu0
        %v5684 = vadd.f32 %v5616, %v5683
        %v5685 = vpop.f32.mrb[0].mxu0
        %5686 = vmatprep.mubr.bf16.mxu0 0
        %5687 = vmatmul.mubr.bf16.gmra.mrb[0].mxu0 %v5176
        %v5688 = vpop.f32.mrb[0].mxu0
        %v5689 = vadd.f32 %v5616, %v5688
        %v5690 = vpop.f32.mrb[0].mxu0
        %v5691 = vpop.f32.mrb[0].mxu0
        %v5692 = vadd.f32 %v5616, %v5691
        %v5693 = vpop.f32.mrb[0].mxu0
        %5694 = vmatprep.mubr.bf16.mxu0 0
        %5695 = vmatmul.mubr.bf16.gmra.mrb[0].mxu0 %v5179
        %v5696 = vpop.f32.mrb[0].mxu0
        %v5697 = vadd.f32 %v5616, %v5696
        %v5698 = vpop.f32.mrb[0].mxu0
        %v5699 = vpop.f32.mrb[0].mxu0
        %v5700 = vadd.f32 %v5616, %v5699
        %v5701 = vpop.f32.mrb[0].mxu0
        %5702 = vmatprep.mubr.bf16.mxu0 0
        %5703 = vmatmul.mubr.bf16.gmra.mrb[0].mxu0 %v5182
        %v5704 = vpop.f32.mrb[0].mxu0
        %v5705 = vadd.f32 %v5616, %v5704
        %v5706 = vpop.f32.mrb[0].mxu0
        %v5707 = vpop.f32.mrb[0].mxu0
        %v5708 = vadd.f32 %v5616, %v5707
        %v5709 = vpop.f32.mrb[0].mxu0
        %5710 = vmatprep.mubr.bf16.mxu0 0
        %5711 = vmatmul.mubr.bf16.gmra.mrb[0].mxu0 %v5185
        %v5712 = vpop.f32.mrb[0].mxu0
        %v5713 = vadd.f32 %v5616, %v5712
        %v5714 = vpop.f32.mrb[0].mxu0
        %v5715 = vpop.f32.mrb[0].mxu0
        %v5716 = vadd.f32 %v5616, %v5715
        %v5717 = vpop.f32.mrb[0].mxu0
        %5718 = vmatprep.mubr.bf16.mxu0 0
        %5719 = vmatmul.mubr.bf16.gmra.mrb[0].mxu0 %v5188
        %v5720 = vpop.f32.mrb[0].mxu0
        %v5721 = vadd.f32 %v5616, %v5720
        %v5722 = vpop.f32.mrb[0].mxu0
        %v5723 = vpop.f32.mrb[0].mxu0
        %v5724 = vadd.f32 %v5616, %v5723
        %v5725 = vpop.f32.mrb[0].mxu0
        %5726 = vdwg.mxu0
        %v5727 = vmul.f32 %v5665, %v5665
        %v5728 = vmul.f32 %v5668, %v5668
        %v5729 = vmul.f32 %v5673, %v5673
        %v5730 = vmul.f32 %v5676, %v5676
        %v5731 = vmul.f32 %v5681, %v5681
        %v5732 = vmul.f32 %v5684, %v5684
        %v5733 = vmul.f32 %v5689, %v5689
        %v5734 = vmul.f32 %v5692, %v5692
        %v5735 = vmul.f32 %v5697, %v5697
        %v5736 = vmul.f32 %v5700, %v5700
        %v5737 = vmul.f32 %v5705, %v5705
        %v5738 = vmul.f32 %v5708, %v5708
        %v5739 = vmul.f32 %v5713, %v5713
        %v5740 = vmul.f32 %v5716, %v5716
        %v5741 = vmul.f32 %v5721, %v5721
        %v5742 = vmul.f32 %v5724, %v5724
        %v5743 = vmul.f32 %v5665, %v5727
        %v5744 = vmul.f32 %v5668, %v5728
        %v5745 = vmul.f32 %v5673, %v5729
        %v5746 = vmul.f32 %v5676, %v5730
        %v5747 = vmul.f32 %v5681, %v5731
        %v5748 = vmul.f32 %v5684, %v5732
        %v5749 = vmul.f32 %v5689, %v5733
        %v5750 = vmul.f32 %v5692, %v5734
        %v5751 = vmul.f32 %v5697, %v5735
        %v5752 = vmul.f32 %v5700, %v5736
        %v5753 = vmul.f32 %v5705, %v5737
        %v5754 = vmul.f32 %v5708, %v5738
        %v5755 = vmul.f32 %v5713, %v5739
        %v5756 = vmul.f32 %v5716, %v5740
        %v5757 = vmul.f32 %v5721, %v5741
        %v5758 = vmul.f32 %v5724, %v5742
        %v5759 = vmul.f32 %v5743, 0.044715
        %v5760 = vmul.f32 %v5744, 0.044715
        %v5761 = vmul.f32 %v5745, 0.044715
        %v5762 = vmul.f32 %v5746, 0.044715
        %v5763 = vmul.f32 %v5747, 0.044715
        %v5764 = vmul.f32 %v5748, 0.044715
        %v5765 = vmul.f32 %v5749, 0.044715
        %v5766 = vmul.f32 %v5750, 0.044715
        %v5767 = vmul.f32 %v5751, 0.044715
        %v5768 = vmul.f32 %v5752, 0.044715
        %v5769 = vmul.f32 %v5753, 0.044715
        %v5770 = vmul.f32 %v5754, 0.044715
        %v5771 = vmul.f32 %v5755, 0.044715
        %v5772 = vmul.f32 %v5756, 0.044715
        %v5773 = vmul.f32 %v5757, 0.044715
        %v5774 = vmul.f32 %v5758, 0.044715
        %v5775 = vadd.f32 %v5665, %v5759
        %v5776 = vadd.f32 %v5668, %v5760
        %v5777 = vadd.f32 %v5673, %v5761
        %v5778 = vadd.f32 %v5676, %v5762
        %v5779 = vadd.f32 %v5681, %v5763
        %v5780 = vadd.f32 %v5684, %v5764
        %v5781 = vadd.f32 %v5689, %v5765
        %v5782 = vadd.f32 %v5692, %v5766
        %v5783 = vadd.f32 %v5697, %v5767
        %v5784 = vadd.f32 %v5700, %v5768
        %v5785 = vadd.f32 %v5705, %v5769
        %v5786 = vadd.f32 %v5708, %v5770
        %v5787 = vadd.f32 %v5713, %v5771
        %v5788 = vadd.f32 %v5716, %v5772
        %v5789 = vadd.f32 %v5721, %v5773
        %v5790 = vadd.f32 %v5724, %v5774
        %v5791 = vmul.f32 %v5775, 0.7978846
        %v5792 = vmul.f32 %v5776, 0.7978846
        %v5793 = vmul.f32 %v5777, 0.7978846
        %v5794 = vmul.f32 %v5778, 0.7978846
        %v5795 = vmul.f32 %v5779, 0.7978846
        %v5796 = vmul.f32 %v5780, 0.7978846
        %v5797 = vmul.f32 %v5781, 0.7978846
        %v5798 = vmul.f32 %v5782, 0.7978846
        %v5799 = vmul.f32 %v5783, 0.7978846
        %v5800 = vmul.f32 %v5784, 0.7978846
        %v5801 = vmul.f32 %v5785, 0.7978846
        %v5802 = vmul.f32 %v5786, 0.7978846
        %v5803 = vmul.f32 %v5787, 0.7978846
        %v5804 = vmul.f32 %v5788, 0.7978846
        %v5805 = vmul.f32 %v5789, 0.7978846
        %v5806 = vmul.f32 %v5790, 0.7978846
        %v5807 = vtanh.pop %v5791
        %v5808 = vtanh.pop %v5792
        %v5809 = vtanh.pop %v5793
        %v5810 = vtanh.pop %v5794
        %v5811 = vtanh.pop %v5795
        %v5812 = vtanh.pop %v5796
        %v5813 = vtanh.pop %v5797
        %v5814 = vtanh.pop %v5798
        %v5815 = vtanh.pop %v5799
        %v5816 = vtanh.pop %v5800
        %v5817 = vtanh.pop %v5801
        %v5818 = vtanh.pop %v5802
        %v5819 = vtanh.pop %v5803
        %v5820 = vtanh.pop %v5804
        %v5821 = vtanh.pop %v5805
        %v5822 = vtanh.pop %v5806
        %v5823 = vadd.f32 %v5807, 1.0
        %v5824 = vadd.f32 %v5808, 1.0
        %v5825 = vadd.f32 %v5809, 1.0
        %v5826 = vadd.f32 %v5810, 1.0
        %v5827 = vadd.f32 %v5811, 1.0
        %v5828 = vadd.f32 %v5812, 1.0
        %v5829 = vadd.f32 %v5813, 1.0
        %v5830 = vadd.f32 %v5814, 1.0
        %v5831 = vadd.f32 %v5815, 1.0
        %v5832 = vadd.f32 %v5816, 1.0
        %v5833 = vadd.f32 %v5817, 1.0
        %v5834 = vadd.f32 %v5818, 1.0
        %v5835 = vadd.f32 %v5819, 1.0
        %v5836 = vadd.f32 %v5820, 1.0
        %v5837 = vadd.f32 %v5821, 1.0
        %v5838 = vadd.f32 %v5822, 1.0
        %v5839 = vmul.f32 %v5823, 0.5
        %v5840 = vmul.f32 %v5824, 0.5
        %v5841 = vmul.f32 %v5825, 0.5
        %v5842 = vmul.f32 %v5826, 0.5
        %v5843 = vmul.f32 %v5827, 0.5
        %v5844 = vmul.f32 %v5828, 0.5
        %v5845 = vmul.f32 %v5829, 0.5
        %v5846 = vmul.f32 %v5830, 0.5
        %v5847 = vmul.f32 %v5831, 0.5
        %v5848 = vmul.f32 %v5832, 0.5
        %v5849 = vmul.f32 %v5833, 0.5
        %v5850 = vmul.f32 %v5834, 0.5
        %v5851 = vmul.f32 %v5835, 0.5
        %v5852 = vmul.f32 %v5836, 0.5
        %v5853 = vmul.f32 %v5837, 0.5
        %v5854 = vmul.f32 %v5838, 0.5
        %v5855 = vmul.f32 %v5665, %v5839
        %v5856 = vmul.f32 %v5668, %v5840
        %v5857 = vmul.f32 %v5673, %v5841
        %v5858 = vmul.f32 %v5676, %v5842
        %v5859 = vmul.f32 %v5681, %v5843
        %v5860 = vmul.f32 %v5684, %v5844
        %v5861 = vmul.f32 %v5689, %v5845
        %v5862 = vmul.f32 %v5692, %v5846
        %v5863 = vmul.f32 %v5697, %v5847
        %v5864 = vmul.f32 %v5700, %v5848
        %v5865 = vmul.f32 %v5705, %v5849
        %v5866 = vmul.f32 %v5708, %v5850
        %v5867 = vmul.f32 %v5713, %v5851
        %v5868 = vmul.f32 %v5716, %v5852
        %v5869 = vmul.f32 %v5721, %v5853
        %v5870 = vmul.f32 %v5724, %v5854
        %v5871 = vld [vmem:[%s1186] sm:$0xf]
        %v5872 = vpack.c.bf16 %v5856, %v5855
        %v5873 = vpack.c.bf16 %v5858, %v5857
        %v5874 = vpack.c.bf16 %v5860, %v5859
        %v5875 = vpack.c.bf16 %v5862, %v5861
        %v5876 = vpack.c.bf16 %v5864, %v5863
        %v5877 = vpack.c.bf16 %v5866, %v5865
        %v5878 = vpack.c.bf16 %v5868, %v5867
        %v5879 = vpack.c.bf16 %v5870, %v5869
        %v5880 = vld [vmem:[%s1025] sm:$0x1]
        %v5882 = vlaneseq
        %v5883 = vshrl.u32 %v5882, 7
        %v5884 = vsub.s32 0, %v5883
        %v5885 = vrot.slane %v5880, %v5884
        %v5888 = vsel %vm2220, %v5872, 0
        %v5891 = vsel %vm2220, %v5873, 0
        %v5894 = vsel %vm2220, %v5874, 0
        %v5897 = vsel %vm2220, %v5875, 0
        %v5900 = vsel %vm2220, %v5876, 0
        %v5903 = vsel %vm2220, %v5877, 0
        %v5906 = vsel %vm2220, %v5878, 0
        %v5909 = vsel %vm2220, %v5879, 0
        %vm5911 = vcmask 1043456
        %v5913 = vsel %vm5911, %v5871, 0
        %5915 = vmatprep.subr.bf16.mxu0 0
        %5916 = vmatpush1.bf16.msra.mxu0 %v5913
        %5917 = vmatprep.subr.bf16.mxu0 0
        %5918 = vmatpush1.bf16.msra.mxu0 0
        %5919 = vmatprep.subr.bf16.mxu0 0
        %5920 = vmatpush1.bf16.msra.mxu0 0
        %5921 = vmatprep.subr.bf16.mxu0 0
        %5922 = vmatpush1.bf16.msra.mxu0 0
        %5923 = vmatprep.subr.bf16.mxu0 0
        %5924 = vmatpush1.bf16.msra.mxu0 0
        %5925 = vmatprep.subr.bf16.mxu0 0
        %5926 = vmatpush1.bf16.msra.mxu0 0
        %5927 = vmatprep.subr.bf16.mxu0 0
        %5928 = vmatpush1.bf16.msra.mxu0 0
        %5929 = vmatprep.subr.bf16.mxu0 0
        %5930 = vmatpush1.bf16.msra.mxu0 0
        %5931 = vmatprep.subr.bf16.mxu0 0
        %5932 = vmatpush1.bf16.msra.mxu0 0
        %5933 = vmatprep.subr.bf16.mxu0 0
        %5934 = vmatpush1.bf16.msra.mxu0 0
        %5935 = vmatprep.subr.bf16.mxu0 0
        %5936 = vmatpush1.bf16.msra.mxu0 0
        %5937 = vmatprep.subr.bf16.mxu0 0
        %5938 = vmatpush1.bf16.msra.mxu0 0
        %5939 = vmatprep.subr.bf16.mxu0 0
        %5940 = vmatpush1.bf16.msra.mxu0 0
        %5941 = vmatprep.subr.bf16.mxu0 0
        %5942 = vmatpush1.bf16.msra.mxu0 0
        %5943 = vmatprep.subr.bf16.mxu0 0
        %5944 = vmatpush1.bf16.msra.mxu0 0
        %5945 = vmatprep.subr.bf16.mxu0 0
        %5946 = vmatpush1.bf16.msra.mxu0 0
        %5947 = vmatprep.mubr.bf16.mxu0 0
        %5948 = vmatmul.mubr.bf16.gmra.mrb[0].mxu0 %v5888
        %v5949 = vpop.f32.mrb[0].mxu0
        %v5950 = vadd.f32 %v5885, %v5949
        %v5951 = vpop.f32.mrb[0].mxu0
        %v5952 = vpop.f32.mrb[0].mxu0
        %v5953 = vadd.f32 %v5885, %v5952
        %v5954 = vpop.f32.mrb[0].mxu0
        %5955 = vmatprep.mubr.bf16.mxu0 0
        %5956 = vmatmul.mubr.bf16.gmra.mrb[0].mxu0 %v5891
        %v5957 = vpop.f32.mrb[0].mxu0
        %v5958 = vadd.f32 %v5885, %v5957
        %v5959 = vpop.f32.mrb[0].mxu0
        %v5960 = vpop.f32.mrb[0].mxu0
        %v5961 = vadd.f32 %v5885, %v5960
        %v5962 = vpop.f32.mrb[0].mxu0
        %5963 = vmatprep.mubr.bf16.mxu0 0
        %5964 = vmatmul.mubr.bf16.gmra.mrb[0].mxu0 %v5894
        %v5965 = vpop.f32.mrb[0].mxu0
        %v5966 = vadd.f32 %v5885, %v5965
        %v5967 = vpop.f32.mrb[0].mxu0
        %v5968 = vpop.f32.mrb[0].mxu0
        %v5969 = vadd.f32 %v5885, %v5968
        %v5970 = vpop.f32.mrb[0].mxu0
        %5971 = vmatprep.mubr.bf16.mxu0 0
        %5972 = vmatmul.mubr.bf16.gmra.mrb[0].mxu0 %v5897
        %v5973 = vpop.f32.mrb[0].mxu0
        %v5974 = vadd.f32 %v5885, %v5973
        %v5975 = vpop.f32.mrb[0].mxu0
        %v5976 = vpop.f32.mrb[0].mxu0
        %v5977 = vadd.f32 %v5885, %v5976
        %v5978 = vpop.f32.mrb[0].mxu0
        %5979 = vmatprep.mubr.bf16.mxu0 0
        %5980 = vmatmul.mubr.bf16.gmra.mrb[0].mxu0 %v5900
        %v5981 = vpop.f32.mrb[0].mxu0
        %v5982 = vadd.f32 %v5885, %v5981
        %v5983 = vpop.f32.mrb[0].mxu0
        %v5984 = vpop.f32.mrb[0].mxu0
        %v5985 = vadd.f32 %v5885, %v5984
        %v5986 = vpop.f32.mrb[0].mxu0
        %5987 = vmatprep.mubr.bf16.mxu0 0
        %5988 = vmatmul.mubr.bf16.gmra.mrb[0].mxu0 %v5903
        %v5989 = vpop.f32.mrb[0].mxu0
        %v5990 = vadd.f32 %v5885, %v5989
        %v5991 = vpop.f32.mrb[0].mxu0
        %v5992 = vpop.f32.mrb[0].mxu0
        %v5993 = vadd.f32 %v5885, %v5992
        %v5994 = vpop.f32.mrb[0].mxu0
        %5995 = vmatprep.mubr.bf16.mxu0 0
        %5996 = vmatmul.mubr.bf16.gmra.mrb[0].mxu0 %v5906
        %v5997 = vpop.f32.mrb[0].mxu0
        %v5998 = vadd.f32 %v5885, %v5997
        %v5999 = vpop.f32.mrb[0].mxu0
        %v6000 = vpop.f32.mrb[0].mxu0
        %v6001 = vadd.f32 %v5885, %v6000
        %v6002 = vpop.f32.mrb[0].mxu0
        %6003 = vmatprep.mubr.bf16.mxu0 0
        %6004 = vmatmul.mubr.bf16.gmra.mrb[0].mxu0 %v5909
        %v6005 = vpop.f32.mrb[0].mxu0
        %v6006 = vadd.f32 %v5885, %v6005
        %v6007 = vpop.f32.mrb[0].mxu0
        %v6008 = vpop.f32.mrb[0].mxu0
        %v6009 = vadd.f32 %v5885, %v6008
        %v6010 = vpop.f32.mrb[0].mxu0
        %6011 = vdwg.mxu0
        %s6012 = sadd.s32 %s42, 1
        %s6013 = sld [smem:[#allocation4 + %s6012]]
        %v6014 = vadd.f32 %v4968, %v5545
        %v6015 = vadd.f32 %v4969, %v5548
        %v6016 = vadd.f32 %v4970, %v5553
        %v6017 = vadd.f32 %v4971, %v5556
        %v6018 = vadd.f32 %v4972, %v5561
        %v6019 = vadd.f32 %v4973, %v5564
        %v6020 = vadd.f32 %v4974, %v5569
        %v6021 = vadd.f32 %v4975, %v5572
        %v6022 = vadd.f32 %v4976, %v5577
        %v6023 = vadd.f32 %v4977, %v5580
        %v6024 = vadd.f32 %v4978, %v5585
        %v6025 = vadd.f32 %v4979, %v5588
        %v6026 = vadd.f32 %v4980, %v5593
        %v6027 = vadd.f32 %v4981, %v5596
        %v6028 = vadd.f32 %v4982, %v5601
        %v6029 = vadd.f32 %v4983, %v5604
        %v6030 = vstv %s6013
        %v6031 = vmul.f32 %v6030, %v5950
        %v6032 = vmul.f32 %v6030, %v5953
        %v6033 = vmul.f32 %v6030, %v5958
        %v6034 = vmul.f32 %v6030, %v5961
        %v6035 = vmul.f32 %v6030, %v5966
        %v6036 = vmul.f32 %v6030, %v5969
        %v6037 = vmul.f32 %v6030, %v5974
        %v6038 = vmul.f32 %v6030, %v5977
        %v6039 = vmul.f32 %v6030, %v5982
        %v6040 = vmul.f32 %v6030, %v5985
        %v6041 = vmul.f32 %v6030, %v5990
        %v6042 = vmul.f32 %v6030, %v5993
        %v6043 = vmul.f32 %v6030, %v5998
        %v6044 = vmul.f32 %v6030, %v6001
        %v6045 = vmul.f32 %v6030, %v6006
        %v6046 = vmul.f32 %v6030, %v6009
        %v6047 = vadd.f32 %v6014, %v6031
        %v6048 = vadd.f32 %v6015, %v6032
        %v6049 = vadd.f32 %v6016, %v6033
        %v6050 = vadd.f32 %v6017, %v6034
        %v6051 = vadd.f32 %v6018, %v6035
        %v6052 = vadd.f32 %v6019, %v6036
        %v6053 = vadd.f32 %v6020, %v6037
        %v6054 = vadd.f32 %v6021, %v6038
        %v6055 = vadd.f32 %v6022, %v6039
        %v6056 = vadd.f32 %v6023, %v6040
        %v6057 = vadd.f32 %v6024, %v6041
        %v6058 = vadd.f32 %v6025, %v6042
        %v6059 = vadd.f32 %v6026, %v6043
        %v6060 = vadd.f32 %v6027, %v6044
        %v6061 = vadd.f32 %v6028, %v6045
        %v6062 = vadd.f32 %v6029, %v6046
        %6063 = vst.msk [vmem:[#allocation2] sm:$0xff] %vm1896, %v6047
        %6064 = vst.msk [vmem:[#allocation2 + $0x8] sm:$0xff] %vm1896, %v6048
        %6065 = vst.msk [vmem:[#allocation2 + $0x10] sm:$0xff] %vm1896, %v6049
        %6066 = vst.msk [vmem:[#allocation2 + $0x18] sm:$0xff] %vm1896, %v6050
        %6067 = vst.msk [vmem:[#allocation2 + $0x20] sm:$0xff] %vm1896, %v6051
        %6068 = vst.msk [vmem:[#allocation2 + $0x28] sm:$0xff] %vm1896, %v6052
        %6069 = vst.msk [vmem:[#allocation2 + $0x30] sm:$0xff] %vm1896, %v6053
        %6070 = vst.msk [vmem:[#allocation2 + $0x38] sm:$0xff] %vm1896, %v6054
        %6071 = vst.msk [vmem:[#allocation2 + $0x40] sm:$0xff] %vm1896, %v6055
        %6072 = vst.msk [vmem:[#allocation2 + $0x48] sm:$0xff] %vm1896, %v6056
        %6073 = vst.msk [vmem:[#allocation2 + $0x50] sm:$0xff] %vm1896, %v6057
        %6074 = vst.msk [vmem:[#allocation2 + $0x58] sm:$0xff] %vm1896, %v6058
        %6075 = vst.msk [vmem:[#allocation2 + $0x60] sm:$0xff] %vm1896, %v6059
        %6076 = vst.msk [vmem:[#allocation2 + $0x68] sm:$0xff] %vm1896, %v6060
        %6077 = vst.msk [vmem:[#allocation2 + $0x70] sm:$0xff] %vm1896, %v6061
        %6078 = vst.msk [vmem:[#allocation2 + $0x78] sm:$0xff] %vm1896, %v6062
        %p6079 = scmp.eq.s32.totalorder %s42, 3
        // Predicated region
        $region173: #{wipo_forward.1} parent=115 // pred_check
          %p6080 = pneg %p6079
        $region174: #{wipo_forward.1} parent=115 // pred_check_branch
          %6082 = sbr.rel (%p6080) target = $region176
        $region175: #{wipo_forward.1} parent=115 // pred_region
          %v6083 = vld [vmem:[#allocation7] sm:$0x1]
          %v6084 = vmul.f32 %v6047, %v6047
          %v6085 = vmul.f32 %v6048, %v6048
          %v6086 = vmul.f32 %v6049, %v6049
          %v6087 = vmul.f32 %v6050, %v6050
          %v6088 = vmul.f32 %v6051, %v6051
          %v6089 = vmul.f32 %v6052, %v6052
          %v6090 = vmul.f32 %v6053, %v6053
          %v6091 = vmul.f32 %v6054, %v6054
          %v6092 = vmul.f32 %v6055, %v6055
          %v6093 = vmul.f32 %v6056, %v6056
          %v6094 = vmul.f32 %v6057, %v6057
          %v6095 = vmul.f32 %v6058, %v6058
          %v6096 = vmul.f32 %v6059, %v6059
          %v6097 = vmul.f32 %v6060, %v6060
          %v6098 = vmul.f32 %v6061, %v6061
          %v6099 = vmul.f32 %v6062, %v6062
          %v6100 = vsel %vm1896, %v6084, 0.0
          %6101 = vadd.xlane.f32.xlu0 %v6100
          %v6102 = vpop.xlane.xlu0 %6101
          %v6103 = vsel %vm1896, %v6085, 0.0
          %6104 = vadd.xlane.f32.xlu0 %v6103
          %v6105 = vpop.xlane.xlu0 %6104
          %v6106 = vsel %vm1896, %v6086, 0.0
          %6107 = vadd.xlane.f32.xlu0 %v6106
          %v6108 = vpop.xlane.xlu0 %6107
          %v6109 = vsel %vm1896, %v6087, 0.0
          %6110 = vadd.xlane.f32.xlu0 %v6109
          %v6111 = vpop.xlane.xlu0 %6110
          %v6112 = vsel %vm1896, %v6088, 0.0
          %6113 = vadd.xlane.f32.xlu0 %v6112
          %v6114 = vpop.xlane.xlu0 %6113
          %v6115 = vsel %vm1896, %v6089, 0.0
          %6116 = vadd.xlane.f32.xlu0 %v6115
          %v6117 = vpop.xlane.xlu0 %6116
          %v6118 = vsel %vm1896, %v6090, 0.0
          %6119 = vadd.xlane.f32.xlu0 %v6118
          %v6120 = vpop.xlane.xlu0 %6119
          %v6121 = vsel %vm1896, %v6091, 0.0
          %6122 = vadd.xlane.f32.xlu0 %v6121
          %v6123 = vpop.xlane.xlu0 %6122
          %v6124 = vsel %vm1896, %v6092, 0.0
          %6125 = vadd.xlane.f32.xlu0 %v6124
          %v6126 = vpop.xlane.xlu0 %6125
          %v6127 = vsel %vm1896, %v6093, 0.0
          %6128 = vadd.xlane.f32.xlu0 %v6127
          %v6129 = vpop.xlane.xlu0 %6128
          %v6130 = vsel %vm1896, %v6094, 0.0
          %6131 = vadd.xlane.f32.xlu0 %v6130
          %v6132 = vpop.xlane.xlu0 %6131
          %v6133 = vsel %vm1896, %v6095, 0.0
          %6134 = vadd.xlane.f32.xlu0 %v6133
          %v6135 = vpop.xlane.xlu0 %6134
          %v6136 = vsel %vm1896, %v6096, 0.0
          %6137 = vadd.xlane.f32.xlu0 %v6136
          %v6138 = vpop.xlane.xlu0 %6137
          %v6139 = vsel %vm1896, %v6097, 0.0
          %6140 = vadd.xlane.f32.xlu0 %v6139
          %v6141 = vpop.xlane.xlu0 %6140
          %v6142 = vsel %vm1896, %v6098, 0.0
          %6143 = vadd.xlane.f32.xlu0 %v6142
          %v6144 = vpop.xlane.xlu0 %6143
          %v6145 = vsel %vm1896, %v6099, 0.0
          %6146 = vadd.xlane.f32.xlu0 %v6145
          %v6147 = vpop.xlane.xlu0 %6146
          %v6148 = vmul.f32 %v6102, %v1945
          %v6149 = vmul.f32 %v6105, %v1945
          %v6150 = vmul.f32 %v6108, %v1945
          %v6151 = vmul.f32 %v6111, %v1945
          %v6152 = vmul.f32 %v6114, %v1945
          %v6153 = vmul.f32 %v6117, %v1945
          %v6154 = vmul.f32 %v6120, %v1945
          %v6155 = vmul.f32 %v6123, %v1945
          %v6156 = vmul.f32 %v6126, %v1945
          %v6157 = vmul.f32 %v6129, %v1945
          %v6158 = vmul.f32 %v6132, %v1945
          %v6159 = vmul.f32 %v6135, %v1945
          %v6160 = vmul.f32 %v6138, %v1945
          %v6161 = vmul.f32 %v6141, %v1945
          %v6162 = vmul.f32 %v6144, %v1945
          %v6163 = vmul.f32 %v6147, %v1945
          %v6164 = vadd.f32 %v6148, 1.1920929e-07
          %v6165 = vadd.f32 %v6149, 1.1920929e-07
          %v6166 = vadd.f32 %v6150, 1.1920929e-07
          %v6167 = vadd.f32 %v6151, 1.1920929e-07
          %v6168 = vadd.f32 %v6152, 1.1920929e-07
          %v6169 = vadd.f32 %v6153, 1.1920929e-07
          %v6170 = vadd.f32 %v6154, 1.1920929e-07
          %v6171 = vadd.f32 %v6155, 1.1920929e-07
          %v6172 = vadd.f32 %v6156, 1.1920929e-07
          %v6173 = vadd.f32 %v6157, 1.1920929e-07
          %v6174 = vadd.f32 %v6158, 1.1920929e-07
          %v6175 = vadd.f32 %v6159, 1.1920929e-07
          %v6176 = vadd.f32 %v6160, 1.1920929e-07
          %v6177 = vadd.f32 %v6161, 1.1920929e-07
          %v6178 = vadd.f32 %v6162, 1.1920929e-07
          %v6179 = vadd.f32 %v6163, 1.1920929e-07
          %v6180 = vrsqrt.pop %v6164
          %v6181 = vrsqrt.pop %v6165
          %v6182 = vrsqrt.pop %v6166
          %v6183 = vrsqrt.pop %v6167
          %v6184 = vrsqrt.pop %v6168
          %v6185 = vrsqrt.pop %v6169
          %v6186 = vrsqrt.pop %v6170
          %v6187 = vrsqrt.pop %v6171
          %v6188 = vrsqrt.pop %v6172
          %v6189 = vrsqrt.pop %v6173
          %v6190 = vrsqrt.pop %v6174
          %v6191 = vrsqrt.pop %v6175
          %v6192 = vrsqrt.pop %v6176
          %v6193 = vrsqrt.pop %v6177
          %v6194 = vrsqrt.pop %v6178
          %v6195 = vrsqrt.pop %v6179
          %v6196 = vmul.f32 %v6047, %v6180
          %v6197 = vmul.f32 %v6048, %v6181
          %v6198 = vmul.f32 %v6049, %v6182
          %v6199 = vmul.f32 %v6050, %v6183
          %v6200 = vmul.f32 %v6051, %v6184
          %v6201 = vmul.f32 %v6052, %v6185
          %v6202 = vmul.f32 %v6053, %v6186
          %v6203 = vmul.f32 %v6054, %v6187
          %v6204 = vmul.f32 %v6055, %v6188
          %v6205 = vmul.f32 %v6056, %v6189
          %v6206 = vmul.f32 %v6057, %v6190
          %v6207 = vmul.f32 %v6058, %v6191
          %v6208 = vmul.f32 %v6059, %v6192
          %v6209 = vmul.f32 %v6060, %v6193
          %v6210 = vmul.f32 %v6061, %v6194
          %v6211 = vmul.f32 %v6062, %v6195
          %v6213 = vlaneseq
          %v6214 = vshrl.u32 %v6213, 7
          %v6215 = vsub.s32 0, %v6214
          %v6216 = vrot.slane %v6083, %v6215
          %v6218 = vmul.f32 %v6196, %v6216
          %v6219 = vmul.f32 %v6197, %v6216
          %v6220 = vmul.f32 %v6198, %v6216
          %v6221 = vmul.f32 %v6199, %v6216
          %v6222 = vmul.f32 %v6200, %v6216
          %v6223 = vmul.f32 %v6201, %v6216
          %v6224 = vmul.f32 %v6202, %v6216
          %v6225 = vmul.f32 %v6203, %v6216
          %v6226 = vmul.f32 %v6204, %v6216
          %v6227 = vmul.f32 %v6205, %v6216
          %v6228 = vmul.f32 %v6206, %v6216
          %v6229 = vmul.f32 %v6207, %v6216
          %v6230 = vmul.f32 %v6208, %v6216
          %v6231 = vmul.f32 %v6209, %v6216
          %v6232 = vmul.f32 %v6210, %v6216
          %v6233 = vmul.f32 %v6211, %v6216
          %6234 = vst.msk [vmem:[%s24] sm:$0xff] %vm1896, %v6218
          %6235 = vst.msk [vmem:[%s24 + $0x8] sm:$0xff] %vm1896, %v6219
          %6236 = vst.msk [vmem:[%s24 + $0x10] sm:$0xff] %vm1896, %v6220
          %6237 = vst.msk [vmem:[%s24 + $0x18] sm:$0xff] %vm1896, %v6221
          %6238 = vst.msk [vmem:[%s24 + $0x20] sm:$0xff] %vm1896, %v6222
          %6239 = vst.msk [vmem:[%s24 + $0x28] sm:$0xff] %vm1896, %v6223
          %6240 = vst.msk [vmem:[%s24 + $0x30] sm:$0xff] %vm1896, %v6224
          %6241 = vst.msk [vmem:[%s24 + $0x38] sm:$0xff] %vm1896, %v6225
          %6242 = vst.msk [vmem:[%s24 + $0x40] sm:$0xff] %vm1896, %v6226
          %6243 = vst.msk [vmem:[%s24 + $0x48] sm:$0xff] %vm1896, %v6227
          %6244 = vst.msk [vmem:[%s24 + $0x50] sm:$0xff] %vm1896, %v6228
          %6245 = vst.msk [vmem:[%s24 + $0x58] sm:$0xff] %vm1896, %v6229
          %6246 = vst.msk [vmem:[%s24 + $0x60] sm:$0xff] %vm1896, %v6230
          %6247 = vst.msk [vmem:[%s24 + $0x68] sm:$0xff] %vm1896, %v6231
          %6248 = vst.msk [vmem:[%s24 + $0x70] sm:$0xff] %vm1896, %v6232
          %6249 = vst.msk [vmem:[%s24 + $0x78] sm:$0xff] %vm1896, %v6233
        $region176: #{wipo_forward.1} parent=115 // pred_fallthru
          _
        // Predicated region
        $region177: #{wipo_forward.1} parent=115 // pred_check
          %p6250 = pneg %p634
        $region178: #{wipo_forward.1} parent=115 // pred_check_branch
          %6252 = sbr.rel (%p6250) target = $region180
        $region179: #{wipo_forward.1} parent=115 // pred_region
          _
        $region180: #{wipo_forward.1} parent=115 // pred_fallthru
          _
        // Predicated region
        $region181: #{wipo_forward.1} parent=115 // pred_check
          %p6253 = pneg %p655
        $region182: #{wipo_forward.1} parent=115 // pred_check_branch
          %6255 = sbr.rel (%p6253) target = $region184
        $region183: #{wipo_forward.1} parent=115 // pred_region
          _
        $region184: #{wipo_forward.1} parent=115 // pred_fallthru
          _
        // Predicated region
        $region185: #{wipo_forward.1} parent=115 // pred_check
          %p6256 = pneg %p676
        $region186: #{wipo_forward.1} parent=115 // pred_check_branch
          %6258 = sbr.rel (%p6256) target = $region188
        $region187: #{wipo_forward.1} parent=115 // pred_region
          _
        $region188: #{wipo_forward.1} parent=115 // pred_fallthru
          _
        // Predicated region
        $region189: #{wipo_forward.1} parent=115 // pred_check
          %p6259 = pneg %p634
        $region190: #{wipo_forward.1} parent=115 // pred_check_branch
          %6261 = sbr.rel (%p6259) target = $region192
        $region191: #{wipo_forward.1} parent=115 // pred_region
          _
        $region192: #{wipo_forward.1} parent=115 // pred_fallthru
          _
        // Predicated region
        $region193: #{wipo_forward.1} parent=115 // pred_check
          %p6262 = pneg %p655
        $region194: #{wipo_forward.1} parent=115 // pred_check_branch
          %6264 = sbr.rel (%p6262) target = $region196
        $region195: #{wipo_forward.1} parent=115 // pred_region
          _
        $region196: #{wipo_forward.1} parent=115 // pred_fallthru
          _
        // Predicated region
        $region197: #{wipo_forward.1} parent=115 // pred_check
          %p6265 = pneg %p676
        $region198: #{wipo_forward.1} parent=115 // pred_check_branch
          %6267 = sbr.rel (%p6265) target = $region200
        $region199: #{wipo_forward.1} parent=115 // pred_region
          _
        $region200: #{wipo_forward.1} parent=115 // pred_fallthru
          _
      $region116: #{wipo_forward.1} parent=5 // pred_fallthru
        _
      %p6268 = scmp.le.s32.totalorder 2, %s37
      // Predicated region
      $region201: #{wipo_forward.1} parent=5 // pred_check
        %p6269 = pneg %p6268
      $region202: #{wipo_forward.1} parent=5 // pred_check_branch
        %6271 = sbr.rel (%p6269) target = $region204
      $region203: #{wipo_forward.1} parent=5 // pred_region
        %s6272 = ssub.s32 %s37, 2
      $region204: #{wipo_forward.1} parent=5 // pred_fallthru
        _
    $region6: #{wipo_forward.1} parent=1 // loop_footer
      %s41 = sadd.s32 1, %s37
    $region7: #{wipo_forward.1} parent=1 // loop_footer_branch
      %36 = sbr.rel target = $region3
    $region8: #{wipo_forward.1} parent=1 // loop_exit
      _
    %6273 = vsyncpa [#allocation5], 1
    %s6274 = scalar_lea.sflag [#allocation5], 1
    %6275 = vsyncpa %s6274, 1
    %6276 = vsyncpa [#allocation9], 1
    %6277 = vsyncpa [#allocation12], 1
    %6278 = vsyncpa [#allocation6], 1
    %s6279 = scalar_lea.sflag [#allocation6], 1
    %6280 = vsyncpa %s6279, 1

</llo_original>
